<compile_context>
chip_gen: v7x
topology: tpu7x:2x2x1
jax: 0.10.0
libtpu: 0.0.40
codegen_flags: <defaults>
</compile_context>

<pallas_src>
import numpy as np
import jax
import jax.numpy as jnp
from jax.experimental import pallas as pl
from jax.experimental.pallas import tpu as pltpu

# --- synthetic EfficientNet configuration (mirrors the PyTorch module wiring) ---
IN_CH = 4            # n_channels
STEM_OUT = 16        # round_filters(32, ...) scaled down
B1_CH = 16           # block 1: expand_ratio=1, in=out=16, k=3, s=1, se=0.25
B2_EXP = 96          # block 2: expand_ratio=6 on 16 input filters
B2_OUT = 24
HEAD_OUT = 64        # round_filters(1280, ...) scaled down
NUM_CLASSES = 10
BN_EPS = 1e-3

CPAD = 128           # every channel axis is zero-padded to a full 128-lane group
H_IN = W_IN = 16     # input spatial resolution
H1 = W1 = 8          # after stride-2 stem (block 1 keeps this resolution)
H2 = W2 = 4          # after stride-2 depthwise conv in block 2
HW_IN, HW1, HW2 = H_IN * W_IN, H1 * W1, H2 * W2

# Row indices into the packed (NUM_VECS, 128) per-channel vector table.
(V_STEM_S, V_STEM_B,
 V_B1_BN1_S, V_B1_BN1_B, V_B1_SER_B, V_B1_SEE_B, V_B1_BN2_S, V_B1_BN2_B,
 V_B2_BN0_S, V_B2_BN0_B, V_B2_BN1_S, V_B2_BN1_B, V_B2_SER_B, V_B2_SEE_B,
 V_B2_BN2_S, V_B2_BN2_B, V_HEAD_S, V_HEAD_B, V_FC_B, NUM_VECS) = range(20)

# Indices into the packed (NUM_MATS, 128, 128) 1x1-conv / fc weight table.
(M_B1_SER, M_B1_SEE, M_B1_PROJ, M_B2_EXP, M_B2_SER, M_B2_SEE, M_B2_PROJ,
 M_HEAD, M_FC, NUM_MATS) = range(10)


# --------------------------------------------------------------------------- #
# Constant gather matrices: TF-"SAME" im2col expressed as 0/1 matmuls so the
# patch extraction happens on the MXU inside the kernel (no HBM im2col slab).
# --------------------------------------------------------------------------- #
def _conv_gather_mats(H, W, k, s):
    """G[t] @ x_flat gives the (Ho*Wo, C) patch seen by kernel tap t at every
    output position, with zero rows where the tap falls in the padding."""
    Ho, Wo = -(-H // s), -(-W // s)
    ph = max((Ho - 1) * s + k - H, 0)
    pw = max((Wo - 1) * s + k - W, 0)
    pt, plft = ph // 2, pw // 2            # TF-SAME: smaller pad on top/left
    g = np.zeros((k * k, Ho * Wo, H * W), np.float32)
    t = 0
    for ky in range(k):
        for kx in range(k):
            for a in range(Ho):
                for b in range(Wo):
                    ih, iw = a * s + ky - pt, b * s + kx - plft
                    if 0 <= ih < H and 0 <= iw < W:
                        g[t, a * Wo + b, ih * W + iw] = 1.0
            t += 1
    return jnp.asarray(g)


# --------------------------------------------------------------------------- #
# Fused whole-network kernel (one grid step = one batch sample).
# --------------------------------------------------------------------------- #
def _effnet_kernel(x_ref, gstem_ref, gdw1_ref, gdw2_ref, stemw_ref, dww_ref,
                   mats_ref, vecs_ref, out_ref):
    f32 = jnp.float32

    def vec(i):                                    # (1, CPAD) broadcastable row
        return vecs_ref[pl.ds(i, 1), :]

    def dw_w(i):                                   # (1, CPAD) depthwise tap weight
        return dww_ref[pl.ds(i, 1), :]

    def swish(v):
        return v * jax.nn.sigmoid(v)

    def mm(a, b):
        return jnp.dot(a, b, preferred_element_type=f32)

    x = x_ref[0]                                   # (HW_IN, CPAD) flattened 16x16

    # ---- stem: 3x3 stride-2 'SAME' conv (in-kernel im2col) + BN + swish ----
    acc = mm(mm(gstem_ref[0], x), stemw_ref[0])
    for t in range(1, 9):
        acc = acc + mm(mm(gstem_ref[t], x), stemw_ref[t])
    h = swish(acc * vec(V_STEM_S) + vec(V_STEM_B))            # (HW1, CPAD) 8x8x16

    # ---- MBConv block 1: expand_ratio=1, k=3, s=1, SE 0.25, identity skip ----
    blk_in = h
    acc = mm(gdw1_ref[0], blk_in) * dw_w(0)                   # depthwise conv
    for t in range(1, 9):
        acc = acc + mm(gdw1_ref[t], blk_in) * dw_w(t)
    hdw = swish(acc * vec(V_B1_BN1_S) + vec(V_B1_BN1_B))      # (HW1, CPAD)
    pooled = jnp.sum(hdw, axis=0, keepdims=True) * (1.0 / HW1)
    sq = swish(mm(pooled, mats_ref[M_B1_SER]) + vec(V_B1_SER_B))
    ex = mm(sq, mats_ref[M_B1_SEE]) + vec(V_B1_SEE_B)
    gated = hdw * jax.nn.sigmoid(ex)                          # SE gate
    proj = mm(gated, mats_ref[M_B1_PROJ]) * vec(V_B1_BN2_S) + vec(V_B1_BN2_B)
    h = proj + blk_in                                         # identity skip
    # TODO(synk): drop_connect is identity in eval mode; training path not implemented.

    # ---- MBConv block 2: expand_ratio=6, k=3, s=2, SE 0.25, no skip ----
    hexp = swish(mm(h, mats_ref[M_B2_EXP]) * vec(V_B2_BN0_S) + vec(V_B2_BN0_B))
    acc = mm(gdw2_ref[0], hexp) * dw_w(9)                     # strided depthwise conv
    for t in range(1, 9):
        acc = acc + mm(gdw2_ref[t], hexp) * dw_w(9 + t)
    hdw = swish(acc * vec(V_B2_BN1_S) + vec(V_B2_BN1_B))      # (HW2, CPAD) 4x4x96
    pooled = jnp.sum(hdw, axis=0, keepdims=True) * (1.0 / HW2)
    sq = swish(mm(pooled, mats_ref[M_B2_SER]) + vec(V_B2_SER_B))
    ex = mm(sq, mats_ref[M_B2_SEE]) + vec(V_B2_SEE_B)
    gated = hdw * jax.nn.sigmoid(ex)
    h = mm(gated, mats_ref[M_B2_PROJ]) * vec(V_B2_BN2_S) + vec(V_B2_BN2_B)

    # ---- head 1x1 conv + BN + swish, global average pool, fc ----
    h = swish(mm(h, mats_ref[M_HEAD]) * vec(V_HEAD_S) + vec(V_HEAD_B))
    pooled = jnp.sum(h, axis=0, keepdims=True) * (1.0 / HW2)
    # TODO(synk): nn.Dropout is identity in eval mode; training dropout not implemented.
    logits = mm(pooled, mats_ref[M_FC]) + vec(V_FC_B)         # (1, CPAD)

    # lane-dense, sublane-aligned (8, 128) store; wrapper reads row 0.
    out_ref[0] = jnp.broadcast_to(logits, (8, CPAD))


# --------------------------------------------------------------------------- #
# Host wrapper: layout plumbing only (NCHW -> flattened NHWC, pad lanes).
# --------------------------------------------------------------------------- #
def efficientnet_forward(x_nchw, params):
    x = jnp.transpose(x_nchw, (0, 2, 3, 1)).astype(jnp.float32)     # NCHW -> NHWC
    n, h, w, cin = x.shape
    assert (h, w, cin) == (H_IN, W_IN, IN_CH)
    x_flat = jnp.pad(x.reshape(n, h * w, cin),
                     ((0, 0), (0, 0), (0, CPAD - cin)))             # (n, HW_IN, CPAD)

    grid_spec = pltpu.PrefetchScalarGridSpec(
        num_scalar_prefetch=0,
        grid=(n,),
        in_specs=[
            pl.BlockSpec((1, HW_IN, CPAD), lambda i: (i, 0, 0)),       # activations
            pl.BlockSpec((9, HW1, HW_IN), lambda i: (0, 0, 0)),        # stem gathers
            pl.BlockSpec((9, HW1, HW1), lambda i: (0, 0, 0)),          # dw1 gathers
            pl.BlockSpec((9, HW2, HW1), lambda i: (0, 0, 0)),          # dw2 gathers
            pl.BlockSpec((9, CPAD, CPAD), lambda i: (0, 0, 0)),        # stem weights
            pl.BlockSpec((18, CPAD), lambda i: (0, 0)),                # depthwise weights
            pl.BlockSpec((NUM_MATS, CPAD, CPAD), lambda i: (0, 0, 0)), # 1x1 / fc weights
            pl.BlockSpec((NUM_VECS, CPAD), lambda i: (0, 0)),          # folded BN / biases
        ],
        out_specs=pl.BlockSpec((1, 8, CPAD), lambda i: (i, 0, 0)),
    )

    out = pl.pallas_call(
        _effnet_kernel,
        out_shape=jax.ShapeDtypeStruct((n, 8, CPAD), jnp.float32),
        grid_spec=grid_spec,
        compiler_params=pltpu.CompilerParams(
            dimension_semantics=("parallel",),
            vmem_limit_bytes=32 * 1024 * 1024,
        ),
    )(x_flat, params["gstem"], params["gdw1"], params["gdw2"],
      params["stem_w"], params["dw_w"], params["mats"], params["vecs"])

    return out[:, 0, :NUM_CLASSES]


# --------------------------- deterministic parameter init --------------------
def _fold_bn(gamma, beta, mean, var, eps=BN_EPS):
    scale = gamma / jnp.sqrt(var + eps)
    return scale, beta - mean * scale


def init_params(key):
    keys = iter(jax.random.split(key, 64))

    def nrm(shape, s=0.1):
        return s * jax.random.normal(next(keys), shape, dtype=jnp.float32)

    def bn(c):
        gamma = 1.0 + nrm((c,))
        beta = nrm((c,))
        mean = nrm((c,))
        var = jnp.abs(nrm((c,))) + 1.0
        return _fold_bn(gamma, beta, mean, var)

    def pad_vec(v):
        return jnp.pad(v, (0, CPAD - v.shape[0]))

    def pad_mat(m):
        return jnp.pad(m, ((0, CPAD - m.shape[0]), (0, CPAD - m.shape[1])))

    # stem: 3x3 conv (9 per-tap (Cin, Cout) slices, ky-major tap order) + BN
    # NOTE: tap/channel ordering only needs to be self-consistent for these
    # synthetic weights; loading real PyTorch OIHW weights would require a
    # matching reorder.
    stem_w = jnp.stack([pad_mat(nrm((IN_CH, STEM_OUT))) for _ in range(9)])
    stem_s, stem_b = bn(STEM_OUT)

    # block 1 (expand_ratio=1): dw k3 s1, SE(16->4->16), project 16->16
    b1_dw = nrm((9, B1_CH))
    b1_bn1_s, b1_bn1_b = bn(B1_CH)
    b1_ser_w, b1_ser_b = nrm((B1_CH, 4)), nrm((4,))
    b1_see_w, b1_see_b = nrm((4, B1_CH)), nrm((B1_CH,))
    b1_proj_w = nrm((B1_CH, B1_CH))
    b1_bn2_s, b1_bn2_b = bn(B1_CH)

    # block 2 (expand_ratio=6): expand 16->96, dw k3 s2, SE(96->4->96), project 96->24
    b2_exp_w = nrm((B1_CH, B2_EXP))
    b2_bn0_s, b2_bn0_b = bn(B2_EXP)
    b2_dw = nrm((9, B2_EXP))
    b2_bn1_s, b2_bn1_b = bn(B2_EXP)
    b2_ser_w, b2_ser_b = nrm((B2_EXP, 4)), nrm((4,))
    b2_see_w, b2_see_b = nrm((4, B2_EXP)), nrm((B2_EXP,))
    b2_proj_w = nrm((B2_EXP, B2_OUT))
    b2_bn2_s, b2_bn2_b = bn(B2_OUT)

    # head + fc
    head_w = nrm((B2_OUT, HEAD_OUT))
    head_s, head_b = bn(HEAD_OUT)
    fc_w, fc_b = nrm((HEAD_OUT, NUM_CLASSES)), nrm((NUM_CLASSES,))

    dw_w = jnp.concatenate([
        jnp.stack([pad_vec(b1_dw[t]) for t in range(9)]),
        jnp.stack([pad_vec(b2_dw[t]) for t in range(9)]),
    ])                                                          # (18, CPAD)

    mats = jnp.stack([pad_mat(m) for m in
                      (b1_ser_w, b1_see_w, b1_proj_w, b2_exp_w, b2_ser_w,
                       b2_see_w, b2_proj_w, head_w, fc_w)])     # (NUM_MATS, CPAD, CPAD)

    vecs = jnp.stack([pad_vec(v) for v in
                      (stem_s, stem_b,
                       b1_bn1_s, b1_bn1_b, b1_ser_b, b1_see_b, b1_bn2_s, b1_bn2_b,
                       b2_bn0_s, b2_bn0_b, b2_bn1_s, b2_bn1_b, b2_ser_b, b2_see_b,
                       b2_bn2_s, b2_bn2_b, head_s, head_b, fc_b)])  # (NUM_VECS, CPAD)

    return dict(
        stem_w=stem_w, dw_w=dw_w, mats=mats, vecs=vecs,
        gstem=_conv_gather_mats(H_IN, W_IN, 3, 2),              # (9, HW1, HW_IN)
        gdw1=_conv_gather_mats(H1, W1, 3, 1),                   # (9, HW1, HW1)
        gdw2=_conv_gather_mats(H1, W1, 3, 2),                   # (9, HW2, HW1)
    )


if __name__ == "__main__":
    key = jax.random.PRNGKey(0)
    pkey, xkey = jax.random.split(key)
    params = init_params(pkey)
    # PyTorch-style NCHW input
    x = jax.random.normal(xkey, (2, IN_CH, H_IN, W_IN), dtype=jnp.float32)
    logits = jax.jit(efficientnet_forward)(x, params)
    jax.block_until_ready(logits)
    assert logits.shape == (2, NUM_CLASSES)
    assert bool(jnp.all(jnp.isfinite(logits)))
    print("KERNEL_OK")
</pallas_src>

<mosaic_0001>
module attributes {stable_mosaic.version = 11 : i64} {
  func.func @_effnet_kernel(%arg0: i32, %arg1: memref<1x256x128xf32, #tpu.memory_space<vmem>>, %arg2: memref<9x64x256xf32, #tpu.memory_space<vmem>>, %arg3: memref<9x64x64xf32, #tpu.memory_space<vmem>>, %arg4: memref<9x16x64xf32, #tpu.memory_space<vmem>>, %arg5: memref<9x128x128xf32, #tpu.memory_space<vmem>>, %arg6: memref<18x128xf32, #tpu.memory_space<vmem>>, %arg7: memref<9x128x128xf32, #tpu.memory_space<vmem>>, %arg8: memref<19x128xf32, #tpu.memory_space<vmem>>, %arg9: memref<1x8x128xf32, #tpu.memory_space<vmem>>) attributes {dimension_semantics = [#tpu.dimension_semantics<parallel>], iteration_bounds = array<i64: 2>, scalar_prefetch = 0 : i64, scratch_operands = 0 : i64, tpu.core_type = #tpu.core_type<tc>, window_params = [{transform_indices = @transform_0, window_bounds = array<i64: 1, 256, 128>}, {pipeline_mode = #tpu.pipeline_mode<synchronous>, transform_indices = @transform_1, window_bounds = array<i64: 9, 64, 256>}, {pipeline_mode = #tpu.pipeline_mode<synchronous>, transform_indices = @transform_2, window_bounds = array<i64: 9, 64, 64>}, {pipeline_mode = #tpu.pipeline_mode<synchronous>, transform_indices = @transform_3, window_bounds = array<i64: 9, 16, 64>}, {pipeline_mode = #tpu.pipeline_mode<synchronous>, transform_indices = @transform_4, window_bounds = array<i64: 9, 128, 128>}, {pipeline_mode = #tpu.pipeline_mode<synchronous>, transform_indices = @transform_5, window_bounds = array<i64: 18, 128>}, {pipeline_mode = #tpu.pipeline_mode<synchronous>, transform_indices = @transform_6, window_bounds = array<i64: 9, 128, 128>}, {pipeline_mode = #tpu.pipeline_mode<synchronous>, transform_indices = @transform_7, window_bounds = array<i64: 19, 128>}, {transform_indices = @transform_8, window_bounds = array<i64: 1, 8, 128>}]} {
    %c0 = arith.constant 0 : index
    %c0_0 = arith.constant 0 : index
    %c0_1 = arith.constant 0 : index
    %0 = vector.load %arg1[%c0, %c0_0, %c0_1] : memref<1x256x128xf32, #tpu.memory_space<vmem>>, vector<1x256x128xf32>
    %1 = vector.shape_cast %0 : vector<1x256x128xf32> to vector<256x128xf32>
    %c0_2 = arith.constant 0 : index
    %c0_3 = arith.constant 0 : index
    %c0_4 = arith.constant 0 : index
    %2 = vector.load %arg2[%c0_2, %c0_3, %c0_4] : memref<9x64x256xf32, #tpu.memory_space<vmem>>, vector<1x64x256xf32>
    %3 = vector.shape_cast %2 : vector<1x64x256xf32> to vector<64x256xf32>
    %cst = arith.constant dense<0.000000e+00> : vector<64x128xf32>
    %4 = tpu.matmul %3, %1, %cst {dimension_numbers = #tpu.dot_dimension_numbers<[1], [0], [0], [1], [0, 0, 1, 1], [], []>} : vector<64x256xf32>, vector<256x128xf32>, vector<64x128xf32> -> vector<64x128xf32>
    %c0_5 = arith.constant 0 : index
    %c0_6 = arith.constant 0 : index
    %c0_7 = arith.constant 0 : index
    %5 = vector.load %arg5[%c0_5, %c0_6, %c0_7] : memref<9x128x128xf32, #tpu.memory_space<vmem>>, vector<1x128x128xf32>
    %6 = vector.shape_cast %5 : vector<1x128x128xf32> to vector<128x128xf32>
    %cst_8 = arith.constant dense<0.000000e+00> : vector<64x128xf32>
    %7 = tpu.matmul %4, %6, %cst_8 {dimension_numbers = #tpu.dot_dimension_numbers<[1], [0], [0], [1], [0, 0, 1, 1], [], []>} : vector<64x128xf32>, vector<128x128xf32>, vector<64x128xf32> -> vector<64x128xf32>
    %c1 = arith.constant 1 : index
    %c0_9 = arith.constant 0 : index
    %c0_10 = arith.constant 0 : index
    %8 = vector.load %arg2[%c1, %c0_9, %c0_10] : memref<9x64x256xf32, #tpu.memory_space<vmem>>, vector<1x64x256xf32>
    %9 = vector.shape_cast %8 : vector<1x64x256xf32> to vector<64x256xf32>
    %cst_11 = arith.constant dense<0.000000e+00> : vector<64x128xf32>
    %10 = tpu.matmul %9, %1, %cst_11 {dimension_numbers = #tpu.dot_dimension_numbers<[1], [0], [0], [1], [0, 0, 1, 1], [], []>} : vector<64x256xf32>, vector<256x128xf32>, vector<64x128xf32> -> vector<64x128xf32>
    %c1_12 = arith.constant 1 : index
    %c0_13 = arith.constant 0 : index
    %c0_14 = arith.constant 0 : index
    %11 = vector.load %arg5[%c1_12, %c0_13, %c0_14] : memref<9x128x128xf32, #tpu.memory_space<vmem>>, vector<1x128x128xf32>
    %12 = vector.shape_cast %11 : vector<1x128x128xf32> to vector<128x128xf32>
    %cst_15 = arith.constant dense<0.000000e+00> : vector<64x128xf32>
    %13 = tpu.matmul %10, %12, %cst_15 {dimension_numbers = #tpu.dot_dimension_numbers<[1], [0], [0], [1], [0, 0, 1, 1], [], []>} : vector<64x128xf32>, vector<128x128xf32>, vector<64x128xf32> -> vector<64x128xf32>
    %14 = arith.addf %7, %13 : vector<64x128xf32>
    %c2 = arith.constant 2 : index
    %c0_16 = arith.constant 0 : index
    %c0_17 = arith.constant 0 : index
    %15 = vector.load %arg2[%c2, %c0_16, %c0_17] : memref<9x64x256xf32, #tpu.memory_space<vmem>>, vector<1x64x256xf32>
    %16 = vector.shape_cast %15 : vector<1x64x256xf32> to vector<64x256xf32>
    %cst_18 = arith.constant dense<0.000000e+00> : vector<64x128xf32>
    %17 = tpu.matmul %16, %1, %cst_18 {dimension_numbers = #tpu.dot_dimension_numbers<[1], [0], [0], [1], [0, 0, 1, 1], [], []>} : vector<64x256xf32>, vector<256x128xf32>, vector<64x128xf32> -> vector<64x128xf32>
    %c2_19 = arith.constant 2 : index
    %c0_20 = arith.constant 0 : index
    %c0_21 = arith.constant 0 : index
    %18 = vector.load %arg5[%c2_19, %c0_20, %c0_21] : memref<9x128x128xf32, #tpu.memory_space<vmem>>, vector<1x128x128xf32>
    %19 = vector.shape_cast %18 : vector<1x128x128xf32> to vector<128x128xf32>
    %cst_22 = arith.constant dense<0.000000e+00> : vector<64x128xf32>
    %20 = tpu.matmul %17, %19, %cst_22 {dimension_numbers = #tpu.dot_dimension_numbers<[1], [0], [0], [1], [0, 0, 1, 1], [], []>} : vector<64x128xf32>, vector<128x128xf32>, vector<64x128xf32> -> vector<64x128xf32>
    %21 = arith.addf %14, %20 : vector<64x128xf32>
    %c3 = arith.constant 3 : index
    %c0_23 = arith.constant 0 : index
    %c0_24 = arith.constant 0 : index
    %22 = vector.load %arg2[%c3, %c0_23, %c0_24] : memref<9x64x256xf32, #tpu.memory_space<vmem>>, vector<1x64x256xf32>
    %23 = vector.shape_cast %22 : vector<1x64x256xf32> to vector<64x256xf32>
    %cst_25 = arith.constant dense<0.000000e+00> : vector<64x128xf32>
    %24 = tpu.matmul %23, %1, %cst_25 {dimension_numbers = #tpu.dot_dimension_numbers<[1], [0], [0], [1], [0, 0, 1, 1], [], []>} : vector<64x256xf32>, vector<256x128xf32>, vector<64x128xf32> -> vector<64x128xf32>
    %c3_26 = arith.constant 3 : index
    %c0_27 = arith.constant 0 : index
    %c0_28 = arith.constant 0 : index
    %25 = vector.load %arg5[%c3_26, %c0_27, %c0_28] : memref<9x128x128xf32, #tpu.memory_space<vmem>>, vector<1x128x128xf32>
    %26 = vector.shape_cast %25 : vector<1x128x128xf32> to vector<128x128xf32>
    %cst_29 = arith.constant dense<0.000000e+00> : vector<64x128xf32>
    %27 = tpu.matmul %24, %26, %cst_29 {dimension_numbers = #tpu.dot_dimension_numbers<[1], [0], [0], [1], [0, 0, 1, 1], [], []>} : vector<64x128xf32>, vector<128x128xf32>, vector<64x128xf32> -> vector<64x128xf32>
    %28 = arith.addf %21, %27 : vector<64x128xf32>
    %c4 = arith.constant 4 : index
    %c0_30 = arith.constant 0 : index
    %c0_31 = arith.constant 0 : index
    %29 = vector.load %arg2[%c4, %c0_30, %c0_31] : memref<9x64x256xf32, #tpu.memory_space<vmem>>, vector<1x64x256xf32>
    %30 = vector.shape_cast %29 : vector<1x64x256xf32> to vector<64x256xf32>
    %cst_32 = arith.constant dense<0.000000e+00> : vector<64x128xf32>
    %31 = tpu.matmul %30, %1, %cst_32 {dimension_numbers = #tpu.dot_dimension_numbers<[1], [0], [0], [1], [0, 0, 1, 1], [], []>} : vector<64x256xf32>, vector<256x128xf32>, vector<64x128xf32> -> vector<64x128xf32>
    %c4_33 = arith.constant 4 : index
    %c0_34 = arith.constant 0 : index
    %c0_35 = arith.constant 0 : index
    %32 = vector.load %arg5[%c4_33, %c0_34, %c0_35] : memref<9x128x128xf32, #tpu.memory_space<vmem>>, vector<1x128x128xf32>
    %33 = vector.shape_cast %32 : vector<1x128x128xf32> to vector<128x128xf32>
    %cst_36 = arith.constant dense<0.000000e+00> : vector<64x128xf32>
    %34 = tpu.matmul %31, %33, %cst_36 {dimension_numbers = #tpu.dot_dimension_numbers<[1], [0], [0], [1], [0, 0, 1, 1], [], []>} : vector<64x128xf32>, vector<128x128xf32>, vector<64x128xf32> -> vector<64x128xf32>
    %35 = arith.addf %28, %34 : vector<64x128xf32>
    %c5 = arith.constant 5 : index
    %c0_37 = arith.constant 0 : index
    %c0_38 = arith.constant 0 : index
    %36 = vector.load %arg2[%c5, %c0_37, %c0_38] : memref<9x64x256xf32, #tpu.memory_space<vmem>>, vector<1x64x256xf32>
    %37 = vector.shape_cast %36 : vector<1x64x256xf32> to vector<64x256xf32>
    %cst_39 = arith.constant dense<0.000000e+00> : vector<64x128xf32>
    %38 = tpu.matmul %37, %1, %cst_39 {dimension_numbers = #tpu.dot_dimension_numbers<[1], [0], [0], [1], [0, 0, 1, 1], [], []>} : vector<64x256xf32>, vector<256x128xf32>, vector<64x128xf32> -> vector<64x128xf32>
    %c5_40 = arith.constant 5 : index
    %c0_41 = arith.constant 0 : index
    %c0_42 = arith.constant 0 : index
    %39 = vector.load %arg5[%c5_40, %c0_41, %c0_42] : memref<9x128x128xf32, #tpu.memory_space<vmem>>, vector<1x128x128xf32>
    %40 = vector.shape_cast %39 : vector<1x128x128xf32> to vector<128x128xf32>
    %cst_43 = arith.constant dense<0.000000e+00> : vector<64x128xf32>
    %41 = tpu.matmul %38, %40, %cst_43 {dimension_numbers = #tpu.dot_dimension_numbers<[1], [0], [0], [1], [0, 0, 1, 1], [], []>} : vector<64x128xf32>, vector<128x128xf32>, vector<64x128xf32> -> vector<64x128xf32>
    %42 = arith.addf %35, %41 : vector<64x128xf32>
    %c6 = arith.constant 6 : index
    %c0_44 = arith.constant 0 : index
    %c0_45 = arith.constant 0 : index
    %43 = vector.load %arg2[%c6, %c0_44, %c0_45] : memref<9x64x256xf32, #tpu.memory_space<vmem>>, vector<1x64x256xf32>
    %44 = vector.shape_cast %43 : vector<1x64x256xf32> to vector<64x256xf32>
    %cst_46 = arith.constant dense<0.000000e+00> : vector<64x128xf32>
    %45 = tpu.matmul %44, %1, %cst_46 {dimension_numbers = #tpu.dot_dimension_numbers<[1], [0], [0], [1], [0, 0, 1, 1], [], []>} : vector<64x256xf32>, vector<256x128xf32>, vector<64x128xf32> -> vector<64x128xf32>
    %c6_47 = arith.constant 6 : index
    %c0_48 = arith.constant 0 : index
    %c0_49 = arith.constant 0 : index
    %46 = vector.load %arg5[%c6_47, %c0_48, %c0_49] : memref<9x128x128xf32, #tpu.memory_space<vmem>>, vector<1x128x128xf32>
    %47 = vector.shape_cast %46 : vector<1x128x128xf32> to vector<128x128xf32>
    %cst_50 = arith.constant dense<0.000000e+00> : vector<64x128xf32>
    %48 = tpu.matmul %45, %47, %cst_50 {dimension_numbers = #tpu.dot_dimension_numbers<[1], [0], [0], [1], [0, 0, 1, 1], [], []>} : vector<64x128xf32>, vector<128x128xf32>, vector<64x128xf32> -> vector<64x128xf32>
    %49 = arith.addf %42, %48 : vector<64x128xf32>
    %c7 = arith.constant 7 : index
    %c0_51 = arith.constant 0 : index
    %c0_52 = arith.constant 0 : index
    %50 = vector.load %arg2[%c7, %c0_51, %c0_52] : memref<9x64x256xf32, #tpu.memory_space<vmem>>, vector<1x64x256xf32>
    %51 = vector.shape_cast %50 : vector<1x64x256xf32> to vector<64x256xf32>
    %cst_53 = arith.constant dense<0.000000e+00> : vector<64x128xf32>
    %52 = tpu.matmul %51, %1, %cst_53 {dimension_numbers = #tpu.dot_dimension_numbers<[1], [0], [0], [1], [0, 0, 1, 1], [], []>} : vector<64x256xf32>, vector<256x128xf32>, vector<64x128xf32> -> vector<64x128xf32>
    %c7_54 = arith.constant 7 : index
    %c0_55 = arith.constant 0 : index
    %c0_56 = arith.constant 0 : index
    %53 = vector.load %arg5[%c7_54, %c0_55, %c0_56] : memref<9x128x128xf32, #tpu.memory_space<vmem>>, vector<1x128x128xf32>
    %54 = vector.shape_cast %53 : vector<1x128x128xf32> to vector<128x128xf32>
    %cst_57 = arith.constant dense<0.000000e+00> : vector<64x128xf32>
    %55 = tpu.matmul %52, %54, %cst_57 {dimension_numbers = #tpu.dot_dimension_numbers<[1], [0], [0], [1], [0, 0, 1, 1], [], []>} : vector<64x128xf32>, vector<128x128xf32>, vector<64x128xf32> -> vector<64x128xf32>
    %56 = arith.addf %49, %55 : vector<64x128xf32>
    %c8 = arith.constant 8 : index
    %c0_58 = arith.constant 0 : index
    %c0_59 = arith.constant 0 : index
    %57 = vector.load %arg2[%c8, %c0_58, %c0_59] : memref<9x64x256xf32, #tpu.memory_space<vmem>>, vector<1x64x256xf32>
    %58 = vector.shape_cast %57 : vector<1x64x256xf32> to vector<64x256xf32>
    %cst_60 = arith.constant dense<0.000000e+00> : vector<64x128xf32>
    %59 = tpu.matmul %58, %1, %cst_60 {dimension_numbers = #tpu.dot_dimension_numbers<[1], [0], [0], [1], [0, 0, 1, 1], [], []>} : vector<64x256xf32>, vector<256x128xf32>, vector<64x128xf32> -> vector<64x128xf32>
    %c8_61 = arith.constant 8 : index
    %c0_62 = arith.constant 0 : index
    %c0_63 = arith.constant 0 : index
    %60 = vector.load %arg5[%c8_61, %c0_62, %c0_63] : memref<9x128x128xf32, #tpu.memory_space<vmem>>, vector<1x128x128xf32>
    %61 = vector.shape_cast %60 : vector<1x128x128xf32> to vector<128x128xf32>
    %cst_64 = arith.constant dense<0.000000e+00> : vector<64x128xf32>
    %62 = tpu.matmul %59, %61, %cst_64 {dimension_numbers = #tpu.dot_dimension_numbers<[1], [0], [0], [1], [0, 0, 1, 1], [], []>} : vector<64x128xf32>, vector<128x128xf32>, vector<64x128xf32> -> vector<64x128xf32>
    %63 = arith.addf %56, %62 : vector<64x128xf32>
    %c0_65 = arith.constant 0 : index
    %c0_66 = arith.constant 0 : index
    %64 = vector.load %arg8[%c0_65, %c0_66] : memref<19x128xf32, #tpu.memory_space<vmem>>, vector<1x128xf32>
    %65 = vector.broadcast %64 : vector<1x128xf32> to vector<64x128xf32>
    %66 = arith.mulf %63, %65 : vector<64x128xf32>
    %c1_67 = arith.constant 1 : index
    %c0_68 = arith.constant 0 : index
    %67 = vector.load %arg8[%c1_67, %c0_68] : memref<19x128xf32, #tpu.memory_space<vmem>>, vector<1x128xf32>
    %68 = vector.broadcast %67 : vector<1x128xf32> to vector<64x128xf32>
    %69 = arith.addf %66, %68 : vector<64x128xf32>
    %70 = arith.negf %69 : vector<64x128xf32>
    %71 = math.exp %70 : vector<64x128xf32>
    %cst_69 = arith.constant 1.000000e+00 : f32
    %72 = vector.broadcast %cst_69 : f32 to vector<64x128xf32>
    %73 = arith.addf %72, %71 : vector<64x128xf32>
    %74 = arith.divf %72, %73 : vector<64x128xf32>
    %75 = arith.mulf %69, %74 : vector<64x128xf32>
    %c0_70 = arith.constant 0 : index
    %c0_71 = arith.constant 0 : index
    %c0_72 = arith.constant 0 : index
    %76 = vector.load %arg3[%c0_70, %c0_71, %c0_72] : memref<9x64x64xf32, #tpu.memory_space<vmem>>, vector<1x64x64xf32>
    %77 = vector.shape_cast %76 : vector<1x64x64xf32> to vector<64x64xf32>
    %cst_73 = arith.constant dense<0.000000e+00> : vector<64x128xf32>
    %78 = tpu.matmul %77, %75, %cst_73 {dimension_numbers = #tpu.dot_dimension_numbers<[1], [0], [0], [1], [0, 0, 1, 1], [], []>} : vector<64x64xf32>, vector<64x128xf32>, vector<64x128xf32> -> vector<64x128xf32>
    %c0_74 = arith.constant 0 : index
    %c0_75 = arith.constant 0 : index
    %79 = vector.load %arg6[%c0_74, %c0_75] : memref<18x128xf32, #tpu.memory_space<vmem>>, vector<1x128xf32>
    %80 = vector.broadcast %79 : vector<1x128xf32> to vector<64x128xf32>
    %81 = arith.mulf %78, %80 : vector<64x128xf32>
    %c1_76 = arith.constant 1 : index
    %c0_77 = arith.constant 0 : index
    %c0_78 = arith.constant 0 : index
    %82 = vector.load %arg3[%c1_76, %c0_77, %c0_78] : memref<9x64x64xf32, #tpu.memory_space<vmem>>, vector<1x64x64xf32>
    %83 = vector.shape_cast %82 : vector<1x64x64xf32> to vector<64x64xf32>
    %cst_79 = arith.constant dense<0.000000e+00> : vector<64x128xf32>
    %84 = tpu.matmul %83, %75, %cst_79 {dimension_numbers = #tpu.dot_dimension_numbers<[1], [0], [0], [1], [0, 0, 1, 1], [], []>} : vector<64x64xf32>, vector<64x128xf32>, vector<64x128xf32> -> vector<64x128xf32>
    %c1_80 = arith.constant 1 : index
    %c0_81 = arith.constant 0 : index
    %85 = vector.load %arg6[%c1_80, %c0_81] : memref<18x128xf32, #tpu.memory_space<vmem>>, vector<1x128xf32>
    %86 = vector.broadcast %85 : vector<1x128xf32> to vector<64x128xf32>
    %87 = arith.mulf %84, %86 : vector<64x128xf32>
    %88 = arith.addf %81, %87 : vector<64x128xf32>
    %c2_82 = arith.constant 2 : index
    %c0_83 = arith.constant 0 : index
    %c0_84 = arith.constant 0 : index
    %89 = vector.load %arg3[%c2_82, %c0_83, %c0_84] : memref<9x64x64xf32, #tpu.memory_space<vmem>>, vector<1x64x64xf32>
    %90 = vector.shape_cast %89 : vector<1x64x64xf32> to vector<64x64xf32>
    %cst_85 = arith.constant dense<0.000000e+00> : vector<64x128xf32>
    %91 = tpu.matmul %90, %75, %cst_85 {dimension_numbers = #tpu.dot_dimension_numbers<[1], [0], [0], [1], [0, 0, 1, 1], [], []>} : vector<64x64xf32>, vector<64x128xf32>, vector<64x128xf32> -> vector<64x128xf32>
    %c2_86 = arith.constant 2 : index
    %c0_87 = arith.constant 0 : index
    %92 = vector.load %arg6[%c2_86, %c0_87] : memref<18x128xf32, #tpu.memory_space<vmem>>, vector<1x128xf32>
    %93 = vector.broadcast %92 : vector<1x128xf32> to vector<64x128xf32>
    %94 = arith.mulf %91, %93 : vector<64x128xf32>
    %95 = arith.addf %88, %94 : vector<64x128xf32>
    %c3_88 = arith.constant 3 : index
    %c0_89 = arith.constant 0 : index
    %c0_90 = arith.constant 0 : index
    %96 = vector.load %arg3[%c3_88, %c0_89, %c0_90] : memref<9x64x64xf32, #tpu.memory_space<vmem>>, vector<1x64x64xf32>
    %97 = vector.shape_cast %96 : vector<1x64x64xf32> to vector<64x64xf32>
    %cst_91 = arith.constant dense<0.000000e+00> : vector<64x128xf32>
    %98 = tpu.matmul %97, %75, %cst_91 {dimension_numbers = #tpu.dot_dimension_numbers<[1], [0], [0], [1], [0, 0, 1, 1], [], []>} : vector<64x64xf32>, vector<64x128xf32>, vector<64x128xf32> -> vector<64x128xf32>
    %c3_92 = arith.constant 3 : index
    %c0_93 = arith.constant 0 : index
    %99 = vector.load %arg6[%c3_92, %c0_93] : memref<18x128xf32, #tpu.memory_space<vmem>>, vector<1x128xf32>
    %100 = vector.broadcast %99 : vector<1x128xf32> to vector<64x128xf32>
    %101 = arith.mulf %98, %100 : vector<64x128xf32>
    %102 = arith.addf %95, %101 : vector<64x128xf32>
    %c4_94 = arith.constant 4 : index
    %c0_95 = arith.constant 0 : index
    %c0_96 = arith.constant 0 : index
    %103 = vector.load %arg3[%c4_94, %c0_95, %c0_96] : memref<9x64x64xf32, #tpu.memory_space<vmem>>, vector<1x64x64xf32>
    %104 = vector.shape_cast %103 : vector<1x64x64xf32> to vector<64x64xf32>
    %cst_97 = arith.constant dense<0.000000e+00> : vector<64x128xf32>
    %105 = tpu.matmul %104, %75, %cst_97 {dimension_numbers = #tpu.dot_dimension_numbers<[1], [0], [0], [1], [0, 0, 1, 1], [], []>} : vector<64x64xf32>, vector<64x128xf32>, vector<64x128xf32> -> vector<64x128xf32>
    %c4_98 = arith.constant 4 : index
    %c0_99 = arith.constant 0 : index
    %106 = vector.load %arg6[%c4_98, %c0_99] : memref<18x128xf32, #tpu.memory_space<vmem>>, vector<1x128xf32>
    %107 = vector.broadcast %106 : vector<1x128xf32> to vector<64x128xf32>
    %108 = arith.mulf %105, %107 : vector<64x128xf32>
    %109 = arith.addf %102, %108 : vector<64x128xf32>
    %c5_100 = arith.constant 5 : index
    %c0_101 = arith.constant 0 : index
    %c0_102 = arith.constant 0 : index
    %110 = vector.load %arg3[%c5_100, %c0_101, %c0_102] : memref<9x64x64xf32, #tpu.memory_space<vmem>>, vector<1x64x64xf32>
    %111 = vector.shape_cast %110 : vector<1x64x64xf32> to vector<64x64xf32>
    %cst_103 = arith.constant dense<0.000000e+00> : vector<64x128xf32>
    %112 = tpu.matmul %111, %75, %cst_103 {dimension_numbers = #tpu.dot_dimension_numbers<[1], [0], [0], [1], [0, 0, 1, 1], [], []>} : vector<64x64xf32>, vector<64x128xf32>, vector<64x128xf32> -> vector<64x128xf32>
    %c5_104 = arith.constant 5 : index
    %c0_105 = arith.constant 0 : index
    %113 = vector.load %arg6[%c5_104, %c0_105] : memref<18x128xf32, #tpu.memory_space<vmem>>, vector<1x128xf32>
    %114 = vector.broadcast %113 : vector<1x128xf32> to vector<64x128xf32>
    %115 = arith.mulf %112, %114 : vector<64x128xf32>
    %116 = arith.addf %109, %115 : vector<64x128xf32>
    %c6_106 = arith.constant 6 : index
    %c0_107 = arith.constant 0 : index
    %c0_108 = arith.constant 0 : index
    %117 = vector.load %arg3[%c6_106, %c0_107, %c0_108] : memref<9x64x64xf32, #tpu.memory_space<vmem>>, vector<1x64x64xf32>
    %118 = vector.shape_cast %117 : vector<1x64x64xf32> to vector<64x64xf32>
    %cst_109 = arith.constant dense<0.000000e+00> : vector<64x128xf32>
    %119 = tpu.matmul %118, %75, %cst_109 {dimension_numbers = #tpu.dot_dimension_numbers<[1], [0], [0], [1], [0, 0, 1, 1], [], []>} : vector<64x64xf32>, vector<64x128xf32>, vector<64x128xf32> -> vector<64x128xf32>
    %c6_110 = arith.constant 6 : index
    %c0_111 = arith.constant 0 : index
    %120 = vector.load %arg6[%c6_110, %c0_111] : memref<18x128xf32, #tpu.memory_space<vmem>>, vector<1x128xf32>
    %121 = vector.broadcast %120 : vector<1x128xf32> to vector<64x128xf32>
    %122 = arith.mulf %119, %121 : vector<64x128xf32>
    %123 = arith.addf %116, %122 : vector<64x128xf32>
    %c7_112 = arith.constant 7 : index
    %c0_113 = arith.constant 0 : index
    %c0_114 = arith.constant 0 : index
    %124 = vector.load %arg3[%c7_112, %c0_113, %c0_114] : memref<9x64x64xf32, #tpu.memory_space<vmem>>, vector<1x64x64xf32>
    %125 = vector.shape_cast %124 : vector<1x64x64xf32> to vector<64x64xf32>
    %cst_115 = arith.constant dense<0.000000e+00> : vector<64x128xf32>
    %126 = tpu.matmul %125, %75, %cst_115 {dimension_numbers = #tpu.dot_dimension_numbers<[1], [0], [0], [1], [0, 0, 1, 1], [], []>} : vector<64x64xf32>, vector<64x128xf32>, vector<64x128xf32> -> vector<64x128xf32>
    %c7_116 = arith.constant 7 : index
    %c0_117 = arith.constant 0 : index
    %127 = vector.load %arg6[%c7_116, %c0_117] : memref<18x128xf32, #tpu.memory_space<vmem>>, vector<1x128xf32>
    %128 = vector.broadcast %127 : vector<1x128xf32> to vector<64x128xf32>
    %129 = arith.mulf %126, %128 : vector<64x128xf32>
    %130 = arith.addf %123, %129 : vector<64x128xf32>
    %c8_118 = arith.constant 8 : index
    %c0_119 = arith.constant 0 : index
    %c0_120 = arith.constant 0 : index
    %131 = vector.load %arg3[%c8_118, %c0_119, %c0_120] : memref<9x64x64xf32, #tpu.memory_space<vmem>>, vector<1x64x64xf32>
    %132 = vector.shape_cast %131 : vector<1x64x64xf32> to vector<64x64xf32>
    %cst_121 = arith.constant dense<0.000000e+00> : vector<64x128xf32>
    %133 = tpu.matmul %132, %75, %cst_121 {dimension_numbers = #tpu.dot_dimension_numbers<[1], [0], [0], [1], [0, 0, 1, 1], [], []>} : vector<64x64xf32>, vector<64x128xf32>, vector<64x128xf32> -> vector<64x128xf32>
    %c8_122 = arith.constant 8 : index
    %c0_123 = arith.constant 0 : index
    %134 = vector.load %arg6[%c8_122, %c0_123] : memref<18x128xf32, #tpu.memory_space<vmem>>, vector<1x128xf32>
    %135 = vector.broadcast %134 : vector<1x128xf32> to vector<64x128xf32>
    %136 = arith.mulf %133, %135 : vector<64x128xf32>
    %137 = arith.addf %130, %136 : vector<64x128xf32>
    %c2_124 = arith.constant 2 : index
    %c0_125 = arith.constant 0 : index
    %138 = vector.load %arg8[%c2_124, %c0_125] : memref<19x128xf32, #tpu.memory_space<vmem>>, vector<1x128xf32>
    %139 = vector.broadcast %138 : vector<1x128xf32> to vector<64x128xf32>
    %140 = arith.mulf %137, %139 : vector<64x128xf32>
    %c3_126 = arith.constant 3 : index
    %c0_127 = arith.constant 0 : index
    %141 = vector.load %arg8[%c3_126, %c0_127] : memref<19x128xf32, #tpu.memory_space<vmem>>, vector<1x128xf32>
    %142 = vector.broadcast %141 : vector<1x128xf32> to vector<64x128xf32>
    %143 = arith.addf %140, %142 : vector<64x128xf32>
    %144 = arith.negf %143 : vector<64x128xf32>
    %145 = math.exp %144 : vector<64x128xf32>
    %cst_128 = arith.constant 1.000000e+00 : f32
    %146 = vector.broadcast %cst_128 : f32 to vector<64x128xf32>
    %147 = arith.addf %146, %145 : vector<64x128xf32>
    %148 = arith.divf %146, %147 : vector<64x128xf32>
    %149 = arith.mulf %143, %148 : vector<64x128xf32>
    %cst_129 = arith.constant dense<0.000000e+00> : vector<128xf32>
    %150 = vector.multi_reduction <add>, %149, %cst_129 [0] : vector<64x128xf32> to vector<128xf32>
    %151 = vector.shape_cast %150 : vector<128xf32> to vector<1x128xf32>
    %cst_130 = arith.constant 1.562500e-02 : f32
    %152 = vector.broadcast %cst_130 : f32 to vector<1x128xf32>
    %153 = arith.mulf %151, %152 : vector<1x128xf32>
    %c0_131 = arith.constant 0 : index
    %c0_132 = arith.constant 0 : index
    %c0_133 = arith.constant 0 : index
    %154 = vector.load %arg7[%c0_131, %c0_132, %c0_133] : memref<9x128x128xf32, #tpu.memory_space<vmem>>, vector<1x128x128xf32>
    %155 = vector.shape_cast %154 : vector<1x128x128xf32> to vector<128x128xf32>
    %cst_134 = arith.constant dense<0.000000e+00> : vector<1x128xf32>
    %156 = tpu.matmul %153, %155, %cst_134 {dimension_numbers = #tpu.dot_dimension_numbers<[1], [0], [0], [1], [0, 0, 1, 1], [], []>} : vector<1x128xf32>, vector<128x128xf32>, vector<1x128xf32> -> vector<1x128xf32>
    %c4_135 = arith.constant 4 : index
    %c0_136 = arith.constant 0 : index
    %157 = vector.load %arg8[%c4_135, %c0_136] : memref<19x128xf32, #tpu.memory_space<vmem>>, vector<1x128xf32>
    %158 = arith.addf %156, %157 : vector<1x128xf32>
    %159 = arith.negf %158 : vector<1x128xf32>
    %160 = math.exp %159 : vector<1x128xf32>
    %cst_137 = arith.constant 1.000000e+00 : f32
    %161 = vector.broadcast %cst_137 : f32 to vector<1x128xf32>
    %162 = arith.addf %161, %160 : vector<1x128xf32>
    %163 = arith.divf %161, %162 : vector<1x128xf32>
    %164 = arith.mulf %158, %163 : vector<1x128xf32>
    %c1_138 = arith.constant 1 : index
    %c0_139 = arith.constant 0 : index
    %c0_140 = arith.constant 0 : index
    %165 = vector.load %arg7[%c1_138, %c0_139, %c0_140] : memref<9x128x128xf32, #tpu.memory_space<vmem>>, vector<1x128x128xf32>
    %166 = vector.shape_cast %165 : vector<1x128x128xf32> to vector<128x128xf32>
    %cst_141 = arith.constant dense<0.000000e+00> : vector<1x128xf32>
    %167 = tpu.matmul %164, %166, %cst_141 {dimension_numbers = #tpu.dot_dimension_numbers<[1], [0], [0], [1], [0, 0, 1, 1], [], []>} : vector<1x128xf32>, vector<128x128xf32>, vector<1x128xf32> -> vector<1x128xf32>
    %c5_142 = arith.constant 5 : index
    %c0_143 = arith.constant 0 : index
    %168 = vector.load %arg8[%c5_142, %c0_143] : memref<19x128xf32, #tpu.memory_space<vmem>>, vector<1x128xf32>
    %169 = arith.addf %167, %168 : vector<1x128xf32>
    %170 = arith.negf %169 : vector<1x128xf32>
    %171 = math.exp %170 : vector<1x128xf32>
    %cst_144 = arith.constant 1.000000e+00 : f32
    %172 = vector.broadcast %cst_144 : f32 to vector<1x128xf32>
    %173 = arith.addf %172, %171 : vector<1x128xf32>
    %174 = arith.divf %172, %173 : vector<1x128xf32>
    %175 = vector.broadcast %174 : vector<1x128xf32> to vector<64x128xf32>
    %176 = arith.mulf %149, %175 : vector<64x128xf32>
    %c2_145 = arith.constant 2 : index
    %c0_146 = arith.constant 0 : index
    %c0_147 = arith.constant 0 : index
    %177 = vector.load %arg7[%c2_145, %c0_146, %c0_147] : memref<9x128x128xf32, #tpu.memory_space<vmem>>, vector<1x128x128xf32>
    %178 = vector.shape_cast %177 : vector<1x128x128xf32> to vector<128x128xf32>
    %cst_148 = arith.constant dense<0.000000e+00> : vector<64x128xf32>
    %179 = tpu.matmul %176, %178, %cst_148 {dimension_numbers = #tpu.dot_dimension_numbers<[1], [0], [0], [1], [0, 0, 1, 1], [], []>} : vector<64x128xf32>, vector<128x128xf32>, vector<64x128xf32> -> vector<64x128xf32>
    %c6_149 = arith.constant 6 : index
    %c0_150 = arith.constant 0 : index
    %180 = vector.load %arg8[%c6_149, %c0_150] : memref<19x128xf32, #tpu.memory_space<vmem>>, vector<1x128xf32>
    %181 = vector.broadcast %180 : vector<1x128xf32> to vector<64x128xf32>
    %182 = arith.mulf %179, %181 : vector<64x128xf32>
    %c7_151 = arith.constant 7 : index
    %c0_152 = arith.constant 0 : index
    %183 = vector.load %arg8[%c7_151, %c0_152] : memref<19x128xf32, #tpu.memory_space<vmem>>, vector<1x128xf32>
    %184 = vector.broadcast %183 : vector<1x128xf32> to vector<64x128xf32>
    %185 = arith.addf %182, %184 : vector<64x128xf32>
    %186 = arith.addf %185, %75 : vector<64x128xf32>
    %c3_153 = arith.constant 3 : index
    %c0_154 = arith.constant 0 : index
    %c0_155 = arith.constant 0 : index
    %187 = vector.load %arg7[%c3_153, %c0_154, %c0_155] : memref<9x128x128xf32, #tpu.memory_space<vmem>>, vector<1x128x128xf32>
    %188 = vector.shape_cast %187 : vector<1x128x128xf32> to vector<128x128xf32>
    %cst_156 = arith.constant dense<0.000000e+00> : vector<64x128xf32>
    %189 = tpu.matmul %186, %188, %cst_156 {dimension_numbers = #tpu.dot_dimension_numbers<[1], [0], [0], [1], [0, 0, 1, 1], [], []>} : vector<64x128xf32>, vector<128x128xf32>, vector<64x128xf32> -> vector<64x128xf32>
    %c8_157 = arith.constant 8 : index
    %c0_158 = arith.constant 0 : index
    %190 = vector.load %arg8[%c8_157, %c0_158] : memref<19x128xf32, #tpu.memory_space<vmem>>, vector<1x128xf32>
    %191 = vector.broadcast %190 : vector<1x128xf32> to vector<64x128xf32>
    %192 = arith.mulf %189, %191 : vector<64x128xf32>
    %c9 = arith.constant 9 : index
    %c0_159 = arith.constant 0 : index
    %193 = vector.load %arg8[%c9, %c0_159] : memref<19x128xf32, #tpu.memory_space<vmem>>, vector<1x128xf32>
    %194 = vector.broadcast %193 : vector<1x128xf32> to vector<64x128xf32>
    %195 = arith.addf %192, %194 : vector<64x128xf32>
    %196 = arith.negf %195 : vector<64x128xf32>
    %197 = math.exp %196 : vector<64x128xf32>
    %cst_160 = arith.constant 1.000000e+00 : f32
    %198 = vector.broadcast %cst_160 : f32 to vector<64x128xf32>
    %199 = arith.addf %198, %197 : vector<64x128xf32>
    %200 = arith.divf %198, %199 : vector<64x128xf32>
    %201 = arith.mulf %195, %200 : vector<64x128xf32>
    %c0_161 = arith.constant 0 : index
    %c0_162 = arith.constant 0 : index
    %c0_163 = arith.constant 0 : index
    %202 = vector.load %arg4[%c0_161, %c0_162, %c0_163] : memref<9x16x64xf32, #tpu.memory_space<vmem>>, vector<1x16x64xf32>
    %203 = vector.shape_cast %202 : vector<1x16x64xf32> to vector<16x64xf32>
    %cst_164 = arith.constant dense<0.000000e+00> : vector<16x128xf32>
    %204 = tpu.matmul %203, %201, %cst_164 {dimension_numbers = #tpu.dot_dimension_numbers<[1], [0], [0], [1], [0, 0, 1, 1], [], []>} : vector<16x64xf32>, vector<64x128xf32>, vector<16x128xf32> -> vector<16x128xf32>
    %c9_165 = arith.constant 9 : index
    %c0_166 = arith.constant 0 : index
    %205 = vector.load %arg6[%c9_165, %c0_166] : memref<18x128xf32, #tpu.memory_space<vmem>>, vector<1x128xf32>
    %206 = vector.broadcast %205 : vector<1x128xf32> to vector<16x128xf32>
    %207 = arith.mulf %204, %206 : vector<16x128xf32>
    %c1_167 = arith.constant 1 : index
    %c0_168 = arith.constant 0 : index
    %c0_169 = arith.constant 0 : index
    %208 = vector.load %arg4[%c1_167, %c0_168, %c0_169] : memref<9x16x64xf32, #tpu.memory_space<vmem>>, vector<1x16x64xf32>
    %209 = vector.shape_cast %208 : vector<1x16x64xf32> to vector<16x64xf32>
    %cst_170 = arith.constant dense<0.000000e+00> : vector<16x128xf32>
    %210 = tpu.matmul %209, %201, %cst_170 {dimension_numbers = #tpu.dot_dimension_numbers<[1], [0], [0], [1], [0, 0, 1, 1], [], []>} : vector<16x64xf32>, vector<64x128xf32>, vector<16x128xf32> -> vector<16x128xf32>
    %c10 = arith.constant 10 : index
    %c0_171 = arith.constant 0 : index
    %211 = vector.load %arg6[%c10, %c0_171] : memref<18x128xf32, #tpu.memory_space<vmem>>, vector<1x128xf32>
    %212 = vector.broadcast %211 : vector<1x128xf32> to vector<16x128xf32>
    %213 = arith.mulf %210, %212 : vector<16x128xf32>
    %214 = arith.addf %207, %213 : vector<16x128xf32>
    %c2_172 = arith.constant 2 : index
    %c0_173 = arith.constant 0 : index
    %c0_174 = arith.constant 0 : index
    %215 = vector.load %arg4[%c2_172, %c0_173, %c0_174] : memref<9x16x64xf32, #tpu.memory_space<vmem>>, vector<1x16x64xf32>
    %216 = vector.shape_cast %215 : vector<1x16x64xf32> to vector<16x64xf32>
    %cst_175 = arith.constant dense<0.000000e+00> : vector<16x128xf32>
    %217 = tpu.matmul %216, %201, %cst_175 {dimension_numbers = #tpu.dot_dimension_numbers<[1], [0], [0], [1], [0, 0, 1, 1], [], []>} : vector<16x64xf32>, vector<64x128xf32>, vector<16x128xf32> -> vector<16x128xf32>
    %c11 = arith.constant 11 : index
    %c0_176 = arith.constant 0 : index
    %218 = vector.load %arg6[%c11, %c0_176] : memref<18x128xf32, #tpu.memory_space<vmem>>, vector<1x128xf32>
    %219 = vector.broadcast %218 : vector<1x128xf32> to vector<16x128xf32>
    %220 = arith.mulf %217, %219 : vector<16x128xf32>
    %221 = arith.addf %214, %220 : vector<16x128xf32>
    %c3_177 = arith.constant 3 : index
    %c0_178 = arith.constant 0 : index
    %c0_179 = arith.constant 0 : index
    %222 = vector.load %arg4[%c3_177, %c0_178, %c0_179] : memref<9x16x64xf32, #tpu.memory_space<vmem>>, vector<1x16x64xf32>
    %223 = vector.shape_cast %222 : vector<1x16x64xf32> to vector<16x64xf32>
    %cst_180 = arith.constant dense<0.000000e+00> : vector<16x128xf32>
    %224 = tpu.matmul %223, %201, %cst_180 {dimension_numbers = #tpu.dot_dimension_numbers<[1], [0], [0], [1], [0, 0, 1, 1], [], []>} : vector<16x64xf32>, vector<64x128xf32>, vector<16x128xf32> -> vector<16x128xf32>
    %c12 = arith.constant 12 : index
    %c0_181 = arith.constant 0 : index
    %225 = vector.load %arg6[%c12, %c0_181] : memref<18x128xf32, #tpu.memory_space<vmem>>, vector<1x128xf32>
    %226 = vector.broadcast %225 : vector<1x128xf32> to vector<16x128xf32>
    %227 = arith.mulf %224, %226 : vector<16x128xf32>
    %228 = arith.addf %221, %227 : vector<16x128xf32>
    %c4_182 = arith.constant 4 : index
    %c0_183 = arith.constant 0 : index
    %c0_184 = arith.constant 0 : index
    %229 = vector.load %arg4[%c4_182, %c0_183, %c0_184] : memref<9x16x64xf32, #tpu.memory_space<vmem>>, vector<1x16x64xf32>
    %230 = vector.shape_cast %229 : vector<1x16x64xf32> to vector<16x64xf32>
    %cst_185 = arith.constant dense<0.000000e+00> : vector<16x128xf32>
    %231 = tpu.matmul %230, %201, %cst_185 {dimension_numbers = #tpu.dot_dimension_numbers<[1], [0], [0], [1], [0, 0, 1, 1], [], []>} : vector<16x64xf32>, vector<64x128xf32>, vector<16x128xf32> -> vector<16x128xf32>
    %c13 = arith.constant 13 : index
    %c0_186 = arith.constant 0 : index
    %232 = vector.load %arg6[%c13, %c0_186] : memref<18x128xf32, #tpu.memory_space<vmem>>, vector<1x128xf32>
    %233 = vector.broadcast %232 : vector<1x128xf32> to vector<16x128xf32>
    %234 = arith.mulf %231, %233 : vector<16x128xf32>
    %235 = arith.addf %228, %234 : vector<16x128xf32>
    %c5_187 = arith.constant 5 : index
    %c0_188 = arith.constant 0 : index
    %c0_189 = arith.constant 0 : index
    %236 = vector.load %arg4[%c5_187, %c0_188, %c0_189] : memref<9x16x64xf32, #tpu.memory_space<vmem>>, vector<1x16x64xf32>
    %237 = vector.shape_cast %236 : vector<1x16x64xf32> to vector<16x64xf32>
    %cst_190 = arith.constant dense<0.000000e+00> : vector<16x128xf32>
    %238 = tpu.matmul %237, %201, %cst_190 {dimension_numbers = #tpu.dot_dimension_numbers<[1], [0], [0], [1], [0, 0, 1, 1], [], []>} : vector<16x64xf32>, vector<64x128xf32>, vector<16x128xf32> -> vector<16x128xf32>
    %c14 = arith.constant 14 : index
    %c0_191 = arith.constant 0 : index
    %239 = vector.load %arg6[%c14, %c0_191] : memref<18x128xf32, #tpu.memory_space<vmem>>, vector<1x128xf32>
    %240 = vector.broadcast %239 : vector<1x128xf32> to vector<16x128xf32>
    %241 = arith.mulf %238, %240 : vector<16x128xf32>
    %242 = arith.addf %235, %241 : vector<16x128xf32>
    %c6_192 = arith.constant 6 : index
    %c0_193 = arith.constant 0 : index
    %c0_194 = arith.constant 0 : index
    %243 = vector.load %arg4[%c6_192, %c0_193, %c0_194] : memref<9x16x64xf32, #tpu.memory_space<vmem>>, vector<1x16x64xf32>
    %244 = vector.shape_cast %243 : vector<1x16x64xf32> to vector<16x64xf32>
    %cst_195 = arith.constant dense<0.000000e+00> : vector<16x128xf32>
    %245 = tpu.matmul %244, %201, %cst_195 {dimension_numbers = #tpu.dot_dimension_numbers<[1], [0], [0], [1], [0, 0, 1, 1], [], []>} : vector<16x64xf32>, vector<64x128xf32>, vector<16x128xf32> -> vector<16x128xf32>
    %c15 = arith.constant 15 : index
    %c0_196 = arith.constant 0 : index
    %246 = vector.load %arg6[%c15, %c0_196] : memref<18x128xf32, #tpu.memory_space<vmem>>, vector<1x128xf32>
    %247 = vector.broadcast %246 : vector<1x128xf32> to vector<16x128xf32>
    %248 = arith.mulf %245, %247 : vector<16x128xf32>
    %249 = arith.addf %242, %248 : vector<16x128xf32>
    %c7_197 = arith.constant 7 : index
    %c0_198 = arith.constant 0 : index
    %c0_199 = arith.constant 0 : index
    %250 = vector.load %arg4[%c7_197, %c0_198, %c0_199] : memref<9x16x64xf32, #tpu.memory_space<vmem>>, vector<1x16x64xf32>
    %251 = vector.shape_cast %250 : vector<1x16x64xf32> to vector<16x64xf32>
    %cst_200 = arith.constant dense<0.000000e+00> : vector<16x128xf32>
    %252 = tpu.matmul %251, %201, %cst_200 {dimension_numbers = #tpu.dot_dimension_numbers<[1], [0], [0], [1], [0, 0, 1, 1], [], []>} : vector<16x64xf32>, vector<64x128xf32>, vector<16x128xf32> -> vector<16x128xf32>
    %c16 = arith.constant 16 : index
    %c0_201 = arith.constant 0 : index
    %253 = vector.load %arg6[%c16, %c0_201] : memref<18x128xf32, #tpu.memory_space<vmem>>, vector<1x128xf32>
    %254 = vector.broadcast %253 : vector<1x128xf32> to vector<16x128xf32>
    %255 = arith.mulf %252, %254 : vector<16x128xf32>
    %256 = arith.addf %249, %255 : vector<16x128xf32>
    %c8_202 = arith.constant 8 : index
    %c0_203 = arith.constant 0 : index
    %c0_204 = arith.constant 0 : index
    %257 = vector.load %arg4[%c8_202, %c0_203, %c0_204] : memref<9x16x64xf32, #tpu.memory_space<vmem>>, vector<1x16x64xf32>
    %258 = vector.shape_cast %257 : vector<1x16x64xf32> to vector<16x64xf32>
    %cst_205 = arith.constant dense<0.000000e+00> : vector<16x128xf32>
    %259 = tpu.matmul %258, %201, %cst_205 {dimension_numbers = #tpu.dot_dimension_numbers<[1], [0], [0], [1], [0, 0, 1, 1], [], []>} : vector<16x64xf32>, vector<64x128xf32>, vector<16x128xf32> -> vector<16x128xf32>
    %c17 = arith.constant 17 : index
    %c0_206 = arith.constant 0 : index
    %260 = vector.load %arg6[%c17, %c0_206] : memref<18x128xf32, #tpu.memory_space<vmem>>, vector<1x128xf32>
    %261 = vector.broadcast %260 : vector<1x128xf32> to vector<16x128xf32>
    %262 = arith.mulf %259, %261 : vector<16x128xf32>
    %263 = arith.addf %256, %262 : vector<16x128xf32>
    %c10_207 = arith.constant 10 : index
    %c0_208 = arith.constant 0 : index
    %264 = vector.load %arg8[%c10_207, %c0_208] : memref<19x128xf32, #tpu.memory_space<vmem>>, vector<1x128xf32>
    %265 = vector.broadcast %264 : vector<1x128xf32> to vector<16x128xf32>
    %266 = arith.mulf %263, %265 : vector<16x128xf32>
    %c11_209 = arith.constant 11 : index
    %c0_210 = arith.constant 0 : index
    %267 = vector.load %arg8[%c11_209, %c0_210] : memref<19x128xf32, #tpu.memory_space<vmem>>, vector<1x128xf32>
    %268 = vector.broadcast %267 : vector<1x128xf32> to vector<16x128xf32>
    %269 = arith.addf %266, %268 : vector<16x128xf32>
    %270 = arith.negf %269 : vector<16x128xf32>
    %271 = math.exp %270 : vector<16x128xf32>
    %cst_211 = arith.constant 1.000000e+00 : f32
    %272 = vector.broadcast %cst_211 : f32 to vector<16x128xf32>
    %273 = arith.addf %272, %271 : vector<16x128xf32>
    %274 = arith.divf %272, %273 : vector<16x128xf32>
    %275 = arith.mulf %269, %274 : vector<16x128xf32>
    %cst_212 = arith.constant dense<0.000000e+00> : vector<128xf32>
    %276 = vector.multi_reduction <add>, %275, %cst_212 [0] : vector<16x128xf32> to vector<128xf32>
    %277 = vector.shape_cast %276 : vector<128xf32> to vector<1x128xf32>
    %cst_213 = arith.constant 6.250000e-02 : f32
    %278 = vector.broadcast %cst_213 : f32 to vector<1x128xf32>
    %279 = arith.mulf %277, %278 : vector<1x128xf32>
    %c4_214 = arith.constant 4 : index
    %c0_215 = arith.constant 0 : index
    %c0_216 = arith.constant 0 : index
    %280 = vector.load %arg7[%c4_214, %c0_215, %c0_216] : memref<9x128x128xf32, #tpu.memory_space<vmem>>, vector<1x128x128xf32>
    %281 = vector.shape_cast %280 : vector<1x128x128xf32> to vector<128x128xf32>
    %cst_217 = arith.constant dense<0.000000e+00> : vector<1x128xf32>
    %282 = tpu.matmul %279, %281, %cst_217 {dimension_numbers = #tpu.dot_dimension_numbers<[1], [0], [0], [1], [0, 0, 1, 1], [], []>} : vector<1x128xf32>, vector<128x128xf32>, vector<1x128xf32> -> vector<1x128xf32>
    %c12_218 = arith.constant 12 : index
    %c0_219 = arith.constant 0 : index
    %283 = vector.load %arg8[%c12_218, %c0_219] : memref<19x128xf32, #tpu.memory_space<vmem>>, vector<1x128xf32>
    %284 = arith.addf %282, %283 : vector<1x128xf32>
    %285 = arith.negf %284 : vector<1x128xf32>
    %286 = math.exp %285 : vector<1x128xf32>
    %cst_220 = arith.constant 1.000000e+00 : f32
    %287 = vector.broadcast %cst_220 : f32 to vector<1x128xf32>
    %288 = arith.addf %287, %286 : vector<1x128xf32>
    %289 = arith.divf %287, %288 : vector<1x128xf32>
    %290 = arith.mulf %284, %289 : vector<1x128xf32>
    %c5_221 = arith.constant 5 : index
    %c0_222 = arith.constant 0 : index
    %c0_223 = arith.constant 0 : index
    %291 = vector.load %arg7[%c5_221, %c0_222, %c0_223] : memref<9x128x128xf32, #tpu.memory_space<vmem>>, vector<1x128x128xf32>
    %292 = vector.shape_cast %291 : vector<1x128x128xf32> to vector<128x128xf32>
    %cst_224 = arith.constant dense<0.000000e+00> : vector<1x128xf32>
    %293 = tpu.matmul %290, %292, %cst_224 {dimension_numbers = #tpu.dot_dimension_numbers<[1], [0], [0], [1], [0, 0, 1, 1], [], []>} : vector<1x128xf32>, vector<128x128xf32>, vector<1x128xf32> -> vector<1x128xf32>
    %c13_225 = arith.constant 13 : index
    %c0_226 = arith.constant 0 : index
    %294 = vector.load %arg8[%c13_225, %c0_226] : memref<19x128xf32, #tpu.memory_space<vmem>>, vector<1x128xf32>
    %295 = arith.addf %293, %294 : vector<1x128xf32>
    %296 = arith.negf %295 : vector<1x128xf32>
    %297 = math.exp %296 : vector<1x128xf32>
    %cst_227 = arith.constant 1.000000e+00 : f32
    %298 = vector.broadcast %cst_227 : f32 to vector<1x128xf32>
    %299 = arith.addf %298, %297 : vector<1x128xf32>
    %300 = arith.divf %298, %299 : vector<1x128xf32>
    %301 = vector.broadcast %300 : vector<1x128xf32> to vector<16x128xf32>
    %302 = arith.mulf %275, %301 : vector<16x128xf32>
    %c6_228 = arith.constant 6 : index
    %c0_229 = arith.constant 0 : index
    %c0_230 = arith.constant 0 : index
    %303 = vector.load %arg7[%c6_228, %c0_229, %c0_230] : memref<9x128x128xf32, #tpu.memory_space<vmem>>, vector<1x128x128xf32>
    %304 = vector.shape_cast %303 : vector<1x128x128xf32> to vector<128x128xf32>
    %cst_231 = arith.constant dense<0.000000e+00> : vector<16x128xf32>
    %305 = tpu.matmul %302, %304, %cst_231 {dimension_numbers = #tpu.dot_dimension_numbers<[1], [0], [0], [1], [0, 0, 1, 1], [], []>} : vector<16x128xf32>, vector<128x128xf32>, vector<16x128xf32> -> vector<16x128xf32>
    %c14_232 = arith.constant 14 : index
    %c0_233 = arith.constant 0 : index
    %306 = vector.load %arg8[%c14_232, %c0_233] : memref<19x128xf32, #tpu.memory_space<vmem>>, vector<1x128xf32>
    %307 = vector.broadcast %306 : vector<1x128xf32> to vector<16x128xf32>
    %308 = arith.mulf %305, %307 : vector<16x128xf32>
    %c15_234 = arith.constant 15 : index
    %c0_235 = arith.constant 0 : index
    %309 = vector.load %arg8[%c15_234, %c0_235] : memref<19x128xf32, #tpu.memory_space<vmem>>, vector<1x128xf32>
    %310 = vector.broadcast %309 : vector<1x128xf32> to vector<16x128xf32>
    %311 = arith.addf %308, %310 : vector<16x128xf32>
    %c7_236 = arith.constant 7 : index
    %c0_237 = arith.constant 0 : index
    %c0_238 = arith.constant 0 : index
    %312 = vector.load %arg7[%c7_236, %c0_237, %c0_238] : memref<9x128x128xf32, #tpu.memory_space<vmem>>, vector<1x128x128xf32>
    %313 = vector.shape_cast %312 : vector<1x128x128xf32> to vector<128x128xf32>
    %cst_239 = arith.constant dense<0.000000e+00> : vector<16x128xf32>
    %314 = tpu.matmul %311, %313, %cst_239 {dimension_numbers = #tpu.dot_dimension_numbers<[1], [0], [0], [1], [0, 0, 1, 1], [], []>} : vector<16x128xf32>, vector<128x128xf32>, vector<16x128xf32> -> vector<16x128xf32>
    %c16_240 = arith.constant 16 : index
    %c0_241 = arith.constant 0 : index
    %315 = vector.load %arg8[%c16_240, %c0_241] : memref<19x128xf32, #tpu.memory_space<vmem>>, vector<1x128xf32>
    %316 = vector.broadcast %315 : vector<1x128xf32> to vector<16x128xf32>
    %317 = arith.mulf %314, %316 : vector<16x128xf32>
    %c17_242 = arith.constant 17 : index
    %c0_243 = arith.constant 0 : index
    %318 = vector.load %arg8[%c17_242, %c0_243] : memref<19x128xf32, #tpu.memory_space<vmem>>, vector<1x128xf32>
    %319 = vector.broadcast %318 : vector<1x128xf32> to vector<16x128xf32>
    %320 = arith.addf %317, %319 : vector<16x128xf32>
    %321 = arith.negf %320 : vector<16x128xf32>
    %322 = math.exp %321 : vector<16x128xf32>
    %cst_244 = arith.constant 1.000000e+00 : f32
    %323 = vector.broadcast %cst_244 : f32 to vector<16x128xf32>
    %324 = arith.addf %323, %322 : vector<16x128xf32>
    %325 = arith.divf %323, %324 : vector<16x128xf32>
    %326 = arith.mulf %320, %325 : vector<16x128xf32>
    %cst_245 = arith.constant dense<0.000000e+00> : vector<128xf32>
    %327 = vector.multi_reduction <add>, %326, %cst_245 [0] : vector<16x128xf32> to vector<128xf32>
    %328 = vector.shape_cast %327 : vector<128xf32> to vector<1x128xf32>
    %cst_246 = arith.constant 6.250000e-02 : f32
    %329 = vector.broadcast %cst_246 : f32 to vector<1x128xf32>
    %330 = arith.mulf %328, %329 : vector<1x128xf32>
    %c8_247 = arith.constant 8 : index
    %c0_248 = arith.constant 0 : index
    %c0_249 = arith.constant 0 : index
    %331 = vector.load %arg7[%c8_247, %c0_248, %c0_249] : memref<9x128x128xf32, #tpu.memory_space<vmem>>, vector<1x128x128xf32>
    %332 = vector.shape_cast %331 : vector<1x128x128xf32> to vector<128x128xf32>
    %cst_250 = arith.constant dense<0.000000e+00> : vector<1x128xf32>
    %333 = tpu.matmul %330, %332, %cst_250 {dimension_numbers = #tpu.dot_dimension_numbers<[1], [0], [0], [1], [0, 0, 1, 1], [], []>} : vector<1x128xf32>, vector<128x128xf32>, vector<1x128xf32> -> vector<1x128xf32>
    %c18 = arith.constant 18 : index
    %c0_251 = arith.constant 0 : index
    %334 = vector.load %arg8[%c18, %c0_251] : memref<19x128xf32, #tpu.memory_space<vmem>>, vector<1x128xf32>
    %335 = arith.addf %333, %334 : vector<1x128xf32>
    %336 = vector.shape_cast %335 : vector<1x128xf32> to vector<1x128xf32>
    %337 = vector.broadcast %336 : vector<1x128xf32> to vector<8x128xf32>
    %c0_252 = arith.constant 0 : index
    %c0_253 = arith.constant 0 : index
    %c0_254 = arith.constant 0 : index
    %338 = vector.load %arg9[%c0_252, %c0_253, %c0_254] : memref<1x8x128xf32, #tpu.memory_space<vmem>>, vector<1x8x128xf32>
    %339 = vector.shape_cast %338 : vector<1x8x128xf32> to vector<8x128xf32>
    %340 = vector.shape_cast %337 : vector<8x128xf32> to vector<1x8x128xf32>
    tpu.vector_store %arg9[%c0_252, %c0_253, %c0_254], %340 {strides = array<i32>} : memref<1x8x128xf32, #tpu.memory_space<vmem>>, vector<1x8x128xf32>,
    return
  }
  func.func @transform_0(%arg0: i32) -> (i32, i32, i32) {
    %c0_i32 = arith.constant 0 : i32
    %c0_i32_0 = arith.constant 0 : i32
    %c0_i32_1 = arith.constant 0 : i32
    return %arg0, %c0_i32, %c0_i32_0 : i32, i32, i32
  }
  func.func @transform_1(%arg0: i32) -> (i32, i32, i32) {
    %c0_i32 = arith.constant 0 : i32
    %c0_i32_0 = arith.constant 0 : i32
    %c0_i32_1 = arith.constant 0 : i32
    %c0_i32_2 = arith.constant 0 : i32
    return %c0_i32, %c0_i32_0, %c0_i32_1 : i32, i32, i32
  }
  func.func @transform_2(%arg0: i32) -> (i32, i32, i32) {
    %c0_i32 = arith.constant 0 : i32
    %c0_i32_0 = arith.constant 0 : i32
    %c0_i32_1 = arith.constant 0 : i32
    %c0_i32_2 = arith.constant 0 : i32
    return %c0_i32, %c0_i32_0, %c0_i32_1 : i32, i32, i32
  }
  func.func @transform_3(%arg0: i32) -> (i32, i32, i32) {
    %c0_i32 = arith.constant 0 : i32
    %c0_i32_0 = arith.constant 0 : i32
    %c0_i32_1 = arith.constant 0 : i32
    %c0_i32_2 = arith.constant 0 : i32
    return %c0_i32, %c0_i32_0, %c0_i32_1 : i32, i32, i32
  }
  func.func @transform_4(%arg0: i32) -> (i32, i32, i32) {
    %c0_i32 = arith.constant 0 : i32
    %c0_i32_0 = arith.constant 0 : i32
    %c0_i32_1 = arith.constant 0 : i32
    %c0_i32_2 = arith.constant 0 : i32
    return %c0_i32, %c0_i32_0, %c0_i32_1 : i32, i32, i32
  }
  func.func @transform_5(%arg0: i32) -> (i32, i32) {
    %c0_i32 = arith.constant 0 : i32
    %c0_i32_0 = arith.constant 0 : i32
    %c0_i32_1 = arith.constant 0 : i32
    return %c0_i32, %c0_i32_0 : i32, i32
  }
  func.func @transform_6(%arg0: i32) -> (i32, i32, i32) {
    %c0_i32 = arith.constant 0 : i32
    %c0_i32_0 = arith.constant 0 : i32
    %c0_i32_1 = arith.constant 0 : i32
    %c0_i32_2 = arith.constant 0 : i32
    return %c0_i32, %c0_i32_0, %c0_i32_1 : i32, i32, i32
  }
  func.func @transform_7(%arg0: i32) -> (i32, i32) {
    %c0_i32 = arith.constant 0 : i32
    %c0_i32_0 = arith.constant 0 : i32
    %c0_i32_1 = arith.constant 0 : i32
    return %c0_i32, %c0_i32_0 : i32, i32
  }
  func.func @transform_8(%arg0: i32) -> (i32, i32, i32) {
    %c0_i32 = arith.constant 0 : i32
    %c0_i32_0 = arith.constant 0 : i32
    %c0_i32_1 = arith.constant 0 : i32
    return %arg0, %c0_i32, %c0_i32_0 : i32, i32, i32
  }
}

</mosaic_0001>

<llo_original>
// kernel: efficientnet_forward.1
$region0: #{efficientnet_forward.1}
  #allocation0 [shape = 'u32[]', space=smem, size = 0x4, offset = 0x4, fixed_abs, tag = 'smem constant byte address 0x4 - core index']
  #allocation1 [shape = 'u32[144,128]{1,0:T(1,128)}', space=vmem, size = 0x12000, scoped, tag = 'internal scratch']
  %s0 = inlined_call_operand.vmem [shape: f32[2,256,128], index: 0, kind: input, shape index: {}]
  %s1 = inlined_call_operand.vmem [shape: f32[9,64,256], index: 1, kind: input, shape index: {}]
  %s2 = inlined_call_operand.hbm [shape: f32[9,64,64], index: 2, kind: input, shape index: {}]
  %s3 = inlined_call_operand.vmem [shape: f32[9,16,64], index: 3, kind: input, shape index: {}]
  %s4 = inlined_call_operand.hbm [shape: f32[9,128,128], index: 4, kind: input, shape index: {}]
  %s5 = inlined_call_operand.vmem [shape: f32[18,128], index: 5, kind: input, shape index: {}]
  %s6 = inlined_call_operand.hbm [shape: f32[9,128,128], index: 6, kind: input, shape index: {}]
  %s7 = inlined_call_operand.vmem [shape: f32[19,128], index: 7, kind: input, shape index: {}]
  %s8 = inlined_call_operand.vmem [shape: f32[2,8,128], index: 8, kind: output, shape index: {}]
  %s9 = sld [smem:[#allocation0]]
  $region77: #{efficientnet_forward.1} parent=0
    _
  %s11 = ssub.s32 1, %s9
  %s12 = scalar_select 0, %s11, %s9
  $region1: #{efficientnet_forward.1} parent=0
    #allocation2 [shape = 'u8[294912]{0}', space=vmem, size = 0x48000, scoped, tag = 'input window, operand 2, single buffered']
    #allocation3 [shape = 's32[2]{0}', space=sflag, size = 0x8, scoped, tag = 'scoped memory for efficientnet_forward.1']
    #allocation4 [shape = 'u8[589824]{0}', space=vmem, size = 0x90000, scoped, tag = 'input window, operand 4, single buffered']
    #allocation5 [shape = 's32[1]{0}', space=sflag, size = 0x4, scoped, tag = 'scoped memory for efficientnet_forward.1']
    #allocation6 [shape = 'u8[589824]{0}', space=vmem, size = 0x90000, scoped, tag = 'input window, operand 6, single buffered']
    %13 = vsyncpa [#allocation3], 0
    %14 = vsyncpa [#allocation5], 0
    loop: start=0, step=1, limit=4
    $region2: #{efficientnet_forward.1} parent=1 // loop_pre_header
      _
    $region3: #{efficientnet_forward.1} parent=1 // loop_header
      %s16 = sphi 0, %s20
      %p17 = scmp.ge.s32.totalorder %s16, 4
      %s26 = sphi 0, %s28
      %s29 = sphi 0, %s26
      %s30 = sphi 0, %s29
      %s46 = sphi 0, %s30
      %s50 = sphi 0, %s50
      %s52 = sphi 0, %s50
      %s53 = sphi 0, %s52
      %s67 = sphi 0, %s53
      %s71 = sphi 0, %s71
      %s73 = sphi 0, %s71
      %s74 = sphi 0, %s73
      %s88 = sphi 0, %s74
      %s92 = sphi 0, %s92
      %s94 = sphi 0, %s92
      %s95 = sphi 0, %s94
      %s109 = sphi 0, %s95
      %s113 = sphi 0, %s113
      %s115 = sphi 0, %s113
      %s116 = sphi 0, %s115
      %s130 = sphi 0, %s116
      %s134 = sphi 0, %s134
      %s136 = sphi 0, %s134
      %s137 = sphi 0, %s136
      %s151 = sphi 0, %s137
      %s155 = sphi 0, %s155
      %s157 = sphi 0, %s155
      %s158 = sphi 0, %s157
      %s172 = sphi 0, %s158
      %s176 = sphi 0, %s176
      %s178 = sphi 0, %s176
      %s179 = sphi 0, %s178
      %s193 = sphi 0, %s179
      %s199 = sphi 0, %s201
      %s202 = sphi 0, %s199
      %s203 = sphi 0, %s202
      %s219 = sphi 0, %s203
    $region4: #{efficientnet_forward.1} parent=1 // loop_header_branch
      %19 = sbr.rel (%p17) target = $region8
    $region5: #{efficientnet_forward.1} parent=1 // loop_body
      %s21 = ssub.s32 %s16, 1
      %s22 = ssub.s32 %s16, 2
      %s23 = sadd.s32 %s16, 1
      %s24 = ssub.s32 %s16, %s23
      %p25 = scmp.eq.s32.totalorder %s24, 0
      %s27 = sadd.s32 %s26, 1
      %s28 = scalar_select %p25, %s26, %s27
      %p31 = pneg %p25
      %p32 = scmp.eq.s32.totalorder %s16, 1
      %p33 = por %p31, %p32
      %p34 = scmp.ne.s32.totalorder %s26, %s29
      %p35 = scmp.eq.s32.totalorder %s16, 0
      %p36 = por %p34, %p35
      %p37 = scmp.ne.s32.totalorder %s26, %s29
      %p38 = scmp.eq.s32.totalorder %s21, 1
      %p39 = por %p37, %p38
      %p40 = scmp.ne.s32.totalorder %s29, %s30
      %p41 = scmp.eq.s32.totalorder %s21, 0
      %p42 = por %p40, %p41
      %p43 = scmp.ne.s32.totalorder %s29, %s30
      %p44 = scmp.eq.s32.totalorder %s22, 1
      %p45 = por %p43, %p44
      %p47 = scmp.ne.s32.totalorder %s30, %s46
      %p48 = scmp.eq.s32.totalorder %s22, 0
      %p49 = por %p47, %p48
      %s51 = sadd.s32 %s50, 1
      %p54 = scmp.eq.s32.totalorder %s16, 1
      %p55 = scmp.ne.s32.totalorder %s50, %s52
      %p56 = scmp.eq.s32.totalorder %s16, 0
      %p57 = por %p55, %p56
      %p58 = scmp.ne.s32.totalorder %s50, %s52
      %p59 = scmp.eq.s32.totalorder %s21, 1
      %p60 = por %p58, %p59
      %p61 = scmp.ne.s32.totalorder %s52, %s53
      %p62 = scmp.eq.s32.totalorder %s21, 0
      %p63 = por %p61, %p62
      %p64 = scmp.ne.s32.totalorder %s52, %s53
      %p65 = scmp.eq.s32.totalorder %s22, 1
      %p66 = por %p64, %p65
      %p68 = scmp.ne.s32.totalorder %s53, %s67
      %p69 = scmp.eq.s32.totalorder %s22, 0
      %p70 = por %p68, %p69
      %s72 = sadd.s32 %s71, 1
      %p75 = scmp.eq.s32.totalorder %s16, 1
      %p76 = scmp.ne.s32.totalorder %s71, %s73
      %p77 = scmp.eq.s32.totalorder %s16, 0
      %p78 = por %p76, %p77
      %p79 = scmp.ne.s32.totalorder %s71, %s73
      %p80 = scmp.eq.s32.totalorder %s21, 1
      %p81 = por %p79, %p80
      %p82 = scmp.ne.s32.totalorder %s73, %s74
      %p83 = scmp.eq.s32.totalorder %s21, 0
      %p84 = por %p82, %p83
      %p85 = scmp.ne.s32.totalorder %s73, %s74
      %p86 = scmp.eq.s32.totalorder %s22, 1
      %p87 = por %p85, %p86
      %p89 = scmp.ne.s32.totalorder %s74, %s88
      %p90 = scmp.eq.s32.totalorder %s22, 0
      %p91 = por %p89, %p90
      %s93 = sadd.s32 %s92, 1
      %p96 = scmp.eq.s32.totalorder %s16, 1
      %p97 = scmp.ne.s32.totalorder %s92, %s94
      %p98 = scmp.eq.s32.totalorder %s16, 0
      %p99 = por %p97, %p98
      %p100 = scmp.ne.s32.totalorder %s92, %s94
      %p101 = scmp.eq.s32.totalorder %s21, 1
      %p102 = por %p100, %p101
      %p103 = scmp.ne.s32.totalorder %s94, %s95
      %p104 = scmp.eq.s32.totalorder %s21, 0
      %p105 = por %p103, %p104
      %p106 = scmp.ne.s32.totalorder %s94, %s95
      %p107 = scmp.eq.s32.totalorder %s22, 1
      %p108 = por %p106, %p107
      %p110 = scmp.ne.s32.totalorder %s95, %s109
      %p111 = scmp.eq.s32.totalorder %s22, 0
      %p112 = por %p110, %p111
      %s114 = sadd.s32 %s113, 1
      %p117 = scmp.eq.s32.totalorder %s16, 1
      %p118 = scmp.ne.s32.totalorder %s113, %s115
      %p119 = scmp.eq.s32.totalorder %s16, 0
      %p120 = por %p118, %p119
      %p121 = scmp.ne.s32.totalorder %s113, %s115
      %p122 = scmp.eq.s32.totalorder %s21, 1
      %p123 = por %p121, %p122
      %p124 = scmp.ne.s32.totalorder %s115, %s116
      %p125 = scmp.eq.s32.totalorder %s21, 0
      %p126 = por %p124, %p125
      %p127 = scmp.ne.s32.totalorder %s115, %s116
      %p128 = scmp.eq.s32.totalorder %s22, 1
      %p129 = por %p127, %p128
      %p131 = scmp.ne.s32.totalorder %s116, %s130
      %p132 = scmp.eq.s32.totalorder %s22, 0
      %p133 = por %p131, %p132
      %s135 = sadd.s32 %s134, 1
      %p138 = scmp.eq.s32.totalorder %s16, 1
      %p139 = scmp.ne.s32.totalorder %s134, %s136
      %p140 = scmp.eq.s32.totalorder %s16, 0
      %p141 = por %p139, %p140
      %p142 = scmp.ne.s32.totalorder %s134, %s136
      %p143 = scmp.eq.s32.totalorder %s21, 1
      %p144 = por %p142, %p143
      %p145 = scmp.ne.s32.totalorder %s136, %s137
      %p146 = scmp.eq.s32.totalorder %s21, 0
      %p147 = por %p145, %p146
      %p148 = scmp.ne.s32.totalorder %s136, %s137
      %p149 = scmp.eq.s32.totalorder %s22, 1
      %p150 = por %p148, %p149
      %p152 = scmp.ne.s32.totalorder %s137, %s151
      %p153 = scmp.eq.s32.totalorder %s22, 0
      %p154 = por %p152, %p153
      %s156 = sadd.s32 %s155, 1
      %p159 = scmp.eq.s32.totalorder %s16, 1
      %p160 = scmp.ne.s32.totalorder %s155, %s157
      %p161 = scmp.eq.s32.totalorder %s16, 0
      %p162 = por %p160, %p161
      %p163 = scmp.ne.s32.totalorder %s155, %s157
      %p164 = scmp.eq.s32.totalorder %s21, 1
      %p165 = por %p163, %p164
      %p166 = scmp.ne.s32.totalorder %s157, %s158
      %p167 = scmp.eq.s32.totalorder %s21, 0
      %p168 = por %p166, %p167
      %p169 = scmp.ne.s32.totalorder %s157, %s158
      %p170 = scmp.eq.s32.totalorder %s22, 1
      %p171 = por %p169, %p170
      %p173 = scmp.ne.s32.totalorder %s158, %s172
      %p174 = scmp.eq.s32.totalorder %s22, 0
      %p175 = por %p173, %p174
      %s177 = sadd.s32 %s176, 1
      %p180 = scmp.eq.s32.totalorder %s16, 1
      %p181 = scmp.ne.s32.totalorder %s176, %s178
      %p182 = scmp.eq.s32.totalorder %s16, 0
      %p183 = por %p181, %p182
      %p184 = scmp.ne.s32.totalorder %s176, %s178
      %p185 = scmp.eq.s32.totalorder %s21, 1
      %p186 = por %p184, %p185
      %p187 = scmp.ne.s32.totalorder %s178, %s179
      %p188 = scmp.eq.s32.totalorder %s21, 0
      %p189 = por %p187, %p188
      %p190 = scmp.ne.s32.totalorder %s178, %s179
      %p191 = scmp.eq.s32.totalorder %s22, 1
      %p192 = por %p190, %p191
      %p194 = scmp.ne.s32.totalorder %s179, %s193
      %p195 = scmp.eq.s32.totalorder %s22, 0
      %p196 = por %p194, %p195
      %s197 = ssub.s32 %s16, %s23
      %p198 = scmp.eq.s32.totalorder %s197, 0
      %s200 = sadd.s32 %s199, 1
      %s201 = scalar_select %p198, %s199, %s200
      %p204 = pneg %p198
      %p205 = scmp.eq.s32.totalorder %s16, 1
      %p206 = por %p204, %p205
      %p207 = scmp.ne.s32.totalorder %s199, %s202
      %p208 = scmp.eq.s32.totalorder %s16, 0
      %p209 = por %p207, %p208
      %p210 = scmp.ne.s32.totalorder %s199, %s202
      %p211 = scmp.eq.s32.totalorder %s21, 1
      %p212 = por %p210, %p211
      %p213 = scmp.ne.s32.totalorder %s202, %s203
      %p214 = scmp.eq.s32.totalorder %s21, 0
      %p215 = por %p213, %p214
      %p216 = scmp.ne.s32.totalorder %s202, %s203
      %p217 = scmp.eq.s32.totalorder %s22, 1
      %p218 = por %p216, %p217
      %p220 = scmp.ne.s32.totalorder %s203, %s219
      %p221 = scmp.eq.s32.totalorder %s22, 0
      %p222 = por %p220, %p221
      %p223 = scmp.le.s32.totalorder 1, %s16
      %p224 = scmp.lt.s32.totalorder %s16, 3
      %p225 = pnand %p223, %p224
      %p226 = pneg %p225
      // Predicated region
      $region9: #{efficientnet_forward.1} parent=5 // pred_check
        _
      $region10: #{efficientnet_forward.1} parent=5 // pred_check_branch
        %228 = sbr.rel (%p225) target = $region12
      $region11: #{efficientnet_forward.1} parent=5 // pred_region
        %s229 = ssub.s32 %s16, 1
        // Predicated region
        $region13: #{efficientnet_forward.1} parent=11 // pred_check
          %p230 = pneg %p63
        $region14: #{efficientnet_forward.1} parent=11 // pred_check_branch
          %232 = sbr.rel (%p230) target = $region16
        $region15: #{efficientnet_forward.1} parent=11 // pred_region
          _
        $region16: #{efficientnet_forward.1} parent=11 // pred_fallthru
          _
        // Predicated region
        $region17: #{efficientnet_forward.1} parent=11 // pred_check
          %p233 = pneg %p84
        $region18: #{efficientnet_forward.1} parent=11 // pred_check_branch
          %235 = sbr.rel (%p233) target = $region20
        $region19: #{efficientnet_forward.1} parent=11 // pred_region
          %s237 = ssub.s32 9216, 9216
          %238 = vsyncadd [#allocation3], %s237
          %s239 = sshll.u32 [#allocation2], 4
          %s240 = int_to_ptr.vmem [resolvable:$true] %s239
          %245 = dma.hbm_to_vmem [thread:$0]  %s2, 9216, %s240, [#allocation3], 128, 128, 8
        $region20: #{efficientnet_forward.1} parent=11 // pred_fallthru
          _
        // Predicated region
        $region21: #{efficientnet_forward.1} parent=11 // pred_check
          %p246 = pneg %p105
        $region22: #{efficientnet_forward.1} parent=11 // pred_check_branch
          %248 = sbr.rel (%p246) target = $region24
        $region23: #{efficientnet_forward.1} parent=11 // pred_region
          _
        $region24: #{efficientnet_forward.1} parent=11 // pred_fallthru
          _
        // Predicated region
        $region25: #{efficientnet_forward.1} parent=11 // pred_check
          %p249 = pneg %p126
        $region26: #{efficientnet_forward.1} parent=11 // pred_check_branch
          %251 = sbr.rel (%p249) target = $region28
        $region27: #{efficientnet_forward.1} parent=11 // pred_region
          %s253 = ssub.s32 18432, 18432
          %254 = vsyncadd [#allocation5], %s253
          %s255 = sshll.u32 [#allocation4], 4
          %s256 = int_to_ptr.vmem [resolvable:$true] %s255
          %261 = dma.hbm_to_vmem [thread:$0]  %s4, 18432, %s256, [#allocation5], 128, 128, 8
        $region28: #{efficientnet_forward.1} parent=11 // pred_fallthru
          _
        // Predicated region
        $region29: #{efficientnet_forward.1} parent=11 // pred_check
          %p262 = pneg %p147
        $region30: #{efficientnet_forward.1} parent=11 // pred_check_branch
          %264 = sbr.rel (%p262) target = $region32
        $region31: #{efficientnet_forward.1} parent=11 // pred_region
          _
        $region32: #{efficientnet_forward.1} parent=11 // pred_fallthru
          _
        // Predicated region
        $region33: #{efficientnet_forward.1} parent=11 // pred_check
          %p265 = pneg %p168
        $region34: #{efficientnet_forward.1} parent=11 // pred_check_branch
          %267 = sbr.rel (%p265) target = $region36
        $region35: #{efficientnet_forward.1} parent=11 // pred_region
          %s269 = ssub.s32 18432, 18432
          %270 = vsyncadd [#allocation5], %s269
          %s271 = sshll.u32 [#allocation6], 4
          %s272 = int_to_ptr.vmem [resolvable:$true] %s271
          %277 = dma.hbm_to_vmem [thread:$0]  %s6, 18432, %s272, [#allocation5], 128, 128, 8
        $region36: #{efficientnet_forward.1} parent=11 // pred_fallthru
          _
        // Predicated region
        $region37: #{efficientnet_forward.1} parent=11 // pred_check
          %p278 = pneg %p189
        $region38: #{efficientnet_forward.1} parent=11 // pred_check_branch
          %280 = sbr.rel (%p278) target = $region40
        $region39: #{efficientnet_forward.1} parent=11 // pred_region
          _
        $region40: #{efficientnet_forward.1} parent=11 // pred_fallthru
          _
      $region12: #{efficientnet_forward.1} parent=5 // pred_fallthru
        _
      %p281 = scmp.lt.s32.totalorder %s16, 2
      // Predicated region
      $region41: #{efficientnet_forward.1} parent=5 // pred_check
        %p282 = pneg %p281
      $region42: #{efficientnet_forward.1} parent=5 // pred_check_branch
        %284 = sbr.rel (%p282) target = $region44
      $region43: #{efficientnet_forward.1} parent=5 // pred_region
        // Predicated region
        $region45: #{efficientnet_forward.1} parent=43 // pred_check
          %p285 = pneg %p36
        $region46: #{efficientnet_forward.1} parent=43 // pred_check_branch
          %287 = sbr.rel (%p285) target = $region48
        $region47: #{efficientnet_forward.1} parent=43 // pred_region
          %p288 = scmp.lt.s32.totalorder %s16, 1
          %s289 = scalar_select %p288, %s16, 1
          %s290 = smul.addr %s289, 32
          %s291 = smul.addr %s290, 8
          %s292 = scalar_lea.vmem %s0, %s291
        $region48: #{efficientnet_forward.1} parent=43 // pred_fallthru
          _
      $region44: #{efficientnet_forward.1} parent=5 // pred_fallthru
        _
      %p293 = scmp.le.s32.totalorder 1, %s16
      %p294 = scmp.lt.s32.totalorder %s16, 3
      %p295 = pnand %p293, %p294
      %p296 = pneg %p295
      // Predicated region
      $region49: #{efficientnet_forward.1} parent=5 // pred_check
        _
      $region50: #{efficientnet_forward.1} parent=5 // pred_check_branch
        %298 = sbr.rel (%p295) target = $region52
      $region51: #{efficientnet_forward.1} parent=5 // pred_region
        %s299 = ssub.s32 %s16, 1
        // Predicated region
        $region53: #{efficientnet_forward.1} parent=51 // pred_check
          %p300 = pneg %p84
        $region54: #{efficientnet_forward.1} parent=51 // pred_check_branch
          %302 = sbr.rel (%p300) target = $region56
        $region55: #{efficientnet_forward.1} parent=51 // pred_region
          %303 = dma.done [#allocation3], 9216
        $region56: #{efficientnet_forward.1} parent=51 // pred_fallthru
          _
        // Predicated region
        $region57: #{efficientnet_forward.1} parent=51 // pred_check
          %p304 = pneg %p126
        $region58: #{efficientnet_forward.1} parent=51 // pred_check_branch
          %306 = sbr.rel (%p304) target = $region60
        $region59: #{efficientnet_forward.1} parent=51 // pred_region
          %307 = dma.done [#allocation5], 18432
        $region60: #{efficientnet_forward.1} parent=51 // pred_fallthru
          _
        // Predicated region
        $region61: #{efficientnet_forward.1} parent=51 // pred_check
          %p308 = pneg %p168
        $region62: #{efficientnet_forward.1} parent=51 // pred_check_branch
          %310 = sbr.rel (%p308) target = $region64
        $region63: #{efficientnet_forward.1} parent=51 // pred_region
          %311 = dma.done [#allocation5], 18432
        $region64: #{efficientnet_forward.1} parent=51 // pred_fallthru
          _
        %p312 = scmp.lt.s32.totalorder %s21, 1
        %s313 = scalar_select %p312, %s21, 1
        %s314 = smul.addr %s313, 32
        %s315 = smul.addr %s314, 8
        %s316 = scalar_lea.vmem %s0, %s315
        %p317 = pneg %p42
        %p318 = pneg %p39
        %p319 = pneg %p63
        %p320 = pneg %p60
        %p321 = pneg %p84
        %p322 = pneg %p81
        %p323 = pneg %p105
        %p324 = pneg %p102
        %p325 = pneg %p126
        %p326 = pneg %p123
        %p327 = pneg %p147
        %p328 = pneg %p144
        %p329 = pneg %p168
        %p330 = pneg %p165
        %p331 = pneg %p189
        %p332 = pneg %p186
        %p333 = pneg %p215
        %p334 = pneg %p212
        %p335 = scmp.lt.s32.totalorder %s21, 1
        %s336 = scalar_select %p335, %s21, 1
        %s337 = smul.addr %s336, 8
        %s338 = scalar_lea.vmem %s8, %s337
        %p339 = scmp.lt.s32.totalorder %s21, 1
        %s340 = scalar_select %p339, %s21, 1
        %s341 = smul.addr %s340, 32
        %s342 = smul.addr %s341, 8
        %s343 = scalar_lea.vmem %s0, %s342
        %p344 = scmp.lt.s32.totalorder %s21, 1
        %s345 = scalar_select %p344, %s21, 1
        %s346 = smul.addr %s345, 8
        %s347 = scalar_lea.vmem %s8, %s346
        %v348 = vld [vmem:[%s343] sm:$0xff]
        %v349 = vld [vmem:[%s343 + $0x8] sm:$0xff]
        %v350 = vld [vmem:[%s343 + $0x10] sm:$0xff]
        %v351 = vld [vmem:[%s343 + $0x18] sm:$0xff]
        %v352 = vld [vmem:[%s343 + $0x20] sm:$0xff]
        %v353 = vld [vmem:[%s343 + $0x28] sm:$0xff]
        %v354 = vld [vmem:[%s343 + $0x30] sm:$0xff]
        %v355 = vld [vmem:[%s343 + $0x38] sm:$0xff]
        %v356 = vld [vmem:[%s343 + $0x40] sm:$0xff]
        %v357 = vld [vmem:[%s343 + $0x48] sm:$0xff]
        %v358 = vld [vmem:[%s343 + $0x50] sm:$0xff]
        %v359 = vld [vmem:[%s343 + $0x58] sm:$0xff]
        %v360 = vld [vmem:[%s343 + $0x60] sm:$0xff]
        %v361 = vld [vmem:[%s343 + $0x68] sm:$0xff]
        %v362 = vld [vmem:[%s343 + $0x70] sm:$0xff]
        %v363 = vld [vmem:[%s343 + $0x78] sm:$0xff]
        %v364 = vld [vmem:[%s343 + $0x80] sm:$0xff]
        %v365 = vld [vmem:[%s343 + $0x88] sm:$0xff]
        %v366 = vld [vmem:[%s343 + $0x90] sm:$0xff]
        %v367 = vld [vmem:[%s343 + $0x98] sm:$0xff]
        %v368 = vld [vmem:[%s343 + $0xa0] sm:$0xff]
        %v369 = vld [vmem:[%s343 + $0xa8] sm:$0xff]
        %v370 = vld [vmem:[%s343 + $0xb0] sm:$0xff]
        %v371 = vld [vmem:[%s343 + $0xb8] sm:$0xff]
        %v372 = vld [vmem:[%s343 + $0xc0] sm:$0xff]
        %v373 = vld [vmem:[%s343 + $0xc8] sm:$0xff]
        %v374 = vld [vmem:[%s343 + $0xd0] sm:$0xff]
        %v375 = vld [vmem:[%s343 + $0xd8] sm:$0xff]
        %v376 = vld [vmem:[%s343 + $0xe0] sm:$0xff]
        %v377 = vld [vmem:[%s343 + $0xe8] sm:$0xff]
        %v378 = vld [vmem:[%s343 + $0xf0] sm:$0xff]
        %v379 = vld [vmem:[%s343 + $0xf8] sm:$0xff]
        %v380 = vld [vmem:[%s1] sm:$0xff]
        %v381 = vld [vmem:[%s1 + $0x8] sm:$0xff]
        %v382 = vld [vmem:[%s1 + $0x10] sm:$0xff]
        %v383 = vld [vmem:[%s1 + $0x18] sm:$0xff]
        %v384 = vld [vmem:[%s1 + $0x20] sm:$0xff]
        %v385 = vld [vmem:[%s1 + $0x28] sm:$0xff]
        %v386 = vld [vmem:[%s1 + $0x30] sm:$0xff]
        %v387 = vld [vmem:[%s1 + $0x38] sm:$0xff]
        %v388 = vld [vmem:[%s1 + $0x40] sm:$0xff]
        %v389 = vld [vmem:[%s1 + $0x48] sm:$0xff]
        %v390 = vld [vmem:[%s1 + $0x50] sm:$0xff]
        %v391 = vld [vmem:[%s1 + $0x58] sm:$0xff]
        %v392 = vld [vmem:[%s1 + $0x60] sm:$0xff]
        %v393 = vld [vmem:[%s1 + $0x68] sm:$0xff]
        %v394 = vld [vmem:[%s1 + $0x70] sm:$0xff]
        %v395 = vld [vmem:[%s1 + $0x78] sm:$0xff]
        %396 = vmatprep.subr.mxu0 0.0
        %397 = vmatpush1.msra.mxu0 %v348
        %398 = vmatprep.subr.mxu0 0.0
        %399 = vmatpush1.msra.mxu0 %v349
        %400 = vmatprep.subr.mxu0 0.0
        %401 = vmatpush1.msra.mxu0 %v350
        %402 = vmatprep.subr.mxu0 0.0
        %403 = vmatpush1.msra.mxu0 %v351
        %404 = vmatprep.subr.mxu0 0.0
        %405 = vmatpush1.msra.mxu0 %v352
        %406 = vmatprep.subr.mxu0 0.0
        %407 = vmatpush1.msra.mxu0 %v353
        %408 = vmatprep.subr.mxu0 0.0
        %409 = vmatpush1.msra.mxu0 %v354
        %410 = vmatprep.subr.mxu0 0.0
        %411 = vmatpush1.msra.mxu0 %v355
        %412 = vmatprep.subr.mxu0 0.0
        %413 = vmatpush1.msra.mxu0 %v356
        %414 = vmatprep.subr.mxu0 0.0
        %415 = vmatpush1.msra.mxu0 %v357
        %416 = vmatprep.subr.mxu0 0.0
        %417 = vmatpush1.msra.mxu0 %v358
        %418 = vmatprep.subr.mxu0 0.0
        %419 = vmatpush1.msra.mxu0 %v359
        %420 = vmatprep.subr.mxu0 0.0
        %421 = vmatpush1.msra.mxu0 %v360
        %422 = vmatprep.subr.mxu0 0.0
        %423 = vmatpush1.msra.mxu0 %v361
        %424 = vmatprep.subr.mxu0 0.0
        %425 = vmatpush1.msra.mxu0 %v362
        %426 = vmatprep.subr.mxu0 0.0
        %427 = vmatpush1.msra.mxu0 %v363
        %428 = vmatprep.subr.mxu0 0.0
        %429 = vmatpush1.msra.mxu0 %v364
        %430 = vmatprep.subr.mxu0 0.0
        %431 = vmatpush1.msra.mxu0 %v365
        %432 = vmatprep.subr.mxu0 0.0
        %433 = vmatpush1.msra.mxu0 %v366
        %434 = vmatprep.subr.mxu0 0.0
        %435 = vmatpush1.msra.mxu0 %v367
        %436 = vmatprep.subr.mxu0 0.0
        %437 = vmatpush1.msra.mxu0 %v368
        %438 = vmatprep.subr.mxu0 0.0
        %439 = vmatpush1.msra.mxu0 %v369
        %440 = vmatprep.subr.mxu0 0.0
        %441 = vmatpush1.msra.mxu0 %v370
        %442 = vmatprep.subr.mxu0 0.0
        %443 = vmatpush1.msra.mxu0 %v371
        %444 = vmatprep.subr.mxu0 0.0
        %445 = vmatpush1.msra.mxu0 %v372
        %446 = vmatprep.subr.mxu0 0.0
        %447 = vmatpush1.msra.mxu0 %v373
        %448 = vmatprep.subr.mxu0 0.0
        %449 = vmatpush1.msra.mxu0 %v374
        %450 = vmatprep.subr.mxu0 0.0
        %451 = vmatpush1.msra.mxu0 %v375
        %452 = vmatprep.subr.mxu0 0.0
        %453 = vmatpush1.msra.mxu0 %v376
        %454 = vmatprep.subr.mxu0 0.0
        %455 = vmatpush1.msra.mxu0 %v377
        %456 = vmatprep.subr.mxu0 0.0
        %457 = vmatpush1.msra.mxu0 %v378
        %458 = vmatprep.subr.mxu0 0.0
        %459 = vmatpush1.msra.mxu0 %v379
        %460 = vmatprep.mubr.f32.mxu0 %v381
        %461 = vmatmul.mubr.f32.gmra.mrb[0].mxu0 %v380
        %v462 = vpop.f32.mrb[0].mxu0
        %v463 = vadd.f32 0.0, %v462
        %v464 = vpop.f32.mrb[0].mxu0
        %465 = vmatprep.mubr.f32.mxu0 %v383
        %466 = vmatmul.mubr.f32.gmra.mrb[0].mxu0 %v382
        %v467 = vpop.f32.mrb[0].mxu0
        %v468 = vadd.f32 0.0, %v467
        %v469 = vpop.f32.mrb[0].mxu0
        %470 = vmatprep.mubr.f32.mxu0 %v385
        %471 = vmatmul.mubr.f32.gmra.mrb[0].mxu0 %v384
        %v472 = vpop.f32.mrb[0].mxu0
        %v473 = vadd.f32 0.0, %v472
        %v474 = vpop.f32.mrb[0].mxu0
        %475 = vmatprep.mubr.f32.mxu0 %v387
        %476 = vmatmul.mubr.f32.gmra.mrb[0].mxu0 %v386
        %v477 = vpop.f32.mrb[0].mxu0
        %v478 = vadd.f32 0.0, %v477
        %v479 = vpop.f32.mrb[0].mxu0
        %480 = vmatprep.mubr.f32.mxu0 %v389
        %481 = vmatmul.mubr.f32.gmra.mrb[0].mxu0 %v388
        %v482 = vpop.f32.mrb[0].mxu0
        %v483 = vadd.f32 0.0, %v482
        %v484 = vpop.f32.mrb[0].mxu0
        %485 = vmatprep.mubr.f32.mxu0 %v391
        %486 = vmatmul.mubr.f32.gmra.mrb[0].mxu0 %v390
        %v487 = vpop.f32.mrb[0].mxu0
        %v488 = vadd.f32 0.0, %v487
        %v489 = vpop.f32.mrb[0].mxu0
        %490 = vmatprep.mubr.f32.mxu0 %v393
        %491 = vmatmul.mubr.f32.gmra.mrb[0].mxu0 %v392
        %v492 = vpop.f32.mrb[0].mxu0
        %v493 = vadd.f32 0.0, %v492
        %v494 = vpop.f32.mrb[0].mxu0
        %495 = vmatprep.mubr.f32.mxu0 %v395
        %496 = vmatmul.mubr.f32.gmra.mrb[0].mxu0 %v394
        %v497 = vpop.f32.mrb[0].mxu0
        %v498 = vadd.f32 0.0, %v497
        %v499 = vpop.f32.mrb[0].mxu0
        %500 = vdwg.mxu0
        %v501 = vld [vmem:[#allocation4] sm:$0xff]
        %v502 = vld [vmem:[#allocation4 + $0x8] sm:$0xff]
        %v503 = vld [vmem:[#allocation4 + $0x10] sm:$0xff]
        %v504 = vld [vmem:[#allocation4 + $0x18] sm:$0xff]
        %v505 = vld [vmem:[#allocation4 + $0x20] sm:$0xff]
        %v506 = vld [vmem:[#allocation4 + $0x28] sm:$0xff]
        %v507 = vld [vmem:[#allocation4 + $0x30] sm:$0xff]
        %v508 = vld [vmem:[#allocation4 + $0x38] sm:$0xff]
        %v509 = vld [vmem:[#allocation4 + $0x40] sm:$0xff]
        %v510 = vld [vmem:[#allocation4 + $0x48] sm:$0xff]
        %v511 = vld [vmem:[#allocation4 + $0x50] sm:$0xff]
        %v512 = vld [vmem:[#allocation4 + $0x58] sm:$0xff]
        %v513 = vld [vmem:[#allocation4 + $0x60] sm:$0xff]
        %v514 = vld [vmem:[#allocation4 + $0x68] sm:$0xff]
        %v515 = vld [vmem:[#allocation4 + $0x70] sm:$0xff]
        %v516 = vld [vmem:[#allocation4 + $0x78] sm:$0xff]
        %s517 = scalar_lea.vmem %s1, 128
        %v518 = vld [vmem:[%s517] sm:$0xff]
        %v519 = vld [vmem:[%s517 + $0x8] sm:$0xff]
        %v520 = vld [vmem:[%s517 + $0x10] sm:$0xff]
        %v521 = vld [vmem:[%s517 + $0x18] sm:$0xff]
        %v522 = vld [vmem:[%s517 + $0x20] sm:$0xff]
        %v523 = vld [vmem:[%s517 + $0x28] sm:$0xff]
        %v524 = vld [vmem:[%s517 + $0x30] sm:$0xff]
        %v525 = vld [vmem:[%s517 + $0x38] sm:$0xff]
        %v526 = vld [vmem:[%s517 + $0x40] sm:$0xff]
        %v527 = vld [vmem:[%s517 + $0x48] sm:$0xff]
        %v528 = vld [vmem:[%s517 + $0x50] sm:$0xff]
        %v529 = vld [vmem:[%s517 + $0x58] sm:$0xff]
        %v530 = vld [vmem:[%s517 + $0x60] sm:$0xff]
        %v531 = vld [vmem:[%s517 + $0x68] sm:$0xff]
        %v532 = vld [vmem:[%s517 + $0x70] sm:$0xff]
        %v533 = vld [vmem:[%s517 + $0x78] sm:$0xff]
        %534 = vmatprep.subr.mxu0 0.0
        %535 = vmatpush1.msra.mxu0 %v348
        %536 = vmatprep.subr.mxu0 0.0
        %537 = vmatpush1.msra.mxu0 %v349
        %538 = vmatprep.subr.mxu0 0.0
        %539 = vmatpush1.msra.mxu0 %v350
        %540 = vmatprep.subr.mxu0 0.0
        %541 = vmatpush1.msra.mxu0 %v351
        %542 = vmatprep.subr.mxu0 0.0
        %543 = vmatpush1.msra.mxu0 %v352
        %544 = vmatprep.subr.mxu0 0.0
        %545 = vmatpush1.msra.mxu0 %v353
        %546 = vmatprep.subr.mxu0 0.0
        %547 = vmatpush1.msra.mxu0 %v354
        %548 = vmatprep.subr.mxu0 0.0
        %549 = vmatpush1.msra.mxu0 %v355
        %550 = vmatprep.subr.mxu0 0.0
        %551 = vmatpush1.msra.mxu0 %v356
        %552 = vmatprep.subr.mxu0 0.0
        %553 = vmatpush1.msra.mxu0 %v357
        %554 = vmatprep.subr.mxu0 0.0
        %555 = vmatpush1.msra.mxu0 %v358
        %556 = vmatprep.subr.mxu0 0.0
        %557 = vmatpush1.msra.mxu0 %v359
        %558 = vmatprep.subr.mxu0 0.0
        %559 = vmatpush1.msra.mxu0 %v360
        %560 = vmatprep.subr.mxu0 0.0
        %561 = vmatpush1.msra.mxu0 %v361
        %562 = vmatprep.subr.mxu0 0.0
        %563 = vmatpush1.msra.mxu0 %v362
        %564 = vmatprep.subr.mxu0 0.0
        %565 = vmatpush1.msra.mxu0 %v363
        %566 = vmatprep.subr.mxu0 0.0
        %567 = vmatpush1.msra.mxu0 %v364
        %568 = vmatprep.subr.mxu0 0.0
        %569 = vmatpush1.msra.mxu0 %v365
        %570 = vmatprep.subr.mxu0 0.0
        %571 = vmatpush1.msra.mxu0 %v366
        %572 = vmatprep.subr.mxu0 0.0
        %573 = vmatpush1.msra.mxu0 %v367
        %574 = vmatprep.subr.mxu0 0.0
        %575 = vmatpush1.msra.mxu0 %v368
        %576 = vmatprep.subr.mxu0 0.0
        %577 = vmatpush1.msra.mxu0 %v369
        %578 = vmatprep.subr.mxu0 0.0
        %579 = vmatpush1.msra.mxu0 %v370
        %580 = vmatprep.subr.mxu0 0.0
        %581 = vmatpush1.msra.mxu0 %v371
        %582 = vmatprep.subr.mxu0 0.0
        %583 = vmatpush1.msra.mxu0 %v372
        %584 = vmatprep.subr.mxu0 0.0
        %585 = vmatpush1.msra.mxu0 %v373
        %586 = vmatprep.subr.mxu0 0.0
        %587 = vmatpush1.msra.mxu0 %v374
        %588 = vmatprep.subr.mxu0 0.0
        %589 = vmatpush1.msra.mxu0 %v375
        %590 = vmatprep.subr.mxu0 0.0
        %591 = vmatpush1.msra.mxu0 %v376
        %592 = vmatprep.subr.mxu0 0.0
        %593 = vmatpush1.msra.mxu0 %v377
        %594 = vmatprep.subr.mxu0 0.0
        %595 = vmatpush1.msra.mxu0 %v378
        %596 = vmatprep.subr.mxu0 0.0
        %597 = vmatpush1.msra.mxu0 %v379
        %598 = vmatprep.mubr.f32.mxu0 %v519
        %599 = vmatmul.mubr.f32.gmra.mrb[0].mxu0 %v518
        %v600 = vpop.f32.mrb[0].mxu0
        %v601 = vadd.f32 0.0, %v600
        %v602 = vpop.f32.mrb[0].mxu0
        %603 = vmatprep.mubr.f32.mxu0 %v521
        %604 = vmatmul.mubr.f32.gmra.mrb[0].mxu0 %v520
        %v605 = vpop.f32.mrb[0].mxu0
        %v606 = vadd.f32 0.0, %v605
        %v607 = vpop.f32.mrb[0].mxu0
        %608 = vmatprep.mubr.f32.mxu0 %v523
        %609 = vmatmul.mubr.f32.gmra.mrb[0].mxu0 %v522
        %v610 = vpop.f32.mrb[0].mxu0
        %v611 = vadd.f32 0.0, %v610
        %v612 = vpop.f32.mrb[0].mxu0
        %613 = vmatprep.mubr.f32.mxu0 %v525
        %614 = vmatmul.mubr.f32.gmra.mrb[0].mxu0 %v524
        %v615 = vpop.f32.mrb[0].mxu0
        %v616 = vadd.f32 0.0, %v615
        %v617 = vpop.f32.mrb[0].mxu0
        %618 = vmatprep.mubr.f32.mxu0 %v527
        %619 = vmatmul.mubr.f32.gmra.mrb[0].mxu0 %v526
        %v620 = vpop.f32.mrb[0].mxu0
        %v621 = vadd.f32 0.0, %v620
        %v622 = vpop.f32.mrb[0].mxu0
        %623 = vmatprep.mubr.f32.mxu0 %v529
        %624 = vmatmul.mubr.f32.gmra.mrb[0].mxu0 %v528
        %v625 = vpop.f32.mrb[0].mxu0
        %v626 = vadd.f32 0.0, %v625
        %v627 = vpop.f32.mrb[0].mxu0
        %628 = vmatprep.mubr.f32.mxu0 %v531
        %629 = vmatmul.mubr.f32.gmra.mrb[0].mxu0 %v530
        %v630 = vpop.f32.mrb[0].mxu0
        %v631 = vadd.f32 0.0, %v630
        %v632 = vpop.f32.mrb[0].mxu0
        %633 = vmatprep.mubr.f32.mxu0 %v533
        %634 = vmatmul.mubr.f32.gmra.mrb[0].mxu0 %v532
        %v635 = vpop.f32.mrb[0].mxu0
        %v636 = vadd.f32 0.0, %v635
        %v637 = vpop.f32.mrb[0].mxu0
        %638 = vdwg.mxu0
        %s639 = scalar_lea.vmem [#allocation4], 128
        %v640 = vld [vmem:[%s639] sm:$0xff]
        %v641 = vld [vmem:[%s639 + $0x8] sm:$0xff]
        %v642 = vld [vmem:[%s639 + $0x10] sm:$0xff]
        %v643 = vld [vmem:[%s639 + $0x18] sm:$0xff]
        %v644 = vld [vmem:[%s639 + $0x20] sm:$0xff]
        %v645 = vld [vmem:[%s639 + $0x28] sm:$0xff]
        %v646 = vld [vmem:[%s639 + $0x30] sm:$0xff]
        %v647 = vld [vmem:[%s639 + $0x38] sm:$0xff]
        %v648 = vld [vmem:[%s639 + $0x40] sm:$0xff]
        %v649 = vld [vmem:[%s639 + $0x48] sm:$0xff]
        %v650 = vld [vmem:[%s639 + $0x50] sm:$0xff]
        %v651 = vld [vmem:[%s639 + $0x58] sm:$0xff]
        %v652 = vld [vmem:[%s639 + $0x60] sm:$0xff]
        %v653 = vld [vmem:[%s639 + $0x68] sm:$0xff]
        %v654 = vld [vmem:[%s639 + $0x70] sm:$0xff]
        %v655 = vld [vmem:[%s639 + $0x78] sm:$0xff]
        %656 = vmatprep.subr.mxu0 0.0
        %657 = vmatpush1.msra.mxu0 %v640
        %658 = vmatprep.subr.mxu0 0.0
        %659 = vmatpush1.msra.mxu0 %v641
        %660 = vmatprep.subr.mxu0 0.0
        %661 = vmatpush1.msra.mxu0 %v642
        %662 = vmatprep.subr.mxu0 0.0
        %663 = vmatpush1.msra.mxu0 %v643
        %664 = vmatprep.subr.mxu0 0.0
        %665 = vmatpush1.msra.mxu0 %v644
        %666 = vmatprep.subr.mxu0 0.0
        %667 = vmatpush1.msra.mxu0 %v645
        %668 = vmatprep.subr.mxu0 0.0
        %669 = vmatpush1.msra.mxu0 %v646
        %670 = vmatprep.subr.mxu0 0.0
        %671 = vmatpush1.msra.mxu0 %v647
        %672 = vmatprep.subr.mxu0 0.0
        %673 = vmatpush1.msra.mxu0 %v648
        %674 = vmatprep.subr.mxu0 0.0
        %675 = vmatpush1.msra.mxu0 %v649
        %676 = vmatprep.subr.mxu0 0.0
        %677 = vmatpush1.msra.mxu0 %v650
        %678 = vmatprep.subr.mxu0 0.0
        %679 = vmatpush1.msra.mxu0 %v651
        %680 = vmatprep.subr.mxu0 0.0
        %681 = vmatpush1.msra.mxu0 %v652
        %682 = vmatprep.subr.mxu0 0.0
        %683 = vmatpush1.msra.mxu0 %v653
        %684 = vmatprep.subr.mxu0 0.0
        %685 = vmatpush1.msra.mxu0 %v654
        %686 = vmatprep.subr.mxu0 0.0
        %687 = vmatpush1.msra.mxu0 %v655
        %688 = vmatprep.subr.mxu0 0.0
        %689 = vmatpush1.msra.mxu0 0.0
        %690 = vmatprep.subr.mxu0 0.0
        %691 = vmatpush1.msra.mxu0 0.0
        %692 = vmatprep.subr.mxu0 0.0
        %693 = vmatpush1.msra.mxu0 0.0
        %694 = vmatprep.subr.mxu0 0.0
        %695 = vmatpush1.msra.mxu0 0.0
        %696 = vmatprep.subr.mxu0 0.0
        %697 = vmatpush1.msra.mxu0 0.0
        %698 = vmatprep.subr.mxu0 0.0
        %699 = vmatpush1.msra.mxu0 0.0
        %700 = vmatprep.subr.mxu0 0.0
        %701 = vmatpush1.msra.mxu0 0.0
        %702 = vmatprep.subr.mxu0 0.0
        %703 = vmatpush1.msra.mxu0 0.0
        %704 = vmatprep.subr.mxu0 0.0
        %705 = vmatpush1.msra.mxu0 0.0
        %706 = vmatprep.subr.mxu0 0.0
        %707 = vmatpush1.msra.mxu0 0.0
        %708 = vmatprep.subr.mxu0 0.0
        %709 = vmatpush1.msra.mxu0 0.0
        %710 = vmatprep.subr.mxu0 0.0
        %711 = vmatpush1.msra.mxu0 0.0
        %712 = vmatprep.subr.mxu0 0.0
        %713 = vmatpush1.msra.mxu0 0.0
        %714 = vmatprep.subr.mxu0 0.0
        %715 = vmatpush1.msra.mxu0 0.0
        %716 = vmatprep.subr.mxu0 0.0
        %717 = vmatpush1.msra.mxu0 0.0
        %718 = vmatprep.subr.mxu0 0.0
        %719 = vmatpush1.msra.mxu0 0.0
        %720 = vmatprep.mubr.f32.mxu0 0.0
        %721 = vmatmul.mubr.f32.gmra.mrb[0].mxu0 %v601
        %v722 = vpop.f32.mrb[0].mxu0
        %v723 = vadd.f32 0.0, %v722
        %v724 = vpop.f32.mrb[0].mxu0
        %725 = vmatprep.mubr.f32.mxu0 0.0
        %726 = vmatmul.mubr.f32.gmra.mrb[0].mxu0 %v606
        %v727 = vpop.f32.mrb[0].mxu0
        %v728 = vadd.f32 0.0, %v727
        %v729 = vpop.f32.mrb[0].mxu0
        %730 = vmatprep.mubr.f32.mxu0 0.0
        %731 = vmatmul.mubr.f32.gmra.mrb[0].mxu0 %v611
        %v732 = vpop.f32.mrb[0].mxu0
        %v733 = vadd.f32 0.0, %v732
        %v734 = vpop.f32.mrb[0].mxu0
        %735 = vmatprep.mubr.f32.mxu0 0.0
        %736 = vmatmul.mubr.f32.gmra.mrb[0].mxu0 %v616
        %v737 = vpop.f32.mrb[0].mxu0
        %v738 = vadd.f32 0.0, %v737
        %v739 = vpop.f32.mrb[0].mxu0
        %740 = vmatprep.mubr.f32.mxu0 0.0
        %741 = vmatmul.mubr.f32.gmra.mrb[0].mxu0 %v621
        %v742 = vpop.f32.mrb[0].mxu0
        %v743 = vadd.f32 0.0, %v742
        %v744 = vpop.f32.mrb[0].mxu0
        %745 = vmatprep.mubr.f32.mxu0 0.0
        %746 = vmatmul.mubr.f32.gmra.mrb[0].mxu0 %v626
        %v747 = vpop.f32.mrb[0].mxu0
        %v748 = vadd.f32 0.0, %v747
        %v749 = vpop.f32.mrb[0].mxu0
        %750 = vmatprep.mubr.f32.mxu0 0.0
        %751 = vmatmul.mubr.f32.gmra.mrb[0].mxu0 %v631
        %v752 = vpop.f32.mrb[0].mxu0
        %v753 = vadd.f32 0.0, %v752
        %v754 = vpop.f32.mrb[0].mxu0
        %755 = vmatprep.mubr.f32.mxu0 0.0
        %756 = vmatmul.mubr.f32.gmra.mrb[0].mxu0 %v636
        %v757 = vpop.f32.mrb[0].mxu0
        %v758 = vadd.f32 0.0, %v757
        %v759 = vpop.f32.mrb[0].mxu0
        %760 = vdwg.mxu0
        %761 = vmatprep.subr.mxu0 0.0
        %762 = vmatpush1.msra.mxu0 %v501
        %763 = vmatprep.subr.mxu0 0.0
        %764 = vmatpush1.msra.mxu0 %v502
        %765 = vmatprep.subr.mxu0 0.0
        %766 = vmatpush1.msra.mxu0 %v503
        %767 = vmatprep.subr.mxu0 0.0
        %768 = vmatpush1.msra.mxu0 %v504
        %769 = vmatprep.subr.mxu0 0.0
        %770 = vmatpush1.msra.mxu0 %v505
        %771 = vmatprep.subr.mxu0 0.0
        %772 = vmatpush1.msra.mxu0 %v506
        %773 = vmatprep.subr.mxu0 0.0
        %774 = vmatpush1.msra.mxu0 %v507
        %775 = vmatprep.subr.mxu0 0.0
        %776 = vmatpush1.msra.mxu0 %v508
        %777 = vmatprep.subr.mxu0 0.0
        %778 = vmatpush1.msra.mxu0 %v509
        %779 = vmatprep.subr.mxu0 0.0
        %780 = vmatpush1.msra.mxu0 %v510
        %781 = vmatprep.subr.mxu0 0.0
        %782 = vmatpush1.msra.mxu0 %v511
        %783 = vmatprep.subr.mxu0 0.0
        %784 = vmatpush1.msra.mxu0 %v512
        %785 = vmatprep.subr.mxu0 0.0
        %786 = vmatpush1.msra.mxu0 %v513
        %787 = vmatprep.subr.mxu0 0.0
        %788 = vmatpush1.msra.mxu0 %v514
        %789 = vmatprep.subr.mxu0 0.0
        %790 = vmatpush1.msra.mxu0 %v515
        %791 = vmatprep.subr.mxu0 0.0
        %792 = vmatpush1.msra.mxu0 %v516
        %793 = vmatprep.subr.mxu0 0.0
        %794 = vmatpush1.msra.mxu0 0.0
        %795 = vmatprep.subr.mxu0 0.0
        %796 = vmatpush1.msra.mxu0 0.0
        %797 = vmatprep.subr.mxu0 0.0
        %798 = vmatpush1.msra.mxu0 0.0
        %799 = vmatprep.subr.mxu0 0.0
        %800 = vmatpush1.msra.mxu0 0.0
        %801 = vmatprep.subr.mxu0 0.0
        %802 = vmatpush1.msra.mxu0 0.0
        %803 = vmatprep.subr.mxu0 0.0
        %804 = vmatpush1.msra.mxu0 0.0
        %805 = vmatprep.subr.mxu0 0.0
        %806 = vmatpush1.msra.mxu0 0.0
        %807 = vmatprep.subr.mxu0 0.0
        %808 = vmatpush1.msra.mxu0 0.0
        %809 = vmatprep.subr.mxu0 0.0
        %810 = vmatpush1.msra.mxu0 0.0
        %811 = vmatprep.subr.mxu0 0.0
        %812 = vmatpush1.msra.mxu0 0.0
        %813 = vmatprep.subr.mxu0 0.0
        %814 = vmatpush1.msra.mxu0 0.0
        %815 = vmatprep.subr.mxu0 0.0
        %816 = vmatpush1.msra.mxu0 0.0
        %817 = vmatprep.subr.mxu0 0.0
        %818 = vmatpush1.msra.mxu0 0.0
        %819 = vmatprep.subr.mxu0 0.0
        %820 = vmatpush1.msra.mxu0 0.0
        %821 = vmatprep.subr.mxu0 0.0
        %822 = vmatpush1.msra.mxu0 0.0
        %823 = vmatprep.subr.mxu0 0.0
        %824 = vmatpush1.msra.mxu0 0.0
        %825 = vmatprep.mubr.f32.mxu0 0.0
        %826 = vmatmul.mubr.f32.gmra.mrb[0].mxu0 %v463
        %v827 = vpop.f32.mrb[0].mxu0
        %v828 = vadd.f32 %v723, %v827
        %v829 = vpop.f32.mrb[0].mxu0
        %830 = vmatprep.mubr.f32.mxu0 0.0
        %831 = vmatmul.mubr.f32.gmra.mrb[0].mxu0 %v468
        %v832 = vpop.f32.mrb[0].mxu0
        %v833 = vadd.f32 %v728, %v832
        %v834 = vpop.f32.mrb[0].mxu0
        %835 = vmatprep.mubr.f32.mxu0 0.0
        %836 = vmatmul.mubr.f32.gmra.mrb[0].mxu0 %v473
        %v837 = vpop.f32.mrb[0].mxu0
        %v838 = vadd.f32 %v733, %v837
        %v839 = vpop.f32.mrb[0].mxu0
        %840 = vmatprep.mubr.f32.mxu0 0.0
        %841 = vmatmul.mubr.f32.gmra.mrb[0].mxu0 %v478
        %v842 = vpop.f32.mrb[0].mxu0
        %v843 = vadd.f32 %v738, %v842
        %v844 = vpop.f32.mrb[0].mxu0
        %845 = vmatprep.mubr.f32.mxu0 0.0
        %846 = vmatmul.mubr.f32.gmra.mrb[0].mxu0 %v483
        %v847 = vpop.f32.mrb[0].mxu0
        %v848 = vadd.f32 %v743, %v847
        %v849 = vpop.f32.mrb[0].mxu0
        %850 = vmatprep.mubr.f32.mxu0 0.0
        %851 = vmatmul.mubr.f32.gmra.mrb[0].mxu0 %v488
        %v852 = vpop.f32.mrb[0].mxu0
        %v853 = vadd.f32 %v748, %v852
        %v854 = vpop.f32.mrb[0].mxu0
        %855 = vmatprep.mubr.f32.mxu0 0.0
        %856 = vmatmul.mubr.f32.gmra.mrb[0].mxu0 %v493
        %v857 = vpop.f32.mrb[0].mxu0
        %v858 = vadd.f32 %v753, %v857
        %v859 = vpop.f32.mrb[0].mxu0
        %860 = vmatprep.mubr.f32.mxu0 0.0
        %861 = vmatmul.mubr.f32.gmra.mrb[0].mxu0 %v498
        %v862 = vpop.f32.mrb[0].mxu0
        %v863 = vadd.f32 %v758, %v862
        %v864 = vpop.f32.mrb[0].mxu0
        %865 = vdwg.mxu0
        %s866 = scalar_lea.vmem %s1, 256
        %v867 = vld [vmem:[%s866] sm:$0xff]
        %v868 = vld [vmem:[%s866 + $0x8] sm:$0xff]
        %v869 = vld [vmem:[%s866 + $0x10] sm:$0xff]
        %v870 = vld [vmem:[%s866 + $0x18] sm:$0xff]
        %v871 = vld [vmem:[%s866 + $0x20] sm:$0xff]
        %v872 = vld [vmem:[%s866 + $0x28] sm:$0xff]
        %v873 = vld [vmem:[%s866 + $0x30] sm:$0xff]
        %v874 = vld [vmem:[%s866 + $0x38] sm:$0xff]
        %v875 = vld [vmem:[%s866 + $0x40] sm:$0xff]
        %v876 = vld [vmem:[%s866 + $0x48] sm:$0xff]
        %v877 = vld [vmem:[%s866 + $0x50] sm:$0xff]
        %v878 = vld [vmem:[%s866 + $0x58] sm:$0xff]
        %v879 = vld [vmem:[%s866 + $0x60] sm:$0xff]
        %v880 = vld [vmem:[%s866 + $0x68] sm:$0xff]
        %v881 = vld [vmem:[%s866 + $0x70] sm:$0xff]
        %v882 = vld [vmem:[%s866 + $0x78] sm:$0xff]
        %883 = vmatprep.subr.mxu0 0.0
        %884 = vmatpush1.msra.mxu0 %v348
        %885 = vmatprep.subr.mxu0 0.0
        %886 = vmatpush1.msra.mxu0 %v349
        %887 = vmatprep.subr.mxu0 0.0
        %888 = vmatpush1.msra.mxu0 %v350
        %889 = vmatprep.subr.mxu0 0.0
        %890 = vmatpush1.msra.mxu0 %v351
        %891 = vmatprep.subr.mxu0 0.0
        %892 = vmatpush1.msra.mxu0 %v352
        %893 = vmatprep.subr.mxu0 0.0
        %894 = vmatpush1.msra.mxu0 %v353
        %895 = vmatprep.subr.mxu0 0.0
        %896 = vmatpush1.msra.mxu0 %v354
        %897 = vmatprep.subr.mxu0 0.0
        %898 = vmatpush1.msra.mxu0 %v355
        %899 = vmatprep.subr.mxu0 0.0
        %900 = vmatpush1.msra.mxu0 %v356
        %901 = vmatprep.subr.mxu0 0.0
        %902 = vmatpush1.msra.mxu0 %v357
        %903 = vmatprep.subr.mxu0 0.0
        %904 = vmatpush1.msra.mxu0 %v358
        %905 = vmatprep.subr.mxu0 0.0
        %906 = vmatpush1.msra.mxu0 %v359
        %907 = vmatprep.subr.mxu0 0.0
        %908 = vmatpush1.msra.mxu0 %v360
        %909 = vmatprep.subr.mxu0 0.0
        %910 = vmatpush1.msra.mxu0 %v361
        %911 = vmatprep.subr.mxu0 0.0
        %912 = vmatpush1.msra.mxu0 %v362
        %913 = vmatprep.subr.mxu0 0.0
        %914 = vmatpush1.msra.mxu0 %v363
        %915 = vmatprep.subr.mxu0 0.0
        %916 = vmatpush1.msra.mxu0 %v364
        %917 = vmatprep.subr.mxu0 0.0
        %918 = vmatpush1.msra.mxu0 %v365
        %919 = vmatprep.subr.mxu0 0.0
        %920 = vmatpush1.msra.mxu0 %v366
        %921 = vmatprep.subr.mxu0 0.0
        %922 = vmatpush1.msra.mxu0 %v367
        %923 = vmatprep.subr.mxu0 0.0
        %924 = vmatpush1.msra.mxu0 %v368
        %925 = vmatprep.subr.mxu0 0.0
        %926 = vmatpush1.msra.mxu0 %v369
        %927 = vmatprep.subr.mxu0 0.0
        %928 = vmatpush1.msra.mxu0 %v370
        %929 = vmatprep.subr.mxu0 0.0
        %930 = vmatpush1.msra.mxu0 %v371
        %931 = vmatprep.subr.mxu0 0.0
        %932 = vmatpush1.msra.mxu0 %v372
        %933 = vmatprep.subr.mxu0 0.0
        %934 = vmatpush1.msra.mxu0 %v373
        %935 = vmatprep.subr.mxu0 0.0
        %936 = vmatpush1.msra.mxu0 %v374
        %937 = vmatprep.subr.mxu0 0.0
        %938 = vmatpush1.msra.mxu0 %v375
        %939 = vmatprep.subr.mxu0 0.0
        %940 = vmatpush1.msra.mxu0 %v376
        %941 = vmatprep.subr.mxu0 0.0
        %942 = vmatpush1.msra.mxu0 %v377
        %943 = vmatprep.subr.mxu0 0.0
        %944 = vmatpush1.msra.mxu0 %v378
        %945 = vmatprep.subr.mxu0 0.0
        %946 = vmatpush1.msra.mxu0 %v379
        %947 = vmatprep.mubr.f32.mxu0 %v868
        %948 = vmatmul.mubr.f32.gmra.mrb[0].mxu0 %v867
        %v949 = vpop.f32.mrb[0].mxu0
        %v950 = vadd.f32 0.0, %v949
        %v951 = vpop.f32.mrb[0].mxu0
        %952 = vmatprep.mubr.f32.mxu0 %v870
        %953 = vmatmul.mubr.f32.gmra.mrb[0].mxu0 %v869
        %v954 = vpop.f32.mrb[0].mxu0
        %v955 = vadd.f32 0.0, %v954
        %v956 = vpop.f32.mrb[0].mxu0
        %957 = vmatprep.mubr.f32.mxu0 %v872
        %958 = vmatmul.mubr.f32.gmra.mrb[0].mxu0 %v871
        %v959 = vpop.f32.mrb[0].mxu0
        %v960 = vadd.f32 0.0, %v959
        %v961 = vpop.f32.mrb[0].mxu0
        %962 = vmatprep.mubr.f32.mxu0 %v874
        %963 = vmatmul.mubr.f32.gmra.mrb[0].mxu0 %v873
        %v964 = vpop.f32.mrb[0].mxu0
        %v965 = vadd.f32 0.0, %v964
        %v966 = vpop.f32.mrb[0].mxu0
        %967 = vmatprep.mubr.f32.mxu0 %v876
        %968 = vmatmul.mubr.f32.gmra.mrb[0].mxu0 %v875
        %v969 = vpop.f32.mrb[0].mxu0
        %v970 = vadd.f32 0.0, %v969
        %v971 = vpop.f32.mrb[0].mxu0
        %972 = vmatprep.mubr.f32.mxu0 %v878
        %973 = vmatmul.mubr.f32.gmra.mrb[0].mxu0 %v877
        %v974 = vpop.f32.mrb[0].mxu0
        %v975 = vadd.f32 0.0, %v974
        %v976 = vpop.f32.mrb[0].mxu0
        %977 = vmatprep.mubr.f32.mxu0 %v880
        %978 = vmatmul.mubr.f32.gmra.mrb[0].mxu0 %v879
        %v979 = vpop.f32.mrb[0].mxu0
        %v980 = vadd.f32 0.0, %v979
        %v981 = vpop.f32.mrb[0].mxu0
        %982 = vmatprep.mubr.f32.mxu0 %v882
        %983 = vmatmul.mubr.f32.gmra.mrb[0].mxu0 %v881
        %v984 = vpop.f32.mrb[0].mxu0
        %v985 = vadd.f32 0.0, %v984
        %v986 = vpop.f32.mrb[0].mxu0
        %987 = vdwg.mxu0
        %s988 = scalar_lea.vmem [#allocation4], 256
        %v989 = vld [vmem:[%s988] sm:$0xff]
        %v990 = vld [vmem:[%s988 + $0x8] sm:$0xff]
        %v991 = vld [vmem:[%s988 + $0x10] sm:$0xff]
        %v992 = vld [vmem:[%s988 + $0x18] sm:$0xff]
        %v993 = vld [vmem:[%s988 + $0x20] sm:$0xff]
        %v994 = vld [vmem:[%s988 + $0x28] sm:$0xff]
        %v995 = vld [vmem:[%s988 + $0x30] sm:$0xff]
        %v996 = vld [vmem:[%s988 + $0x38] sm:$0xff]
        %v997 = vld [vmem:[%s988 + $0x40] sm:$0xff]
        %v998 = vld [vmem:[%s988 + $0x48] sm:$0xff]
        %v999 = vld [vmem:[%s988 + $0x50] sm:$0xff]
        %v1000 = vld [vmem:[%s988 + $0x58] sm:$0xff]
        %v1001 = vld [vmem:[%s988 + $0x60] sm:$0xff]
        %v1002 = vld [vmem:[%s988 + $0x68] sm:$0xff]
        %v1003 = vld [vmem:[%s988 + $0x70] sm:$0xff]
        %v1004 = vld [vmem:[%s988 + $0x78] sm:$0xff]
        %1005 = vmatprep.subr.mxu0 0.0
        %1006 = vmatpush1.msra.mxu0 %v989
        %1007 = vmatprep.subr.mxu0 0.0
        %1008 = vmatpush1.msra.mxu0 %v990
        %1009 = vmatprep.subr.mxu0 0.0
        %1010 = vmatpush1.msra.mxu0 %v991
        %1011 = vmatprep.subr.mxu0 0.0
        %1012 = vmatpush1.msra.mxu0 %v992
        %1013 = vmatprep.subr.mxu0 0.0
        %1014 = vmatpush1.msra.mxu0 %v993
        %1015 = vmatprep.subr.mxu0 0.0
        %1016 = vmatpush1.msra.mxu0 %v994
        %1017 = vmatprep.subr.mxu0 0.0
        %1018 = vmatpush1.msra.mxu0 %v995
        %1019 = vmatprep.subr.mxu0 0.0
        %1020 = vmatpush1.msra.mxu0 %v996
        %1021 = vmatprep.subr.mxu0 0.0
        %1022 = vmatpush1.msra.mxu0 %v997
        %1023 = vmatprep.subr.mxu0 0.0
        %1024 = vmatpush1.msra.mxu0 %v998
        %1025 = vmatprep.subr.mxu0 0.0
        %1026 = vmatpush1.msra.mxu0 %v999
        %1027 = vmatprep.subr.mxu0 0.0
        %1028 = vmatpush1.msra.mxu0 %v1000
        %1029 = vmatprep.subr.mxu0 0.0
        %1030 = vmatpush1.msra.mxu0 %v1001
        %1031 = vmatprep.subr.mxu0 0.0
        %1032 = vmatpush1.msra.mxu0 %v1002
        %1033 = vmatprep.subr.mxu0 0.0
        %1034 = vmatpush1.msra.mxu0 %v1003
        %1035 = vmatprep.subr.mxu0 0.0
        %1036 = vmatpush1.msra.mxu0 %v1004
        %1037 = vmatprep.subr.mxu0 0.0
        %1038 = vmatpush1.msra.mxu0 0.0
        %1039 = vmatprep.subr.mxu0 0.0
        %1040 = vmatpush1.msra.mxu0 0.0
        %1041 = vmatprep.subr.mxu0 0.0
        %1042 = vmatpush1.msra.mxu0 0.0
        %1043 = vmatprep.subr.mxu0 0.0
        %1044 = vmatpush1.msra.mxu0 0.0
        %1045 = vmatprep.subr.mxu0 0.0
        %1046 = vmatpush1.msra.mxu0 0.0
        %1047 = vmatprep.subr.mxu0 0.0
        %1048 = vmatpush1.msra.mxu0 0.0
        %1049 = vmatprep.subr.mxu0 0.0
        %1050 = vmatpush1.msra.mxu0 0.0
        %1051 = vmatprep.subr.mxu0 0.0
        %1052 = vmatpush1.msra.mxu0 0.0
        %1053 = vmatprep.subr.mxu0 0.0
        %1054 = vmatpush1.msra.mxu0 0.0
        %1055 = vmatprep.subr.mxu0 0.0
        %1056 = vmatpush1.msra.mxu0 0.0
        %1057 = vmatprep.subr.mxu0 0.0
        %1058 = vmatpush1.msra.mxu0 0.0
        %1059 = vmatprep.subr.mxu0 0.0
        %1060 = vmatpush1.msra.mxu0 0.0
        %1061 = vmatprep.subr.mxu0 0.0
        %1062 = vmatpush1.msra.mxu0 0.0
        %1063 = vmatprep.subr.mxu0 0.0
        %1064 = vmatpush1.msra.mxu0 0.0
        %1065 = vmatprep.subr.mxu0 0.0
        %1066 = vmatpush1.msra.mxu0 0.0
        %1067 = vmatprep.subr.mxu0 0.0
        %1068 = vmatpush1.msra.mxu0 0.0
        %1069 = vmatprep.mubr.f32.mxu0 0.0
        %1070 = vmatmul.mubr.f32.gmra.mrb[0].mxu0 %v950
        %v1071 = vpop.f32.mrb[0].mxu0
        %v1072 = vadd.f32 0.0, %v1071
        %v1073 = vpop.f32.mrb[0].mxu0
        %1074 = vmatprep.mubr.f32.mxu0 0.0
        %1075 = vmatmul.mubr.f32.gmra.mrb[0].mxu0 %v955
        %v1076 = vpop.f32.mrb[0].mxu0
        %v1077 = vadd.f32 0.0, %v1076
        %v1078 = vpop.f32.mrb[0].mxu0
        %1079 = vmatprep.mubr.f32.mxu0 0.0
        %1080 = vmatmul.mubr.f32.gmra.mrb[0].mxu0 %v960
        %v1081 = vpop.f32.mrb[0].mxu0
        %v1082 = vadd.f32 0.0, %v1081
        %v1083 = vpop.f32.mrb[0].mxu0
        %1084 = vmatprep.mubr.f32.mxu0 0.0
        %1085 = vmatmul.mubr.f32.gmra.mrb[0].mxu0 %v965
        %v1086 = vpop.f32.mrb[0].mxu0
        %v1087 = vadd.f32 0.0, %v1086
        %v1088 = vpop.f32.mrb[0].mxu0
        %1089 = vmatprep.mubr.f32.mxu0 0.0
        %1090 = vmatmul.mubr.f32.gmra.mrb[0].mxu0 %v970
        %v1091 = vpop.f32.mrb[0].mxu0
        %v1092 = vadd.f32 0.0, %v1091
        %v1093 = vpop.f32.mrb[0].mxu0
        %1094 = vmatprep.mubr.f32.mxu0 0.0
        %1095 = vmatmul.mubr.f32.gmra.mrb[0].mxu0 %v975
        %v1096 = vpop.f32.mrb[0].mxu0
        %v1097 = vadd.f32 0.0, %v1096
        %v1098 = vpop.f32.mrb[0].mxu0
        %1099 = vmatprep.mubr.f32.mxu0 0.0
        %1100 = vmatmul.mubr.f32.gmra.mrb[0].mxu0 %v980
        %v1101 = vpop.f32.mrb[0].mxu0
        %v1102 = vadd.f32 0.0, %v1101
        %v1103 = vpop.f32.mrb[0].mxu0
        %1104 = vmatprep.mubr.f32.mxu0 0.0
        %1105 = vmatmul.mubr.f32.gmra.mrb[0].mxu0 %v985
        %v1106 = vpop.f32.mrb[0].mxu0
        %v1107 = vadd.f32 0.0, %v1106
        %v1108 = vpop.f32.mrb[0].mxu0
        %1109 = vdwg.mxu0
        %v1110 = vadd.f32 %v828, %v1072
        %v1111 = vadd.f32 %v833, %v1077
        %v1112 = vadd.f32 %v838, %v1082
        %v1113 = vadd.f32 %v843, %v1087
        %v1114 = vadd.f32 %v848, %v1092
        %v1115 = vadd.f32 %v853, %v1097
        %v1116 = vadd.f32 %v858, %v1102
        %v1117 = vadd.f32 %v863, %v1107
        %s1118 = scalar_lea.vmem %s1, 384
        %v1119 = vld [vmem:[%s1118] sm:$0xff]
        %v1120 = vld [vmem:[%s1118 + $0x8] sm:$0xff]
        %v1121 = vld [vmem:[%s1118 + $0x10] sm:$0xff]
        %v1122 = vld [vmem:[%s1118 + $0x18] sm:$0xff]
        %v1123 = vld [vmem:[%s1118 + $0x20] sm:$0xff]
        %v1124 = vld [vmem:[%s1118 + $0x28] sm:$0xff]
        %v1125 = vld [vmem:[%s1118 + $0x30] sm:$0xff]
        %v1126 = vld [vmem:[%s1118 + $0x38] sm:$0xff]
        %v1127 = vld [vmem:[%s1118 + $0x40] sm:$0xff]
        %v1128 = vld [vmem:[%s1118 + $0x48] sm:$0xff]
        %v1129 = vld [vmem:[%s1118 + $0x50] sm:$0xff]
        %v1130 = vld [vmem:[%s1118 + $0x58] sm:$0xff]
        %v1131 = vld [vmem:[%s1118 + $0x60] sm:$0xff]
        %v1132 = vld [vmem:[%s1118 + $0x68] sm:$0xff]
        %v1133 = vld [vmem:[%s1118 + $0x70] sm:$0xff]
        %v1134 = vld [vmem:[%s1118 + $0x78] sm:$0xff]
        %1135 = vmatprep.subr.mxu0 0.0
        %1136 = vmatpush1.msra.mxu0 %v348
        %1137 = vmatprep.subr.mxu0 0.0
        %1138 = vmatpush1.msra.mxu0 %v349
        %1139 = vmatprep.subr.mxu0 0.0
        %1140 = vmatpush1.msra.mxu0 %v350
        %1141 = vmatprep.subr.mxu0 0.0
        %1142 = vmatpush1.msra.mxu0 %v351
        %1143 = vmatprep.subr.mxu0 0.0
        %1144 = vmatpush1.msra.mxu0 %v352
        %1145 = vmatprep.subr.mxu0 0.0
        %1146 = vmatpush1.msra.mxu0 %v353
        %1147 = vmatprep.subr.mxu0 0.0
        %1148 = vmatpush1.msra.mxu0 %v354
        %1149 = vmatprep.subr.mxu0 0.0
        %1150 = vmatpush1.msra.mxu0 %v355
        %1151 = vmatprep.subr.mxu0 0.0
        %1152 = vmatpush1.msra.mxu0 %v356
        %1153 = vmatprep.subr.mxu0 0.0
        %1154 = vmatpush1.msra.mxu0 %v357
        %1155 = vmatprep.subr.mxu0 0.0
        %1156 = vmatpush1.msra.mxu0 %v358
        %1157 = vmatprep.subr.mxu0 0.0
        %1158 = vmatpush1.msra.mxu0 %v359
        %1159 = vmatprep.subr.mxu0 0.0
        %1160 = vmatpush1.msra.mxu0 %v360
        %1161 = vmatprep.subr.mxu0 0.0
        %1162 = vmatpush1.msra.mxu0 %v361
        %1163 = vmatprep.subr.mxu0 0.0
        %1164 = vmatpush1.msra.mxu0 %v362
        %1165 = vmatprep.subr.mxu0 0.0
        %1166 = vmatpush1.msra.mxu0 %v363
        %1167 = vmatprep.subr.mxu0 0.0
        %1168 = vmatpush1.msra.mxu0 %v364
        %1169 = vmatprep.subr.mxu0 0.0
        %1170 = vmatpush1.msra.mxu0 %v365
        %1171 = vmatprep.subr.mxu0 0.0
        %1172 = vmatpush1.msra.mxu0 %v366
        %1173 = vmatprep.subr.mxu0 0.0
        %1174 = vmatpush1.msra.mxu0 %v367
        %1175 = vmatprep.subr.mxu0 0.0
        %1176 = vmatpush1.msra.mxu0 %v368
        %1177 = vmatprep.subr.mxu0 0.0
        %1178 = vmatpush1.msra.mxu0 %v369
        %1179 = vmatprep.subr.mxu0 0.0
        %1180 = vmatpush1.msra.mxu0 %v370
        %1181 = vmatprep.subr.mxu0 0.0
        %1182 = vmatpush1.msra.mxu0 %v371
        %1183 = vmatprep.subr.mxu0 0.0
        %1184 = vmatpush1.msra.mxu0 %v372
        %1185 = vmatprep.subr.mxu0 0.0
        %1186 = vmatpush1.msra.mxu0 %v373
        %1187 = vmatprep.subr.mxu0 0.0
        %1188 = vmatpush1.msra.mxu0 %v374
        %1189 = vmatprep.subr.mxu0 0.0
        %1190 = vmatpush1.msra.mxu0 %v375
        %1191 = vmatprep.subr.mxu0 0.0
        %1192 = vmatpush1.msra.mxu0 %v376
        %1193 = vmatprep.subr.mxu0 0.0
        %1194 = vmatpush1.msra.mxu0 %v377
        %1195 = vmatprep.subr.mxu0 0.0
        %1196 = vmatpush1.msra.mxu0 %v378
        %1197 = vmatprep.subr.mxu0 0.0
        %1198 = vmatpush1.msra.mxu0 %v379
        %1199 = vmatprep.mubr.f32.mxu0 %v1120
        %1200 = vmatmul.mubr.f32.gmra.mrb[0].mxu0 %v1119
        %v1201 = vpop.f32.mrb[0].mxu0
        %v1202 = vadd.f32 0.0, %v1201
        %v1203 = vpop.f32.mrb[0].mxu0
        %1204 = vmatprep.mubr.f32.mxu0 %v1122
        %1205 = vmatmul.mubr.f32.gmra.mrb[0].mxu0 %v1121
        %v1206 = vpop.f32.mrb[0].mxu0
        %v1207 = vadd.f32 0.0, %v1206
        %v1208 = vpop.f32.mrb[0].mxu0
        %1209 = vmatprep.mubr.f32.mxu0 %v1124
        %1210 = vmatmul.mubr.f32.gmra.mrb[0].mxu0 %v1123
        %v1211 = vpop.f32.mrb[0].mxu0
        %v1212 = vadd.f32 0.0, %v1211
        %v1213 = vpop.f32.mrb[0].mxu0
        %1214 = vmatprep.mubr.f32.mxu0 %v1126
        %1215 = vmatmul.mubr.f32.gmra.mrb[0].mxu0 %v1125
        %v1216 = vpop.f32.mrb[0].mxu0
        %v1217 = vadd.f32 0.0, %v1216
        %v1218 = vpop.f32.mrb[0].mxu0
        %1219 = vmatprep.mubr.f32.mxu0 %v1128
        %1220 = vmatmul.mubr.f32.gmra.mrb[0].mxu0 %v1127
        %v1221 = vpop.f32.mrb[0].mxu0
        %v1222 = vadd.f32 0.0, %v1221
        %v1223 = vpop.f32.mrb[0].mxu0
        %1224 = vmatprep.mubr.f32.mxu0 %v1130
        %1225 = vmatmul.mubr.f32.gmra.mrb[0].mxu0 %v1129
        %v1226 = vpop.f32.mrb[0].mxu0
        %v1227 = vadd.f32 0.0, %v1226
        %v1228 = vpop.f32.mrb[0].mxu0
        %1229 = vmatprep.mubr.f32.mxu0 %v1132
        %1230 = vmatmul.mubr.f32.gmra.mrb[0].mxu0 %v1131
        %v1231 = vpop.f32.mrb[0].mxu0
        %v1232 = vadd.f32 0.0, %v1231
        %v1233 = vpop.f32.mrb[0].mxu0
        %1234 = vmatprep.mubr.f32.mxu0 %v1134
        %1235 = vmatmul.mubr.f32.gmra.mrb[0].mxu0 %v1133
        %v1236 = vpop.f32.mrb[0].mxu0
        %v1237 = vadd.f32 0.0, %v1236
        %v1238 = vpop.f32.mrb[0].mxu0
        %1239 = vdwg.mxu0
        %s1240 = scalar_lea.vmem [#allocation4], 384
        %v1241 = vld [vmem:[%s1240] sm:$0xff]
        %v1242 = vld [vmem:[%s1240 + $0x8] sm:$0xff]
        %v1243 = vld [vmem:[%s1240 + $0x10] sm:$0xff]
        %v1244 = vld [vmem:[%s1240 + $0x18] sm:$0xff]
        %v1245 = vld [vmem:[%s1240 + $0x20] sm:$0xff]
        %v1246 = vld [vmem:[%s1240 + $0x28] sm:$0xff]
        %v1247 = vld [vmem:[%s1240 + $0x30] sm:$0xff]
        %v1248 = vld [vmem:[%s1240 + $0x38] sm:$0xff]
        %v1249 = vld [vmem:[%s1240 + $0x40] sm:$0xff]
        %v1250 = vld [vmem:[%s1240 + $0x48] sm:$0xff]
        %v1251 = vld [vmem:[%s1240 + $0x50] sm:$0xff]
        %v1252 = vld [vmem:[%s1240 + $0x58] sm:$0xff]
        %v1253 = vld [vmem:[%s1240 + $0x60] sm:$0xff]
        %v1254 = vld [vmem:[%s1240 + $0x68] sm:$0xff]
        %v1255 = vld [vmem:[%s1240 + $0x70] sm:$0xff]
        %v1256 = vld [vmem:[%s1240 + $0x78] sm:$0xff]
        %1257 = vmatprep.subr.mxu0 0.0
        %1258 = vmatpush1.msra.mxu0 %v1241
        %1259 = vmatprep.subr.mxu0 0.0
        %1260 = vmatpush1.msra.mxu0 %v1242
        %1261 = vmatprep.subr.mxu0 0.0
        %1262 = vmatpush1.msra.mxu0 %v1243
        %1263 = vmatprep.subr.mxu0 0.0
        %1264 = vmatpush1.msra.mxu0 %v1244
        %1265 = vmatprep.subr.mxu0 0.0
        %1266 = vmatpush1.msra.mxu0 %v1245
        %1267 = vmatprep.subr.mxu0 0.0
        %1268 = vmatpush1.msra.mxu0 %v1246
        %1269 = vmatprep.subr.mxu0 0.0
        %1270 = vmatpush1.msra.mxu0 %v1247
        %1271 = vmatprep.subr.mxu0 0.0
        %1272 = vmatpush1.msra.mxu0 %v1248
        %1273 = vmatprep.subr.mxu0 0.0
        %1274 = vmatpush1.msra.mxu0 %v1249
        %1275 = vmatprep.subr.mxu0 0.0
        %1276 = vmatpush1.msra.mxu0 %v1250
        %1277 = vmatprep.subr.mxu0 0.0
        %1278 = vmatpush1.msra.mxu0 %v1251
        %1279 = vmatprep.subr.mxu0 0.0
        %1280 = vmatpush1.msra.mxu0 %v1252
        %1281 = vmatprep.subr.mxu0 0.0
        %1282 = vmatpush1.msra.mxu0 %v1253
        %1283 = vmatprep.subr.mxu0 0.0
        %1284 = vmatpush1.msra.mxu0 %v1254
        %1285 = vmatprep.subr.mxu0 0.0
        %1286 = vmatpush1.msra.mxu0 %v1255
        %1287 = vmatprep.subr.mxu0 0.0
        %1288 = vmatpush1.msra.mxu0 %v1256
        %1289 = vmatprep.subr.mxu0 0.0
        %1290 = vmatpush1.msra.mxu0 0.0
        %1291 = vmatprep.subr.mxu0 0.0
        %1292 = vmatpush1.msra.mxu0 0.0
        %1293 = vmatprep.subr.mxu0 0.0
        %1294 = vmatpush1.msra.mxu0 0.0
        %1295 = vmatprep.subr.mxu0 0.0
        %1296 = vmatpush1.msra.mxu0 0.0
        %1297 = vmatprep.subr.mxu0 0.0
        %1298 = vmatpush1.msra.mxu0 0.0
        %1299 = vmatprep.subr.mxu0 0.0
        %1300 = vmatpush1.msra.mxu0 0.0
        %1301 = vmatprep.subr.mxu0 0.0
        %1302 = vmatpush1.msra.mxu0 0.0
        %1303 = vmatprep.subr.mxu0 0.0
        %1304 = vmatpush1.msra.mxu0 0.0
        %1305 = vmatprep.subr.mxu0 0.0
        %1306 = vmatpush1.msra.mxu0 0.0
        %1307 = vmatprep.subr.mxu0 0.0
        %1308 = vmatpush1.msra.mxu0 0.0
        %1309 = vmatprep.subr.mxu0 0.0
        %1310 = vmatpush1.msra.mxu0 0.0
        %1311 = vmatprep.subr.mxu0 0.0
        %1312 = vmatpush1.msra.mxu0 0.0
        %1313 = vmatprep.subr.mxu0 0.0
        %1314 = vmatpush1.msra.mxu0 0.0
        %1315 = vmatprep.subr.mxu0 0.0
        %1316 = vmatpush1.msra.mxu0 0.0
        %1317 = vmatprep.subr.mxu0 0.0
        %1318 = vmatpush1.msra.mxu0 0.0
        %1319 = vmatprep.subr.mxu0 0.0
        %1320 = vmatpush1.msra.mxu0 0.0
        %1321 = vmatprep.mubr.f32.mxu0 0.0
        %1322 = vmatmul.mubr.f32.gmra.mrb[0].mxu0 %v1202
        %v1323 = vpop.f32.mrb[0].mxu0
        %v1324 = vadd.f32 0.0, %v1323
        %v1325 = vpop.f32.mrb[0].mxu0
        %1326 = vmatprep.mubr.f32.mxu0 0.0
        %1327 = vmatmul.mubr.f32.gmra.mrb[0].mxu0 %v1207
        %v1328 = vpop.f32.mrb[0].mxu0
        %v1329 = vadd.f32 0.0, %v1328
        %v1330 = vpop.f32.mrb[0].mxu0
        %1331 = vmatprep.mubr.f32.mxu0 0.0
        %1332 = vmatmul.mubr.f32.gmra.mrb[0].mxu0 %v1212
        %v1333 = vpop.f32.mrb[0].mxu0
        %v1334 = vadd.f32 0.0, %v1333
        %v1335 = vpop.f32.mrb[0].mxu0
        %1336 = vmatprep.mubr.f32.mxu0 0.0
        %1337 = vmatmul.mubr.f32.gmra.mrb[0].mxu0 %v1217
        %v1338 = vpop.f32.mrb[0].mxu0
        %v1339 = vadd.f32 0.0, %v1338
        %v1340 = vpop.f32.mrb[0].mxu0
        %1341 = vmatprep.mubr.f32.mxu0 0.0
        %1342 = vmatmul.mubr.f32.gmra.mrb[0].mxu0 %v1222
        %v1343 = vpop.f32.mrb[0].mxu0
        %v1344 = vadd.f32 0.0, %v1343
        %v1345 = vpop.f32.mrb[0].mxu0
        %1346 = vmatprep.mubr.f32.mxu0 0.0
        %1347 = vmatmul.mubr.f32.gmra.mrb[0].mxu0 %v1227
        %v1348 = vpop.f32.mrb[0].mxu0
        %v1349 = vadd.f32 0.0, %v1348
        %v1350 = vpop.f32.mrb[0].mxu0
        %1351 = vmatprep.mubr.f32.mxu0 0.0
        %1352 = vmatmul.mubr.f32.gmra.mrb[0].mxu0 %v1232
        %v1353 = vpop.f32.mrb[0].mxu0
        %v1354 = vadd.f32 0.0, %v1353
        %v1355 = vpop.f32.mrb[0].mxu0
        %1356 = vmatprep.mubr.f32.mxu0 0.0
        %1357 = vmatmul.mubr.f32.gmra.mrb[0].mxu0 %v1237
        %v1358 = vpop.f32.mrb[0].mxu0
        %v1359 = vadd.f32 0.0, %v1358
        %v1360 = vpop.f32.mrb[0].mxu0
        %1361 = vdwg.mxu0
        %v1362 = vadd.f32 %v1110, %v1324
        %v1363 = vadd.f32 %v1111, %v1329
        %v1364 = vadd.f32 %v1112, %v1334
        %v1365 = vadd.f32 %v1113, %v1339
        %v1366 = vadd.f32 %v1114, %v1344
        %v1367 = vadd.f32 %v1115, %v1349
        %v1368 = vadd.f32 %v1116, %v1354
        %v1369 = vadd.f32 %v1117, %v1359
        %s1370 = scalar_lea.vmem %s1, 512
        %v1371 = vld [vmem:[%s1370] sm:$0xff]
        %v1372 = vld [vmem:[%s1370 + $0x8] sm:$0xff]
        %v1373 = vld [vmem:[%s1370 + $0x10] sm:$0xff]
        %v1374 = vld [vmem:[%s1370 + $0x18] sm:$0xff]
        %v1375 = vld [vmem:[%s1370 + $0x20] sm:$0xff]
        %v1376 = vld [vmem:[%s1370 + $0x28] sm:$0xff]
        %v1377 = vld [vmem:[%s1370 + $0x30] sm:$0xff]
        %v1378 = vld [vmem:[%s1370 + $0x38] sm:$0xff]
        %v1379 = vld [vmem:[%s1370 + $0x40] sm:$0xff]
        %v1380 = vld [vmem:[%s1370 + $0x48] sm:$0xff]
        %v1381 = vld [vmem:[%s1370 + $0x50] sm:$0xff]
        %v1382 = vld [vmem:[%s1370 + $0x58] sm:$0xff]
        %v1383 = vld [vmem:[%s1370 + $0x60] sm:$0xff]
        %v1384 = vld [vmem:[%s1370 + $0x68] sm:$0xff]
        %v1385 = vld [vmem:[%s1370 + $0x70] sm:$0xff]
        %v1386 = vld [vmem:[%s1370 + $0x78] sm:$0xff]
        %1387 = vmatprep.subr.mxu0 0.0
        %1388 = vmatpush1.msra.mxu0 %v348
        %1389 = vmatprep.subr.mxu0 0.0
        %1390 = vmatpush1.msra.mxu0 %v349
        %1391 = vmatprep.subr.mxu0 0.0
        %1392 = vmatpush1.msra.mxu0 %v350
        %1393 = vmatprep.subr.mxu0 0.0
        %1394 = vmatpush1.msra.mxu0 %v351
        %1395 = vmatprep.subr.mxu0 0.0
        %1396 = vmatpush1.msra.mxu0 %v352
        %1397 = vmatprep.subr.mxu0 0.0
        %1398 = vmatpush1.msra.mxu0 %v353
        %1399 = vmatprep.subr.mxu0 0.0
        %1400 = vmatpush1.msra.mxu0 %v354
        %1401 = vmatprep.subr.mxu0 0.0
        %1402 = vmatpush1.msra.mxu0 %v355
        %1403 = vmatprep.subr.mxu0 0.0
        %1404 = vmatpush1.msra.mxu0 %v356
        %1405 = vmatprep.subr.mxu0 0.0
        %1406 = vmatpush1.msra.mxu0 %v357
        %1407 = vmatprep.subr.mxu0 0.0
        %1408 = vmatpush1.msra.mxu0 %v358
        %1409 = vmatprep.subr.mxu0 0.0
        %1410 = vmatpush1.msra.mxu0 %v359
        %1411 = vmatprep.subr.mxu0 0.0
        %1412 = vmatpush1.msra.mxu0 %v360
        %1413 = vmatprep.subr.mxu0 0.0
        %1414 = vmatpush1.msra.mxu0 %v361
        %1415 = vmatprep.subr.mxu0 0.0
        %1416 = vmatpush1.msra.mxu0 %v362
        %1417 = vmatprep.subr.mxu0 0.0
        %1418 = vmatpush1.msra.mxu0 %v363
        %1419 = vmatprep.subr.mxu0 0.0
        %1420 = vmatpush1.msra.mxu0 %v364
        %1421 = vmatprep.subr.mxu0 0.0
        %1422 = vmatpush1.msra.mxu0 %v365
        %1423 = vmatprep.subr.mxu0 0.0
        %1424 = vmatpush1.msra.mxu0 %v366
        %1425 = vmatprep.subr.mxu0 0.0
        %1426 = vmatpush1.msra.mxu0 %v367
        %1427 = vmatprep.subr.mxu0 0.0
        %1428 = vmatpush1.msra.mxu0 %v368
        %1429 = vmatprep.subr.mxu0 0.0
        %1430 = vmatpush1.msra.mxu0 %v369
        %1431 = vmatprep.subr.mxu0 0.0
        %1432 = vmatpush1.msra.mxu0 %v370
        %1433 = vmatprep.subr.mxu0 0.0
        %1434 = vmatpush1.msra.mxu0 %v371
        %1435 = vmatprep.subr.mxu0 0.0
        %1436 = vmatpush1.msra.mxu0 %v372
        %1437 = vmatprep.subr.mxu0 0.0
        %1438 = vmatpush1.msra.mxu0 %v373
        %1439 = vmatprep.subr.mxu0 0.0
        %1440 = vmatpush1.msra.mxu0 %v374
        %1441 = vmatprep.subr.mxu0 0.0
        %1442 = vmatpush1.msra.mxu0 %v375
        %1443 = vmatprep.subr.mxu0 0.0
        %1444 = vmatpush1.msra.mxu0 %v376
        %1445 = vmatprep.subr.mxu0 0.0
        %1446 = vmatpush1.msra.mxu0 %v377
        %1447 = vmatprep.subr.mxu0 0.0
        %1448 = vmatpush1.msra.mxu0 %v378
        %1449 = vmatprep.subr.mxu0 0.0
        %1450 = vmatpush1.msra.mxu0 %v379
        %1451 = vmatprep.mubr.f32.mxu0 %v1372
        %1452 = vmatmul.mubr.f32.gmra.mrb[0].mxu0 %v1371
        %v1453 = vpop.f32.mrb[0].mxu0
        %v1454 = vadd.f32 0.0, %v1453
        %v1455 = vpop.f32.mrb[0].mxu0
        %1456 = vmatprep.mubr.f32.mxu0 %v1374
        %1457 = vmatmul.mubr.f32.gmra.mrb[0].mxu0 %v1373
        %v1458 = vpop.f32.mrb[0].mxu0
        %v1459 = vadd.f32 0.0, %v1458
        %v1460 = vpop.f32.mrb[0].mxu0
        %1461 = vmatprep.mubr.f32.mxu0 %v1376
        %1462 = vmatmul.mubr.f32.gmra.mrb[0].mxu0 %v1375
        %v1463 = vpop.f32.mrb[0].mxu0
        %v1464 = vadd.f32 0.0, %v1463
        %v1465 = vpop.f32.mrb[0].mxu0
        %1466 = vmatprep.mubr.f32.mxu0 %v1378
        %1467 = vmatmul.mubr.f32.gmra.mrb[0].mxu0 %v1377
        %v1468 = vpop.f32.mrb[0].mxu0
        %v1469 = vadd.f32 0.0, %v1468
        %v1470 = vpop.f32.mrb[0].mxu0
        %1471 = vmatprep.mubr.f32.mxu0 %v1380
        %1472 = vmatmul.mubr.f32.gmra.mrb[0].mxu0 %v1379
        %v1473 = vpop.f32.mrb[0].mxu0
        %v1474 = vadd.f32 0.0, %v1473
        %v1475 = vpop.f32.mrb[0].mxu0
        %1476 = vmatprep.mubr.f32.mxu0 %v1382
        %1477 = vmatmul.mubr.f32.gmra.mrb[0].mxu0 %v1381
        %v1478 = vpop.f32.mrb[0].mxu0
        %v1479 = vadd.f32 0.0, %v1478
        %v1480 = vpop.f32.mrb[0].mxu0
        %1481 = vmatprep.mubr.f32.mxu0 %v1384
        %1482 = vmatmul.mubr.f32.gmra.mrb[0].mxu0 %v1383
        %v1483 = vpop.f32.mrb[0].mxu0
        %v1484 = vadd.f32 0.0, %v1483
        %v1485 = vpop.f32.mrb[0].mxu0
        %1486 = vmatprep.mubr.f32.mxu0 %v1386
        %1487 = vmatmul.mubr.f32.gmra.mrb[0].mxu0 %v1385
        %v1488 = vpop.f32.mrb[0].mxu0
        %v1489 = vadd.f32 0.0, %v1488
        %v1490 = vpop.f32.mrb[0].mxu0
        %1491 = vdwg.mxu0
        %s1492 = scalar_lea.vmem [#allocation4], 512
        %v1493 = vld [vmem:[%s1492] sm:$0xff]
        %v1494 = vld [vmem:[%s1492 + $0x8] sm:$0xff]
        %v1495 = vld [vmem:[%s1492 + $0x10] sm:$0xff]
        %v1496 = vld [vmem:[%s1492 + $0x18] sm:$0xff]
        %v1497 = vld [vmem:[%s1492 + $0x20] sm:$0xff]
        %v1498 = vld [vmem:[%s1492 + $0x28] sm:$0xff]
        %v1499 = vld [vmem:[%s1492 + $0x30] sm:$0xff]
        %v1500 = vld [vmem:[%s1492 + $0x38] sm:$0xff]
        %v1501 = vld [vmem:[%s1492 + $0x40] sm:$0xff]
        %v1502 = vld [vmem:[%s1492 + $0x48] sm:$0xff]
        %v1503 = vld [vmem:[%s1492 + $0x50] sm:$0xff]
        %v1504 = vld [vmem:[%s1492 + $0x58] sm:$0xff]
        %v1505 = vld [vmem:[%s1492 + $0x60] sm:$0xff]
        %v1506 = vld [vmem:[%s1492 + $0x68] sm:$0xff]
        %v1507 = vld [vmem:[%s1492 + $0x70] sm:$0xff]
        %v1508 = vld [vmem:[%s1492 + $0x78] sm:$0xff]
        %1509 = vmatprep.subr.mxu0 0.0
        %1510 = vmatpush1.msra.mxu0 %v1493
        %1511 = vmatprep.subr.mxu0 0.0
        %1512 = vmatpush1.msra.mxu0 %v1494
        %1513 = vmatprep.subr.mxu0 0.0
        %1514 = vmatpush1.msra.mxu0 %v1495
        %1515 = vmatprep.subr.mxu0 0.0
        %1516 = vmatpush1.msra.mxu0 %v1496
        %1517 = vmatprep.subr.mxu0 0.0
        %1518 = vmatpush1.msra.mxu0 %v1497
        %1519 = vmatprep.subr.mxu0 0.0
        %1520 = vmatpush1.msra.mxu0 %v1498
        %1521 = vmatprep.subr.mxu0 0.0
        %1522 = vmatpush1.msra.mxu0 %v1499
        %1523 = vmatprep.subr.mxu0 0.0
        %1524 = vmatpush1.msra.mxu0 %v1500
        %1525 = vmatprep.subr.mxu0 0.0
        %1526 = vmatpush1.msra.mxu0 %v1501
        %1527 = vmatprep.subr.mxu0 0.0
        %1528 = vmatpush1.msra.mxu0 %v1502
        %1529 = vmatprep.subr.mxu0 0.0
        %1530 = vmatpush1.msra.mxu0 %v1503
        %1531 = vmatprep.subr.mxu0 0.0
        %1532 = vmatpush1.msra.mxu0 %v1504
        %1533 = vmatprep.subr.mxu0 0.0
        %1534 = vmatpush1.msra.mxu0 %v1505
        %1535 = vmatprep.subr.mxu0 0.0
        %1536 = vmatpush1.msra.mxu0 %v1506
        %1537 = vmatprep.subr.mxu0 0.0
        %1538 = vmatpush1.msra.mxu0 %v1507
        %1539 = vmatprep.subr.mxu0 0.0
        %1540 = vmatpush1.msra.mxu0 %v1508
        %1541 = vmatprep.subr.mxu0 0.0
        %1542 = vmatpush1.msra.mxu0 0.0
        %1543 = vmatprep.subr.mxu0 0.0
        %1544 = vmatpush1.msra.mxu0 0.0
        %1545 = vmatprep.subr.mxu0 0.0
        %1546 = vmatpush1.msra.mxu0 0.0
        %1547 = vmatprep.subr.mxu0 0.0
        %1548 = vmatpush1.msra.mxu0 0.0
        %1549 = vmatprep.subr.mxu0 0.0
        %1550 = vmatpush1.msra.mxu0 0.0
        %1551 = vmatprep.subr.mxu0 0.0
        %1552 = vmatpush1.msra.mxu0 0.0
        %1553 = vmatprep.subr.mxu0 0.0
        %1554 = vmatpush1.msra.mxu0 0.0
        %1555 = vmatprep.subr.mxu0 0.0
        %1556 = vmatpush1.msra.mxu0 0.0
        %1557 = vmatprep.subr.mxu0 0.0
        %1558 = vmatpush1.msra.mxu0 0.0
        %1559 = vmatprep.subr.mxu0 0.0
        %1560 = vmatpush1.msra.mxu0 0.0
        %1561 = vmatprep.subr.mxu0 0.0
        %1562 = vmatpush1.msra.mxu0 0.0
        %1563 = vmatprep.subr.mxu0 0.0
        %1564 = vmatpush1.msra.mxu0 0.0
        %1565 = vmatprep.subr.mxu0 0.0
        %1566 = vmatpush1.msra.mxu0 0.0
        %1567 = vmatprep.subr.mxu0 0.0
        %1568 = vmatpush1.msra.mxu0 0.0
        %1569 = vmatprep.subr.mxu0 0.0
        %1570 = vmatpush1.msra.mxu0 0.0
        %1571 = vmatprep.subr.mxu0 0.0
        %1572 = vmatpush1.msra.mxu0 0.0
        %1573 = vmatprep.mubr.f32.mxu0 0.0
        %1574 = vmatmul.mubr.f32.gmra.mrb[0].mxu0 %v1454
        %v1575 = vpop.f32.mrb[0].mxu0
        %v1576 = vadd.f32 0.0, %v1575
        %v1577 = vpop.f32.mrb[0].mxu0
        %1578 = vmatprep.mubr.f32.mxu0 0.0
        %1579 = vmatmul.mubr.f32.gmra.mrb[0].mxu0 %v1459
        %v1580 = vpop.f32.mrb[0].mxu0
        %v1581 = vadd.f32 0.0, %v1580
        %v1582 = vpop.f32.mrb[0].mxu0
        %1583 = vmatprep.mubr.f32.mxu0 0.0
        %1584 = vmatmul.mubr.f32.gmra.mrb[0].mxu0 %v1464
        %v1585 = vpop.f32.mrb[0].mxu0
        %v1586 = vadd.f32 0.0, %v1585
        %v1587 = vpop.f32.mrb[0].mxu0
        %1588 = vmatprep.mubr.f32.mxu0 0.0
        %1589 = vmatmul.mubr.f32.gmra.mrb[0].mxu0 %v1469
        %v1590 = vpop.f32.mrb[0].mxu0
        %v1591 = vadd.f32 0.0, %v1590
        %v1592 = vpop.f32.mrb[0].mxu0
        %1593 = vmatprep.mubr.f32.mxu0 0.0
        %1594 = vmatmul.mubr.f32.gmra.mrb[0].mxu0 %v1474
        %v1595 = vpop.f32.mrb[0].mxu0
        %v1596 = vadd.f32 0.0, %v1595
        %v1597 = vpop.f32.mrb[0].mxu0
        %1598 = vmatprep.mubr.f32.mxu0 0.0
        %1599 = vmatmul.mubr.f32.gmra.mrb[0].mxu0 %v1479
        %v1600 = vpop.f32.mrb[0].mxu0
        %v1601 = vadd.f32 0.0, %v1600
        %v1602 = vpop.f32.mrb[0].mxu0
        %1603 = vmatprep.mubr.f32.mxu0 0.0
        %1604 = vmatmul.mubr.f32.gmra.mrb[0].mxu0 %v1484
        %v1605 = vpop.f32.mrb[0].mxu0
        %v1606 = vadd.f32 0.0, %v1605
        %v1607 = vpop.f32.mrb[0].mxu0
        %1608 = vmatprep.mubr.f32.mxu0 0.0
        %1609 = vmatmul.mubr.f32.gmra.mrb[0].mxu0 %v1489
        %v1610 = vpop.f32.mrb[0].mxu0
        %v1611 = vadd.f32 0.0, %v1610
        %v1612 = vpop.f32.mrb[0].mxu0
        %1613 = vdwg.mxu0
        %v1614 = vadd.f32 %v1362, %v1576
        %v1615 = vadd.f32 %v1363, %v1581
        %v1616 = vadd.f32 %v1364, %v1586
        %v1617 = vadd.f32 %v1365, %v1591
        %v1618 = vadd.f32 %v1366, %v1596
        %v1619 = vadd.f32 %v1367, %v1601
        %v1620 = vadd.f32 %v1368, %v1606
        %v1621 = vadd.f32 %v1369, %v1611
        %s1622 = scalar_lea.vmem %s1, 640
        %v1623 = vld [vmem:[%s1622] sm:$0xff]
        %v1624 = vld [vmem:[%s1622 + $0x8] sm:$0xff]
        %v1625 = vld [vmem:[%s1622 + $0x10] sm:$0xff]
        %v1626 = vld [vmem:[%s1622 + $0x18] sm:$0xff]
        %v1627 = vld [vmem:[%s1622 + $0x20] sm:$0xff]
        %v1628 = vld [vmem:[%s1622 + $0x28] sm:$0xff]
        %v1629 = vld [vmem:[%s1622 + $0x30] sm:$0xff]
        %v1630 = vld [vmem:[%s1622 + $0x38] sm:$0xff]
        %v1631 = vld [vmem:[%s1622 + $0x40] sm:$0xff]
        %v1632 = vld [vmem:[%s1622 + $0x48] sm:$0xff]
        %v1633 = vld [vmem:[%s1622 + $0x50] sm:$0xff]
        %v1634 = vld [vmem:[%s1622 + $0x58] sm:$0xff]
        %v1635 = vld [vmem:[%s1622 + $0x60] sm:$0xff]
        %v1636 = vld [vmem:[%s1622 + $0x68] sm:$0xff]
        %v1637 = vld [vmem:[%s1622 + $0x70] sm:$0xff]
        %v1638 = vld [vmem:[%s1622 + $0x78] sm:$0xff]
        %1639 = vmatprep.subr.mxu0 0.0
        %1640 = vmatpush1.msra.mxu0 %v348
        %1641 = vmatprep.subr.mxu0 0.0
        %1642 = vmatpush1.msra.mxu0 %v349
        %1643 = vmatprep.subr.mxu0 0.0
        %1644 = vmatpush1.msra.mxu0 %v350
        %1645 = vmatprep.subr.mxu0 0.0
        %1646 = vmatpush1.msra.mxu0 %v351
        %1647 = vmatprep.subr.mxu0 0.0
        %1648 = vmatpush1.msra.mxu0 %v352
        %1649 = vmatprep.subr.mxu0 0.0
        %1650 = vmatpush1.msra.mxu0 %v353
        %1651 = vmatprep.subr.mxu0 0.0
        %1652 = vmatpush1.msra.mxu0 %v354
        %1653 = vmatprep.subr.mxu0 0.0
        %1654 = vmatpush1.msra.mxu0 %v355
        %1655 = vmatprep.subr.mxu0 0.0
        %1656 = vmatpush1.msra.mxu0 %v356
        %1657 = vmatprep.subr.mxu0 0.0
        %1658 = vmatpush1.msra.mxu0 %v357
        %1659 = vmatprep.subr.mxu0 0.0
        %1660 = vmatpush1.msra.mxu0 %v358
        %1661 = vmatprep.subr.mxu0 0.0
        %1662 = vmatpush1.msra.mxu0 %v359
        %1663 = vmatprep.subr.mxu0 0.0
        %1664 = vmatpush1.msra.mxu0 %v360
        %1665 = vmatprep.subr.mxu0 0.0
        %1666 = vmatpush1.msra.mxu0 %v361
        %1667 = vmatprep.subr.mxu0 0.0
        %1668 = vmatpush1.msra.mxu0 %v362
        %1669 = vmatprep.subr.mxu0 0.0
        %1670 = vmatpush1.msra.mxu0 %v363
        %1671 = vmatprep.subr.mxu0 0.0
        %1672 = vmatpush1.msra.mxu0 %v364
        %1673 = vmatprep.subr.mxu0 0.0
        %1674 = vmatpush1.msra.mxu0 %v365
        %1675 = vmatprep.subr.mxu0 0.0
        %1676 = vmatpush1.msra.mxu0 %v366
        %1677 = vmatprep.subr.mxu0 0.0
        %1678 = vmatpush1.msra.mxu0 %v367
        %1679 = vmatprep.subr.mxu0 0.0
        %1680 = vmatpush1.msra.mxu0 %v368
        %1681 = vmatprep.subr.mxu0 0.0
        %1682 = vmatpush1.msra.mxu0 %v369
        %1683 = vmatprep.subr.mxu0 0.0
        %1684 = vmatpush1.msra.mxu0 %v370
        %1685 = vmatprep.subr.mxu0 0.0
        %1686 = vmatpush1.msra.mxu0 %v371
        %1687 = vmatprep.subr.mxu0 0.0
        %1688 = vmatpush1.msra.mxu0 %v372
        %1689 = vmatprep.subr.mxu0 0.0
        %1690 = vmatpush1.msra.mxu0 %v373
        %1691 = vmatprep.subr.mxu0 0.0
        %1692 = vmatpush1.msra.mxu0 %v374
        %1693 = vmatprep.subr.mxu0 0.0
        %1694 = vmatpush1.msra.mxu0 %v375
        %1695 = vmatprep.subr.mxu0 0.0
        %1696 = vmatpush1.msra.mxu0 %v376
        %1697 = vmatprep.subr.mxu0 0.0
        %1698 = vmatpush1.msra.mxu0 %v377
        %1699 = vmatprep.subr.mxu0 0.0
        %1700 = vmatpush1.msra.mxu0 %v378
        %1701 = vmatprep.subr.mxu0 0.0
        %1702 = vmatpush1.msra.mxu0 %v379
        %1703 = vmatprep.mubr.f32.mxu0 %v1624
        %1704 = vmatmul.mubr.f32.gmra.mrb[0].mxu0 %v1623
        %v1705 = vpop.f32.mrb[0].mxu0
        %v1706 = vadd.f32 0.0, %v1705
        %v1707 = vpop.f32.mrb[0].mxu0
        %1708 = vmatprep.mubr.f32.mxu0 %v1626
        %1709 = vmatmul.mubr.f32.gmra.mrb[0].mxu0 %v1625
        %v1710 = vpop.f32.mrb[0].mxu0
        %v1711 = vadd.f32 0.0, %v1710
        %v1712 = vpop.f32.mrb[0].mxu0
        %1713 = vmatprep.mubr.f32.mxu0 %v1628
        %1714 = vmatmul.mubr.f32.gmra.mrb[0].mxu0 %v1627
        %v1715 = vpop.f32.mrb[0].mxu0
        %v1716 = vadd.f32 0.0, %v1715
        %v1717 = vpop.f32.mrb[0].mxu0
        %1718 = vmatprep.mubr.f32.mxu0 %v1630
        %1719 = vmatmul.mubr.f32.gmra.mrb[0].mxu0 %v1629
        %v1720 = vpop.f32.mrb[0].mxu0
        %v1721 = vadd.f32 0.0, %v1720
        %v1722 = vpop.f32.mrb[0].mxu0
        %1723 = vmatprep.mubr.f32.mxu0 %v1632
        %1724 = vmatmul.mubr.f32.gmra.mrb[0].mxu0 %v1631
        %v1725 = vpop.f32.mrb[0].mxu0
        %v1726 = vadd.f32 0.0, %v1725
        %v1727 = vpop.f32.mrb[0].mxu0
        %1728 = vmatprep.mubr.f32.mxu0 %v1634
        %1729 = vmatmul.mubr.f32.gmra.mrb[0].mxu0 %v1633
        %v1730 = vpop.f32.mrb[0].mxu0
        %v1731 = vadd.f32 0.0, %v1730
        %v1732 = vpop.f32.mrb[0].mxu0
        %1733 = vmatprep.mubr.f32.mxu0 %v1636
        %1734 = vmatmul.mubr.f32.gmra.mrb[0].mxu0 %v1635
        %v1735 = vpop.f32.mrb[0].mxu0
        %v1736 = vadd.f32 0.0, %v1735
        %v1737 = vpop.f32.mrb[0].mxu0
        %1738 = vmatprep.mubr.f32.mxu0 %v1638
        %1739 = vmatmul.mubr.f32.gmra.mrb[0].mxu0 %v1637
        %v1740 = vpop.f32.mrb[0].mxu0
        %v1741 = vadd.f32 0.0, %v1740
        %v1742 = vpop.f32.mrb[0].mxu0
        %1743 = vdwg.mxu0
        %s1744 = scalar_lea.vmem [#allocation4], 640
        %v1745 = vld [vmem:[%s1744] sm:$0xff]
        %v1746 = vld [vmem:[%s1744 + $0x8] sm:$0xff]
        %v1747 = vld [vmem:[%s1744 + $0x10] sm:$0xff]
        %v1748 = vld [vmem:[%s1744 + $0x18] sm:$0xff]
        %v1749 = vld [vmem:[%s1744 + $0x20] sm:$0xff]
        %v1750 = vld [vmem:[%s1744 + $0x28] sm:$0xff]
        %v1751 = vld [vmem:[%s1744 + $0x30] sm:$0xff]
        %v1752 = vld [vmem:[%s1744 + $0x38] sm:$0xff]
        %v1753 = vld [vmem:[%s1744 + $0x40] sm:$0xff]
        %v1754 = vld [vmem:[%s1744 + $0x48] sm:$0xff]
        %v1755 = vld [vmem:[%s1744 + $0x50] sm:$0xff]
        %v1756 = vld [vmem:[%s1744 + $0x58] sm:$0xff]
        %v1757 = vld [vmem:[%s1744 + $0x60] sm:$0xff]
        %v1758 = vld [vmem:[%s1744 + $0x68] sm:$0xff]
        %v1759 = vld [vmem:[%s1744 + $0x70] sm:$0xff]
        %v1760 = vld [vmem:[%s1744 + $0x78] sm:$0xff]
        %1761 = vmatprep.subr.mxu0 0.0
        %1762 = vmatpush1.msra.mxu0 %v1745
        %1763 = vmatprep.subr.mxu0 0.0
        %1764 = vmatpush1.msra.mxu0 %v1746
        %1765 = vmatprep.subr.mxu0 0.0
        %1766 = vmatpush1.msra.mxu0 %v1747
        %1767 = vmatprep.subr.mxu0 0.0
        %1768 = vmatpush1.msra.mxu0 %v1748
        %1769 = vmatprep.subr.mxu0 0.0
        %1770 = vmatpush1.msra.mxu0 %v1749
        %1771 = vmatprep.subr.mxu0 0.0
        %1772 = vmatpush1.msra.mxu0 %v1750
        %1773 = vmatprep.subr.mxu0 0.0
        %1774 = vmatpush1.msra.mxu0 %v1751
        %1775 = vmatprep.subr.mxu0 0.0
        %1776 = vmatpush1.msra.mxu0 %v1752
        %1777 = vmatprep.subr.mxu0 0.0
        %1778 = vmatpush1.msra.mxu0 %v1753
        %1779 = vmatprep.subr.mxu0 0.0
        %1780 = vmatpush1.msra.mxu0 %v1754
        %1781 = vmatprep.subr.mxu0 0.0
        %1782 = vmatpush1.msra.mxu0 %v1755
        %1783 = vmatprep.subr.mxu0 0.0
        %1784 = vmatpush1.msra.mxu0 %v1756
        %1785 = vmatprep.subr.mxu0 0.0
        %1786 = vmatpush1.msra.mxu0 %v1757
        %1787 = vmatprep.subr.mxu0 0.0
        %1788 = vmatpush1.msra.mxu0 %v1758
        %1789 = vmatprep.subr.mxu0 0.0
        %1790 = vmatpush1.msra.mxu0 %v1759
        %1791 = vmatprep.subr.mxu0 0.0
        %1792 = vmatpush1.msra.mxu0 %v1760
        %1793 = vmatprep.subr.mxu0 0.0
        %1794 = vmatpush1.msra.mxu0 0.0
        %1795 = vmatprep.subr.mxu0 0.0
        %1796 = vmatpush1.msra.mxu0 0.0
        %1797 = vmatprep.subr.mxu0 0.0
        %1798 = vmatpush1.msra.mxu0 0.0
        %1799 = vmatprep.subr.mxu0 0.0
        %1800 = vmatpush1.msra.mxu0 0.0
        %1801 = vmatprep.subr.mxu0 0.0
        %1802 = vmatpush1.msra.mxu0 0.0
        %1803 = vmatprep.subr.mxu0 0.0
        %1804 = vmatpush1.msra.mxu0 0.0
        %1805 = vmatprep.subr.mxu0 0.0
        %1806 = vmatpush1.msra.mxu0 0.0
        %1807 = vmatprep.subr.mxu0 0.0
        %1808 = vmatpush1.msra.mxu0 0.0
        %1809 = vmatprep.subr.mxu0 0.0
        %1810 = vmatpush1.msra.mxu0 0.0
        %1811 = vmatprep.subr.mxu0 0.0
        %1812 = vmatpush1.msra.mxu0 0.0
        %1813 = vmatprep.subr.mxu0 0.0
        %1814 = vmatpush1.msra.mxu0 0.0
        %1815 = vmatprep.subr.mxu0 0.0
        %1816 = vmatpush1.msra.mxu0 0.0
        %1817 = vmatprep.subr.mxu0 0.0
        %1818 = vmatpush1.msra.mxu0 0.0
        %1819 = vmatprep.subr.mxu0 0.0
        %1820 = vmatpush1.msra.mxu0 0.0
        %1821 = vmatprep.subr.mxu0 0.0
        %1822 = vmatpush1.msra.mxu0 0.0
        %1823 = vmatprep.subr.mxu0 0.0
        %1824 = vmatpush1.msra.mxu0 0.0
        %1825 = vmatprep.mubr.f32.mxu0 0.0
        %1826 = vmatmul.mubr.f32.gmra.mrb[0].mxu0 %v1706
        %v1827 = vpop.f32.mrb[0].mxu0
        %v1828 = vadd.f32 0.0, %v1827
        %v1829 = vpop.f32.mrb[0].mxu0
        %1830 = vmatprep.mubr.f32.mxu0 0.0
        %1831 = vmatmul.mubr.f32.gmra.mrb[0].mxu0 %v1711
        %v1832 = vpop.f32.mrb[0].mxu0
        %v1833 = vadd.f32 0.0, %v1832
        %v1834 = vpop.f32.mrb[0].mxu0
        %1835 = vmatprep.mubr.f32.mxu0 0.0
        %1836 = vmatmul.mubr.f32.gmra.mrb[0].mxu0 %v1716
        %v1837 = vpop.f32.mrb[0].mxu0
        %v1838 = vadd.f32 0.0, %v1837
        %v1839 = vpop.f32.mrb[0].mxu0
        %1840 = vmatprep.mubr.f32.mxu0 0.0
        %1841 = vmatmul.mubr.f32.gmra.mrb[0].mxu0 %v1721
        %v1842 = vpop.f32.mrb[0].mxu0
        %v1843 = vadd.f32 0.0, %v1842
        %v1844 = vpop.f32.mrb[0].mxu0
        %1845 = vmatprep.mubr.f32.mxu0 0.0
        %1846 = vmatmul.mubr.f32.gmra.mrb[0].mxu0 %v1726
        %v1847 = vpop.f32.mrb[0].mxu0
        %v1848 = vadd.f32 0.0, %v1847
        %v1849 = vpop.f32.mrb[0].mxu0
        %1850 = vmatprep.mubr.f32.mxu0 0.0
        %1851 = vmatmul.mubr.f32.gmra.mrb[0].mxu0 %v1731
        %v1852 = vpop.f32.mrb[0].mxu0
        %v1853 = vadd.f32 0.0, %v1852
        %v1854 = vpop.f32.mrb[0].mxu0
        %1855 = vmatprep.mubr.f32.mxu0 0.0
        %1856 = vmatmul.mubr.f32.gmra.mrb[0].mxu0 %v1736
        %v1857 = vpop.f32.mrb[0].mxu0
        %v1858 = vadd.f32 0.0, %v1857
        %v1859 = vpop.f32.mrb[0].mxu0
        %1860 = vmatprep.mubr.f32.mxu0 0.0
        %1861 = vmatmul.mubr.f32.gmra.mrb[0].mxu0 %v1741
        %v1862 = vpop.f32.mrb[0].mxu0
        %v1863 = vadd.f32 0.0, %v1862
        %v1864 = vpop.f32.mrb[0].mxu0
        %1865 = vdwg.mxu0
        %v1866 = vadd.f32 %v1614, %v1828
        %v1867 = vadd.f32 %v1615, %v1833
        %v1868 = vadd.f32 %v1616, %v1838
        %v1869 = vadd.f32 %v1617, %v1843
        %v1870 = vadd.f32 %v1618, %v1848
        %v1871 = vadd.f32 %v1619, %v1853
        %v1872 = vadd.f32 %v1620, %v1858
        %v1873 = vadd.f32 %v1621, %v1863
        %s1874 = scalar_lea.vmem %s1, 768
        %v1875 = vld [vmem:[%s1874] sm:$0xff]
        %v1876 = vld [vmem:[%s1874 + $0x8] sm:$0xff]
        %v1877 = vld [vmem:[%s1874 + $0x10] sm:$0xff]
        %v1878 = vld [vmem:[%s1874 + $0x18] sm:$0xff]
        %v1879 = vld [vmem:[%s1874 + $0x20] sm:$0xff]
        %v1880 = vld [vmem:[%s1874 + $0x28] sm:$0xff]
        %v1881 = vld [vmem:[%s1874 + $0x30] sm:$0xff]
        %v1882 = vld [vmem:[%s1874 + $0x38] sm:$0xff]
        %v1883 = vld [vmem:[%s1874 + $0x40] sm:$0xff]
        %v1884 = vld [vmem:[%s1874 + $0x48] sm:$0xff]
        %v1885 = vld [vmem:[%s1874 + $0x50] sm:$0xff]
        %v1886 = vld [vmem:[%s1874 + $0x58] sm:$0xff]
        %v1887 = vld [vmem:[%s1874 + $0x60] sm:$0xff]
        %v1888 = vld [vmem:[%s1874 + $0x68] sm:$0xff]
        %v1889 = vld [vmem:[%s1874 + $0x70] sm:$0xff]
        %v1890 = vld [vmem:[%s1874 + $0x78] sm:$0xff]
        %1891 = vmatprep.subr.mxu0 0.0
        %1892 = vmatpush1.msra.mxu0 %v348
        %1893 = vmatprep.subr.mxu0 0.0
        %1894 = vmatpush1.msra.mxu0 %v349
        %1895 = vmatprep.subr.mxu0 0.0
        %1896 = vmatpush1.msra.mxu0 %v350
        %1897 = vmatprep.subr.mxu0 0.0
        %1898 = vmatpush1.msra.mxu0 %v351
        %1899 = vmatprep.subr.mxu0 0.0
        %1900 = vmatpush1.msra.mxu0 %v352
        %1901 = vmatprep.subr.mxu0 0.0
        %1902 = vmatpush1.msra.mxu0 %v353
        %1903 = vmatprep.subr.mxu0 0.0
        %1904 = vmatpush1.msra.mxu0 %v354
        %1905 = vmatprep.subr.mxu0 0.0
        %1906 = vmatpush1.msra.mxu0 %v355
        %1907 = vmatprep.subr.mxu0 0.0
        %1908 = vmatpush1.msra.mxu0 %v356
        %1909 = vmatprep.subr.mxu0 0.0
        %1910 = vmatpush1.msra.mxu0 %v357
        %1911 = vmatprep.subr.mxu0 0.0
        %1912 = vmatpush1.msra.mxu0 %v358
        %1913 = vmatprep.subr.mxu0 0.0
        %1914 = vmatpush1.msra.mxu0 %v359
        %1915 = vmatprep.subr.mxu0 0.0
        %1916 = vmatpush1.msra.mxu0 %v360
        %1917 = vmatprep.subr.mxu0 0.0
        %1918 = vmatpush1.msra.mxu0 %v361
        %1919 = vmatprep.subr.mxu0 0.0
        %1920 = vmatpush1.msra.mxu0 %v362
        %1921 = vmatprep.subr.mxu0 0.0
        %1922 = vmatpush1.msra.mxu0 %v363
        %1923 = vmatprep.subr.mxu0 0.0
        %1924 = vmatpush1.msra.mxu0 %v364
        %1925 = vmatprep.subr.mxu0 0.0
        %1926 = vmatpush1.msra.mxu0 %v365
        %1927 = vmatprep.subr.mxu0 0.0
        %1928 = vmatpush1.msra.mxu0 %v366
        %1929 = vmatprep.subr.mxu0 0.0
        %1930 = vmatpush1.msra.mxu0 %v367
        %1931 = vmatprep.subr.mxu0 0.0
        %1932 = vmatpush1.msra.mxu0 %v368
        %1933 = vmatprep.subr.mxu0 0.0
        %1934 = vmatpush1.msra.mxu0 %v369
        %1935 = vmatprep.subr.mxu0 0.0
        %1936 = vmatpush1.msra.mxu0 %v370
        %1937 = vmatprep.subr.mxu0 0.0
        %1938 = vmatpush1.msra.mxu0 %v371
        %1939 = vmatprep.subr.mxu0 0.0
        %1940 = vmatpush1.msra.mxu0 %v372
        %1941 = vmatprep.subr.mxu0 0.0
        %1942 = vmatpush1.msra.mxu0 %v373
        %1943 = vmatprep.subr.mxu0 0.0
        %1944 = vmatpush1.msra.mxu0 %v374
        %1945 = vmatprep.subr.mxu0 0.0
        %1946 = vmatpush1.msra.mxu0 %v375
        %1947 = vmatprep.subr.mxu0 0.0
        %1948 = vmatpush1.msra.mxu0 %v376
        %1949 = vmatprep.subr.mxu0 0.0
        %1950 = vmatpush1.msra.mxu0 %v377
        %1951 = vmatprep.subr.mxu0 0.0
        %1952 = vmatpush1.msra.mxu0 %v378
        %1953 = vmatprep.subr.mxu0 0.0
        %1954 = vmatpush1.msra.mxu0 %v379
        %1955 = vmatprep.mubr.f32.mxu0 %v1876
        %1956 = vmatmul.mubr.f32.gmra.mrb[0].mxu0 %v1875
        %v1957 = vpop.f32.mrb[0].mxu0
        %v1958 = vadd.f32 0.0, %v1957
        %v1959 = vpop.f32.mrb[0].mxu0
        %1960 = vmatprep.mubr.f32.mxu0 %v1878
        %1961 = vmatmul.mubr.f32.gmra.mrb[0].mxu0 %v1877
        %v1962 = vpop.f32.mrb[0].mxu0
        %v1963 = vadd.f32 0.0, %v1962
        %v1964 = vpop.f32.mrb[0].mxu0
        %1965 = vmatprep.mubr.f32.mxu0 %v1880
        %1966 = vmatmul.mubr.f32.gmra.mrb[0].mxu0 %v1879
        %v1967 = vpop.f32.mrb[0].mxu0
        %v1968 = vadd.f32 0.0, %v1967
        %v1969 = vpop.f32.mrb[0].mxu0
        %1970 = vmatprep.mubr.f32.mxu0 %v1882
        %1971 = vmatmul.mubr.f32.gmra.mrb[0].mxu0 %v1881
        %v1972 = vpop.f32.mrb[0].mxu0
        %v1973 = vadd.f32 0.0, %v1972
        %v1974 = vpop.f32.mrb[0].mxu0
        %1975 = vmatprep.mubr.f32.mxu0 %v1884
        %1976 = vmatmul.mubr.f32.gmra.mrb[0].mxu0 %v1883
        %v1977 = vpop.f32.mrb[0].mxu0
        %v1978 = vadd.f32 0.0, %v1977
        %v1979 = vpop.f32.mrb[0].mxu0
        %1980 = vmatprep.mubr.f32.mxu0 %v1886
        %1981 = vmatmul.mubr.f32.gmra.mrb[0].mxu0 %v1885
        %v1982 = vpop.f32.mrb[0].mxu0
        %v1983 = vadd.f32 0.0, %v1982
        %v1984 = vpop.f32.mrb[0].mxu0
        %1985 = vmatprep.mubr.f32.mxu0 %v1888
        %1986 = vmatmul.mubr.f32.gmra.mrb[0].mxu0 %v1887
        %v1987 = vpop.f32.mrb[0].mxu0
        %v1988 = vadd.f32 0.0, %v1987
        %v1989 = vpop.f32.mrb[0].mxu0
        %1990 = vmatprep.mubr.f32.mxu0 %v1890
        %1991 = vmatmul.mubr.f32.gmra.mrb[0].mxu0 %v1889
        %v1992 = vpop.f32.mrb[0].mxu0
        %v1993 = vadd.f32 0.0, %v1992
        %v1994 = vpop.f32.mrb[0].mxu0
        %1995 = vdwg.mxu0
        %s1996 = scalar_lea.vmem [#allocation4], 768
        %v1997 = vld [vmem:[%s1996] sm:$0xff]
        %v1998 = vld [vmem:[%s1996 + $0x8] sm:$0xff]
        %v1999 = vld [vmem:[%s1996 + $0x10] sm:$0xff]
        %v2000 = vld [vmem:[%s1996 + $0x18] sm:$0xff]
        %v2001 = vld [vmem:[%s1996 + $0x20] sm:$0xff]
        %v2002 = vld [vmem:[%s1996 + $0x28] sm:$0xff]
        %v2003 = vld [vmem:[%s1996 + $0x30] sm:$0xff]
        %v2004 = vld [vmem:[%s1996 + $0x38] sm:$0xff]
        %v2005 = vld [vmem:[%s1996 + $0x40] sm:$0xff]
        %v2006 = vld [vmem:[%s1996 + $0x48] sm:$0xff]
        %v2007 = vld [vmem:[%s1996 + $0x50] sm:$0xff]
        %v2008 = vld [vmem:[%s1996 + $0x58] sm:$0xff]
        %v2009 = vld [vmem:[%s1996 + $0x60] sm:$0xff]
        %v2010 = vld [vmem:[%s1996 + $0x68] sm:$0xff]
        %v2011 = vld [vmem:[%s1996 + $0x70] sm:$0xff]
        %v2012 = vld [vmem:[%s1996 + $0x78] sm:$0xff]
        %2013 = vmatprep.subr.mxu0 0.0
        %2014 = vmatpush1.msra.mxu0 %v1997
        %2015 = vmatprep.subr.mxu0 0.0
        %2016 = vmatpush1.msra.mxu0 %v1998
        %2017 = vmatprep.subr.mxu0 0.0
        %2018 = vmatpush1.msra.mxu0 %v1999
        %2019 = vmatprep.subr.mxu0 0.0
        %2020 = vmatpush1.msra.mxu0 %v2000
        %2021 = vmatprep.subr.mxu0 0.0
        %2022 = vmatpush1.msra.mxu0 %v2001
        %2023 = vmatprep.subr.mxu0 0.0
        %2024 = vmatpush1.msra.mxu0 %v2002
        %2025 = vmatprep.subr.mxu0 0.0
        %2026 = vmatpush1.msra.mxu0 %v2003
        %2027 = vmatprep.subr.mxu0 0.0
        %2028 = vmatpush1.msra.mxu0 %v2004
        %2029 = vmatprep.subr.mxu0 0.0
        %2030 = vmatpush1.msra.mxu0 %v2005
        %2031 = vmatprep.subr.mxu0 0.0
        %2032 = vmatpush1.msra.mxu0 %v2006
        %2033 = vmatprep.subr.mxu0 0.0
        %2034 = vmatpush1.msra.mxu0 %v2007
        %2035 = vmatprep.subr.mxu0 0.0
        %2036 = vmatpush1.msra.mxu0 %v2008
        %2037 = vmatprep.subr.mxu0 0.0
        %2038 = vmatpush1.msra.mxu0 %v2009
        %2039 = vmatprep.subr.mxu0 0.0
        %2040 = vmatpush1.msra.mxu0 %v2010
        %2041 = vmatprep.subr.mxu0 0.0
        %2042 = vmatpush1.msra.mxu0 %v2011
        %2043 = vmatprep.subr.mxu0 0.0
        %2044 = vmatpush1.msra.mxu0 %v2012
        %2045 = vmatprep.subr.mxu0 0.0
        %2046 = vmatpush1.msra.mxu0 0.0
        %2047 = vmatprep.subr.mxu0 0.0
        %2048 = vmatpush1.msra.mxu0 0.0
        %2049 = vmatprep.subr.mxu0 0.0
        %2050 = vmatpush1.msra.mxu0 0.0
        %2051 = vmatprep.subr.mxu0 0.0
        %2052 = vmatpush1.msra.mxu0 0.0
        %2053 = vmatprep.subr.mxu0 0.0
        %2054 = vmatpush1.msra.mxu0 0.0
        %2055 = vmatprep.subr.mxu0 0.0
        %2056 = vmatpush1.msra.mxu0 0.0
        %2057 = vmatprep.subr.mxu0 0.0
        %2058 = vmatpush1.msra.mxu0 0.0
        %2059 = vmatprep.subr.mxu0 0.0
        %2060 = vmatpush1.msra.mxu0 0.0
        %2061 = vmatprep.subr.mxu0 0.0
        %2062 = vmatpush1.msra.mxu0 0.0
        %2063 = vmatprep.subr.mxu0 0.0
        %2064 = vmatpush1.msra.mxu0 0.0
        %2065 = vmatprep.subr.mxu0 0.0
        %2066 = vmatpush1.msra.mxu0 0.0
        %2067 = vmatprep.subr.mxu0 0.0
        %2068 = vmatpush1.msra.mxu0 0.0
        %2069 = vmatprep.subr.mxu0 0.0
        %2070 = vmatpush1.msra.mxu0 0.0
        %2071 = vmatprep.subr.mxu0 0.0
        %2072 = vmatpush1.msra.mxu0 0.0
        %2073 = vmatprep.subr.mxu0 0.0
        %2074 = vmatpush1.msra.mxu0 0.0
        %2075 = vmatprep.subr.mxu0 0.0
        %2076 = vmatpush1.msra.mxu0 0.0
        %2077 = vmatprep.mubr.f32.mxu0 0.0
        %2078 = vmatmul.mubr.f32.gmra.mrb[0].mxu0 %v1958
        %v2079 = vpop.f32.mrb[0].mxu0
        %v2080 = vadd.f32 0.0, %v2079
        %v2081 = vpop.f32.mrb[0].mxu0
        %2082 = vmatprep.mubr.f32.mxu0 0.0
        %2083 = vmatmul.mubr.f32.gmra.mrb[0].mxu0 %v1963
        %v2084 = vpop.f32.mrb[0].mxu0
        %v2085 = vadd.f32 0.0, %v2084
        %v2086 = vpop.f32.mrb[0].mxu0
        %2087 = vmatprep.mubr.f32.mxu0 0.0
        %2088 = vmatmul.mubr.f32.gmra.mrb[0].mxu0 %v1968
        %v2089 = vpop.f32.mrb[0].mxu0
        %v2090 = vadd.f32 0.0, %v2089
        %v2091 = vpop.f32.mrb[0].mxu0
        %2092 = vmatprep.mubr.f32.mxu0 0.0
        %2093 = vmatmul.mubr.f32.gmra.mrb[0].mxu0 %v1973
        %v2094 = vpop.f32.mrb[0].mxu0
        %v2095 = vadd.f32 0.0, %v2094
        %v2096 = vpop.f32.mrb[0].mxu0
        %2097 = vmatprep.mubr.f32.mxu0 0.0
        %2098 = vmatmul.mubr.f32.gmra.mrb[0].mxu0 %v1978
        %v2099 = vpop.f32.mrb[0].mxu0
        %v2100 = vadd.f32 0.0, %v2099
        %v2101 = vpop.f32.mrb[0].mxu0
        %2102 = vmatprep.mubr.f32.mxu0 0.0
        %2103 = vmatmul.mubr.f32.gmra.mrb[0].mxu0 %v1983
        %v2104 = vpop.f32.mrb[0].mxu0
        %v2105 = vadd.f32 0.0, %v2104
        %v2106 = vpop.f32.mrb[0].mxu0
        %2107 = vmatprep.mubr.f32.mxu0 0.0
        %2108 = vmatmul.mubr.f32.gmra.mrb[0].mxu0 %v1988
        %v2109 = vpop.f32.mrb[0].mxu0
        %v2110 = vadd.f32 0.0, %v2109
        %v2111 = vpop.f32.mrb[0].mxu0
        %2112 = vmatprep.mubr.f32.mxu0 0.0
        %2113 = vmatmul.mubr.f32.gmra.mrb[0].mxu0 %v1993
        %v2114 = vpop.f32.mrb[0].mxu0
        %v2115 = vadd.f32 0.0, %v2114
        %v2116 = vpop.f32.mrb[0].mxu0
        %2117 = vdwg.mxu0
        %v2118 = vadd.f32 %v1866, %v2080
        %v2119 = vadd.f32 %v1867, %v2085
        %v2120 = vadd.f32 %v1868, %v2090
        %v2121 = vadd.f32 %v1869, %v2095
        %v2122 = vadd.f32 %v1870, %v2100
        %v2123 = vadd.f32 %v1871, %v2105
        %v2124 = vadd.f32 %v1872, %v2110
        %v2125 = vadd.f32 %v1873, %v2115
        %s2126 = scalar_lea.vmem %s1, 896
        %v2127 = vld [vmem:[%s2126] sm:$0xff]
        %v2128 = vld [vmem:[%s2126 + $0x8] sm:$0xff]
        %v2129 = vld [vmem:[%s2126 + $0x10] sm:$0xff]
        %v2130 = vld [vmem:[%s2126 + $0x18] sm:$0xff]
        %v2131 = vld [vmem:[%s2126 + $0x20] sm:$0xff]
        %v2132 = vld [vmem:[%s2126 + $0x28] sm:$0xff]
        %v2133 = vld [vmem:[%s2126 + $0x30] sm:$0xff]
        %v2134 = vld [vmem:[%s2126 + $0x38] sm:$0xff]
        %v2135 = vld [vmem:[%s2126 + $0x40] sm:$0xff]
        %v2136 = vld [vmem:[%s2126 + $0x48] sm:$0xff]
        %v2137 = vld [vmem:[%s2126 + $0x50] sm:$0xff]
        %v2138 = vld [vmem:[%s2126 + $0x58] sm:$0xff]
        %v2139 = vld [vmem:[%s2126 + $0x60] sm:$0xff]
        %v2140 = vld [vmem:[%s2126 + $0x68] sm:$0xff]
        %v2141 = vld [vmem:[%s2126 + $0x70] sm:$0xff]
        %v2142 = vld [vmem:[%s2126 + $0x78] sm:$0xff]
        %2143 = vmatprep.subr.mxu0 0.0
        %2144 = vmatpush1.msra.mxu0 %v348
        %2145 = vmatprep.subr.mxu0 0.0
        %2146 = vmatpush1.msra.mxu0 %v349
        %2147 = vmatprep.subr.mxu0 0.0
        %2148 = vmatpush1.msra.mxu0 %v350
        %2149 = vmatprep.subr.mxu0 0.0
        %2150 = vmatpush1.msra.mxu0 %v351
        %2151 = vmatprep.subr.mxu0 0.0
        %2152 = vmatpush1.msra.mxu0 %v352
        %2153 = vmatprep.subr.mxu0 0.0
        %2154 = vmatpush1.msra.mxu0 %v353
        %2155 = vmatprep.subr.mxu0 0.0
        %2156 = vmatpush1.msra.mxu0 %v354
        %2157 = vmatprep.subr.mxu0 0.0
        %2158 = vmatpush1.msra.mxu0 %v355
        %2159 = vmatprep.subr.mxu0 0.0
        %2160 = vmatpush1.msra.mxu0 %v356
        %2161 = vmatprep.subr.mxu0 0.0
        %2162 = vmatpush1.msra.mxu0 %v357
        %2163 = vmatprep.subr.mxu0 0.0
        %2164 = vmatpush1.msra.mxu0 %v358
        %2165 = vmatprep.subr.mxu0 0.0
        %2166 = vmatpush1.msra.mxu0 %v359
        %2167 = vmatprep.subr.mxu0 0.0
        %2168 = vmatpush1.msra.mxu0 %v360
        %2169 = vmatprep.subr.mxu0 0.0
        %2170 = vmatpush1.msra.mxu0 %v361
        %2171 = vmatprep.subr.mxu0 0.0
        %2172 = vmatpush1.msra.mxu0 %v362
        %2173 = vmatprep.subr.mxu0 0.0
        %2174 = vmatpush1.msra.mxu0 %v363
        %2175 = vmatprep.subr.mxu0 0.0
        %2176 = vmatpush1.msra.mxu0 %v364
        %2177 = vmatprep.subr.mxu0 0.0
        %2178 = vmatpush1.msra.mxu0 %v365
        %2179 = vmatprep.subr.mxu0 0.0
        %2180 = vmatpush1.msra.mxu0 %v366
        %2181 = vmatprep.subr.mxu0 0.0
        %2182 = vmatpush1.msra.mxu0 %v367
        %2183 = vmatprep.subr.mxu0 0.0
        %2184 = vmatpush1.msra.mxu0 %v368
        %2185 = vmatprep.subr.mxu0 0.0
        %2186 = vmatpush1.msra.mxu0 %v369
        %2187 = vmatprep.subr.mxu0 0.0
        %2188 = vmatpush1.msra.mxu0 %v370
        %2189 = vmatprep.subr.mxu0 0.0
        %2190 = vmatpush1.msra.mxu0 %v371
        %2191 = vmatprep.subr.mxu0 0.0
        %2192 = vmatpush1.msra.mxu0 %v372
        %2193 = vmatprep.subr.mxu0 0.0
        %2194 = vmatpush1.msra.mxu0 %v373
        %2195 = vmatprep.subr.mxu0 0.0
        %2196 = vmatpush1.msra.mxu0 %v374
        %2197 = vmatprep.subr.mxu0 0.0
        %2198 = vmatpush1.msra.mxu0 %v375
        %2199 = vmatprep.subr.mxu0 0.0
        %2200 = vmatpush1.msra.mxu0 %v376
        %2201 = vmatprep.subr.mxu0 0.0
        %2202 = vmatpush1.msra.mxu0 %v377
        %2203 = vmatprep.subr.mxu0 0.0
        %2204 = vmatpush1.msra.mxu0 %v378
        %2205 = vmatprep.subr.mxu0 0.0
        %2206 = vmatpush1.msra.mxu0 %v379
        %2207 = vmatprep.mubr.f32.mxu0 %v2128
        %2208 = vmatmul.mubr.f32.gmra.mrb[0].mxu0 %v2127
        %v2209 = vpop.f32.mrb[0].mxu0
        %v2210 = vadd.f32 0.0, %v2209
        %v2211 = vpop.f32.mrb[0].mxu0
        %2212 = vmatprep.mubr.f32.mxu0 %v2130
        %2213 = vmatmul.mubr.f32.gmra.mrb[0].mxu0 %v2129
        %v2214 = vpop.f32.mrb[0].mxu0
        %v2215 = vadd.f32 0.0, %v2214
        %v2216 = vpop.f32.mrb[0].mxu0
        %2217 = vmatprep.mubr.f32.mxu0 %v2132
        %2218 = vmatmul.mubr.f32.gmra.mrb[0].mxu0 %v2131
        %v2219 = vpop.f32.mrb[0].mxu0
        %v2220 = vadd.f32 0.0, %v2219
        %v2221 = vpop.f32.mrb[0].mxu0
        %2222 = vmatprep.mubr.f32.mxu0 %v2134
        %2223 = vmatmul.mubr.f32.gmra.mrb[0].mxu0 %v2133
        %v2224 = vpop.f32.mrb[0].mxu0
        %v2225 = vadd.f32 0.0, %v2224
        %v2226 = vpop.f32.mrb[0].mxu0
        %2227 = vmatprep.mubr.f32.mxu0 %v2136
        %2228 = vmatmul.mubr.f32.gmra.mrb[0].mxu0 %v2135
        %v2229 = vpop.f32.mrb[0].mxu0
        %v2230 = vadd.f32 0.0, %v2229
        %v2231 = vpop.f32.mrb[0].mxu0
        %2232 = vmatprep.mubr.f32.mxu0 %v2138
        %2233 = vmatmul.mubr.f32.gmra.mrb[0].mxu0 %v2137
        %v2234 = vpop.f32.mrb[0].mxu0
        %v2235 = vadd.f32 0.0, %v2234
        %v2236 = vpop.f32.mrb[0].mxu0
        %2237 = vmatprep.mubr.f32.mxu0 %v2140
        %2238 = vmatmul.mubr.f32.gmra.mrb[0].mxu0 %v2139
        %v2239 = vpop.f32.mrb[0].mxu0
        %v2240 = vadd.f32 0.0, %v2239
        %v2241 = vpop.f32.mrb[0].mxu0
        %2242 = vmatprep.mubr.f32.mxu0 %v2142
        %2243 = vmatmul.mubr.f32.gmra.mrb[0].mxu0 %v2141
        %v2244 = vpop.f32.mrb[0].mxu0
        %v2245 = vadd.f32 0.0, %v2244
        %v2246 = vpop.f32.mrb[0].mxu0
        %2247 = vdwg.mxu0
        %s2248 = scalar_lea.vmem [#allocation4], 896
        %v2249 = vld [vmem:[%s2248] sm:$0xff]
        %v2250 = vld [vmem:[%s2248 + $0x8] sm:$0xff]
        %v2251 = vld [vmem:[%s2248 + $0x10] sm:$0xff]
        %v2252 = vld [vmem:[%s2248 + $0x18] sm:$0xff]
        %v2253 = vld [vmem:[%s2248 + $0x20] sm:$0xff]
        %v2254 = vld [vmem:[%s2248 + $0x28] sm:$0xff]
        %v2255 = vld [vmem:[%s2248 + $0x30] sm:$0xff]
        %v2256 = vld [vmem:[%s2248 + $0x38] sm:$0xff]
        %v2257 = vld [vmem:[%s2248 + $0x40] sm:$0xff]
        %v2258 = vld [vmem:[%s2248 + $0x48] sm:$0xff]
        %v2259 = vld [vmem:[%s2248 + $0x50] sm:$0xff]
        %v2260 = vld [vmem:[%s2248 + $0x58] sm:$0xff]
        %v2261 = vld [vmem:[%s2248 + $0x60] sm:$0xff]
        %v2262 = vld [vmem:[%s2248 + $0x68] sm:$0xff]
        %v2263 = vld [vmem:[%s2248 + $0x70] sm:$0xff]
        %v2264 = vld [vmem:[%s2248 + $0x78] sm:$0xff]
        %2265 = vmatprep.subr.mxu0 0.0
        %2266 = vmatpush1.msra.mxu0 %v2249
        %2267 = vmatprep.subr.mxu0 0.0
        %2268 = vmatpush1.msra.mxu0 %v2250
        %2269 = vmatprep.subr.mxu0 0.0
        %2270 = vmatpush1.msra.mxu0 %v2251
        %2271 = vmatprep.subr.mxu0 0.0
        %2272 = vmatpush1.msra.mxu0 %v2252
        %2273 = vmatprep.subr.mxu0 0.0
        %2274 = vmatpush1.msra.mxu0 %v2253
        %2275 = vmatprep.subr.mxu0 0.0
        %2276 = vmatpush1.msra.mxu0 %v2254
        %2277 = vmatprep.subr.mxu0 0.0
        %2278 = vmatpush1.msra.mxu0 %v2255
        %2279 = vmatprep.subr.mxu0 0.0
        %2280 = vmatpush1.msra.mxu0 %v2256
        %2281 = vmatprep.subr.mxu0 0.0
        %2282 = vmatpush1.msra.mxu0 %v2257
        %2283 = vmatprep.subr.mxu0 0.0
        %2284 = vmatpush1.msra.mxu0 %v2258
        %2285 = vmatprep.subr.mxu0 0.0
        %2286 = vmatpush1.msra.mxu0 %v2259
        %2287 = vmatprep.subr.mxu0 0.0
        %2288 = vmatpush1.msra.mxu0 %v2260
        %2289 = vmatprep.subr.mxu0 0.0
        %2290 = vmatpush1.msra.mxu0 %v2261
        %2291 = vmatprep.subr.mxu0 0.0
        %2292 = vmatpush1.msra.mxu0 %v2262
        %2293 = vmatprep.subr.mxu0 0.0
        %2294 = vmatpush1.msra.mxu0 %v2263
        %2295 = vmatprep.subr.mxu0 0.0
        %2296 = vmatpush1.msra.mxu0 %v2264
        %2297 = vmatprep.subr.mxu0 0.0
        %2298 = vmatpush1.msra.mxu0 0.0
        %2299 = vmatprep.subr.mxu0 0.0
        %2300 = vmatpush1.msra.mxu0 0.0
        %2301 = vmatprep.subr.mxu0 0.0
        %2302 = vmatpush1.msra.mxu0 0.0
        %2303 = vmatprep.subr.mxu0 0.0
        %2304 = vmatpush1.msra.mxu0 0.0
        %2305 = vmatprep.subr.mxu0 0.0
        %2306 = vmatpush1.msra.mxu0 0.0
        %2307 = vmatprep.subr.mxu0 0.0
        %2308 = vmatpush1.msra.mxu0 0.0
        %2309 = vmatprep.subr.mxu0 0.0
        %2310 = vmatpush1.msra.mxu0 0.0
        %2311 = vmatprep.subr.mxu0 0.0
        %2312 = vmatpush1.msra.mxu0 0.0
        %2313 = vmatprep.subr.mxu0 0.0
        %2314 = vmatpush1.msra.mxu0 0.0
        %2315 = vmatprep.subr.mxu0 0.0
        %2316 = vmatpush1.msra.mxu0 0.0
        %2317 = vmatprep.subr.mxu0 0.0
        %2318 = vmatpush1.msra.mxu0 0.0
        %2319 = vmatprep.subr.mxu0 0.0
        %2320 = vmatpush1.msra.mxu0 0.0
        %2321 = vmatprep.subr.mxu0 0.0
        %2322 = vmatpush1.msra.mxu0 0.0
        %2323 = vmatprep.subr.mxu0 0.0
        %2324 = vmatpush1.msra.mxu0 0.0
        %2325 = vmatprep.subr.mxu0 0.0
        %2326 = vmatpush1.msra.mxu0 0.0
        %2327 = vmatprep.subr.mxu0 0.0
        %2328 = vmatpush1.msra.mxu0 0.0
        %2329 = vmatprep.mubr.f32.mxu0 0.0
        %2330 = vmatmul.mubr.f32.gmra.mrb[0].mxu0 %v2210
        %v2331 = vpop.f32.mrb[0].mxu0
        %v2332 = vadd.f32 0.0, %v2331
        %v2333 = vpop.f32.mrb[0].mxu0
        %2334 = vmatprep.mubr.f32.mxu0 0.0
        %2335 = vmatmul.mubr.f32.gmra.mrb[0].mxu0 %v2215
        %v2336 = vpop.f32.mrb[0].mxu0
        %v2337 = vadd.f32 0.0, %v2336
        %v2338 = vpop.f32.mrb[0].mxu0
        %2339 = vmatprep.mubr.f32.mxu0 0.0
        %2340 = vmatmul.mubr.f32.gmra.mrb[0].mxu0 %v2220
        %v2341 = vpop.f32.mrb[0].mxu0
        %v2342 = vadd.f32 0.0, %v2341
        %v2343 = vpop.f32.mrb[0].mxu0
        %2344 = vmatprep.mubr.f32.mxu0 0.0
        %2345 = vmatmul.mubr.f32.gmra.mrb[0].mxu0 %v2225
        %v2346 = vpop.f32.mrb[0].mxu0
        %v2347 = vadd.f32 0.0, %v2346
        %v2348 = vpop.f32.mrb[0].mxu0
        %2349 = vmatprep.mubr.f32.mxu0 0.0
        %2350 = vmatmul.mubr.f32.gmra.mrb[0].mxu0 %v2230
        %v2351 = vpop.f32.mrb[0].mxu0
        %v2352 = vadd.f32 0.0, %v2351
        %v2353 = vpop.f32.mrb[0].mxu0
        %2354 = vmatprep.mubr.f32.mxu0 0.0
        %2355 = vmatmul.mubr.f32.gmra.mrb[0].mxu0 %v2235
        %v2356 = vpop.f32.mrb[0].mxu0
        %v2357 = vadd.f32 0.0, %v2356
        %v2358 = vpop.f32.mrb[0].mxu0
        %2359 = vmatprep.mubr.f32.mxu0 0.0
        %2360 = vmatmul.mubr.f32.gmra.mrb[0].mxu0 %v2240
        %v2361 = vpop.f32.mrb[0].mxu0
        %v2362 = vadd.f32 0.0, %v2361
        %v2363 = vpop.f32.mrb[0].mxu0
        %2364 = vmatprep.mubr.f32.mxu0 0.0
        %2365 = vmatmul.mubr.f32.gmra.mrb[0].mxu0 %v2245
        %v2366 = vpop.f32.mrb[0].mxu0
        %v2367 = vadd.f32 0.0, %v2366
        %v2368 = vpop.f32.mrb[0].mxu0
        %2369 = vdwg.mxu0
        %v2370 = vadd.f32 %v2118, %v2332
        %v2371 = vadd.f32 %v2119, %v2337
        %v2372 = vadd.f32 %v2120, %v2342
        %v2373 = vadd.f32 %v2121, %v2347
        %v2374 = vadd.f32 %v2122, %v2352
        %v2375 = vadd.f32 %v2123, %v2357
        %v2376 = vadd.f32 %v2124, %v2362
        %v2377 = vadd.f32 %v2125, %v2367
        %s2378 = scalar_lea.vmem %s1, 1024
        %v2379 = vld [vmem:[%s2378] sm:$0xff]
        %v2380 = vld [vmem:[%s2378 + $0x8] sm:$0xff]
        %v2381 = vld [vmem:[%s2378 + $0x10] sm:$0xff]
        %v2382 = vld [vmem:[%s2378 + $0x18] sm:$0xff]
        %v2383 = vld [vmem:[%s2378 + $0x20] sm:$0xff]
        %v2384 = vld [vmem:[%s2378 + $0x28] sm:$0xff]
        %v2385 = vld [vmem:[%s2378 + $0x30] sm:$0xff]
        %v2386 = vld [vmem:[%s2378 + $0x38] sm:$0xff]
        %v2387 = vld [vmem:[%s2378 + $0x40] sm:$0xff]
        %v2388 = vld [vmem:[%s2378 + $0x48] sm:$0xff]
        %v2389 = vld [vmem:[%s2378 + $0x50] sm:$0xff]
        %v2390 = vld [vmem:[%s2378 + $0x58] sm:$0xff]
        %v2391 = vld [vmem:[%s2378 + $0x60] sm:$0xff]
        %v2392 = vld [vmem:[%s2378 + $0x68] sm:$0xff]
        %v2393 = vld [vmem:[%s2378 + $0x70] sm:$0xff]
        %v2394 = vld [vmem:[%s2378 + $0x78] sm:$0xff]
        %2395 = vmatprep.subr.mxu0 0.0
        %2396 = vmatpush1.msra.mxu0 %v348
        %2397 = vmatprep.subr.mxu0 0.0
        %2398 = vmatpush1.msra.mxu0 %v349
        %2399 = vmatprep.subr.mxu0 0.0
        %2400 = vmatpush1.msra.mxu0 %v350
        %2401 = vmatprep.subr.mxu0 0.0
        %2402 = vmatpush1.msra.mxu0 %v351
        %2403 = vmatprep.subr.mxu0 0.0
        %2404 = vmatpush1.msra.mxu0 %v352
        %2405 = vmatprep.subr.mxu0 0.0
        %2406 = vmatpush1.msra.mxu0 %v353
        %2407 = vmatprep.subr.mxu0 0.0
        %2408 = vmatpush1.msra.mxu0 %v354
        %2409 = vmatprep.subr.mxu0 0.0
        %2410 = vmatpush1.msra.mxu0 %v355
        %2411 = vmatprep.subr.mxu0 0.0
        %2412 = vmatpush1.msra.mxu0 %v356
        %2413 = vmatprep.subr.mxu0 0.0
        %2414 = vmatpush1.msra.mxu0 %v357
        %2415 = vmatprep.subr.mxu0 0.0
        %2416 = vmatpush1.msra.mxu0 %v358
        %2417 = vmatprep.subr.mxu0 0.0
        %2418 = vmatpush1.msra.mxu0 %v359
        %2419 = vmatprep.subr.mxu0 0.0
        %2420 = vmatpush1.msra.mxu0 %v360
        %2421 = vmatprep.subr.mxu0 0.0
        %2422 = vmatpush1.msra.mxu0 %v361
        %2423 = vmatprep.subr.mxu0 0.0
        %2424 = vmatpush1.msra.mxu0 %v362
        %2425 = vmatprep.subr.mxu0 0.0
        %2426 = vmatpush1.msra.mxu0 %v363
        %2427 = vmatprep.subr.mxu0 0.0
        %2428 = vmatpush1.msra.mxu0 %v364
        %2429 = vmatprep.subr.mxu0 0.0
        %2430 = vmatpush1.msra.mxu0 %v365
        %2431 = vmatprep.subr.mxu0 0.0
        %2432 = vmatpush1.msra.mxu0 %v366
        %2433 = vmatprep.subr.mxu0 0.0
        %2434 = vmatpush1.msra.mxu0 %v367
        %2435 = vmatprep.subr.mxu0 0.0
        %2436 = vmatpush1.msra.mxu0 %v368
        %2437 = vmatprep.subr.mxu0 0.0
        %2438 = vmatpush1.msra.mxu0 %v369
        %2439 = vmatprep.subr.mxu0 0.0
        %2440 = vmatpush1.msra.mxu0 %v370
        %2441 = vmatprep.subr.mxu0 0.0
        %2442 = vmatpush1.msra.mxu0 %v371
        %2443 = vmatprep.subr.mxu0 0.0
        %2444 = vmatpush1.msra.mxu0 %v372
        %2445 = vmatprep.subr.mxu0 0.0
        %2446 = vmatpush1.msra.mxu0 %v373
        %2447 = vmatprep.subr.mxu0 0.0
        %2448 = vmatpush1.msra.mxu0 %v374
        %2449 = vmatprep.subr.mxu0 0.0
        %2450 = vmatpush1.msra.mxu0 %v375
        %2451 = vmatprep.subr.mxu0 0.0
        %2452 = vmatpush1.msra.mxu0 %v376
        %2453 = vmatprep.subr.mxu0 0.0
        %2454 = vmatpush1.msra.mxu0 %v377
        %2455 = vmatprep.subr.mxu0 0.0
        %2456 = vmatpush1.msra.mxu0 %v378
        %2457 = vmatprep.subr.mxu0 0.0
        %2458 = vmatpush1.msra.mxu0 %v379
        %2459 = vmatprep.mubr.f32.mxu0 %v2380
        %2460 = vmatmul.mubr.f32.gmra.mrb[0].mxu0 %v2379
        %v2461 = vpop.f32.mrb[0].mxu0
        %v2462 = vadd.f32 0.0, %v2461
        %v2463 = vpop.f32.mrb[0].mxu0
        %2464 = vmatprep.mubr.f32.mxu0 %v2382
        %2465 = vmatmul.mubr.f32.gmra.mrb[0].mxu0 %v2381
        %v2466 = vpop.f32.mrb[0].mxu0
        %v2467 = vadd.f32 0.0, %v2466
        %v2468 = vpop.f32.mrb[0].mxu0
        %2469 = vmatprep.mubr.f32.mxu0 %v2384
        %2470 = vmatmul.mubr.f32.gmra.mrb[0].mxu0 %v2383
        %v2471 = vpop.f32.mrb[0].mxu0
        %v2472 = vadd.f32 0.0, %v2471
        %v2473 = vpop.f32.mrb[0].mxu0
        %2474 = vmatprep.mubr.f32.mxu0 %v2386
        %2475 = vmatmul.mubr.f32.gmra.mrb[0].mxu0 %v2385
        %v2476 = vpop.f32.mrb[0].mxu0
        %v2477 = vadd.f32 0.0, %v2476
        %v2478 = vpop.f32.mrb[0].mxu0
        %2479 = vmatprep.mubr.f32.mxu0 %v2388
        %2480 = vmatmul.mubr.f32.gmra.mrb[0].mxu0 %v2387
        %v2481 = vpop.f32.mrb[0].mxu0
        %v2482 = vadd.f32 0.0, %v2481
        %v2483 = vpop.f32.mrb[0].mxu0
        %2484 = vmatprep.mubr.f32.mxu0 %v2390
        %2485 = vmatmul.mubr.f32.gmra.mrb[0].mxu0 %v2389
        %v2486 = vpop.f32.mrb[0].mxu0
        %v2487 = vadd.f32 0.0, %v2486
        %v2488 = vpop.f32.mrb[0].mxu0
        %2489 = vmatprep.mubr.f32.mxu0 %v2392
        %2490 = vmatmul.mubr.f32.gmra.mrb[0].mxu0 %v2391
        %v2491 = vpop.f32.mrb[0].mxu0
        %v2492 = vadd.f32 0.0, %v2491
        %v2493 = vpop.f32.mrb[0].mxu0
        %2494 = vmatprep.mubr.f32.mxu0 %v2394
        %2495 = vmatmul.mubr.f32.gmra.mrb[0].mxu0 %v2393
        %v2496 = vpop.f32.mrb[0].mxu0
        %v2497 = vadd.f32 0.0, %v2496
        %v2498 = vpop.f32.mrb[0].mxu0
        %2499 = vdwg.mxu0
        %s2500 = scalar_lea.vmem [#allocation4], 1024
        %v2501 = vld [vmem:[%s2500] sm:$0xff]
        %v2502 = vld [vmem:[%s2500 + $0x8] sm:$0xff]
        %v2503 = vld [vmem:[%s2500 + $0x10] sm:$0xff]
        %v2504 = vld [vmem:[%s2500 + $0x18] sm:$0xff]
        %v2505 = vld [vmem:[%s2500 + $0x20] sm:$0xff]
        %v2506 = vld [vmem:[%s2500 + $0x28] sm:$0xff]
        %v2507 = vld [vmem:[%s2500 + $0x30] sm:$0xff]
        %v2508 = vld [vmem:[%s2500 + $0x38] sm:$0xff]
        %v2509 = vld [vmem:[%s2500 + $0x40] sm:$0xff]
        %v2510 = vld [vmem:[%s2500 + $0x48] sm:$0xff]
        %v2511 = vld [vmem:[%s2500 + $0x50] sm:$0xff]
        %v2512 = vld [vmem:[%s2500 + $0x58] sm:$0xff]
        %v2513 = vld [vmem:[%s2500 + $0x60] sm:$0xff]
        %v2514 = vld [vmem:[%s2500 + $0x68] sm:$0xff]
        %v2515 = vld [vmem:[%s2500 + $0x70] sm:$0xff]
        %v2516 = vld [vmem:[%s2500 + $0x78] sm:$0xff]
        %2517 = vmatprep.subr.mxu0 0.0
        %2518 = vmatpush1.msra.mxu0 %v2501
        %2519 = vmatprep.subr.mxu0 0.0
        %2520 = vmatpush1.msra.mxu0 %v2502
        %2521 = vmatprep.subr.mxu0 0.0
        %2522 = vmatpush1.msra.mxu0 %v2503
        %2523 = vmatprep.subr.mxu0 0.0
        %2524 = vmatpush1.msra.mxu0 %v2504
        %2525 = vmatprep.subr.mxu0 0.0
        %2526 = vmatpush1.msra.mxu0 %v2505
        %2527 = vmatprep.subr.mxu0 0.0
        %2528 = vmatpush1.msra.mxu0 %v2506
        %2529 = vmatprep.subr.mxu0 0.0
        %2530 = vmatpush1.msra.mxu0 %v2507
        %2531 = vmatprep.subr.mxu0 0.0
        %2532 = vmatpush1.msra.mxu0 %v2508
        %2533 = vmatprep.subr.mxu0 0.0
        %2534 = vmatpush1.msra.mxu0 %v2509
        %2535 = vmatprep.subr.mxu0 0.0
        %2536 = vmatpush1.msra.mxu0 %v2510
        %2537 = vmatprep.subr.mxu0 0.0
        %2538 = vmatpush1.msra.mxu0 %v2511
        %2539 = vmatprep.subr.mxu0 0.0
        %2540 = vmatpush1.msra.mxu0 %v2512
        %2541 = vmatprep.subr.mxu0 0.0
        %2542 = vmatpush1.msra.mxu0 %v2513
        %2543 = vmatprep.subr.mxu0 0.0
        %2544 = vmatpush1.msra.mxu0 %v2514
        %2545 = vmatprep.subr.mxu0 0.0
        %2546 = vmatpush1.msra.mxu0 %v2515
        %2547 = vmatprep.subr.mxu0 0.0
        %2548 = vmatpush1.msra.mxu0 %v2516
        %2549 = vmatprep.subr.mxu0 0.0
        %2550 = vmatpush1.msra.mxu0 0.0
        %2551 = vmatprep.subr.mxu0 0.0
        %2552 = vmatpush1.msra.mxu0 0.0
        %2553 = vmatprep.subr.mxu0 0.0
        %2554 = vmatpush1.msra.mxu0 0.0
        %2555 = vmatprep.subr.mxu0 0.0
        %2556 = vmatpush1.msra.mxu0 0.0
        %2557 = vmatprep.subr.mxu0 0.0
        %2558 = vmatpush1.msra.mxu0 0.0
        %2559 = vmatprep.subr.mxu0 0.0
        %2560 = vmatpush1.msra.mxu0 0.0
        %2561 = vmatprep.subr.mxu0 0.0
        %2562 = vmatpush1.msra.mxu0 0.0
        %2563 = vmatprep.subr.mxu0 0.0
        %2564 = vmatpush1.msra.mxu0 0.0
        %2565 = vmatprep.subr.mxu0 0.0
        %2566 = vmatpush1.msra.mxu0 0.0
        %2567 = vmatprep.subr.mxu0 0.0
        %2568 = vmatpush1.msra.mxu0 0.0
        %2569 = vmatprep.subr.mxu0 0.0
        %2570 = vmatpush1.msra.mxu0 0.0
        %2571 = vmatprep.subr.mxu0 0.0
        %2572 = vmatpush1.msra.mxu0 0.0
        %2573 = vmatprep.subr.mxu0 0.0
        %2574 = vmatpush1.msra.mxu0 0.0
        %2575 = vmatprep.subr.mxu0 0.0
        %2576 = vmatpush1.msra.mxu0 0.0
        %2577 = vmatprep.subr.mxu0 0.0
        %2578 = vmatpush1.msra.mxu0 0.0
        %2579 = vmatprep.subr.mxu0 0.0
        %2580 = vmatpush1.msra.mxu0 0.0
        %2581 = vmatprep.mubr.f32.mxu0 0.0
        %2582 = vmatmul.mubr.f32.gmra.mrb[0].mxu0 %v2462
        %v2583 = vpop.f32.mrb[0].mxu0
        %v2584 = vadd.f32 0.0, %v2583
        %v2585 = vpop.f32.mrb[0].mxu0
        %2586 = vmatprep.mubr.f32.mxu0 0.0
        %2587 = vmatmul.mubr.f32.gmra.mrb[0].mxu0 %v2467
        %v2588 = vpop.f32.mrb[0].mxu0
        %v2589 = vadd.f32 0.0, %v2588
        %v2590 = vpop.f32.mrb[0].mxu0
        %2591 = vmatprep.mubr.f32.mxu0 0.0
        %2592 = vmatmul.mubr.f32.gmra.mrb[0].mxu0 %v2472
        %v2593 = vpop.f32.mrb[0].mxu0
        %v2594 = vadd.f32 0.0, %v2593
        %v2595 = vpop.f32.mrb[0].mxu0
        %2596 = vmatprep.mubr.f32.mxu0 0.0
        %2597 = vmatmul.mubr.f32.gmra.mrb[0].mxu0 %v2477
        %v2598 = vpop.f32.mrb[0].mxu0
        %v2599 = vadd.f32 0.0, %v2598
        %v2600 = vpop.f32.mrb[0].mxu0
        %2601 = vmatprep.mubr.f32.mxu0 0.0
        %2602 = vmatmul.mubr.f32.gmra.mrb[0].mxu0 %v2482
        %v2603 = vpop.f32.mrb[0].mxu0
        %v2604 = vadd.f32 0.0, %v2603
        %v2605 = vpop.f32.mrb[0].mxu0
        %2606 = vmatprep.mubr.f32.mxu0 0.0
        %2607 = vmatmul.mubr.f32.gmra.mrb[0].mxu0 %v2487
        %v2608 = vpop.f32.mrb[0].mxu0
        %v2609 = vadd.f32 0.0, %v2608
        %v2610 = vpop.f32.mrb[0].mxu0
        %2611 = vmatprep.mubr.f32.mxu0 0.0
        %2612 = vmatmul.mubr.f32.gmra.mrb[0].mxu0 %v2492
        %v2613 = vpop.f32.mrb[0].mxu0
        %v2614 = vadd.f32 0.0, %v2613
        %v2615 = vpop.f32.mrb[0].mxu0
        %2616 = vmatprep.mubr.f32.mxu0 0.0
        %2617 = vmatmul.mubr.f32.gmra.mrb[0].mxu0 %v2497
        %v2618 = vpop.f32.mrb[0].mxu0
        %v2619 = vadd.f32 0.0, %v2618
        %v2620 = vpop.f32.mrb[0].mxu0
        %2621 = vdwg.mxu0
        %v2622 = vadd.f32 %v2370, %v2584
        %v2623 = vadd.f32 %v2371, %v2589
        %v2624 = vadd.f32 %v2372, %v2594
        %v2625 = vadd.f32 %v2373, %v2599
        %v2626 = vadd.f32 %v2374, %v2604
        %v2627 = vadd.f32 %v2375, %v2609
        %v2628 = vadd.f32 %v2376, %v2614
        %v2629 = vadd.f32 %v2377, %v2619
        %v2630 = vld [vmem:[%s7] sm:$0x1]
        %v2631 = vlaneseq
        %v2632 = vshrl.u32 %v2631, 7
        %v2633 = vsub.s32 0, %v2632
        %v2634 = vrot.slane %v2630, %v2633
        %v2635 = vmul.f32 %v2622, %v2634
        %v2636 = vmul.f32 %v2623, %v2634
        %v2637 = vmul.f32 %v2624, %v2634
        %v2638 = vmul.f32 %v2625, %v2634
        %v2639 = vmul.f32 %v2626, %v2634
        %v2640 = vmul.f32 %v2627, %v2634
        %v2641 = vmul.f32 %v2628, %v2634
        %v2642 = vmul.f32 %v2629, %v2634
        %v2643 = vld [vmem:[%s7 + $0x1] sm:$0x1]
        %v2644 = vlaneseq
        %v2645 = vshrl.u32 %v2644, 7
        %v2646 = vsub.s32 0, %v2645
        %v2647 = vrot.slane %v2643, %v2646
        %v2648 = vadd.f32 %v2635, %v2647
        %v2649 = vadd.f32 %v2636, %v2647
        %v2650 = vadd.f32 %v2637, %v2647
        %v2651 = vadd.f32 %v2638, %v2647
        %v2652 = vadd.f32 %v2639, %v2647
        %v2653 = vadd.f32 %v2640, %v2647
        %v2654 = vadd.f32 %v2641, %v2647
        %v2655 = vadd.f32 %v2642, %v2647
        %v2656 = vxor.u32 %v2648, 2147483648
        %v2657 = vxor.u32 %v2649, 2147483648
        %v2658 = vxor.u32 %v2650, 2147483648
        %v2659 = vxor.u32 %v2651, 2147483648
        %v2660 = vxor.u32 %v2652, 2147483648
        %v2661 = vxor.u32 %v2653, 2147483648
        %v2662 = vxor.u32 %v2654, 2147483648
        %v2663 = vxor.u32 %v2655, 2147483648
        %v2664 = vmul.f32 %v2656, 1.442695
        %v2665 = vpow.pop %v2664
        %v2666 = vmul.f32 %v2657, 1.442695
        %v2667 = vpow.pop %v2666
        %v2668 = vmul.f32 %v2658, 1.442695
        %v2669 = vpow.pop %v2668
        %v2670 = vmul.f32 %v2659, 1.442695
        %v2671 = vpow.pop %v2670
        %v2672 = vmul.f32 %v2660, 1.442695
        %v2673 = vpow.pop %v2672
        %v2674 = vmul.f32 %v2661, 1.442695
        %v2675 = vpow.pop %v2674
        %v2676 = vmul.f32 %v2662, 1.442695
        %v2677 = vpow.pop %v2676
        %v2678 = vmul.f32 %v2663, 1.442695
        %v2679 = vpow.pop %v2678
        %v2680 = vadd.f32 %v2665, 1.0
        %v2681 = vadd.f32 %v2667, 1.0
        %v2682 = vadd.f32 %v2669, 1.0
        %v2683 = vadd.f32 %v2671, 1.0
        %v2684 = vadd.f32 %v2673, 1.0
        %v2685 = vadd.f32 %v2675, 1.0
        %v2686 = vadd.f32 %v2677, 1.0
        %v2687 = vadd.f32 %v2679, 1.0
        %v2688 = vrcp.pop %v2680
        %v2689 = vmul.f32 1.0, %v2688
        %v2690 = vrcp.pop %v2681
        %v2691 = vmul.f32 1.0, %v2690
        %v2692 = vrcp.pop %v2682
        %v2693 = vmul.f32 1.0, %v2692
        %v2694 = vrcp.pop %v2683
        %v2695 = vmul.f32 1.0, %v2694
        %v2696 = vrcp.pop %v2684
        %v2697 = vmul.f32 1.0, %v2696
        %v2698 = vrcp.pop %v2685
        %v2699 = vmul.f32 1.0, %v2698
        %v2700 = vrcp.pop %v2686
        %v2701 = vmul.f32 1.0, %v2700
        %v2702 = vrcp.pop %v2687
        %v2703 = vmul.f32 1.0, %v2702
        %v2704 = vmul.f32 %v2648, %v2689
        %v2705 = vmul.f32 %v2649, %v2691
        %v2706 = vmul.f32 %v2650, %v2693
        %v2707 = vmul.f32 %v2651, %v2695
        %v2708 = vmul.f32 %v2652, %v2697
        %v2709 = vmul.f32 %v2653, %v2699
        %v2710 = vmul.f32 %v2654, %v2701
        %v2711 = vmul.f32 %v2655, %v2703
        %v2712 = vld [vmem:[#allocation2] sm:$0xff]
        %v2713 = vld [vmem:[#allocation2 + $0x8] sm:$0xff]
        %v2714 = vld [vmem:[#allocation2 + $0x10] sm:$0xff]
        %v2715 = vld [vmem:[#allocation2 + $0x18] sm:$0xff]
        %v2716 = vld [vmem:[#allocation2 + $0x20] sm:$0xff]
        %v2717 = vld [vmem:[#allocation2 + $0x28] sm:$0xff]
        %v2718 = vld [vmem:[#allocation2 + $0x30] sm:$0xff]
        %v2719 = vld [vmem:[#allocation2 + $0x38] sm:$0xff]
        %vm2720 = vcmask 523264
        %v2722 = vsel %vm2720, %v2712, 0
        %v2725 = vsel %vm2720, %v2713, 0
        %v2728 = vsel %vm2720, %v2714, 0
        %v2731 = vsel %vm2720, %v2715, 0
        %v2734 = vsel %vm2720, %v2716, 0
        %v2737 = vsel %vm2720, %v2717, 0
        %v2740 = vsel %vm2720, %v2718, 0
        %v2743 = vsel %vm2720, %v2719, 0
        %2745 = vmatprep.subr.mxu0 0.0
        %2746 = vmatpush1.msra.mxu0 %v2704
        %2747 = vmatprep.subr.mxu0 0.0
        %2748 = vmatpush1.msra.mxu0 %v2705
        %2749 = vmatprep.subr.mxu0 0.0
        %2750 = vmatpush1.msra.mxu0 %v2706
        %2751 = vmatprep.subr.mxu0 0.0
        %2752 = vmatpush1.msra.mxu0 %v2707
        %2753 = vmatprep.subr.mxu0 0.0
        %2754 = vmatpush1.msra.mxu0 %v2708
        %2755 = vmatprep.subr.mxu0 0.0
        %2756 = vmatpush1.msra.mxu0 %v2709
        %2757 = vmatprep.subr.mxu0 0.0
        %2758 = vmatpush1.msra.mxu0 %v2710
        %2759 = vmatprep.subr.mxu0 0.0
        %2760 = vmatpush1.msra.mxu0 %v2711
        %2761 = vmatprep.subr.mxu0 0.0
        %2762 = vmatpush1.msra.mxu0 0.0
        %2763 = vmatprep.subr.mxu0 0.0
        %2764 = vmatpush1.msra.mxu0 0.0
        %2765 = vmatprep.subr.mxu0 0.0
        %2766 = vmatpush1.msra.mxu0 0.0
        %2767 = vmatprep.subr.mxu0 0.0
        %2768 = vmatpush1.msra.mxu0 0.0
        %2769 = vmatprep.subr.mxu0 0.0
        %2770 = vmatpush1.msra.mxu0 0.0
        %2771 = vmatprep.subr.mxu0 0.0
        %2772 = vmatpush1.msra.mxu0 0.0
        %2773 = vmatprep.subr.mxu0 0.0
        %2774 = vmatpush1.msra.mxu0 0.0
        %2775 = vmatprep.subr.mxu0 0.0
        %2776 = vmatpush1.msra.mxu0 0.0
        %2777 = vmatprep.subr.mxu0 0.0
        %2778 = vmatpush1.msra.mxu0 0.0
        %2779 = vmatprep.subr.mxu0 0.0
        %2780 = vmatpush1.msra.mxu0 0.0
        %2781 = vmatprep.subr.mxu0 0.0
        %2782 = vmatpush1.msra.mxu0 0.0
        %2783 = vmatprep.subr.mxu0 0.0
        %2784 = vmatpush1.msra.mxu0 0.0
        %2785 = vmatprep.subr.mxu0 0.0
        %2786 = vmatpush1.msra.mxu0 0.0
        %2787 = vmatprep.subr.mxu0 0.0
        %2788 = vmatpush1.msra.mxu0 0.0
        %2789 = vmatprep.subr.mxu0 0.0
        %2790 = vmatpush1.msra.mxu0 0.0
        %2791 = vmatprep.subr.mxu0 0.0
        %2792 = vmatpush1.msra.mxu0 0.0
        %2793 = vmatprep.subr.mxu0 0.0
        %2794 = vmatpush1.msra.mxu0 0.0
        %2795 = vmatprep.subr.mxu0 0.0
        %2796 = vmatpush1.msra.mxu0 0.0
        %2797 = vmatprep.subr.mxu0 0.0
        %2798 = vmatpush1.msra.mxu0 0.0
        %2799 = vmatprep.subr.mxu0 0.0
        %2800 = vmatpush1.msra.mxu0 0.0
        %2801 = vmatprep.subr.mxu0 0.0
        %2802 = vmatpush1.msra.mxu0 0.0
        %2803 = vmatprep.subr.mxu0 0.0
        %2804 = vmatpush1.msra.mxu0 0.0
        %2805 = vmatprep.subr.mxu0 0.0
        %2806 = vmatpush1.msra.mxu0 0.0
        %2807 = vmatprep.subr.mxu0 0.0
        %2808 = vmatpush1.msra.mxu0 0.0
        %2809 = vmatprep.mubr.f32.mxu0 0.0
        %2810 = vmatmul.mubr.f32.gmra.mrb[0].mxu0 %v2722
        %v2811 = vpop.f32.mrb[0].mxu0
        %v2812 = vadd.f32 0.0, %v2811
        %v2813 = vpop.f32.mrb[0].mxu0
        %2814 = vmatprep.mubr.f32.mxu0 0.0
        %2815 = vmatmul.mubr.f32.gmra.mrb[0].mxu0 %v2725
        %v2816 = vpop.f32.mrb[0].mxu0
        %v2817 = vadd.f32 0.0, %v2816
        %v2818 = vpop.f32.mrb[0].mxu0
        %2819 = vmatprep.mubr.f32.mxu0 0.0
        %2820 = vmatmul.mubr.f32.gmra.mrb[0].mxu0 %v2728
        %v2821 = vpop.f32.mrb[0].mxu0
        %v2822 = vadd.f32 0.0, %v2821
        %v2823 = vpop.f32.mrb[0].mxu0
        %2824 = vmatprep.mubr.f32.mxu0 0.0
        %2825 = vmatmul.mubr.f32.gmra.mrb[0].mxu0 %v2731
        %v2826 = vpop.f32.mrb[0].mxu0
        %v2827 = vadd.f32 0.0, %v2826
        %v2828 = vpop.f32.mrb[0].mxu0
        %2829 = vmatprep.mubr.f32.mxu0 0.0
        %2830 = vmatmul.mubr.f32.gmra.mrb[0].mxu0 %v2734
        %v2831 = vpop.f32.mrb[0].mxu0
        %v2832 = vadd.f32 0.0, %v2831
        %v2833 = vpop.f32.mrb[0].mxu0
        %2834 = vmatprep.mubr.f32.mxu0 0.0
        %2835 = vmatmul.mubr.f32.gmra.mrb[0].mxu0 %v2737
        %v2836 = vpop.f32.mrb[0].mxu0
        %v2837 = vadd.f32 0.0, %v2836
        %v2838 = vpop.f32.mrb[0].mxu0
        %2839 = vmatprep.mubr.f32.mxu0 0.0
        %2840 = vmatmul.mubr.f32.gmra.mrb[0].mxu0 %v2740
        %v2841 = vpop.f32.mrb[0].mxu0
        %v2842 = vadd.f32 0.0, %v2841
        %v2843 = vpop.f32.mrb[0].mxu0
        %2844 = vmatprep.mubr.f32.mxu0 0.0
        %2845 = vmatmul.mubr.f32.gmra.mrb[0].mxu0 %v2743
        %v2846 = vpop.f32.mrb[0].mxu0
        %v2847 = vadd.f32 0.0, %v2846
        %v2848 = vpop.f32.mrb[0].mxu0
        %2849 = vdwg.mxu0
        %v2850 = vld [vmem:[%s5] sm:$0x1]
        %v2851 = vlaneseq
        %v2852 = vshrl.u32 %v2851, 7
        %v2853 = vsub.s32 0, %v2852
        %v2854 = vrot.slane %v2850, %v2853
        %v2855 = vmul.f32 %v2812, %v2854
        %v2856 = vmul.f32 %v2817, %v2854
        %v2857 = vmul.f32 %v2822, %v2854
        %v2858 = vmul.f32 %v2827, %v2854
        %v2859 = vmul.f32 %v2832, %v2854
        %v2860 = vmul.f32 %v2837, %v2854
        %v2861 = vmul.f32 %v2842, %v2854
        %v2862 = vmul.f32 %v2847, %v2854
        %s2863 = scalar_lea.vmem [#allocation2], 64
        %v2864 = vld [vmem:[%s2863] sm:$0xff]
        %v2865 = vld [vmem:[%s2863 + $0x8] sm:$0xff]
        %v2866 = vld [vmem:[%s2863 + $0x10] sm:$0xff]
        %v2867 = vld [vmem:[%s2863 + $0x18] sm:$0xff]
        %v2868 = vld [vmem:[%s2863 + $0x20] sm:$0xff]
        %v2869 = vld [vmem:[%s2863 + $0x28] sm:$0xff]
        %v2870 = vld [vmem:[%s2863 + $0x30] sm:$0xff]
        %v2871 = vld [vmem:[%s2863 + $0x38] sm:$0xff]
        %v2873 = vsel %vm2720, %v2864, 0
        %v2876 = vsel %vm2720, %v2865, 0
        %v2879 = vsel %vm2720, %v2866, 0
        %v2882 = vsel %vm2720, %v2867, 0
        %v2885 = vsel %vm2720, %v2868, 0
        %v2888 = vsel %vm2720, %v2869, 0
        %v2891 = vsel %vm2720, %v2870, 0
        %v2894 = vsel %vm2720, %v2871, 0
        %2896 = vmatprep.subr.mxu0 0.0
        %2897 = vmatpush1.msra.mxu0 %v2704
        %2898 = vmatprep.subr.mxu0 0.0
        %2899 = vmatpush1.msra.mxu0 %v2705
        %2900 = vmatprep.subr.mxu0 0.0
        %2901 = vmatpush1.msra.mxu0 %v2706
        %2902 = vmatprep.subr.mxu0 0.0
        %2903 = vmatpush1.msra.mxu0 %v2707
        %2904 = vmatprep.subr.mxu0 0.0
        %2905 = vmatpush1.msra.mxu0 %v2708
        %2906 = vmatprep.subr.mxu0 0.0
        %2907 = vmatpush1.msra.mxu0 %v2709
        %2908 = vmatprep.subr.mxu0 0.0
        %2909 = vmatpush1.msra.mxu0 %v2710
        %2910 = vmatprep.subr.mxu0 0.0
        %2911 = vmatpush1.msra.mxu0 %v2711
        %2912 = vmatprep.subr.mxu0 0.0
        %2913 = vmatpush1.msra.mxu0 0.0
        %2914 = vmatprep.subr.mxu0 0.0
        %2915 = vmatpush1.msra.mxu0 0.0
        %2916 = vmatprep.subr.mxu0 0.0
        %2917 = vmatpush1.msra.mxu0 0.0
        %2918 = vmatprep.subr.mxu0 0.0
        %2919 = vmatpush1.msra.mxu0 0.0
        %2920 = vmatprep.subr.mxu0 0.0
        %2921 = vmatpush1.msra.mxu0 0.0
        %2922 = vmatprep.subr.mxu0 0.0
        %2923 = vmatpush1.msra.mxu0 0.0
        %2924 = vmatprep.subr.mxu0 0.0
        %2925 = vmatpush1.msra.mxu0 0.0
        %2926 = vmatprep.subr.mxu0 0.0
        %2927 = vmatpush1.msra.mxu0 0.0
        %2928 = vmatprep.subr.mxu0 0.0
        %2929 = vmatpush1.msra.mxu0 0.0
        %2930 = vmatprep.subr.mxu0 0.0
        %2931 = vmatpush1.msra.mxu0 0.0
        %2932 = vmatprep.subr.mxu0 0.0
        %2933 = vmatpush1.msra.mxu0 0.0
        %2934 = vmatprep.subr.mxu0 0.0
        %2935 = vmatpush1.msra.mxu0 0.0
        %2936 = vmatprep.subr.mxu0 0.0
        %2937 = vmatpush1.msra.mxu0 0.0
        %2938 = vmatprep.subr.mxu0 0.0
        %2939 = vmatpush1.msra.mxu0 0.0
        %2940 = vmatprep.subr.mxu0 0.0
        %2941 = vmatpush1.msra.mxu0 0.0
        %2942 = vmatprep.subr.mxu0 0.0
        %2943 = vmatpush1.msra.mxu0 0.0
        %2944 = vmatprep.subr.mxu0 0.0
        %2945 = vmatpush1.msra.mxu0 0.0
        %2946 = vmatprep.subr.mxu0 0.0
        %2947 = vmatpush1.msra.mxu0 0.0
        %2948 = vmatprep.subr.mxu0 0.0
        %2949 = vmatpush1.msra.mxu0 0.0
        %2950 = vmatprep.subr.mxu0 0.0
        %2951 = vmatpush1.msra.mxu0 0.0
        %2952 = vmatprep.subr.mxu0 0.0
        %2953 = vmatpush1.msra.mxu0 0.0
        %2954 = vmatprep.subr.mxu0 0.0
        %2955 = vmatpush1.msra.mxu0 0.0
        %2956 = vmatprep.subr.mxu0 0.0
        %2957 = vmatpush1.msra.mxu0 0.0
        %2958 = vmatprep.subr.mxu0 0.0
        %2959 = vmatpush1.msra.mxu0 0.0
        %2960 = vmatprep.mubr.f32.mxu0 0.0
        %2961 = vmatmul.mubr.f32.gmra.mrb[0].mxu0 %v2873
        %v2962 = vpop.f32.mrb[0].mxu0
        %v2963 = vadd.f32 0.0, %v2962
        %v2964 = vpop.f32.mrb[0].mxu0
        %2965 = vmatprep.mubr.f32.mxu0 0.0
        %2966 = vmatmul.mubr.f32.gmra.mrb[0].mxu0 %v2876
        %v2967 = vpop.f32.mrb[0].mxu0
        %v2968 = vadd.f32 0.0, %v2967
        %v2969 = vpop.f32.mrb[0].mxu0
        %2970 = vmatprep.mubr.f32.mxu0 0.0
        %2971 = vmatmul.mubr.f32.gmra.mrb[0].mxu0 %v2879
        %v2972 = vpop.f32.mrb[0].mxu0
        %v2973 = vadd.f32 0.0, %v2972
        %v2974 = vpop.f32.mrb[0].mxu0
        %2975 = vmatprep.mubr.f32.mxu0 0.0
        %2976 = vmatmul.mubr.f32.gmra.mrb[0].mxu0 %v2882
        %v2977 = vpop.f32.mrb[0].mxu0
        %v2978 = vadd.f32 0.0, %v2977
        %v2979 = vpop.f32.mrb[0].mxu0
        %2980 = vmatprep.mubr.f32.mxu0 0.0
        %2981 = vmatmul.mubr.f32.gmra.mrb[0].mxu0 %v2885
        %v2982 = vpop.f32.mrb[0].mxu0
        %v2983 = vadd.f32 0.0, %v2982
        %v2984 = vpop.f32.mrb[0].mxu0
        %2985 = vmatprep.mubr.f32.mxu0 0.0
        %2986 = vmatmul.mubr.f32.gmra.mrb[0].mxu0 %v2888
        %v2987 = vpop.f32.mrb[0].mxu0
        %v2988 = vadd.f32 0.0, %v2987
        %v2989 = vpop.f32.mrb[0].mxu0
        %2990 = vmatprep.mubr.f32.mxu0 0.0
        %2991 = vmatmul.mubr.f32.gmra.mrb[0].mxu0 %v2891
        %v2992 = vpop.f32.mrb[0].mxu0
        %v2993 = vadd.f32 0.0, %v2992
        %v2994 = vpop.f32.mrb[0].mxu0
        %2995 = vmatprep.mubr.f32.mxu0 0.0
        %2996 = vmatmul.mubr.f32.gmra.mrb[0].mxu0 %v2894
        %v2997 = vpop.f32.mrb[0].mxu0
        %v2998 = vadd.f32 0.0, %v2997
        %v2999 = vpop.f32.mrb[0].mxu0
        %3000 = vdwg.mxu0
        %v3001 = vld [vmem:[%s5 + $0x1] sm:$0x1]
        %v3002 = vlaneseq
        %v3003 = vshrl.u32 %v3002, 7
        %v3004 = vsub.s32 0, %v3003
        %v3005 = vrot.slane %v3001, %v3004
        %v3006 = vmul.f32 %v2963, %v3005
        %v3007 = vmul.f32 %v2968, %v3005
        %v3008 = vmul.f32 %v2973, %v3005
        %v3009 = vmul.f32 %v2978, %v3005
        %v3010 = vmul.f32 %v2983, %v3005
        %v3011 = vmul.f32 %v2988, %v3005
        %v3012 = vmul.f32 %v2993, %v3005
        %v3013 = vmul.f32 %v2998, %v3005
        %v3014 = vadd.f32 %v2855, %v3006
        %v3015 = vadd.f32 %v2856, %v3007
        %v3016 = vadd.f32 %v2857, %v3008
        %v3017 = vadd.f32 %v2858, %v3009
        %v3018 = vadd.f32 %v2859, %v3010
        %v3019 = vadd.f32 %v2860, %v3011
        %v3020 = vadd.f32 %v2861, %v3012
        %v3021 = vadd.f32 %v2862, %v3013
        %s3022 = scalar_lea.vmem [#allocation2], 128
        %v3023 = vld [vmem:[%s3022] sm:$0xff]
        %v3024 = vld [vmem:[%s3022 + $0x8] sm:$0xff]
        %v3025 = vld [vmem:[%s3022 + $0x10] sm:$0xff]
        %v3026 = vld [vmem:[%s3022 + $0x18] sm:$0xff]
        %v3027 = vld [vmem:[%s3022 + $0x20] sm:$0xff]
        %v3028 = vld [vmem:[%s3022 + $0x28] sm:$0xff]
        %v3029 = vld [vmem:[%s3022 + $0x30] sm:$0xff]
        %v3030 = vld [vmem:[%s3022 + $0x38] sm:$0xff]
        %v3032 = vsel %vm2720, %v3023, 0
        %v3035 = vsel %vm2720, %v3024, 0
        %v3038 = vsel %vm2720, %v3025, 0
        %v3041 = vsel %vm2720, %v3026, 0
        %v3044 = vsel %vm2720, %v3027, 0
        %v3047 = vsel %vm2720, %v3028, 0
        %v3050 = vsel %vm2720, %v3029, 0
        %v3053 = vsel %vm2720, %v3030, 0
        %3055 = vmatprep.subr.mxu0 0.0
        %3056 = vmatpush1.msra.mxu0 %v2704
        %3057 = vmatprep.subr.mxu0 0.0
        %3058 = vmatpush1.msra.mxu0 %v2705
        %3059 = vmatprep.subr.mxu0 0.0
        %3060 = vmatpush1.msra.mxu0 %v2706
        %3061 = vmatprep.subr.mxu0 0.0
        %3062 = vmatpush1.msra.mxu0 %v2707
        %3063 = vmatprep.subr.mxu0 0.0
        %3064 = vmatpush1.msra.mxu0 %v2708
        %3065 = vmatprep.subr.mxu0 0.0
        %3066 = vmatpush1.msra.mxu0 %v2709
        %3067 = vmatprep.subr.mxu0 0.0
        %3068 = vmatpush1.msra.mxu0 %v2710
        %3069 = vmatprep.subr.mxu0 0.0
        %3070 = vmatpush1.msra.mxu0 %v2711
        %3071 = vmatprep.subr.mxu0 0.0
        %3072 = vmatpush1.msra.mxu0 0.0
        %3073 = vmatprep.subr.mxu0 0.0
        %3074 = vmatpush1.msra.mxu0 0.0
        %3075 = vmatprep.subr.mxu0 0.0
        %3076 = vmatpush1.msra.mxu0 0.0
        %3077 = vmatprep.subr.mxu0 0.0
        %3078 = vmatpush1.msra.mxu0 0.0
        %3079 = vmatprep.subr.mxu0 0.0
        %3080 = vmatpush1.msra.mxu0 0.0
        %3081 = vmatprep.subr.mxu0 0.0
        %3082 = vmatpush1.msra.mxu0 0.0
        %3083 = vmatprep.subr.mxu0 0.0
        %3084 = vmatpush1.msra.mxu0 0.0
        %3085 = vmatprep.subr.mxu0 0.0
        %3086 = vmatpush1.msra.mxu0 0.0
        %3087 = vmatprep.subr.mxu0 0.0
        %3088 = vmatpush1.msra.mxu0 0.0
        %3089 = vmatprep.subr.mxu0 0.0
        %3090 = vmatpush1.msra.mxu0 0.0
        %3091 = vmatprep.subr.mxu0 0.0
        %3092 = vmatpush1.msra.mxu0 0.0
        %3093 = vmatprep.subr.mxu0 0.0
        %3094 = vmatpush1.msra.mxu0 0.0
        %3095 = vmatprep.subr.mxu0 0.0
        %3096 = vmatpush1.msra.mxu0 0.0
        %3097 = vmatprep.subr.mxu0 0.0
        %3098 = vmatpush1.msra.mxu0 0.0
        %3099 = vmatprep.subr.mxu0 0.0
        %3100 = vmatpush1.msra.mxu0 0.0
        %3101 = vmatprep.subr.mxu0 0.0
        %3102 = vmatpush1.msra.mxu0 0.0
        %3103 = vmatprep.subr.mxu0 0.0
        %3104 = vmatpush1.msra.mxu0 0.0
        %3105 = vmatprep.subr.mxu0 0.0
        %3106 = vmatpush1.msra.mxu0 0.0
        %3107 = vmatprep.subr.mxu0 0.0
        %3108 = vmatpush1.msra.mxu0 0.0
        %3109 = vmatprep.subr.mxu0 0.0
        %3110 = vmatpush1.msra.mxu0 0.0
        %3111 = vmatprep.subr.mxu0 0.0
        %3112 = vmatpush1.msra.mxu0 0.0
        %3113 = vmatprep.subr.mxu0 0.0
        %3114 = vmatpush1.msra.mxu0 0.0
        %3115 = vmatprep.subr.mxu0 0.0
        %3116 = vmatpush1.msra.mxu0 0.0
        %3117 = vmatprep.subr.mxu0 0.0
        %3118 = vmatpush1.msra.mxu0 0.0
        %3119 = vmatprep.mubr.f32.mxu0 0.0
        %3120 = vmatmul.mubr.f32.gmra.mrb[0].mxu0 %v3032
        %v3121 = vpop.f32.mrb[0].mxu0
        %v3122 = vadd.f32 0.0, %v3121
        %v3123 = vpop.f32.mrb[0].mxu0
        %3124 = vmatprep.mubr.f32.mxu0 0.0
        %3125 = vmatmul.mubr.f32.gmra.mrb[0].mxu0 %v3035
        %v3126 = vpop.f32.mrb[0].mxu0
        %v3127 = vadd.f32 0.0, %v3126
        %v3128 = vpop.f32.mrb[0].mxu0
        %3129 = vmatprep.mubr.f32.mxu0 0.0
        %3130 = vmatmul.mubr.f32.gmra.mrb[0].mxu0 %v3038
        %v3131 = vpop.f32.mrb[0].mxu0
        %v3132 = vadd.f32 0.0, %v3131
        %v3133 = vpop.f32.mrb[0].mxu0
        %3134 = vmatprep.mubr.f32.mxu0 0.0
        %3135 = vmatmul.mubr.f32.gmra.mrb[0].mxu0 %v3041
        %v3136 = vpop.f32.mrb[0].mxu0
        %v3137 = vadd.f32 0.0, %v3136
        %v3138 = vpop.f32.mrb[0].mxu0
        %3139 = vmatprep.mubr.f32.mxu0 0.0
        %3140 = vmatmul.mubr.f32.gmra.mrb[0].mxu0 %v3044
        %v3141 = vpop.f32.mrb[0].mxu0
        %v3142 = vadd.f32 0.0, %v3141
        %v3143 = vpop.f32.mrb[0].mxu0
        %3144 = vmatprep.mubr.f32.mxu0 0.0
        %3145 = vmatmul.mubr.f32.gmra.mrb[0].mxu0 %v3047
        %v3146 = vpop.f32.mrb[0].mxu0
        %v3147 = vadd.f32 0.0, %v3146
        %v3148 = vpop.f32.mrb[0].mxu0
        %3149 = vmatprep.mubr.f32.mxu0 0.0
        %3150 = vmatmul.mubr.f32.gmra.mrb[0].mxu0 %v3050
        %v3151 = vpop.f32.mrb[0].mxu0
        %v3152 = vadd.f32 0.0, %v3151
        %v3153 = vpop.f32.mrb[0].mxu0
        %3154 = vmatprep.mubr.f32.mxu0 0.0
        %3155 = vmatmul.mubr.f32.gmra.mrb[0].mxu0 %v3053
        %v3156 = vpop.f32.mrb[0].mxu0
        %v3157 = vadd.f32 0.0, %v3156
        %v3158 = vpop.f32.mrb[0].mxu0
        %3159 = vdwg.mxu0
        %v3160 = vld [vmem:[%s5 + $0x2] sm:$0x1]
        %v3161 = vlaneseq
        %v3162 = vshrl.u32 %v3161, 7
        %v3163 = vsub.s32 0, %v3162
        %v3164 = vrot.slane %v3160, %v3163
        %v3165 = vmul.f32 %v3122, %v3164
        %v3166 = vmul.f32 %v3127, %v3164
        %v3167 = vmul.f32 %v3132, %v3164
        %v3168 = vmul.f32 %v3137, %v3164
        %v3169 = vmul.f32 %v3142, %v3164
        %v3170 = vmul.f32 %v3147, %v3164
        %v3171 = vmul.f32 %v3152, %v3164
        %v3172 = vmul.f32 %v3157, %v3164
        %v3173 = vadd.f32 %v3014, %v3165
        %v3174 = vadd.f32 %v3015, %v3166
        %v3175 = vadd.f32 %v3016, %v3167
        %v3176 = vadd.f32 %v3017, %v3168
        %v3177 = vadd.f32 %v3018, %v3169
        %v3178 = vadd.f32 %v3019, %v3170
        %v3179 = vadd.f32 %v3020, %v3171
        %v3180 = vadd.f32 %v3021, %v3172
        %s3181 = scalar_lea.vmem [#allocation2], 192
        %v3182 = vld [vmem:[%s3181] sm:$0xff]
        %v3183 = vld [vmem:[%s3181 + $0x8] sm:$0xff]
        %v3184 = vld [vmem:[%s3181 + $0x10] sm:$0xff]
        %v3185 = vld [vmem:[%s3181 + $0x18] sm:$0xff]
        %v3186 = vld [vmem:[%s3181 + $0x20] sm:$0xff]
        %v3187 = vld [vmem:[%s3181 + $0x28] sm:$0xff]
        %v3188 = vld [vmem:[%s3181 + $0x30] sm:$0xff]
        %v3189 = vld [vmem:[%s3181 + $0x38] sm:$0xff]
        %v3191 = vsel %vm2720, %v3182, 0
        %v3194 = vsel %vm2720, %v3183, 0
        %v3197 = vsel %vm2720, %v3184, 0
        %v3200 = vsel %vm2720, %v3185, 0
        %v3203 = vsel %vm2720, %v3186, 0
        %v3206 = vsel %vm2720, %v3187, 0
        %v3209 = vsel %vm2720, %v3188, 0
        %v3212 = vsel %vm2720, %v3189, 0
        %3214 = vmatprep.subr.mxu0 0.0
        %3215 = vmatpush1.msra.mxu0 %v2704
        %3216 = vmatprep.subr.mxu0 0.0
        %3217 = vmatpush1.msra.mxu0 %v2705
        %3218 = vmatprep.subr.mxu0 0.0
        %3219 = vmatpush1.msra.mxu0 %v2706
        %3220 = vmatprep.subr.mxu0 0.0
        %3221 = vmatpush1.msra.mxu0 %v2707
        %3222 = vmatprep.subr.mxu0 0.0
        %3223 = vmatpush1.msra.mxu0 %v2708
        %3224 = vmatprep.subr.mxu0 0.0
        %3225 = vmatpush1.msra.mxu0 %v2709
        %3226 = vmatprep.subr.mxu0 0.0
        %3227 = vmatpush1.msra.mxu0 %v2710
        %3228 = vmatprep.subr.mxu0 0.0
        %3229 = vmatpush1.msra.mxu0 %v2711
        %3230 = vmatprep.subr.mxu0 0.0
        %3231 = vmatpush1.msra.mxu0 0.0
        %3232 = vmatprep.subr.mxu0 0.0
        %3233 = vmatpush1.msra.mxu0 0.0
        %3234 = vmatprep.subr.mxu0 0.0
        %3235 = vmatpush1.msra.mxu0 0.0
        %3236 = vmatprep.subr.mxu0 0.0
        %3237 = vmatpush1.msra.mxu0 0.0
        %3238 = vmatprep.subr.mxu0 0.0
        %3239 = vmatpush1.msra.mxu0 0.0
        %3240 = vmatprep.subr.mxu0 0.0
        %3241 = vmatpush1.msra.mxu0 0.0
        %3242 = vmatprep.subr.mxu0 0.0
        %3243 = vmatpush1.msra.mxu0 0.0
        %3244 = vmatprep.subr.mxu0 0.0
        %3245 = vmatpush1.msra.mxu0 0.0
        %3246 = vmatprep.subr.mxu0 0.0
        %3247 = vmatpush1.msra.mxu0 0.0
        %3248 = vmatprep.subr.mxu0 0.0
        %3249 = vmatpush1.msra.mxu0 0.0
        %3250 = vmatprep.subr.mxu0 0.0
        %3251 = vmatpush1.msra.mxu0 0.0
        %3252 = vmatprep.subr.mxu0 0.0
        %3253 = vmatpush1.msra.mxu0 0.0
        %3254 = vmatprep.subr.mxu0 0.0
        %3255 = vmatpush1.msra.mxu0 0.0
        %3256 = vmatprep.subr.mxu0 0.0
        %3257 = vmatpush1.msra.mxu0 0.0
        %3258 = vmatprep.subr.mxu0 0.0
        %3259 = vmatpush1.msra.mxu0 0.0
        %3260 = vmatprep.subr.mxu0 0.0
        %3261 = vmatpush1.msra.mxu0 0.0
        %3262 = vmatprep.subr.mxu0 0.0
        %3263 = vmatpush1.msra.mxu0 0.0
        %3264 = vmatprep.subr.mxu0 0.0
        %3265 = vmatpush1.msra.mxu0 0.0
        %3266 = vmatprep.subr.mxu0 0.0
        %3267 = vmatpush1.msra.mxu0 0.0
        %3268 = vmatprep.subr.mxu0 0.0
        %3269 = vmatpush1.msra.mxu0 0.0
        %3270 = vmatprep.subr.mxu0 0.0
        %3271 = vmatpush1.msra.mxu0 0.0
        %3272 = vmatprep.subr.mxu0 0.0
        %3273 = vmatpush1.msra.mxu0 0.0
        %3274 = vmatprep.subr.mxu0 0.0
        %3275 = vmatpush1.msra.mxu0 0.0
        %3276 = vmatprep.subr.mxu0 0.0
        %3277 = vmatpush1.msra.mxu0 0.0
        %3278 = vmatprep.mubr.f32.mxu0 0.0
        %3279 = vmatmul.mubr.f32.gmra.mrb[0].mxu0 %v3191
        %v3280 = vpop.f32.mrb[0].mxu0
        %v3281 = vadd.f32 0.0, %v3280
        %v3282 = vpop.f32.mrb[0].mxu0
        %3283 = vmatprep.mubr.f32.mxu0 0.0
        %3284 = vmatmul.mubr.f32.gmra.mrb[0].mxu0 %v3194
        %v3285 = vpop.f32.mrb[0].mxu0
        %v3286 = vadd.f32 0.0, %v3285
        %v3287 = vpop.f32.mrb[0].mxu0
        %3288 = vmatprep.mubr.f32.mxu0 0.0
        %3289 = vmatmul.mubr.f32.gmra.mrb[0].mxu0 %v3197
        %v3290 = vpop.f32.mrb[0].mxu0
        %v3291 = vadd.f32 0.0, %v3290
        %v3292 = vpop.f32.mrb[0].mxu0
        %3293 = vmatprep.mubr.f32.mxu0 0.0
        %3294 = vmatmul.mubr.f32.gmra.mrb[0].mxu0 %v3200
        %v3295 = vpop.f32.mrb[0].mxu0
        %v3296 = vadd.f32 0.0, %v3295
        %v3297 = vpop.f32.mrb[0].mxu0
        %3298 = vmatprep.mubr.f32.mxu0 0.0
        %3299 = vmatmul.mubr.f32.gmra.mrb[0].mxu0 %v3203
        %v3300 = vpop.f32.mrb[0].mxu0
        %v3301 = vadd.f32 0.0, %v3300
        %v3302 = vpop.f32.mrb[0].mxu0
        %3303 = vmatprep.mubr.f32.mxu0 0.0
        %3304 = vmatmul.mubr.f32.gmra.mrb[0].mxu0 %v3206
        %v3305 = vpop.f32.mrb[0].mxu0
        %v3306 = vadd.f32 0.0, %v3305
        %v3307 = vpop.f32.mrb[0].mxu0
        %3308 = vmatprep.mubr.f32.mxu0 0.0
        %3309 = vmatmul.mubr.f32.gmra.mrb[0].mxu0 %v3209
        %v3310 = vpop.f32.mrb[0].mxu0
        %v3311 = vadd.f32 0.0, %v3310
        %v3312 = vpop.f32.mrb[0].mxu0
        %3313 = vmatprep.mubr.f32.mxu0 0.0
        %3314 = vmatmul.mubr.f32.gmra.mrb[0].mxu0 %v3212
        %v3315 = vpop.f32.mrb[0].mxu0
        %v3316 = vadd.f32 0.0, %v3315
        %v3317 = vpop.f32.mrb[0].mxu0
        %3318 = vdwg.mxu0
        %v3319 = vld [vmem:[%s5 + $0x3] sm:$0x1]
        %v3320 = vlaneseq
        %v3321 = vshrl.u32 %v3320, 7
        %v3322 = vsub.s32 0, %v3321
        %v3323 = vrot.slane %v3319, %v3322
        %v3324 = vmul.f32 %v3281, %v3323
        %v3325 = vmul.f32 %v3286, %v3323
        %v3326 = vmul.f32 %v3291, %v3323
        %v3327 = vmul.f32 %v3296, %v3323
        %v3328 = vmul.f32 %v3301, %v3323
        %v3329 = vmul.f32 %v3306, %v3323
        %v3330 = vmul.f32 %v3311, %v3323
        %v3331 = vmul.f32 %v3316, %v3323
        %v3332 = vadd.f32 %v3173, %v3324
        %v3333 = vadd.f32 %v3174, %v3325
        %v3334 = vadd.f32 %v3175, %v3326
        %v3335 = vadd.f32 %v3176, %v3327
        %v3336 = vadd.f32 %v3177, %v3328
        %v3337 = vadd.f32 %v3178, %v3329
        %v3338 = vadd.f32 %v3179, %v3330
        %v3339 = vadd.f32 %v3180, %v3331
        %s3340 = scalar_lea.vmem [#allocation2], 256
        %v3341 = vld [vmem:[%s3340] sm:$0xff]
        %v3342 = vld [vmem:[%s3340 + $0x8] sm:$0xff]
        %v3343 = vld [vmem:[%s3340 + $0x10] sm:$0xff]
        %v3344 = vld [vmem:[%s3340 + $0x18] sm:$0xff]
        %v3345 = vld [vmem:[%s3340 + $0x20] sm:$0xff]
        %v3346 = vld [vmem:[%s3340 + $0x28] sm:$0xff]
        %v3347 = vld [vmem:[%s3340 + $0x30] sm:$0xff]
        %v3348 = vld [vmem:[%s3340 + $0x38] sm:$0xff]
        %v3350 = vsel %vm2720, %v3341, 0
        %v3353 = vsel %vm2720, %v3342, 0
        %v3356 = vsel %vm2720, %v3343, 0
        %v3359 = vsel %vm2720, %v3344, 0
        %v3362 = vsel %vm2720, %v3345, 0
        %v3365 = vsel %vm2720, %v3346, 0
        %v3368 = vsel %vm2720, %v3347, 0
        %v3371 = vsel %vm2720, %v3348, 0
        %3373 = vmatprep.subr.mxu0 0.0
        %3374 = vmatpush1.msra.mxu0 %v2704
        %3375 = vmatprep.subr.mxu0 0.0
        %3376 = vmatpush1.msra.mxu0 %v2705
        %3377 = vmatprep.subr.mxu0 0.0
        %3378 = vmatpush1.msra.mxu0 %v2706
        %3379 = vmatprep.subr.mxu0 0.0
        %3380 = vmatpush1.msra.mxu0 %v2707
        %3381 = vmatprep.subr.mxu0 0.0
        %3382 = vmatpush1.msra.mxu0 %v2708
        %3383 = vmatprep.subr.mxu0 0.0
        %3384 = vmatpush1.msra.mxu0 %v2709
        %3385 = vmatprep.subr.mxu0 0.0
        %3386 = vmatpush1.msra.mxu0 %v2710
        %3387 = vmatprep.subr.mxu0 0.0
        %3388 = vmatpush1.msra.mxu0 %v2711
        %3389 = vmatprep.subr.mxu0 0.0
        %3390 = vmatpush1.msra.mxu0 0.0
        %3391 = vmatprep.subr.mxu0 0.0
        %3392 = vmatpush1.msra.mxu0 0.0
        %3393 = vmatprep.subr.mxu0 0.0
        %3394 = vmatpush1.msra.mxu0 0.0
        %3395 = vmatprep.subr.mxu0 0.0
        %3396 = vmatpush1.msra.mxu0 0.0
        %3397 = vmatprep.subr.mxu0 0.0
        %3398 = vmatpush1.msra.mxu0 0.0
        %3399 = vmatprep.subr.mxu0 0.0
        %3400 = vmatpush1.msra.mxu0 0.0
        %3401 = vmatprep.subr.mxu0 0.0
        %3402 = vmatpush1.msra.mxu0 0.0
        %3403 = vmatprep.subr.mxu0 0.0
        %3404 = vmatpush1.msra.mxu0 0.0
        %3405 = vmatprep.subr.mxu0 0.0
        %3406 = vmatpush1.msra.mxu0 0.0
        %3407 = vmatprep.subr.mxu0 0.0
        %3408 = vmatpush1.msra.mxu0 0.0
        %3409 = vmatprep.subr.mxu0 0.0
        %3410 = vmatpush1.msra.mxu0 0.0
        %3411 = vmatprep.subr.mxu0 0.0
        %3412 = vmatpush1.msra.mxu0 0.0
        %3413 = vmatprep.subr.mxu0 0.0
        %3414 = vmatpush1.msra.mxu0 0.0
        %3415 = vmatprep.subr.mxu0 0.0
        %3416 = vmatpush1.msra.mxu0 0.0
        %3417 = vmatprep.subr.mxu0 0.0
        %3418 = vmatpush1.msra.mxu0 0.0
        %3419 = vmatprep.subr.mxu0 0.0
        %3420 = vmatpush1.msra.mxu0 0.0
        %3421 = vmatprep.subr.mxu0 0.0
        %3422 = vmatpush1.msra.mxu0 0.0
        %3423 = vmatprep.subr.mxu0 0.0
        %3424 = vmatpush1.msra.mxu0 0.0
        %3425 = vmatprep.subr.mxu0 0.0
        %3426 = vmatpush1.msra.mxu0 0.0
        %3427 = vmatprep.subr.mxu0 0.0
        %3428 = vmatpush1.msra.mxu0 0.0
        %3429 = vmatprep.subr.mxu0 0.0
        %3430 = vmatpush1.msra.mxu0 0.0
        %3431 = vmatprep.subr.mxu0 0.0
        %3432 = vmatpush1.msra.mxu0 0.0
        %3433 = vmatprep.subr.mxu0 0.0
        %3434 = vmatpush1.msra.mxu0 0.0
        %3435 = vmatprep.subr.mxu0 0.0
        %3436 = vmatpush1.msra.mxu0 0.0
        %3437 = vmatprep.mubr.f32.mxu0 0.0
        %3438 = vmatmul.mubr.f32.gmra.mrb[0].mxu0 %v3350
        %v3439 = vpop.f32.mrb[0].mxu0
        %v3440 = vadd.f32 0.0, %v3439
        %v3441 = vpop.f32.mrb[0].mxu0
        %3442 = vmatprep.mubr.f32.mxu0 0.0
        %3443 = vmatmul.mubr.f32.gmra.mrb[0].mxu0 %v3353
        %v3444 = vpop.f32.mrb[0].mxu0
        %v3445 = vadd.f32 0.0, %v3444
        %v3446 = vpop.f32.mrb[0].mxu0
        %3447 = vmatprep.mubr.f32.mxu0 0.0
        %3448 = vmatmul.mubr.f32.gmra.mrb[0].mxu0 %v3356
        %v3449 = vpop.f32.mrb[0].mxu0
        %v3450 = vadd.f32 0.0, %v3449
        %v3451 = vpop.f32.mrb[0].mxu0
        %3452 = vmatprep.mubr.f32.mxu0 0.0
        %3453 = vmatmul.mubr.f32.gmra.mrb[0].mxu0 %v3359
        %v3454 = vpop.f32.mrb[0].mxu0
        %v3455 = vadd.f32 0.0, %v3454
        %v3456 = vpop.f32.mrb[0].mxu0
        %3457 = vmatprep.mubr.f32.mxu0 0.0
        %3458 = vmatmul.mubr.f32.gmra.mrb[0].mxu0 %v3362
        %v3459 = vpop.f32.mrb[0].mxu0
        %v3460 = vadd.f32 0.0, %v3459
        %v3461 = vpop.f32.mrb[0].mxu0
        %3462 = vmatprep.mubr.f32.mxu0 0.0
        %3463 = vmatmul.mubr.f32.gmra.mrb[0].mxu0 %v3365
        %v3464 = vpop.f32.mrb[0].mxu0
        %v3465 = vadd.f32 0.0, %v3464
        %v3466 = vpop.f32.mrb[0].mxu0
        %3467 = vmatprep.mubr.f32.mxu0 0.0
        %3468 = vmatmul.mubr.f32.gmra.mrb[0].mxu0 %v3368
        %v3469 = vpop.f32.mrb[0].mxu0
        %v3470 = vadd.f32 0.0, %v3469
        %v3471 = vpop.f32.mrb[0].mxu0
        %3472 = vmatprep.mubr.f32.mxu0 0.0
        %3473 = vmatmul.mubr.f32.gmra.mrb[0].mxu0 %v3371
        %v3474 = vpop.f32.mrb[0].mxu0
        %v3475 = vadd.f32 0.0, %v3474
        %v3476 = vpop.f32.mrb[0].mxu0
        %3477 = vdwg.mxu0
        %v3478 = vld [vmem:[%s5 + $0x4] sm:$0x1]
        %v3479 = vlaneseq
        %v3480 = vshrl.u32 %v3479, 7
        %v3481 = vsub.s32 0, %v3480
        %v3482 = vrot.slane %v3478, %v3481
        %v3483 = vmul.f32 %v3440, %v3482
        %v3484 = vmul.f32 %v3445, %v3482
        %v3485 = vmul.f32 %v3450, %v3482
        %v3486 = vmul.f32 %v3455, %v3482
        %v3487 = vmul.f32 %v3460, %v3482
        %v3488 = vmul.f32 %v3465, %v3482
        %v3489 = vmul.f32 %v3470, %v3482
        %v3490 = vmul.f32 %v3475, %v3482
        %v3491 = vadd.f32 %v3332, %v3483
        %v3492 = vadd.f32 %v3333, %v3484
        %v3493 = vadd.f32 %v3334, %v3485
        %v3494 = vadd.f32 %v3335, %v3486
        %v3495 = vadd.f32 %v3336, %v3487
        %v3496 = vadd.f32 %v3337, %v3488
        %v3497 = vadd.f32 %v3338, %v3489
        %v3498 = vadd.f32 %v3339, %v3490
        %s3499 = scalar_lea.vmem [#allocation2], 320
        %v3500 = vld [vmem:[%s3499] sm:$0xff]
        %v3501 = vld [vmem:[%s3499 + $0x8] sm:$0xff]
        %v3502 = vld [vmem:[%s3499 + $0x10] sm:$0xff]
        %v3503 = vld [vmem:[%s3499 + $0x18] sm:$0xff]
        %v3504 = vld [vmem:[%s3499 + $0x20] sm:$0xff]
        %v3505 = vld [vmem:[%s3499 + $0x28] sm:$0xff]
        %v3506 = vld [vmem:[%s3499 + $0x30] sm:$0xff]
        %v3507 = vld [vmem:[%s3499 + $0x38] sm:$0xff]
        %v3509 = vsel %vm2720, %v3500, 0
        %v3512 = vsel %vm2720, %v3501, 0
        %v3515 = vsel %vm2720, %v3502, 0
        %v3518 = vsel %vm2720, %v3503, 0
        %v3521 = vsel %vm2720, %v3504, 0
        %v3524 = vsel %vm2720, %v3505, 0
        %v3527 = vsel %vm2720, %v3506, 0
        %v3530 = vsel %vm2720, %v3507, 0
        %3532 = vmatprep.subr.mxu0 0.0
        %3533 = vmatpush1.msra.mxu0 %v2704
        %3534 = vmatprep.subr.mxu0 0.0
        %3535 = vmatpush1.msra.mxu0 %v2705
        %3536 = vmatprep.subr.mxu0 0.0
        %3537 = vmatpush1.msra.mxu0 %v2706
        %3538 = vmatprep.subr.mxu0 0.0
        %3539 = vmatpush1.msra.mxu0 %v2707
        %3540 = vmatprep.subr.mxu0 0.0
        %3541 = vmatpush1.msra.mxu0 %v2708
        %3542 = vmatprep.subr.mxu0 0.0
        %3543 = vmatpush1.msra.mxu0 %v2709
        %3544 = vmatprep.subr.mxu0 0.0
        %3545 = vmatpush1.msra.mxu0 %v2710
        %3546 = vmatprep.subr.mxu0 0.0
        %3547 = vmatpush1.msra.mxu0 %v2711
        %3548 = vmatprep.subr.mxu0 0.0
        %3549 = vmatpush1.msra.mxu0 0.0
        %3550 = vmatprep.subr.mxu0 0.0
        %3551 = vmatpush1.msra.mxu0 0.0
        %3552 = vmatprep.subr.mxu0 0.0
        %3553 = vmatpush1.msra.mxu0 0.0
        %3554 = vmatprep.subr.mxu0 0.0
        %3555 = vmatpush1.msra.mxu0 0.0
        %3556 = vmatprep.subr.mxu0 0.0
        %3557 = vmatpush1.msra.mxu0 0.0
        %3558 = vmatprep.subr.mxu0 0.0
        %3559 = vmatpush1.msra.mxu0 0.0
        %3560 = vmatprep.subr.mxu0 0.0
        %3561 = vmatpush1.msra.mxu0 0.0
        %3562 = vmatprep.subr.mxu0 0.0
        %3563 = vmatpush1.msra.mxu0 0.0
        %3564 = vmatprep.subr.mxu0 0.0
        %3565 = vmatpush1.msra.mxu0 0.0
        %3566 = vmatprep.subr.mxu0 0.0
        %3567 = vmatpush1.msra.mxu0 0.0
        %3568 = vmatprep.subr.mxu0 0.0
        %3569 = vmatpush1.msra.mxu0 0.0
        %3570 = vmatprep.subr.mxu0 0.0
        %3571 = vmatpush1.msra.mxu0 0.0
        %3572 = vmatprep.subr.mxu0 0.0
        %3573 = vmatpush1.msra.mxu0 0.0
        %3574 = vmatprep.subr.mxu0 0.0
        %3575 = vmatpush1.msra.mxu0 0.0
        %3576 = vmatprep.subr.mxu0 0.0
        %3577 = vmatpush1.msra.mxu0 0.0
        %3578 = vmatprep.subr.mxu0 0.0
        %3579 = vmatpush1.msra.mxu0 0.0
        %3580 = vmatprep.subr.mxu0 0.0
        %3581 = vmatpush1.msra.mxu0 0.0
        %3582 = vmatprep.subr.mxu0 0.0
        %3583 = vmatpush1.msra.mxu0 0.0
        %3584 = vmatprep.subr.mxu0 0.0
        %3585 = vmatpush1.msra.mxu0 0.0
        %3586 = vmatprep.subr.mxu0 0.0
        %3587 = vmatpush1.msra.mxu0 0.0
        %3588 = vmatprep.subr.mxu0 0.0
        %3589 = vmatpush1.msra.mxu0 0.0
        %3590 = vmatprep.subr.mxu0 0.0
        %3591 = vmatpush1.msra.mxu0 0.0
        %3592 = vmatprep.subr.mxu0 0.0
        %3593 = vmatpush1.msra.mxu0 0.0
        %3594 = vmatprep.subr.mxu0 0.0
        %3595 = vmatpush1.msra.mxu0 0.0
        %3596 = vmatprep.mubr.f32.mxu0 0.0
        %3597 = vmatmul.mubr.f32.gmra.mrb[0].mxu0 %v3509
        %v3598 = vpop.f32.mrb[0].mxu0
        %v3599 = vadd.f32 0.0, %v3598
        %v3600 = vpop.f32.mrb[0].mxu0
        %3601 = vmatprep.mubr.f32.mxu0 0.0
        %3602 = vmatmul.mubr.f32.gmra.mrb[0].mxu0 %v3512
        %v3603 = vpop.f32.mrb[0].mxu0
        %v3604 = vadd.f32 0.0, %v3603
        %v3605 = vpop.f32.mrb[0].mxu0
        %3606 = vmatprep.mubr.f32.mxu0 0.0
        %3607 = vmatmul.mubr.f32.gmra.mrb[0].mxu0 %v3515
        %v3608 = vpop.f32.mrb[0].mxu0
        %v3609 = vadd.f32 0.0, %v3608
        %v3610 = vpop.f32.mrb[0].mxu0
        %3611 = vmatprep.mubr.f32.mxu0 0.0
        %3612 = vmatmul.mubr.f32.gmra.mrb[0].mxu0 %v3518
        %v3613 = vpop.f32.mrb[0].mxu0
        %v3614 = vadd.f32 0.0, %v3613
        %v3615 = vpop.f32.mrb[0].mxu0
        %3616 = vmatprep.mubr.f32.mxu0 0.0
        %3617 = vmatmul.mubr.f32.gmra.mrb[0].mxu0 %v3521
        %v3618 = vpop.f32.mrb[0].mxu0
        %v3619 = vadd.f32 0.0, %v3618
        %v3620 = vpop.f32.mrb[0].mxu0
        %3621 = vmatprep.mubr.f32.mxu0 0.0
        %3622 = vmatmul.mubr.f32.gmra.mrb[0].mxu0 %v3524
        %v3623 = vpop.f32.mrb[0].mxu0
        %v3624 = vadd.f32 0.0, %v3623
        %v3625 = vpop.f32.mrb[0].mxu0
        %3626 = vmatprep.mubr.f32.mxu0 0.0
        %3627 = vmatmul.mubr.f32.gmra.mrb[0].mxu0 %v3527
        %v3628 = vpop.f32.mrb[0].mxu0
        %v3629 = vadd.f32 0.0, %v3628
        %v3630 = vpop.f32.mrb[0].mxu0
        %3631 = vmatprep.mubr.f32.mxu0 0.0
        %3632 = vmatmul.mubr.f32.gmra.mrb[0].mxu0 %v3530
        %v3633 = vpop.f32.mrb[0].mxu0
        %v3634 = vadd.f32 0.0, %v3633
        %v3635 = vpop.f32.mrb[0].mxu0
        %3636 = vdwg.mxu0
        %v3637 = vld [vmem:[%s5 + $0x5] sm:$0x1]
        %v3638 = vlaneseq
        %v3639 = vshrl.u32 %v3638, 7
        %v3640 = vsub.s32 0, %v3639
        %v3641 = vrot.slane %v3637, %v3640
        %v3642 = vmul.f32 %v3599, %v3641
        %v3643 = vmul.f32 %v3604, %v3641
        %v3644 = vmul.f32 %v3609, %v3641
        %v3645 = vmul.f32 %v3614, %v3641
        %v3646 = vmul.f32 %v3619, %v3641
        %v3647 = vmul.f32 %v3624, %v3641
        %v3648 = vmul.f32 %v3629, %v3641
        %v3649 = vmul.f32 %v3634, %v3641
        %v3650 = vadd.f32 %v3491, %v3642
        %v3651 = vadd.f32 %v3492, %v3643
        %v3652 = vadd.f32 %v3493, %v3644
        %v3653 = vadd.f32 %v3494, %v3645
        %v3654 = vadd.f32 %v3495, %v3646
        %v3655 = vadd.f32 %v3496, %v3647
        %v3656 = vadd.f32 %v3497, %v3648
        %v3657 = vadd.f32 %v3498, %v3649
        %s3658 = scalar_lea.vmem [#allocation2], 384
        %v3659 = vld [vmem:[%s3658] sm:$0xff]
        %v3660 = vld [vmem:[%s3658 + $0x8] sm:$0xff]
        %v3661 = vld [vmem:[%s3658 + $0x10] sm:$0xff]
        %v3662 = vld [vmem:[%s3658 + $0x18] sm:$0xff]
        %v3663 = vld [vmem:[%s3658 + $0x20] sm:$0xff]
        %v3664 = vld [vmem:[%s3658 + $0x28] sm:$0xff]
        %v3665 = vld [vmem:[%s3658 + $0x30] sm:$0xff]
        %v3666 = vld [vmem:[%s3658 + $0x38] sm:$0xff]
        %v3668 = vsel %vm2720, %v3659, 0
        %v3671 = vsel %vm2720, %v3660, 0
        %v3674 = vsel %vm2720, %v3661, 0
        %v3677 = vsel %vm2720, %v3662, 0
        %v3680 = vsel %vm2720, %v3663, 0
        %v3683 = vsel %vm2720, %v3664, 0
        %v3686 = vsel %vm2720, %v3665, 0
        %v3689 = vsel %vm2720, %v3666, 0
        %3691 = vmatprep.subr.mxu0 0.0
        %3692 = vmatpush1.msra.mxu0 %v2704
        %3693 = vmatprep.subr.mxu0 0.0
        %3694 = vmatpush1.msra.mxu0 %v2705
        %3695 = vmatprep.subr.mxu0 0.0
        %3696 = vmatpush1.msra.mxu0 %v2706
        %3697 = vmatprep.subr.mxu0 0.0
        %3698 = vmatpush1.msra.mxu0 %v2707
        %3699 = vmatprep.subr.mxu0 0.0
        %3700 = vmatpush1.msra.mxu0 %v2708
        %3701 = vmatprep.subr.mxu0 0.0
        %3702 = vmatpush1.msra.mxu0 %v2709
        %3703 = vmatprep.subr.mxu0 0.0
        %3704 = vmatpush1.msra.mxu0 %v2710
        %3705 = vmatprep.subr.mxu0 0.0
        %3706 = vmatpush1.msra.mxu0 %v2711
        %3707 = vmatprep.subr.mxu0 0.0
        %3708 = vmatpush1.msra.mxu0 0.0
        %3709 = vmatprep.subr.mxu0 0.0
        %3710 = vmatpush1.msra.mxu0 0.0
        %3711 = vmatprep.subr.mxu0 0.0
        %3712 = vmatpush1.msra.mxu0 0.0
        %3713 = vmatprep.subr.mxu0 0.0
        %3714 = vmatpush1.msra.mxu0 0.0
        %3715 = vmatprep.subr.mxu0 0.0
        %3716 = vmatpush1.msra.mxu0 0.0
        %3717 = vmatprep.subr.mxu0 0.0
        %3718 = vmatpush1.msra.mxu0 0.0
        %3719 = vmatprep.subr.mxu0 0.0
        %3720 = vmatpush1.msra.mxu0 0.0
        %3721 = vmatprep.subr.mxu0 0.0
        %3722 = vmatpush1.msra.mxu0 0.0
        %3723 = vmatprep.subr.mxu0 0.0
        %3724 = vmatpush1.msra.mxu0 0.0
        %3725 = vmatprep.subr.mxu0 0.0
        %3726 = vmatpush1.msra.mxu0 0.0
        %3727 = vmatprep.subr.mxu0 0.0
        %3728 = vmatpush1.msra.mxu0 0.0
        %3729 = vmatprep.subr.mxu0 0.0
        %3730 = vmatpush1.msra.mxu0 0.0
        %3731 = vmatprep.subr.mxu0 0.0
        %3732 = vmatpush1.msra.mxu0 0.0
        %3733 = vmatprep.subr.mxu0 0.0
        %3734 = vmatpush1.msra.mxu0 0.0
        %3735 = vmatprep.subr.mxu0 0.0
        %3736 = vmatpush1.msra.mxu0 0.0
        %3737 = vmatprep.subr.mxu0 0.0
        %3738 = vmatpush1.msra.mxu0 0.0
        %3739 = vmatprep.subr.mxu0 0.0
        %3740 = vmatpush1.msra.mxu0 0.0
        %3741 = vmatprep.subr.mxu0 0.0
        %3742 = vmatpush1.msra.mxu0 0.0
        %3743 = vmatprep.subr.mxu0 0.0
        %3744 = vmatpush1.msra.mxu0 0.0
        %3745 = vmatprep.subr.mxu0 0.0
        %3746 = vmatpush1.msra.mxu0 0.0
        %3747 = vmatprep.subr.mxu0 0.0
        %3748 = vmatpush1.msra.mxu0 0.0
        %3749 = vmatprep.subr.mxu0 0.0
        %3750 = vmatpush1.msra.mxu0 0.0
        %3751 = vmatprep.subr.mxu0 0.0
        %3752 = vmatpush1.msra.mxu0 0.0
        %3753 = vmatprep.subr.mxu0 0.0
        %3754 = vmatpush1.msra.mxu0 0.0
        %3755 = vmatprep.mubr.f32.mxu0 0.0
        %3756 = vmatmul.mubr.f32.gmra.mrb[0].mxu0 %v3668
        %v3757 = vpop.f32.mrb[0].mxu0
        %v3758 = vadd.f32 0.0, %v3757
        %v3759 = vpop.f32.mrb[0].mxu0
        %3760 = vmatprep.mubr.f32.mxu0 0.0
        %3761 = vmatmul.mubr.f32.gmra.mrb[0].mxu0 %v3671
        %v3762 = vpop.f32.mrb[0].mxu0
        %v3763 = vadd.f32 0.0, %v3762
        %v3764 = vpop.f32.mrb[0].mxu0
        %3765 = vmatprep.mubr.f32.mxu0 0.0
        %3766 = vmatmul.mubr.f32.gmra.mrb[0].mxu0 %v3674
        %v3767 = vpop.f32.mrb[0].mxu0
        %v3768 = vadd.f32 0.0, %v3767
        %v3769 = vpop.f32.mrb[0].mxu0
        %3770 = vmatprep.mubr.f32.mxu0 0.0
        %3771 = vmatmul.mubr.f32.gmra.mrb[0].mxu0 %v3677
        %v3772 = vpop.f32.mrb[0].mxu0
        %v3773 = vadd.f32 0.0, %v3772
        %v3774 = vpop.f32.mrb[0].mxu0
        %3775 = vmatprep.mubr.f32.mxu0 0.0
        %3776 = vmatmul.mubr.f32.gmra.mrb[0].mxu0 %v3680
        %v3777 = vpop.f32.mrb[0].mxu0
        %v3778 = vadd.f32 0.0, %v3777
        %v3779 = vpop.f32.mrb[0].mxu0
        %3780 = vmatprep.mubr.f32.mxu0 0.0
        %3781 = vmatmul.mubr.f32.gmra.mrb[0].mxu0 %v3683
        %v3782 = vpop.f32.mrb[0].mxu0
        %v3783 = vadd.f32 0.0, %v3782
        %v3784 = vpop.f32.mrb[0].mxu0
        %3785 = vmatprep.mubr.f32.mxu0 0.0
        %3786 = vmatmul.mubr.f32.gmra.mrb[0].mxu0 %v3686
        %v3787 = vpop.f32.mrb[0].mxu0
        %v3788 = vadd.f32 0.0, %v3787
        %v3789 = vpop.f32.mrb[0].mxu0
        %3790 = vmatprep.mubr.f32.mxu0 0.0
        %3791 = vmatmul.mubr.f32.gmra.mrb[0].mxu0 %v3689
        %v3792 = vpop.f32.mrb[0].mxu0
        %v3793 = vadd.f32 0.0, %v3792
        %v3794 = vpop.f32.mrb[0].mxu0
        %3795 = vdwg.mxu0
        %v3796 = vld [vmem:[%s5 + $0x6] sm:$0x1]
        %v3797 = vlaneseq
        %v3798 = vshrl.u32 %v3797, 7
        %v3799 = vsub.s32 0, %v3798
        %v3800 = vrot.slane %v3796, %v3799
        %v3801 = vmul.f32 %v3758, %v3800
        %v3802 = vmul.f32 %v3763, %v3800
        %v3803 = vmul.f32 %v3768, %v3800
        %v3804 = vmul.f32 %v3773, %v3800
        %v3805 = vmul.f32 %v3778, %v3800
        %v3806 = vmul.f32 %v3783, %v3800
        %v3807 = vmul.f32 %v3788, %v3800
        %v3808 = vmul.f32 %v3793, %v3800
        %v3809 = vadd.f32 %v3650, %v3801
        %v3810 = vadd.f32 %v3651, %v3802
        %v3811 = vadd.f32 %v3652, %v3803
        %v3812 = vadd.f32 %v3653, %v3804
        %v3813 = vadd.f32 %v3654, %v3805
        %v3814 = vadd.f32 %v3655, %v3806
        %v3815 = vadd.f32 %v3656, %v3807
        %v3816 = vadd.f32 %v3657, %v3808
        %s3817 = scalar_lea.vmem [#allocation2], 448
        %v3818 = vld [vmem:[%s3817] sm:$0xff]
        %v3819 = vld [vmem:[%s3817 + $0x8] sm:$0xff]
        %v3820 = vld [vmem:[%s3817 + $0x10] sm:$0xff]
        %v3821 = vld [vmem:[%s3817 + $0x18] sm:$0xff]
        %v3822 = vld [vmem:[%s3817 + $0x20] sm:$0xff]
        %v3823 = vld [vmem:[%s3817 + $0x28] sm:$0xff]
        %v3824 = vld [vmem:[%s3817 + $0x30] sm:$0xff]
        %v3825 = vld [vmem:[%s3817 + $0x38] sm:$0xff]
        %v3827 = vsel %vm2720, %v3818, 0
        %v3830 = vsel %vm2720, %v3819, 0
        %v3833 = vsel %vm2720, %v3820, 0
        %v3836 = vsel %vm2720, %v3821, 0
        %v3839 = vsel %vm2720, %v3822, 0
        %v3842 = vsel %vm2720, %v3823, 0
        %v3845 = vsel %vm2720, %v3824, 0
        %v3848 = vsel %vm2720, %v3825, 0
        %3850 = vmatprep.subr.mxu0 0.0
        %3851 = vmatpush1.msra.mxu0 %v2704
        %3852 = vmatprep.subr.mxu0 0.0
        %3853 = vmatpush1.msra.mxu0 %v2705
        %3854 = vmatprep.subr.mxu0 0.0
        %3855 = vmatpush1.msra.mxu0 %v2706
        %3856 = vmatprep.subr.mxu0 0.0
        %3857 = vmatpush1.msra.mxu0 %v2707
        %3858 = vmatprep.subr.mxu0 0.0
        %3859 = vmatpush1.msra.mxu0 %v2708
        %3860 = vmatprep.subr.mxu0 0.0
        %3861 = vmatpush1.msra.mxu0 %v2709
        %3862 = vmatprep.subr.mxu0 0.0
        %3863 = vmatpush1.msra.mxu0 %v2710
        %3864 = vmatprep.subr.mxu0 0.0
        %3865 = vmatpush1.msra.mxu0 %v2711
        %3866 = vmatprep.subr.mxu0 0.0
        %3867 = vmatpush1.msra.mxu0 0.0
        %3868 = vmatprep.subr.mxu0 0.0
        %3869 = vmatpush1.msra.mxu0 0.0
        %3870 = vmatprep.subr.mxu0 0.0
        %3871 = vmatpush1.msra.mxu0 0.0
        %3872 = vmatprep.subr.mxu0 0.0
        %3873 = vmatpush1.msra.mxu0 0.0
        %3874 = vmatprep.subr.mxu0 0.0
        %3875 = vmatpush1.msra.mxu0 0.0
        %3876 = vmatprep.subr.mxu0 0.0
        %3877 = vmatpush1.msra.mxu0 0.0
        %3878 = vmatprep.subr.mxu0 0.0
        %3879 = vmatpush1.msra.mxu0 0.0
        %3880 = vmatprep.subr.mxu0 0.0
        %3881 = vmatpush1.msra.mxu0 0.0
        %3882 = vmatprep.subr.mxu0 0.0
        %3883 = vmatpush1.msra.mxu0 0.0
        %3884 = vmatprep.subr.mxu0 0.0
        %3885 = vmatpush1.msra.mxu0 0.0
        %3886 = vmatprep.subr.mxu0 0.0
        %3887 = vmatpush1.msra.mxu0 0.0
        %3888 = vmatprep.subr.mxu0 0.0
        %3889 = vmatpush1.msra.mxu0 0.0
        %3890 = vmatprep.subr.mxu0 0.0
        %3891 = vmatpush1.msra.mxu0 0.0
        %3892 = vmatprep.subr.mxu0 0.0
        %3893 = vmatpush1.msra.mxu0 0.0
        %3894 = vmatprep.subr.mxu0 0.0
        %3895 = vmatpush1.msra.mxu0 0.0
        %3896 = vmatprep.subr.mxu0 0.0
        %3897 = vmatpush1.msra.mxu0 0.0
        %3898 = vmatprep.subr.mxu0 0.0
        %3899 = vmatpush1.msra.mxu0 0.0
        %3900 = vmatprep.subr.mxu0 0.0
        %3901 = vmatpush1.msra.mxu0 0.0
        %3902 = vmatprep.subr.mxu0 0.0
        %3903 = vmatpush1.msra.mxu0 0.0
        %3904 = vmatprep.subr.mxu0 0.0
        %3905 = vmatpush1.msra.mxu0 0.0
        %3906 = vmatprep.subr.mxu0 0.0
        %3907 = vmatpush1.msra.mxu0 0.0
        %3908 = vmatprep.subr.mxu0 0.0
        %3909 = vmatpush1.msra.mxu0 0.0
        %3910 = vmatprep.subr.mxu0 0.0
        %3911 = vmatpush1.msra.mxu0 0.0
        %3912 = vmatprep.subr.mxu0 0.0
        %3913 = vmatpush1.msra.mxu0 0.0
        %3914 = vmatprep.mubr.f32.mxu0 0.0
        %3915 = vmatmul.mubr.f32.gmra.mrb[0].mxu0 %v3827
        %v3916 = vpop.f32.mrb[0].mxu0
        %v3917 = vadd.f32 0.0, %v3916
        %v3918 = vpop.f32.mrb[0].mxu0
        %3919 = vmatprep.mubr.f32.mxu0 0.0
        %3920 = vmatmul.mubr.f32.gmra.mrb[0].mxu0 %v3830
        %v3921 = vpop.f32.mrb[0].mxu0
        %v3922 = vadd.f32 0.0, %v3921
        %v3923 = vpop.f32.mrb[0].mxu0
        %3924 = vmatprep.mubr.f32.mxu0 0.0
        %3925 = vmatmul.mubr.f32.gmra.mrb[0].mxu0 %v3833
        %v3926 = vpop.f32.mrb[0].mxu0
        %v3927 = vadd.f32 0.0, %v3926
        %v3928 = vpop.f32.mrb[0].mxu0
        %3929 = vmatprep.mubr.f32.mxu0 0.0
        %3930 = vmatmul.mubr.f32.gmra.mrb[0].mxu0 %v3836
        %v3931 = vpop.f32.mrb[0].mxu0
        %v3932 = vadd.f32 0.0, %v3931
        %v3933 = vpop.f32.mrb[0].mxu0
        %3934 = vmatprep.mubr.f32.mxu0 0.0
        %3935 = vmatmul.mubr.f32.gmra.mrb[0].mxu0 %v3839
        %v3936 = vpop.f32.mrb[0].mxu0
        %v3937 = vadd.f32 0.0, %v3936
        %v3938 = vpop.f32.mrb[0].mxu0
        %3939 = vmatprep.mubr.f32.mxu0 0.0
        %3940 = vmatmul.mubr.f32.gmra.mrb[0].mxu0 %v3842
        %v3941 = vpop.f32.mrb[0].mxu0
        %v3942 = vadd.f32 0.0, %v3941
        %v3943 = vpop.f32.mrb[0].mxu0
        %3944 = vmatprep.mubr.f32.mxu0 0.0
        %3945 = vmatmul.mubr.f32.gmra.mrb[0].mxu0 %v3845
        %v3946 = vpop.f32.mrb[0].mxu0
        %v3947 = vadd.f32 0.0, %v3946
        %v3948 = vpop.f32.mrb[0].mxu0
        %3949 = vmatprep.mubr.f32.mxu0 0.0
        %3950 = vmatmul.mubr.f32.gmra.mrb[0].mxu0 %v3848
        %v3951 = vpop.f32.mrb[0].mxu0
        %v3952 = vadd.f32 0.0, %v3951
        %v3953 = vpop.f32.mrb[0].mxu0
        %3954 = vdwg.mxu0
        %v3955 = vld [vmem:[%s5 + $0x7] sm:$0x1]
        %v3956 = vlaneseq
        %v3957 = vshrl.u32 %v3956, 7
        %v3958 = vsub.s32 0, %v3957
        %v3959 = vrot.slane %v3955, %v3958
        %v3960 = vmul.f32 %v3917, %v3959
        %v3961 = vmul.f32 %v3922, %v3959
        %v3962 = vmul.f32 %v3927, %v3959
        %v3963 = vmul.f32 %v3932, %v3959
        %v3964 = vmul.f32 %v3937, %v3959
        %v3965 = vmul.f32 %v3942, %v3959
        %v3966 = vmul.f32 %v3947, %v3959
        %v3967 = vmul.f32 %v3952, %v3959
        %v3968 = vadd.f32 %v3809, %v3960
        %v3969 = vadd.f32 %v3810, %v3961
        %v3970 = vadd.f32 %v3811, %v3962
        %v3971 = vadd.f32 %v3812, %v3963
        %v3972 = vadd.f32 %v3813, %v3964
        %v3973 = vadd.f32 %v3814, %v3965
        %v3974 = vadd.f32 %v3815, %v3966
        %v3975 = vadd.f32 %v3816, %v3967
        %s3976 = scalar_lea.vmem [#allocation2], 512
        %v3977 = vld [vmem:[%s3976] sm:$0xff]
        %v3978 = vld [vmem:[%s3976 + $0x8] sm:$0xff]
        %v3979 = vld [vmem:[%s3976 + $0x10] sm:$0xff]
        %v3980 = vld [vmem:[%s3976 + $0x18] sm:$0xff]
        %v3981 = vld [vmem:[%s3976 + $0x20] sm:$0xff]
        %v3982 = vld [vmem:[%s3976 + $0x28] sm:$0xff]
        %v3983 = vld [vmem:[%s3976 + $0x30] sm:$0xff]
        %v3984 = vld [vmem:[%s3976 + $0x38] sm:$0xff]
        %v3986 = vsel %vm2720, %v3977, 0
        %v3989 = vsel %vm2720, %v3978, 0
        %v3992 = vsel %vm2720, %v3979, 0
        %v3995 = vsel %vm2720, %v3980, 0
        %v3998 = vsel %vm2720, %v3981, 0
        %v4001 = vsel %vm2720, %v3982, 0
        %v4004 = vsel %vm2720, %v3983, 0
        %v4007 = vsel %vm2720, %v3984, 0
        %4009 = vmatprep.subr.mxu0 0.0
        %4010 = vmatpush1.msra.mxu0 %v2704
        %4011 = vmatprep.subr.mxu0 0.0
        %4012 = vmatpush1.msra.mxu0 %v2705
        %4013 = vmatprep.subr.mxu0 0.0
        %4014 = vmatpush1.msra.mxu0 %v2706
        %4015 = vmatprep.subr.mxu0 0.0
        %4016 = vmatpush1.msra.mxu0 %v2707
        %4017 = vmatprep.subr.mxu0 0.0
        %4018 = vmatpush1.msra.mxu0 %v2708
        %4019 = vmatprep.subr.mxu0 0.0
        %4020 = vmatpush1.msra.mxu0 %v2709
        %4021 = vmatprep.subr.mxu0 0.0
        %4022 = vmatpush1.msra.mxu0 %v2710
        %4023 = vmatprep.subr.mxu0 0.0
        %4024 = vmatpush1.msra.mxu0 %v2711
        %4025 = vmatprep.subr.mxu0 0.0
        %4026 = vmatpush1.msra.mxu0 0.0
        %4027 = vmatprep.subr.mxu0 0.0
        %4028 = vmatpush1.msra.mxu0 0.0
        %4029 = vmatprep.subr.mxu0 0.0
        %4030 = vmatpush1.msra.mxu0 0.0
        %4031 = vmatprep.subr.mxu0 0.0
        %4032 = vmatpush1.msra.mxu0 0.0
        %4033 = vmatprep.subr.mxu0 0.0
        %4034 = vmatpush1.msra.mxu0 0.0
        %4035 = vmatprep.subr.mxu0 0.0
        %4036 = vmatpush1.msra.mxu0 0.0
        %4037 = vmatprep.subr.mxu0 0.0
        %4038 = vmatpush1.msra.mxu0 0.0
        %4039 = vmatprep.subr.mxu0 0.0
        %4040 = vmatpush1.msra.mxu0 0.0
        %4041 = vmatprep.subr.mxu0 0.0
        %4042 = vmatpush1.msra.mxu0 0.0
        %4043 = vmatprep.subr.mxu0 0.0
        %4044 = vmatpush1.msra.mxu0 0.0
        %4045 = vmatprep.subr.mxu0 0.0
        %4046 = vmatpush1.msra.mxu0 0.0
        %4047 = vmatprep.subr.mxu0 0.0
        %4048 = vmatpush1.msra.mxu0 0.0
        %4049 = vmatprep.subr.mxu0 0.0
        %4050 = vmatpush1.msra.mxu0 0.0
        %4051 = vmatprep.subr.mxu0 0.0
        %4052 = vmatpush1.msra.mxu0 0.0
        %4053 = vmatprep.subr.mxu0 0.0
        %4054 = vmatpush1.msra.mxu0 0.0
        %4055 = vmatprep.subr.mxu0 0.0
        %4056 = vmatpush1.msra.mxu0 0.0
        %4057 = vmatprep.subr.mxu0 0.0
        %4058 = vmatpush1.msra.mxu0 0.0
        %4059 = vmatprep.subr.mxu0 0.0
        %4060 = vmatpush1.msra.mxu0 0.0
        %4061 = vmatprep.subr.mxu0 0.0
        %4062 = vmatpush1.msra.mxu0 0.0
        %4063 = vmatprep.subr.mxu0 0.0
        %4064 = vmatpush1.msra.mxu0 0.0
        %4065 = vmatprep.subr.mxu0 0.0
        %4066 = vmatpush1.msra.mxu0 0.0
        %4067 = vmatprep.subr.mxu0 0.0
        %4068 = vmatpush1.msra.mxu0 0.0
        %4069 = vmatprep.subr.mxu0 0.0
        %4070 = vmatpush1.msra.mxu0 0.0
        %4071 = vmatprep.subr.mxu0 0.0
        %4072 = vmatpush1.msra.mxu0 0.0
        %4073 = vmatprep.mubr.f32.mxu0 0.0
        %4074 = vmatmul.mubr.f32.gmra.mrb[0].mxu0 %v3986
        %v4075 = vpop.f32.mrb[0].mxu0
        %v4076 = vadd.f32 0.0, %v4075
        %v4077 = vpop.f32.mrb[0].mxu0
        %4078 = vmatprep.mubr.f32.mxu0 0.0
        %4079 = vmatmul.mubr.f32.gmra.mrb[0].mxu0 %v3989
        %v4080 = vpop.f32.mrb[0].mxu0
        %v4081 = vadd.f32 0.0, %v4080
        %v4082 = vpop.f32.mrb[0].mxu0
        %4083 = vmatprep.mubr.f32.mxu0 0.0
        %4084 = vmatmul.mubr.f32.gmra.mrb[0].mxu0 %v3992
        %v4085 = vpop.f32.mrb[0].mxu0
        %v4086 = vadd.f32 0.0, %v4085
        %v4087 = vpop.f32.mrb[0].mxu0
        %4088 = vmatprep.mubr.f32.mxu0 0.0
        %4089 = vmatmul.mubr.f32.gmra.mrb[0].mxu0 %v3995
        %v4090 = vpop.f32.mrb[0].mxu0
        %v4091 = vadd.f32 0.0, %v4090
        %v4092 = vpop.f32.mrb[0].mxu0
        %4093 = vmatprep.mubr.f32.mxu0 0.0
        %4094 = vmatmul.mubr.f32.gmra.mrb[0].mxu0 %v3998
        %v4095 = vpop.f32.mrb[0].mxu0
        %v4096 = vadd.f32 0.0, %v4095
        %v4097 = vpop.f32.mrb[0].mxu0
        %4098 = vmatprep.mubr.f32.mxu0 0.0
        %4099 = vmatmul.mubr.f32.gmra.mrb[0].mxu0 %v4001
        %v4100 = vpop.f32.mrb[0].mxu0
        %v4101 = vadd.f32 0.0, %v4100
        %v4102 = vpop.f32.mrb[0].mxu0
        %4103 = vmatprep.mubr.f32.mxu0 0.0
        %4104 = vmatmul.mubr.f32.gmra.mrb[0].mxu0 %v4004
        %v4105 = vpop.f32.mrb[0].mxu0
        %v4106 = vadd.f32 0.0, %v4105
        %v4107 = vpop.f32.mrb[0].mxu0
        %4108 = vmatprep.mubr.f32.mxu0 0.0
        %4109 = vmatmul.mubr.f32.gmra.mrb[0].mxu0 %v4007
        %v4110 = vpop.f32.mrb[0].mxu0
        %v4111 = vadd.f32 0.0, %v4110
        %v4112 = vpop.f32.mrb[0].mxu0
        %4113 = vdwg.mxu0
        %v4114 = vld [vmem:[%s5 + $0x8] sm:$0x1]
        %v4115 = vlaneseq
        %v4116 = vshrl.u32 %v4115, 7
        %v4117 = vsub.s32 0, %v4116
        %v4118 = vrot.slane %v4114, %v4117
        %v4119 = vmul.f32 %v4076, %v4118
        %v4120 = vmul.f32 %v4081, %v4118
        %v4121 = vmul.f32 %v4086, %v4118
        %v4122 = vmul.f32 %v4091, %v4118
        %v4123 = vmul.f32 %v4096, %v4118
        %v4124 = vmul.f32 %v4101, %v4118
        %v4125 = vmul.f32 %v4106, %v4118
        %v4126 = vmul.f32 %v4111, %v4118
        %v4127 = vadd.f32 %v3968, %v4119
        %v4128 = vadd.f32 %v3969, %v4120
        %v4129 = vadd.f32 %v3970, %v4121
        %v4130 = vadd.f32 %v3971, %v4122
        %v4131 = vadd.f32 %v3972, %v4123
        %v4132 = vadd.f32 %v3973, %v4124
        %v4133 = vadd.f32 %v3974, %v4125
        %v4134 = vadd.f32 %v3975, %v4126
        %v4135 = vld [vmem:[%s7 + $0x2] sm:$0x1]
        %v4136 = vlaneseq
        %v4137 = vshrl.u32 %v4136, 7
        %v4138 = vsub.s32 0, %v4137
        %v4139 = vrot.slane %v4135, %v4138
        %v4140 = vmul.f32 %v4127, %v4139
        %v4141 = vmul.f32 %v4128, %v4139
        %v4142 = vmul.f32 %v4129, %v4139
        %v4143 = vmul.f32 %v4130, %v4139
        %v4144 = vmul.f32 %v4131, %v4139
        %v4145 = vmul.f32 %v4132, %v4139
        %v4146 = vmul.f32 %v4133, %v4139
        %v4147 = vmul.f32 %v4134, %v4139
        %v4148 = vld [vmem:[%s7 + $0x3] sm:$0x1]
        %v4149 = vlaneseq
        %v4150 = vshrl.u32 %v4149, 7
        %v4151 = vsub.s32 0, %v4150
        %v4152 = vrot.slane %v4148, %v4151
        %v4153 = vadd.f32 %v4140, %v4152
        %v4154 = vadd.f32 %v4141, %v4152
        %v4155 = vadd.f32 %v4142, %v4152
        %v4156 = vadd.f32 %v4143, %v4152
        %v4157 = vadd.f32 %v4144, %v4152
        %v4158 = vadd.f32 %v4145, %v4152
        %v4159 = vadd.f32 %v4146, %v4152
        %v4160 = vadd.f32 %v4147, %v4152
        %v4161 = vxor.u32 %v4153, 2147483648
        %v4162 = vxor.u32 %v4154, 2147483648
        %v4163 = vxor.u32 %v4155, 2147483648
        %v4164 = vxor.u32 %v4156, 2147483648
        %v4165 = vxor.u32 %v4157, 2147483648
        %v4166 = vxor.u32 %v4158, 2147483648
        %v4167 = vxor.u32 %v4159, 2147483648
        %v4168 = vxor.u32 %v4160, 2147483648
        %v4169 = vmul.f32 %v4161, 1.442695
        %v4170 = vpow.pop %v4169
        %v4171 = vmul.f32 %v4162, 1.442695
        %v4172 = vpow.pop %v4171
        %v4173 = vmul.f32 %v4163, 1.442695
        %v4174 = vpow.pop %v4173
        %v4175 = vmul.f32 %v4164, 1.442695
        %v4176 = vpow.pop %v4175
        %v4177 = vmul.f32 %v4165, 1.442695
        %v4178 = vpow.pop %v4177
        %v4179 = vmul.f32 %v4166, 1.442695
        %v4180 = vpow.pop %v4179
        %v4181 = vmul.f32 %v4167, 1.442695
        %v4182 = vpow.pop %v4181
        %v4183 = vmul.f32 %v4168, 1.442695
        %v4184 = vpow.pop %v4183
        %v4185 = vadd.f32 %v4170, 1.0
        %v4186 = vadd.f32 %v4172, 1.0
        %v4187 = vadd.f32 %v4174, 1.0
        %v4188 = vadd.f32 %v4176, 1.0
        %v4189 = vadd.f32 %v4178, 1.0
        %v4190 = vadd.f32 %v4180, 1.0
        %v4191 = vadd.f32 %v4182, 1.0
        %v4192 = vadd.f32 %v4184, 1.0
        %v4193 = vrcp.pop %v4185
        %v4194 = vmul.f32 1.0, %v4193
        %v4195 = vrcp.pop %v4186
        %v4196 = vmul.f32 1.0, %v4195
        %v4197 = vrcp.pop %v4187
        %v4198 = vmul.f32 1.0, %v4197
        %v4199 = vrcp.pop %v4188
        %v4200 = vmul.f32 1.0, %v4199
        %v4201 = vrcp.pop %v4189
        %v4202 = vmul.f32 1.0, %v4201
        %v4203 = vrcp.pop %v4190
        %v4204 = vmul.f32 1.0, %v4203
        %v4205 = vrcp.pop %v4191
        %v4206 = vmul.f32 1.0, %v4205
        %v4207 = vrcp.pop %v4192
        %v4208 = vmul.f32 1.0, %v4207
        %v4209 = vmul.f32 %v4153, %v4194
        %v4210 = vmul.f32 %v4154, %v4196
        %v4211 = vmul.f32 %v4155, %v4198
        %v4212 = vmul.f32 %v4156, %v4200
        %v4213 = vmul.f32 %v4157, %v4202
        %v4214 = vmul.f32 %v4158, %v4204
        %v4215 = vmul.f32 %v4159, %v4206
        %v4216 = vmul.f32 %v4160, %v4208
        %v4217 = vadd.f32 %v4209, %v4210
        %v4218 = vadd.f32 %v4217, %v4211
        %v4219 = vadd.f32 %v4218, %v4212
        %v4220 = vadd.f32 %v4219, %v4213
        %v4221 = vadd.f32 %v4220, %v4214
        %v4222 = vadd.f32 %v4221, %v4215
        %v4223 = vadd.f32 %v4222, %v4216
        %v4224 = vrot.slane %v4223, 4
        %v4225 = vadd.f32 %v4223, %v4224
        %v4226 = vrot.slane %v4225, 2
        %v4227 = vadd.f32 %v4225, %v4226
        %v4228 = vrot.slane %v4227, 1
        %v4229 = vadd.f32 %v4227, %v4228
        %v4230 = vmul.f32 %v4229, 0.015625
        %v4231 = vld [vmem:[#allocation6] sm:$0xff]
        %v4232 = vld [vmem:[#allocation6 + $0x8] sm:$0xff]
        %v4233 = vld [vmem:[#allocation6 + $0x10] sm:$0xff]
        %v4234 = vld [vmem:[#allocation6 + $0x18] sm:$0xff]
        %v4235 = vld [vmem:[#allocation6 + $0x20] sm:$0xff]
        %v4236 = vld [vmem:[#allocation6 + $0x28] sm:$0xff]
        %v4237 = vld [vmem:[#allocation6 + $0x30] sm:$0xff]
        %v4238 = vld [vmem:[#allocation6 + $0x38] sm:$0xff]
        %v4239 = vld [vmem:[#allocation6 + $0x40] sm:$0xff]
        %v4240 = vld [vmem:[#allocation6 + $0x48] sm:$0xff]
        %v4241 = vld [vmem:[#allocation6 + $0x50] sm:$0xff]
        %v4242 = vld [vmem:[#allocation6 + $0x58] sm:$0xff]
        %v4243 = vld [vmem:[#allocation6 + $0x60] sm:$0xff]
        %v4244 = vld [vmem:[#allocation6 + $0x68] sm:$0xff]
        %v4245 = vld [vmem:[#allocation6 + $0x70] sm:$0xff]
        %v4246 = vld [vmem:[#allocation6 + $0x78] sm:$0xff]
        %v4247 = vld [vmem:[%s7 + $0x4] sm:$0x1]
        %4248 = vmatprep.subr.mxu0 0.0
        %4249 = vmatpush1.msra.mxu0 %v4231
        %4250 = vmatprep.subr.mxu0 0.0
        %4251 = vmatpush1.msra.mxu0 %v4232
        %4252 = vmatprep.subr.mxu0 0.0
        %4253 = vmatpush1.msra.mxu0 %v4233
        %4254 = vmatprep.subr.mxu0 0.0
        %4255 = vmatpush1.msra.mxu0 %v4234
        %4256 = vmatprep.subr.mxu0 0.0
        %4257 = vmatpush1.msra.mxu0 %v4235
        %4258 = vmatprep.subr.mxu0 0.0
        %4259 = vmatpush1.msra.mxu0 %v4236
        %4260 = vmatprep.subr.mxu0 0.0
        %4261 = vmatpush1.msra.mxu0 %v4237
        %4262 = vmatprep.subr.mxu0 0.0
        %4263 = vmatpush1.msra.mxu0 %v4238
        %4264 = vmatprep.subr.mxu0 0.0
        %4265 = vmatpush1.msra.mxu0 %v4239
        %4266 = vmatprep.subr.mxu0 0.0
        %4267 = vmatpush1.msra.mxu0 %v4240
        %4268 = vmatprep.subr.mxu0 0.0
        %4269 = vmatpush1.msra.mxu0 %v4241
        %4270 = vmatprep.subr.mxu0 0.0
        %4271 = vmatpush1.msra.mxu0 %v4242
        %4272 = vmatprep.subr.mxu0 0.0
        %4273 = vmatpush1.msra.mxu0 %v4243
        %4274 = vmatprep.subr.mxu0 0.0
        %4275 = vmatpush1.msra.mxu0 %v4244
        %4276 = vmatprep.subr.mxu0 0.0
        %4277 = vmatpush1.msra.mxu0 %v4245
        %4278 = vmatprep.subr.mxu0 0.0
        %4279 = vmatpush1.msra.mxu0 %v4246
        %4280 = vmatprep.subr.mxu0 0.0
        %4281 = vmatpush1.msra.mxu0 0.0
        %4282 = vmatprep.subr.mxu0 0.0
        %4283 = vmatpush1.msra.mxu0 0.0
        %4284 = vmatprep.subr.mxu0 0.0
        %4285 = vmatpush1.msra.mxu0 0.0
        %4286 = vmatprep.subr.mxu0 0.0
        %4287 = vmatpush1.msra.mxu0 0.0
        %4288 = vmatprep.subr.mxu0 0.0
        %4289 = vmatpush1.msra.mxu0 0.0
        %4290 = vmatprep.subr.mxu0 0.0
        %4291 = vmatpush1.msra.mxu0 0.0
        %4292 = vmatprep.subr.mxu0 0.0
        %4293 = vmatpush1.msra.mxu0 0.0
        %4294 = vmatprep.subr.mxu0 0.0
        %4295 = vmatpush1.msra.mxu0 0.0
        %4296 = vmatprep.subr.mxu0 0.0
        %4297 = vmatpush1.msra.mxu0 0.0
        %4298 = vmatprep.subr.mxu0 0.0
        %4299 = vmatpush1.msra.mxu0 0.0
        %4300 = vmatprep.subr.mxu0 0.0
        %4301 = vmatpush1.msra.mxu0 0.0
        %4302 = vmatprep.subr.mxu0 0.0
        %4303 = vmatpush1.msra.mxu0 0.0
        %4304 = vmatprep.subr.mxu0 0.0
        %4305 = vmatpush1.msra.mxu0 0.0
        %4306 = vmatprep.subr.mxu0 0.0
        %4307 = vmatpush1.msra.mxu0 0.0
        %4308 = vmatprep.subr.mxu0 0.0
        %4309 = vmatpush1.msra.mxu0 0.0
        %4310 = vmatprep.subr.mxu0 0.0
        %4311 = vmatpush1.msra.mxu0 0.0
        %4312 = vmatprep.mubr.f32.mxu0 0.0
        %4313 = vmatmul.mubr.f32.gmra.mrb[0].mxu0 %v4230
        %v4314 = vpop.f32.mrb[0].mxu0
        %v4315 = vadd.f32 %v4247, %v4314
        %v4316 = vpop.f32.mrb[0].mxu0
        %4317 = vdwg.mxu0
        %v4318 = vxor.u32 %v4315, 2147483648
        %v4319 = vmul.f32 %v4318, 1.442695
        %v4320 = vpow.pop %v4319
        %v4321 = vadd.f32 %v4320, 1.0
        %v4322 = vrcp.pop %v4321
        %v4323 = vmul.f32 1.0, %v4322
        %v4324 = vmul.f32 %v4315, %v4323
        %s4325 = scalar_lea.vmem [#allocation6], 128
        %v4326 = vld [vmem:[%s4325] sm:$0xff]
        %v4327 = vld [vmem:[%s4325 + $0x8] sm:$0xff]
        %v4328 = vld [vmem:[%s4325 + $0x10] sm:$0xff]
        %v4329 = vld [vmem:[%s4325 + $0x18] sm:$0xff]
        %v4330 = vld [vmem:[%s4325 + $0x20] sm:$0xff]
        %v4331 = vld [vmem:[%s4325 + $0x28] sm:$0xff]
        %v4332 = vld [vmem:[%s4325 + $0x30] sm:$0xff]
        %v4333 = vld [vmem:[%s4325 + $0x38] sm:$0xff]
        %v4334 = vld [vmem:[%s4325 + $0x40] sm:$0xff]
        %v4335 = vld [vmem:[%s4325 + $0x48] sm:$0xff]
        %v4336 = vld [vmem:[%s4325 + $0x50] sm:$0xff]
        %v4337 = vld [vmem:[%s4325 + $0x58] sm:$0xff]
        %v4338 = vld [vmem:[%s4325 + $0x60] sm:$0xff]
        %v4339 = vld [vmem:[%s4325 + $0x68] sm:$0xff]
        %v4340 = vld [vmem:[%s4325 + $0x70] sm:$0xff]
        %v4341 = vld [vmem:[%s4325 + $0x78] sm:$0xff]
        %v4342 = vld [vmem:[%s7 + $0x5] sm:$0x1]
        %4343 = vmatprep.subr.mxu0 0.0
        %4344 = vmatpush1.msra.mxu0 %v4326
        %4345 = vmatprep.subr.mxu0 0.0
        %4346 = vmatpush1.msra.mxu0 %v4327
        %4347 = vmatprep.subr.mxu0 0.0
        %4348 = vmatpush1.msra.mxu0 %v4328
        %4349 = vmatprep.subr.mxu0 0.0
        %4350 = vmatpush1.msra.mxu0 %v4329
        %4351 = vmatprep.subr.mxu0 0.0
        %4352 = vmatpush1.msra.mxu0 %v4330
        %4353 = vmatprep.subr.mxu0 0.0
        %4354 = vmatpush1.msra.mxu0 %v4331
        %4355 = vmatprep.subr.mxu0 0.0
        %4356 = vmatpush1.msra.mxu0 %v4332
        %4357 = vmatprep.subr.mxu0 0.0
        %4358 = vmatpush1.msra.mxu0 %v4333
        %4359 = vmatprep.subr.mxu0 0.0
        %4360 = vmatpush1.msra.mxu0 %v4334
        %4361 = vmatprep.subr.mxu0 0.0
        %4362 = vmatpush1.msra.mxu0 %v4335
        %4363 = vmatprep.subr.mxu0 0.0
        %4364 = vmatpush1.msra.mxu0 %v4336
        %4365 = vmatprep.subr.mxu0 0.0
        %4366 = vmatpush1.msra.mxu0 %v4337
        %4367 = vmatprep.subr.mxu0 0.0
        %4368 = vmatpush1.msra.mxu0 %v4338
        %4369 = vmatprep.subr.mxu0 0.0
        %4370 = vmatpush1.msra.mxu0 %v4339
        %4371 = vmatprep.subr.mxu0 0.0
        %4372 = vmatpush1.msra.mxu0 %v4340
        %4373 = vmatprep.subr.mxu0 0.0
        %4374 = vmatpush1.msra.mxu0 %v4341
        %4375 = vmatprep.subr.mxu0 0.0
        %4376 = vmatpush1.msra.mxu0 0.0
        %4377 = vmatprep.subr.mxu0 0.0
        %4378 = vmatpush1.msra.mxu0 0.0
        %4379 = vmatprep.subr.mxu0 0.0
        %4380 = vmatpush1.msra.mxu0 0.0
        %4381 = vmatprep.subr.mxu0 0.0
        %4382 = vmatpush1.msra.mxu0 0.0
        %4383 = vmatprep.subr.mxu0 0.0
        %4384 = vmatpush1.msra.mxu0 0.0
        %4385 = vmatprep.subr.mxu0 0.0
        %4386 = vmatpush1.msra.mxu0 0.0
        %4387 = vmatprep.subr.mxu0 0.0
        %4388 = vmatpush1.msra.mxu0 0.0
        %4389 = vmatprep.subr.mxu0 0.0
        %4390 = vmatpush1.msra.mxu0 0.0
        %4391 = vmatprep.subr.mxu0 0.0
        %4392 = vmatpush1.msra.mxu0 0.0
        %4393 = vmatprep.subr.mxu0 0.0
        %4394 = vmatpush1.msra.mxu0 0.0
        %4395 = vmatprep.subr.mxu0 0.0
        %4396 = vmatpush1.msra.mxu0 0.0
        %4397 = vmatprep.subr.mxu0 0.0
        %4398 = vmatpush1.msra.mxu0 0.0
        %4399 = vmatprep.subr.mxu0 0.0
        %4400 = vmatpush1.msra.mxu0 0.0
        %4401 = vmatprep.subr.mxu0 0.0
        %4402 = vmatpush1.msra.mxu0 0.0
        %4403 = vmatprep.subr.mxu0 0.0
        %4404 = vmatpush1.msra.mxu0 0.0
        %4405 = vmatprep.subr.mxu0 0.0
        %4406 = vmatpush1.msra.mxu0 0.0
        %4407 = vmatprep.mubr.f32.mxu0 0.0
        %4408 = vmatmul.mubr.f32.gmra.mrb[0].mxu0 %v4324
        %v4409 = vpop.f32.mrb[0].mxu0
        %v4410 = vadd.f32 %v4342, %v4409
        %v4411 = vpop.f32.mrb[0].mxu0
        %4412 = vdwg.mxu0
        %v4413 = vxor.u32 %v4410, 2147483648
        %v4414 = vmul.f32 %v4413, 1.442695
        %v4415 = vpow.pop %v4414
        %v4416 = vadd.f32 %v4415, 1.0
        %v4417 = vrcp.pop %v4416
        %v4418 = vmul.f32 1.0, %v4417
        %v4419 = vlaneseq
        %v4420 = vshrl.u32 %v4419, 7
        %v4421 = vsub.s32 0, %v4420
        %v4422 = vrot.slane %v4418, %v4421
        %v4423 = vmul.f32 %v4209, %v4422
        %v4424 = vmul.f32 %v4210, %v4422
        %v4425 = vmul.f32 %v4211, %v4422
        %v4426 = vmul.f32 %v4212, %v4422
        %v4427 = vmul.f32 %v4213, %v4422
        %v4428 = vmul.f32 %v4214, %v4422
        %v4429 = vmul.f32 %v4215, %v4422
        %v4430 = vmul.f32 %v4216, %v4422
        %s4431 = scalar_lea.vmem [#allocation6], 256
        %v4432 = vld [vmem:[%s4431] sm:$0xff]
        %v4433 = vld [vmem:[%s4431 + $0x8] sm:$0xff]
        %v4434 = vld [vmem:[%s4431 + $0x10] sm:$0xff]
        %v4435 = vld [vmem:[%s4431 + $0x18] sm:$0xff]
        %v4436 = vld [vmem:[%s4431 + $0x20] sm:$0xff]
        %v4437 = vld [vmem:[%s4431 + $0x28] sm:$0xff]
        %v4438 = vld [vmem:[%s4431 + $0x30] sm:$0xff]
        %v4439 = vld [vmem:[%s4431 + $0x38] sm:$0xff]
        %v4440 = vld [vmem:[%s4431 + $0x40] sm:$0xff]
        %v4441 = vld [vmem:[%s4431 + $0x48] sm:$0xff]
        %v4442 = vld [vmem:[%s4431 + $0x50] sm:$0xff]
        %v4443 = vld [vmem:[%s4431 + $0x58] sm:$0xff]
        %v4444 = vld [vmem:[%s4431 + $0x60] sm:$0xff]
        %v4445 = vld [vmem:[%s4431 + $0x68] sm:$0xff]
        %v4446 = vld [vmem:[%s4431 + $0x70] sm:$0xff]
        %v4447 = vld [vmem:[%s4431 + $0x78] sm:$0xff]
        %4448 = vmatprep.subr.mxu0 0.0
        %4449 = vmatpush1.msra.mxu0 %v4432
        %4450 = vmatprep.subr.mxu0 0.0
        %4451 = vmatpush1.msra.mxu0 %v4433
        %4452 = vmatprep.subr.mxu0 0.0
        %4453 = vmatpush1.msra.mxu0 %v4434
        %4454 = vmatprep.subr.mxu0 0.0
        %4455 = vmatpush1.msra.mxu0 %v4435
        %4456 = vmatprep.subr.mxu0 0.0
        %4457 = vmatpush1.msra.mxu0 %v4436
        %4458 = vmatprep.subr.mxu0 0.0
        %4459 = vmatpush1.msra.mxu0 %v4437
        %4460 = vmatprep.subr.mxu0 0.0
        %4461 = vmatpush1.msra.mxu0 %v4438
        %4462 = vmatprep.subr.mxu0 0.0
        %4463 = vmatpush1.msra.mxu0 %v4439
        %4464 = vmatprep.subr.mxu0 0.0
        %4465 = vmatpush1.msra.mxu0 %v4440
        %4466 = vmatprep.subr.mxu0 0.0
        %4467 = vmatpush1.msra.mxu0 %v4441
        %4468 = vmatprep.subr.mxu0 0.0
        %4469 = vmatpush1.msra.mxu0 %v4442
        %4470 = vmatprep.subr.mxu0 0.0
        %4471 = vmatpush1.msra.mxu0 %v4443
        %4472 = vmatprep.subr.mxu0 0.0
        %4473 = vmatpush1.msra.mxu0 %v4444
        %4474 = vmatprep.subr.mxu0 0.0
        %4475 = vmatpush1.msra.mxu0 %v4445
        %4476 = vmatprep.subr.mxu0 0.0
        %4477 = vmatpush1.msra.mxu0 %v4446
        %4478 = vmatprep.subr.mxu0 0.0
        %4479 = vmatpush1.msra.mxu0 %v4447
        %4480 = vmatprep.subr.mxu0 0.0
        %4481 = vmatpush1.msra.mxu0 0.0
        %4482 = vmatprep.subr.mxu0 0.0
        %4483 = vmatpush1.msra.mxu0 0.0
        %4484 = vmatprep.subr.mxu0 0.0
        %4485 = vmatpush1.msra.mxu0 0.0
        %4486 = vmatprep.subr.mxu0 0.0
        %4487 = vmatpush1.msra.mxu0 0.0
        %4488 = vmatprep.subr.mxu0 0.0
        %4489 = vmatpush1.msra.mxu0 0.0
        %4490 = vmatprep.subr.mxu0 0.0
        %4491 = vmatpush1.msra.mxu0 0.0
        %4492 = vmatprep.subr.mxu0 0.0
        %4493 = vmatpush1.msra.mxu0 0.0
        %4494 = vmatprep.subr.mxu0 0.0
        %4495 = vmatpush1.msra.mxu0 0.0
        %4496 = vmatprep.subr.mxu0 0.0
        %4497 = vmatpush1.msra.mxu0 0.0
        %4498 = vmatprep.subr.mxu0 0.0
        %4499 = vmatpush1.msra.mxu0 0.0
        %4500 = vmatprep.subr.mxu0 0.0
        %4501 = vmatpush1.msra.mxu0 0.0
        %4502 = vmatprep.subr.mxu0 0.0
        %4503 = vmatpush1.msra.mxu0 0.0
        %4504 = vmatprep.subr.mxu0 0.0
        %4505 = vmatpush1.msra.mxu0 0.0
        %4506 = vmatprep.subr.mxu0 0.0
        %4507 = vmatpush1.msra.mxu0 0.0
        %4508 = vmatprep.subr.mxu0 0.0
        %4509 = vmatpush1.msra.mxu0 0.0
        %4510 = vmatprep.subr.mxu0 0.0
        %4511 = vmatpush1.msra.mxu0 0.0
        %4512 = vmatprep.mubr.f32.mxu0 0.0
        %4513 = vmatmul.mubr.f32.gmra.mrb[0].mxu0 %v4423
        %v4514 = vpop.f32.mrb[0].mxu0
        %v4515 = vadd.f32 0.0, %v4514
        %v4516 = vpop.f32.mrb[0].mxu0
        %4517 = vmatprep.mubr.f32.mxu0 0.0
        %4518 = vmatmul.mubr.f32.gmra.mrb[0].mxu0 %v4424
        %v4519 = vpop.f32.mrb[0].mxu0
        %v4520 = vadd.f32 0.0, %v4519
        %v4521 = vpop.f32.mrb[0].mxu0
        %4522 = vmatprep.mubr.f32.mxu0 0.0
        %4523 = vmatmul.mubr.f32.gmra.mrb[0].mxu0 %v4425
        %v4524 = vpop.f32.mrb[0].mxu0
        %v4525 = vadd.f32 0.0, %v4524
        %v4526 = vpop.f32.mrb[0].mxu0
        %4527 = vmatprep.mubr.f32.mxu0 0.0
        %4528 = vmatmul.mubr.f32.gmra.mrb[0].mxu0 %v4426
        %v4529 = vpop.f32.mrb[0].mxu0
        %v4530 = vadd.f32 0.0, %v4529
        %v4531 = vpop.f32.mrb[0].mxu0
        %4532 = vmatprep.mubr.f32.mxu0 0.0
        %4533 = vmatmul.mubr.f32.gmra.mrb[0].mxu0 %v4427
        %v4534 = vpop.f32.mrb[0].mxu0
        %v4535 = vadd.f32 0.0, %v4534
        %v4536 = vpop.f32.mrb[0].mxu0
        %4537 = vmatprep.mubr.f32.mxu0 0.0
        %4538 = vmatmul.mubr.f32.gmra.mrb[0].mxu0 %v4428
        %v4539 = vpop.f32.mrb[0].mxu0
        %v4540 = vadd.f32 0.0, %v4539
        %v4541 = vpop.f32.mrb[0].mxu0
        %4542 = vmatprep.mubr.f32.mxu0 0.0
        %4543 = vmatmul.mubr.f32.gmra.mrb[0].mxu0 %v4429
        %v4544 = vpop.f32.mrb[0].mxu0
        %v4545 = vadd.f32 0.0, %v4544
        %v4546 = vpop.f32.mrb[0].mxu0
        %4547 = vmatprep.mubr.f32.mxu0 0.0
        %4548 = vmatmul.mubr.f32.gmra.mrb[0].mxu0 %v4430
        %v4549 = vpop.f32.mrb[0].mxu0
        %v4550 = vadd.f32 0.0, %v4549
        %v4551 = vpop.f32.mrb[0].mxu0
        %4552 = vdwg.mxu0
        %v4553 = vld [vmem:[%s7 + $0x6] sm:$0x1]
        %v4554 = vlaneseq
        %v4555 = vshrl.u32 %v4554, 7
        %v4556 = vsub.s32 0, %v4555
        %v4557 = vrot.slane %v4553, %v4556
        %v4558 = vmul.f32 %v4515, %v4557
        %v4559 = vmul.f32 %v4520, %v4557
        %v4560 = vmul.f32 %v4525, %v4557
        %v4561 = vmul.f32 %v4530, %v4557
        %v4562 = vmul.f32 %v4535, %v4557
        %v4563 = vmul.f32 %v4540, %v4557
        %v4564 = vmul.f32 %v4545, %v4557
        %v4565 = vmul.f32 %v4550, %v4557
        %v4566 = vld [vmem:[%s7 + $0x7] sm:$0x1]
        %v4567 = vlaneseq
        %v4568 = vshrl.u32 %v4567, 7
        %v4569 = vsub.s32 0, %v4568
        %v4570 = vrot.slane %v4566, %v4569
        %v4571 = vadd.f32 %v4558, %v4570
        %v4572 = vadd.f32 %v4559, %v4570
        %v4573 = vadd.f32 %v4560, %v4570
        %v4574 = vadd.f32 %v4561, %v4570
        %v4575 = vadd.f32 %v4562, %v4570
        %v4576 = vadd.f32 %v4563, %v4570
        %v4577 = vadd.f32 %v4564, %v4570
        %v4578 = vadd.f32 %v4565, %v4570
        %v4579 = vadd.f32 %v4571, %v2704
        %v4580 = vadd.f32 %v4572, %v2705
        %v4581 = vadd.f32 %v4573, %v2706
        %v4582 = vadd.f32 %v4574, %v2707
        %v4583 = vadd.f32 %v4575, %v2708
        %v4584 = vadd.f32 %v4576, %v2709
        %v4585 = vadd.f32 %v4577, %v2710
        %v4586 = vadd.f32 %v4578, %v2711
        %s4587 = scalar_lea.vmem [#allocation6], 384
        %v4588 = vld [vmem:[%s4587] sm:$0xff]
        %v4589 = vld [vmem:[%s4587 + $0x8] sm:$0xff]
        %v4590 = vld [vmem:[%s4587 + $0x10] sm:$0xff]
        %v4591 = vld [vmem:[%s4587 + $0x18] sm:$0xff]
        %v4592 = vld [vmem:[%s4587 + $0x20] sm:$0xff]
        %v4593 = vld [vmem:[%s4587 + $0x28] sm:$0xff]
        %v4594 = vld [vmem:[%s4587 + $0x30] sm:$0xff]
        %v4595 = vld [vmem:[%s4587 + $0x38] sm:$0xff]
        %v4596 = vld [vmem:[%s4587 + $0x40] sm:$0xff]
        %v4597 = vld [vmem:[%s4587 + $0x48] sm:$0xff]
        %v4598 = vld [vmem:[%s4587 + $0x50] sm:$0xff]
        %v4599 = vld [vmem:[%s4587 + $0x58] sm:$0xff]
        %v4600 = vld [vmem:[%s4587 + $0x60] sm:$0xff]
        %v4601 = vld [vmem:[%s4587 + $0x68] sm:$0xff]
        %v4602 = vld [vmem:[%s4587 + $0x70] sm:$0xff]
        %v4603 = vld [vmem:[%s4587 + $0x78] sm:$0xff]
        %4604 = vmatprep.subr.mxu0 0.0
        %4605 = vmatpush1.msra.mxu0 %v4588
        %4606 = vmatprep.subr.mxu0 0.0
        %4607 = vmatpush1.msra.mxu0 %v4589
        %4608 = vmatprep.subr.mxu0 0.0
        %4609 = vmatpush1.msra.mxu0 %v4590
        %4610 = vmatprep.subr.mxu0 0.0
        %4611 = vmatpush1.msra.mxu0 %v4591
        %4612 = vmatprep.subr.mxu0 0.0
        %4613 = vmatpush1.msra.mxu0 %v4592
        %4614 = vmatprep.subr.mxu0 0.0
        %4615 = vmatpush1.msra.mxu0 %v4593
        %4616 = vmatprep.subr.mxu0 0.0
        %4617 = vmatpush1.msra.mxu0 %v4594
        %4618 = vmatprep.subr.mxu0 0.0
        %4619 = vmatpush1.msra.mxu0 %v4595
        %4620 = vmatprep.subr.mxu0 0.0
        %4621 = vmatpush1.msra.mxu0 %v4596
        %4622 = vmatprep.subr.mxu0 0.0
        %4623 = vmatpush1.msra.mxu0 %v4597
        %4624 = vmatprep.subr.mxu0 0.0
        %4625 = vmatpush1.msra.mxu0 %v4598
        %4626 = vmatprep.subr.mxu0 0.0
        %4627 = vmatpush1.msra.mxu0 %v4599
        %4628 = vmatprep.subr.mxu0 0.0
        %4629 = vmatpush1.msra.mxu0 %v4600
        %4630 = vmatprep.subr.mxu0 0.0
        %4631 = vmatpush1.msra.mxu0 %v4601
        %4632 = vmatprep.subr.mxu0 0.0
        %4633 = vmatpush1.msra.mxu0 %v4602
        %4634 = vmatprep.subr.mxu0 0.0
        %4635 = vmatpush1.msra.mxu0 %v4603
        %4636 = vmatprep.subr.mxu0 0.0
        %4637 = vmatpush1.msra.mxu0 0.0
        %4638 = vmatprep.subr.mxu0 0.0
        %4639 = vmatpush1.msra.mxu0 0.0
        %4640 = vmatprep.subr.mxu0 0.0
        %4641 = vmatpush1.msra.mxu0 0.0
        %4642 = vmatprep.subr.mxu0 0.0
        %4643 = vmatpush1.msra.mxu0 0.0
        %4644 = vmatprep.subr.mxu0 0.0
        %4645 = vmatpush1.msra.mxu0 0.0
        %4646 = vmatprep.subr.mxu0 0.0
        %4647 = vmatpush1.msra.mxu0 0.0
        %4648 = vmatprep.subr.mxu0 0.0
        %4649 = vmatpush1.msra.mxu0 0.0
        %4650 = vmatprep.subr.mxu0 0.0
        %4651 = vmatpush1.msra.mxu0 0.0
        %4652 = vmatprep.subr.mxu0 0.0
        %4653 = vmatpush1.msra.mxu0 0.0
        %4654 = vmatprep.subr.mxu0 0.0
        %4655 = vmatpush1.msra.mxu0 0.0
        %4656 = vmatprep.subr.mxu0 0.0
        %4657 = vmatpush1.msra.mxu0 0.0
        %4658 = vmatprep.subr.mxu0 0.0
        %4659 = vmatpush1.msra.mxu0 0.0
        %4660 = vmatprep.subr.mxu0 0.0
        %4661 = vmatpush1.msra.mxu0 0.0
        %4662 = vmatprep.subr.mxu0 0.0
        %4663 = vmatpush1.msra.mxu0 0.0
        %4664 = vmatprep.subr.mxu0 0.0
        %4665 = vmatpush1.msra.mxu0 0.0
        %4666 = vmatprep.subr.mxu0 0.0
        %4667 = vmatpush1.msra.mxu0 0.0
        %4668 = vmatprep.mubr.f32.mxu0 0.0
        %4669 = vmatmul.mubr.f32.gmra.mrb[0].mxu0 %v4579
        %v4670 = vpop.f32.mrb[0].mxu0
        %v4671 = vadd.f32 0.0, %v4670
        %v4672 = vpop.f32.mrb[0].mxu0
        %4673 = vmatprep.mubr.f32.mxu0 0.0
        %4674 = vmatmul.mubr.f32.gmra.mrb[0].mxu0 %v4580
        %v4675 = vpop.f32.mrb[0].mxu0
        %v4676 = vadd.f32 0.0, %v4675
        %v4677 = vpop.f32.mrb[0].mxu0
        %4678 = vmatprep.mubr.f32.mxu0 0.0
        %4679 = vmatmul.mubr.f32.gmra.mrb[0].mxu0 %v4581
        %v4680 = vpop.f32.mrb[0].mxu0
        %v4681 = vadd.f32 0.0, %v4680
        %v4682 = vpop.f32.mrb[0].mxu0
        %4683 = vmatprep.mubr.f32.mxu0 0.0
        %4684 = vmatmul.mubr.f32.gmra.mrb[0].mxu0 %v4582
        %v4685 = vpop.f32.mrb[0].mxu0
        %v4686 = vadd.f32 0.0, %v4685
        %v4687 = vpop.f32.mrb[0].mxu0
        %4688 = vmatprep.mubr.f32.mxu0 0.0
        %4689 = vmatmul.mubr.f32.gmra.mrb[0].mxu0 %v4583
        %v4690 = vpop.f32.mrb[0].mxu0
        %v4691 = vadd.f32 0.0, %v4690
        %v4692 = vpop.f32.mrb[0].mxu0
        %4693 = vmatprep.mubr.f32.mxu0 0.0
        %4694 = vmatmul.mubr.f32.gmra.mrb[0].mxu0 %v4584
        %v4695 = vpop.f32.mrb[0].mxu0
        %v4696 = vadd.f32 0.0, %v4695
        %v4697 = vpop.f32.mrb[0].mxu0
        %4698 = vmatprep.mubr.f32.mxu0 0.0
        %4699 = vmatmul.mubr.f32.gmra.mrb[0].mxu0 %v4585
        %v4700 = vpop.f32.mrb[0].mxu0
        %v4701 = vadd.f32 0.0, %v4700
        %v4702 = vpop.f32.mrb[0].mxu0
        %4703 = vmatprep.mubr.f32.mxu0 0.0
        %4704 = vmatmul.mubr.f32.gmra.mrb[0].mxu0 %v4586
        %v4705 = vpop.f32.mrb[0].mxu0
        %v4706 = vadd.f32 0.0, %v4705
        %v4707 = vpop.f32.mrb[0].mxu0
        %4708 = vdwg.mxu0
        %v4709 = vld [vmem:[%s7 + $0x8] sm:$0x1]
        %v4710 = vlaneseq
        %v4711 = vshrl.u32 %v4710, 7
        %v4712 = vsub.s32 0, %v4711
        %v4713 = vrot.slane %v4709, %v4712
        %v4714 = vmul.f32 %v4671, %v4713
        %v4715 = vmul.f32 %v4676, %v4713
        %v4716 = vmul.f32 %v4681, %v4713
        %v4717 = vmul.f32 %v4686, %v4713
        %v4718 = vmul.f32 %v4691, %v4713
        %v4719 = vmul.f32 %v4696, %v4713
        %v4720 = vmul.f32 %v4701, %v4713
        %v4721 = vmul.f32 %v4706, %v4713
        %v4722 = vld [vmem:[%s7 + $0x9] sm:$0x1]
        %v4723 = vlaneseq
        %v4724 = vshrl.u32 %v4723, 7
        %v4725 = vsub.s32 0, %v4724
        %v4726 = vrot.slane %v4722, %v4725
        %v4727 = vadd.f32 %v4714, %v4726
        %v4728 = vadd.f32 %v4715, %v4726
        %v4729 = vadd.f32 %v4716, %v4726
        %v4730 = vadd.f32 %v4717, %v4726
        %v4731 = vadd.f32 %v4718, %v4726
        %v4732 = vadd.f32 %v4719, %v4726
        %v4733 = vadd.f32 %v4720, %v4726
        %v4734 = vadd.f32 %v4721, %v4726
        %v4735 = vxor.u32 %v4727, 2147483648
        %v4736 = vxor.u32 %v4728, 2147483648
        %v4737 = vxor.u32 %v4729, 2147483648
        %v4738 = vxor.u32 %v4730, 2147483648
        %v4739 = vxor.u32 %v4731, 2147483648
        %v4740 = vxor.u32 %v4732, 2147483648
        %v4741 = vxor.u32 %v4733, 2147483648
        %v4742 = vxor.u32 %v4734, 2147483648
        %v4743 = vmul.f32 %v4735, 1.442695
        %v4744 = vpow.pop %v4743
        %v4745 = vmul.f32 %v4736, 1.442695
        %v4746 = vpow.pop %v4745
        %v4747 = vmul.f32 %v4737, 1.442695
        %v4748 = vpow.pop %v4747
        %v4749 = vmul.f32 %v4738, 1.442695
        %v4750 = vpow.pop %v4749
        %v4751 = vmul.f32 %v4739, 1.442695
        %v4752 = vpow.pop %v4751
        %v4753 = vmul.f32 %v4740, 1.442695
        %v4754 = vpow.pop %v4753
        %v4755 = vmul.f32 %v4741, 1.442695
        %v4756 = vpow.pop %v4755
        %v4757 = vmul.f32 %v4742, 1.442695
        %v4758 = vpow.pop %v4757
        %v4759 = vadd.f32 %v4744, 1.0
        %v4760 = vadd.f32 %v4746, 1.0
        %v4761 = vadd.f32 %v4748, 1.0
        %v4762 = vadd.f32 %v4750, 1.0
        %v4763 = vadd.f32 %v4752, 1.0
        %v4764 = vadd.f32 %v4754, 1.0
        %v4765 = vadd.f32 %v4756, 1.0
        %v4766 = vadd.f32 %v4758, 1.0
        %v4767 = vrcp.pop %v4759
        %v4768 = vmul.f32 1.0, %v4767
        %v4769 = vrcp.pop %v4760
        %v4770 = vmul.f32 1.0, %v4769
        %v4771 = vrcp.pop %v4761
        %v4772 = vmul.f32 1.0, %v4771
        %v4773 = vrcp.pop %v4762
        %v4774 = vmul.f32 1.0, %v4773
        %v4775 = vrcp.pop %v4763
        %v4776 = vmul.f32 1.0, %v4775
        %v4777 = vrcp.pop %v4764
        %v4778 = vmul.f32 1.0, %v4777
        %v4779 = vrcp.pop %v4765
        %v4780 = vmul.f32 1.0, %v4779
        %v4781 = vrcp.pop %v4766
        %v4782 = vmul.f32 1.0, %v4781
        %v4783 = vmul.f32 %v4727, %v4768
        %v4784 = vmul.f32 %v4728, %v4770
        %v4785 = vmul.f32 %v4729, %v4772
        %v4786 = vmul.f32 %v4730, %v4774
        %v4787 = vmul.f32 %v4731, %v4776
        %v4788 = vmul.f32 %v4732, %v4778
        %v4789 = vmul.f32 %v4733, %v4780
        %v4790 = vmul.f32 %v4734, %v4782
        %v4791 = vld [vmem:[%s3] sm:$0xff]
        %v4792 = vld [vmem:[%s3 + $0x8] sm:$0xff]
        %v4794 = vsel %vm2720, %v4791, 0
        %v4797 = vsel %vm2720, %v4792, 0
        %4799 = vmatprep.subr.mxu0 0.0
        %4800 = vmatpush1.msra.mxu0 %v4783
        %4801 = vmatprep.subr.mxu0 0.0
        %4802 = vmatpush1.msra.mxu0 %v4784
        %4803 = vmatprep.subr.mxu0 0.0
        %4804 = vmatpush1.msra.mxu0 %v4785
        %4805 = vmatprep.subr.mxu0 0.0
        %4806 = vmatpush1.msra.mxu0 %v4786
        %4807 = vmatprep.subr.mxu0 0.0
        %4808 = vmatpush1.msra.mxu0 %v4787
        %4809 = vmatprep.subr.mxu0 0.0
        %4810 = vmatpush1.msra.mxu0 %v4788
        %4811 = vmatprep.subr.mxu0 0.0
        %4812 = vmatpush1.msra.mxu0 %v4789
        %4813 = vmatprep.subr.mxu0 0.0
        %4814 = vmatpush1.msra.mxu0 %v4790
        %4815 = vmatprep.subr.mxu0 0.0
        %4816 = vmatpush1.msra.mxu0 0.0
        %4817 = vmatprep.subr.mxu0 0.0
        %4818 = vmatpush1.msra.mxu0 0.0
        %4819 = vmatprep.subr.mxu0 0.0
        %4820 = vmatpush1.msra.mxu0 0.0
        %4821 = vmatprep.subr.mxu0 0.0
        %4822 = vmatpush1.msra.mxu0 0.0
        %4823 = vmatprep.subr.mxu0 0.0
        %4824 = vmatpush1.msra.mxu0 0.0
        %4825 = vmatprep.subr.mxu0 0.0
        %4826 = vmatpush1.msra.mxu0 0.0
        %4827 = vmatprep.subr.mxu0 0.0
        %4828 = vmatpush1.msra.mxu0 0.0
        %4829 = vmatprep.subr.mxu0 0.0
        %4830 = vmatpush1.msra.mxu0 0.0
        %4831 = vmatprep.subr.mxu0 0.0
        %4832 = vmatpush1.msra.mxu0 0.0
        %4833 = vmatprep.subr.mxu0 0.0
        %4834 = vmatpush1.msra.mxu0 0.0
        %4835 = vmatprep.subr.mxu0 0.0
        %4836 = vmatpush1.msra.mxu0 0.0
        %4837 = vmatprep.subr.mxu0 0.0
        %4838 = vmatpush1.msra.mxu0 0.0
        %4839 = vmatprep.subr.mxu0 0.0
        %4840 = vmatpush1.msra.mxu0 0.0
        %4841 = vmatprep.subr.mxu0 0.0
        %4842 = vmatpush1.msra.mxu0 0.0
        %4843 = vmatprep.subr.mxu0 0.0
        %4844 = vmatpush1.msra.mxu0 0.0
        %4845 = vmatprep.subr.mxu0 0.0
        %4846 = vmatpush1.msra.mxu0 0.0
        %4847 = vmatprep.subr.mxu0 0.0
        %4848 = vmatpush1.msra.mxu0 0.0
        %4849 = vmatprep.subr.mxu0 0.0
        %4850 = vmatpush1.msra.mxu0 0.0
        %4851 = vmatprep.subr.mxu0 0.0
        %4852 = vmatpush1.msra.mxu0 0.0
        %4853 = vmatprep.subr.mxu0 0.0
        %4854 = vmatpush1.msra.mxu0 0.0
        %4855 = vmatprep.subr.mxu0 0.0
        %4856 = vmatpush1.msra.mxu0 0.0
        %4857 = vmatprep.subr.mxu0 0.0
        %4858 = vmatpush1.msra.mxu0 0.0
        %4859 = vmatprep.subr.mxu0 0.0
        %4860 = vmatpush1.msra.mxu0 0.0
        %4861 = vmatprep.subr.mxu0 0.0
        %4862 = vmatpush1.msra.mxu0 0.0
        %4863 = vmatprep.mubr.f32.mxu0 0.0
        %4864 = vmatmul.mubr.f32.gmra.mrb[0].mxu0 %v4794
        %v4865 = vpop.f32.mrb[0].mxu0
        %v4866 = vadd.f32 0.0, %v4865
        %v4867 = vpop.f32.mrb[0].mxu0
        %4868 = vmatprep.mubr.f32.mxu0 0.0
        %4869 = vmatmul.mubr.f32.gmra.mrb[0].mxu0 %v4797
        %v4870 = vpop.f32.mrb[0].mxu0
        %v4871 = vadd.f32 0.0, %v4870
        %v4872 = vpop.f32.mrb[0].mxu0
        %4873 = vdwg.mxu0
        %v4874 = vld [vmem:[%s5 + $0x9] sm:$0x1]
        %v4875 = vlaneseq
        %v4876 = vshrl.u32 %v4875, 7
        %v4877 = vsub.s32 0, %v4876
        %v4878 = vrot.slane %v4874, %v4877
        %v4879 = vmul.f32 %v4866, %v4878
        %v4880 = vmul.f32 %v4871, %v4878
        %s4881 = scalar_lea.vmem %s3, 16
        %v4882 = vld [vmem:[%s4881] sm:$0xff]
        %v4883 = vld [vmem:[%s4881 + $0x8] sm:$0xff]
        %v4885 = vsel %vm2720, %v4882, 0
        %v4888 = vsel %vm2720, %v4883, 0
        %4890 = vmatprep.subr.mxu0 0.0
        %4891 = vmatpush1.msra.mxu0 %v4783
        %4892 = vmatprep.subr.mxu0 0.0
        %4893 = vmatpush1.msra.mxu0 %v4784
        %4894 = vmatprep.subr.mxu0 0.0
        %4895 = vmatpush1.msra.mxu0 %v4785
        %4896 = vmatprep.subr.mxu0 0.0
        %4897 = vmatpush1.msra.mxu0 %v4786
        %4898 = vmatprep.subr.mxu0 0.0
        %4899 = vmatpush1.msra.mxu0 %v4787
        %4900 = vmatprep.subr.mxu0 0.0
        %4901 = vmatpush1.msra.mxu0 %v4788
        %4902 = vmatprep.subr.mxu0 0.0
        %4903 = vmatpush1.msra.mxu0 %v4789
        %4904 = vmatprep.subr.mxu0 0.0
        %4905 = vmatpush1.msra.mxu0 %v4790
        %4906 = vmatprep.subr.mxu0 0.0
        %4907 = vmatpush1.msra.mxu0 0.0
        %4908 = vmatprep.subr.mxu0 0.0
        %4909 = vmatpush1.msra.mxu0 0.0
        %4910 = vmatprep.subr.mxu0 0.0
        %4911 = vmatpush1.msra.mxu0 0.0
        %4912 = vmatprep.subr.mxu0 0.0
        %4913 = vmatpush1.msra.mxu0 0.0
        %4914 = vmatprep.subr.mxu0 0.0
        %4915 = vmatpush1.msra.mxu0 0.0
        %4916 = vmatprep.subr.mxu0 0.0
        %4917 = vmatpush1.msra.mxu0 0.0
        %4918 = vmatprep.subr.mxu0 0.0
        %4919 = vmatpush1.msra.mxu0 0.0
        %4920 = vmatprep.subr.mxu0 0.0
        %4921 = vmatpush1.msra.mxu0 0.0
        %4922 = vmatprep.subr.mxu0 0.0
        %4923 = vmatpush1.msra.mxu0 0.0
        %4924 = vmatprep.subr.mxu0 0.0
        %4925 = vmatpush1.msra.mxu0 0.0
        %4926 = vmatprep.subr.mxu0 0.0
        %4927 = vmatpush1.msra.mxu0 0.0
        %4928 = vmatprep.subr.mxu0 0.0
        %4929 = vmatpush1.msra.mxu0 0.0
        %4930 = vmatprep.subr.mxu0 0.0
        %4931 = vmatpush1.msra.mxu0 0.0
        %4932 = vmatprep.subr.mxu0 0.0
        %4933 = vmatpush1.msra.mxu0 0.0
        %4934 = vmatprep.subr.mxu0 0.0
        %4935 = vmatpush1.msra.mxu0 0.0
        %4936 = vmatprep.subr.mxu0 0.0
        %4937 = vmatpush1.msra.mxu0 0.0
        %4938 = vmatprep.subr.mxu0 0.0
        %4939 = vmatpush1.msra.mxu0 0.0
        %4940 = vmatprep.subr.mxu0 0.0
        %4941 = vmatpush1.msra.mxu0 0.0
        %4942 = vmatprep.subr.mxu0 0.0
        %4943 = vmatpush1.msra.mxu0 0.0
        %4944 = vmatprep.subr.mxu0 0.0
        %4945 = vmatpush1.msra.mxu0 0.0
        %4946 = vmatprep.subr.mxu0 0.0
        %4947 = vmatpush1.msra.mxu0 0.0
        %4948 = vmatprep.subr.mxu0 0.0
        %4949 = vmatpush1.msra.mxu0 0.0
        %4950 = vmatprep.subr.mxu0 0.0
        %4951 = vmatpush1.msra.mxu0 0.0
        %4952 = vmatprep.subr.mxu0 0.0
        %4953 = vmatpush1.msra.mxu0 0.0
        %4954 = vmatprep.mubr.f32.mxu0 0.0
        %4955 = vmatmul.mubr.f32.gmra.mrb[0].mxu0 %v4885
        %v4956 = vpop.f32.mrb[0].mxu0
        %v4957 = vadd.f32 0.0, %v4956
        %v4958 = vpop.f32.mrb[0].mxu0
        %4959 = vmatprep.mubr.f32.mxu0 0.0
        %4960 = vmatmul.mubr.f32.gmra.mrb[0].mxu0 %v4888
        %v4961 = vpop.f32.mrb[0].mxu0
        %v4962 = vadd.f32 0.0, %v4961
        %v4963 = vpop.f32.mrb[0].mxu0
        %4964 = vdwg.mxu0
        %v4965 = vld [vmem:[%s5 + $0xa] sm:$0x1]
        %v4966 = vlaneseq
        %v4967 = vshrl.u32 %v4966, 7
        %v4968 = vsub.s32 0, %v4967
        %v4969 = vrot.slane %v4965, %v4968
        %v4970 = vmul.f32 %v4957, %v4969
        %v4971 = vmul.f32 %v4962, %v4969
        %v4972 = vadd.f32 %v4879, %v4970
        %v4973 = vadd.f32 %v4880, %v4971
        %s4974 = scalar_lea.vmem %s3, 32
        %v4975 = vld [vmem:[%s4974] sm:$0xff]
        %v4976 = vld [vmem:[%s4974 + $0x8] sm:$0xff]
        %v4978 = vsel %vm2720, %v4975, 0
        %v4981 = vsel %vm2720, %v4976, 0
        %4983 = vmatprep.subr.mxu0 0.0
        %4984 = vmatpush1.msra.mxu0 %v4783
        %4985 = vmatprep.subr.mxu0 0.0
        %4986 = vmatpush1.msra.mxu0 %v4784
        %4987 = vmatprep.subr.mxu0 0.0
        %4988 = vmatpush1.msra.mxu0 %v4785
        %4989 = vmatprep.subr.mxu0 0.0
        %4990 = vmatpush1.msra.mxu0 %v4786
        %4991 = vmatprep.subr.mxu0 0.0
        %4992 = vmatpush1.msra.mxu0 %v4787
        %4993 = vmatprep.subr.mxu0 0.0
        %4994 = vmatpush1.msra.mxu0 %v4788
        %4995 = vmatprep.subr.mxu0 0.0
        %4996 = vmatpush1.msra.mxu0 %v4789
        %4997 = vmatprep.subr.mxu0 0.0
        %4998 = vmatpush1.msra.mxu0 %v4790
        %4999 = vmatprep.subr.mxu0 0.0
        %5000 = vmatpush1.msra.mxu0 0.0
        %5001 = vmatprep.subr.mxu0 0.0
        %5002 = vmatpush1.msra.mxu0 0.0
        %5003 = vmatprep.subr.mxu0 0.0
        %5004 = vmatpush1.msra.mxu0 0.0
        %5005 = vmatprep.subr.mxu0 0.0
        %5006 = vmatpush1.msra.mxu0 0.0
        %5007 = vmatprep.subr.mxu0 0.0
        %5008 = vmatpush1.msra.mxu0 0.0
        %5009 = vmatprep.subr.mxu0 0.0
        %5010 = vmatpush1.msra.mxu0 0.0
        %5011 = vmatprep.subr.mxu0 0.0
        %5012 = vmatpush1.msra.mxu0 0.0
        %5013 = vmatprep.subr.mxu0 0.0
        %5014 = vmatpush1.msra.mxu0 0.0
        %5015 = vmatprep.subr.mxu0 0.0
        %5016 = vmatpush1.msra.mxu0 0.0
        %5017 = vmatprep.subr.mxu0 0.0
        %5018 = vmatpush1.msra.mxu0 0.0
        %5019 = vmatprep.subr.mxu0 0.0
        %5020 = vmatpush1.msra.mxu0 0.0
        %5021 = vmatprep.subr.mxu0 0.0
        %5022 = vmatpush1.msra.mxu0 0.0
        %5023 = vmatprep.subr.mxu0 0.0
        %5024 = vmatpush1.msra.mxu0 0.0
        %5025 = vmatprep.subr.mxu0 0.0
        %5026 = vmatpush1.msra.mxu0 0.0
        %5027 = vmatprep.subr.mxu0 0.0
        %5028 = vmatpush1.msra.mxu0 0.0
        %5029 = vmatprep.subr.mxu0 0.0
        %5030 = vmatpush1.msra.mxu0 0.0
        %5031 = vmatprep.subr.mxu0 0.0
        %5032 = vmatpush1.msra.mxu0 0.0
        %5033 = vmatprep.subr.mxu0 0.0
        %5034 = vmatpush1.msra.mxu0 0.0
        %5035 = vmatprep.subr.mxu0 0.0
        %5036 = vmatpush1.msra.mxu0 0.0
        %5037 = vmatprep.subr.mxu0 0.0
        %5038 = vmatpush1.msra.mxu0 0.0
        %5039 = vmatprep.subr.mxu0 0.0
        %5040 = vmatpush1.msra.mxu0 0.0
        %5041 = vmatprep.subr.mxu0 0.0
        %5042 = vmatpush1.msra.mxu0 0.0
        %5043 = vmatprep.subr.mxu0 0.0
        %5044 = vmatpush1.msra.mxu0 0.0
        %5045 = vmatprep.subr.mxu0 0.0
        %5046 = vmatpush1.msra.mxu0 0.0
        %5047 = vmatprep.mubr.f32.mxu0 0.0
        %5048 = vmatmul.mubr.f32.gmra.mrb[0].mxu0 %v4978
        %v5049 = vpop.f32.mrb[0].mxu0
        %v5050 = vadd.f32 0.0, %v5049
        %v5051 = vpop.f32.mrb[0].mxu0
        %5052 = vmatprep.mubr.f32.mxu0 0.0
        %5053 = vmatmul.mubr.f32.gmra.mrb[0].mxu0 %v4981
        %v5054 = vpop.f32.mrb[0].mxu0
        %v5055 = vadd.f32 0.0, %v5054
        %v5056 = vpop.f32.mrb[0].mxu0
        %5057 = vdwg.mxu0
        %v5058 = vld [vmem:[%s5 + $0xb] sm:$0x1]
        %v5059 = vlaneseq
        %v5060 = vshrl.u32 %v5059, 7
        %v5061 = vsub.s32 0, %v5060
        %v5062 = vrot.slane %v5058, %v5061
        %v5063 = vmul.f32 %v5050, %v5062
        %v5064 = vmul.f32 %v5055, %v5062
        %v5065 = vadd.f32 %v4972, %v5063
        %v5066 = vadd.f32 %v4973, %v5064
        %s5067 = scalar_lea.vmem %s3, 48
        %v5068 = vld [vmem:[%s5067] sm:$0xff]
        %v5069 = vld [vmem:[%s5067 + $0x8] sm:$0xff]
        %v5071 = vsel %vm2720, %v5068, 0
        %v5074 = vsel %vm2720, %v5069, 0
        %5076 = vmatprep.subr.mxu0 0.0
        %5077 = vmatpush1.msra.mxu0 %v4783
        %5078 = vmatprep.subr.mxu0 0.0
        %5079 = vmatpush1.msra.mxu0 %v4784
        %5080 = vmatprep.subr.mxu0 0.0
        %5081 = vmatpush1.msra.mxu0 %v4785
        %5082 = vmatprep.subr.mxu0 0.0
        %5083 = vmatpush1.msra.mxu0 %v4786
        %5084 = vmatprep.subr.mxu0 0.0
        %5085 = vmatpush1.msra.mxu0 %v4787
        %5086 = vmatprep.subr.mxu0 0.0
        %5087 = vmatpush1.msra.mxu0 %v4788
        %5088 = vmatprep.subr.mxu0 0.0
        %5089 = vmatpush1.msra.mxu0 %v4789
        %5090 = vmatprep.subr.mxu0 0.0
        %5091 = vmatpush1.msra.mxu0 %v4790
        %5092 = vmatprep.subr.mxu0 0.0
        %5093 = vmatpush1.msra.mxu0 0.0
        %5094 = vmatprep.subr.mxu0 0.0
        %5095 = vmatpush1.msra.mxu0 0.0
        %5096 = vmatprep.subr.mxu0 0.0
        %5097 = vmatpush1.msra.mxu0 0.0
        %5098 = vmatprep.subr.mxu0 0.0
        %5099 = vmatpush1.msra.mxu0 0.0
        %5100 = vmatprep.subr.mxu0 0.0
        %5101 = vmatpush1.msra.mxu0 0.0
        %5102 = vmatprep.subr.mxu0 0.0
        %5103 = vmatpush1.msra.mxu0 0.0
        %5104 = vmatprep.subr.mxu0 0.0
        %5105 = vmatpush1.msra.mxu0 0.0
        %5106 = vmatprep.subr.mxu0 0.0
        %5107 = vmatpush1.msra.mxu0 0.0
        %5108 = vmatprep.subr.mxu0 0.0
        %5109 = vmatpush1.msra.mxu0 0.0
        %5110 = vmatprep.subr.mxu0 0.0
        %5111 = vmatpush1.msra.mxu0 0.0
        %5112 = vmatprep.subr.mxu0 0.0
        %5113 = vmatpush1.msra.mxu0 0.0
        %5114 = vmatprep.subr.mxu0 0.0
        %5115 = vmatpush1.msra.mxu0 0.0
        %5116 = vmatprep.subr.mxu0 0.0
        %5117 = vmatpush1.msra.mxu0 0.0
        %5118 = vmatprep.subr.mxu0 0.0
        %5119 = vmatpush1.msra.mxu0 0.0
        %5120 = vmatprep.subr.mxu0 0.0
        %5121 = vmatpush1.msra.mxu0 0.0
        %5122 = vmatprep.subr.mxu0 0.0
        %5123 = vmatpush1.msra.mxu0 0.0
        %5124 = vmatprep.subr.mxu0 0.0
        %5125 = vmatpush1.msra.mxu0 0.0
        %5126 = vmatprep.subr.mxu0 0.0
        %5127 = vmatpush1.msra.mxu0 0.0
        %5128 = vmatprep.subr.mxu0 0.0
        %5129 = vmatpush1.msra.mxu0 0.0
        %5130 = vmatprep.subr.mxu0 0.0
        %5131 = vmatpush1.msra.mxu0 0.0
        %5132 = vmatprep.subr.mxu0 0.0
        %5133 = vmatpush1.msra.mxu0 0.0
        %5134 = vmatprep.subr.mxu0 0.0
        %5135 = vmatpush1.msra.mxu0 0.0
        %5136 = vmatprep.subr.mxu0 0.0
        %5137 = vmatpush1.msra.mxu0 0.0
        %5138 = vmatprep.subr.mxu0 0.0
        %5139 = vmatpush1.msra.mxu0 0.0
        %5140 = vmatprep.mubr.f32.mxu0 0.0
        %5141 = vmatmul.mubr.f32.gmra.mrb[0].mxu0 %v5071
        %v5142 = vpop.f32.mrb[0].mxu0
        %v5143 = vadd.f32 0.0, %v5142
        %v5144 = vpop.f32.mrb[0].mxu0
        %5145 = vmatprep.mubr.f32.mxu0 0.0
        %5146 = vmatmul.mubr.f32.gmra.mrb[0].mxu0 %v5074
        %v5147 = vpop.f32.mrb[0].mxu0
        %v5148 = vadd.f32 0.0, %v5147
        %v5149 = vpop.f32.mrb[0].mxu0
        %5150 = vdwg.mxu0
        %v5151 = vld [vmem:[%s5 + $0xc] sm:$0x1]
        %v5152 = vlaneseq
        %v5153 = vshrl.u32 %v5152, 7
        %v5154 = vsub.s32 0, %v5153
        %v5155 = vrot.slane %v5151, %v5154
        %v5156 = vmul.f32 %v5143, %v5155
        %v5157 = vmul.f32 %v5148, %v5155
        %v5158 = vadd.f32 %v5065, %v5156
        %v5159 = vadd.f32 %v5066, %v5157
        %s5160 = scalar_lea.vmem %s3, 64
        %v5161 = vld [vmem:[%s5160] sm:$0xff]
        %v5162 = vld [vmem:[%s5160 + $0x8] sm:$0xff]
        %v5164 = vsel %vm2720, %v5161, 0
        %v5167 = vsel %vm2720, %v5162, 0
        %5169 = vmatprep.subr.mxu0 0.0
        %5170 = vmatpush1.msra.mxu0 %v4783
        %5171 = vmatprep.subr.mxu0 0.0
        %5172 = vmatpush1.msra.mxu0 %v4784
        %5173 = vmatprep.subr.mxu0 0.0
        %5174 = vmatpush1.msra.mxu0 %v4785
        %5175 = vmatprep.subr.mxu0 0.0
        %5176 = vmatpush1.msra.mxu0 %v4786
        %5177 = vmatprep.subr.mxu0 0.0
        %5178 = vmatpush1.msra.mxu0 %v4787
        %5179 = vmatprep.subr.mxu0 0.0
        %5180 = vmatpush1.msra.mxu0 %v4788
        %5181 = vmatprep.subr.mxu0 0.0
        %5182 = vmatpush1.msra.mxu0 %v4789
        %5183 = vmatprep.subr.mxu0 0.0
        %5184 = vmatpush1.msra.mxu0 %v4790
        %5185 = vmatprep.subr.mxu0 0.0
        %5186 = vmatpush1.msra.mxu0 0.0
        %5187 = vmatprep.subr.mxu0 0.0
        %5188 = vmatpush1.msra.mxu0 0.0
        %5189 = vmatprep.subr.mxu0 0.0
        %5190 = vmatpush1.msra.mxu0 0.0
        %5191 = vmatprep.subr.mxu0 0.0
        %5192 = vmatpush1.msra.mxu0 0.0
        %5193 = vmatprep.subr.mxu0 0.0
        %5194 = vmatpush1.msra.mxu0 0.0
        %5195 = vmatprep.subr.mxu0 0.0
        %5196 = vmatpush1.msra.mxu0 0.0
        %5197 = vmatprep.subr.mxu0 0.0
        %5198 = vmatpush1.msra.mxu0 0.0
        %5199 = vmatprep.subr.mxu0 0.0
        %5200 = vmatpush1.msra.mxu0 0.0
        %5201 = vmatprep.subr.mxu0 0.0
        %5202 = vmatpush1.msra.mxu0 0.0
        %5203 = vmatprep.subr.mxu0 0.0
        %5204 = vmatpush1.msra.mxu0 0.0
        %5205 = vmatprep.subr.mxu0 0.0
        %5206 = vmatpush1.msra.mxu0 0.0
        %5207 = vmatprep.subr.mxu0 0.0
        %5208 = vmatpush1.msra.mxu0 0.0
        %5209 = vmatprep.subr.mxu0 0.0
        %5210 = vmatpush1.msra.mxu0 0.0
        %5211 = vmatprep.subr.mxu0 0.0
        %5212 = vmatpush1.msra.mxu0 0.0
        %5213 = vmatprep.subr.mxu0 0.0
        %5214 = vmatpush1.msra.mxu0 0.0
        %5215 = vmatprep.subr.mxu0 0.0
        %5216 = vmatpush1.msra.mxu0 0.0
        %5217 = vmatprep.subr.mxu0 0.0
        %5218 = vmatpush1.msra.mxu0 0.0
        %5219 = vmatprep.subr.mxu0 0.0
        %5220 = vmatpush1.msra.mxu0 0.0
        %5221 = vmatprep.subr.mxu0 0.0
        %5222 = vmatpush1.msra.mxu0 0.0
        %5223 = vmatprep.subr.mxu0 0.0
        %5224 = vmatpush1.msra.mxu0 0.0
        %5225 = vmatprep.subr.mxu0 0.0
        %5226 = vmatpush1.msra.mxu0 0.0
        %5227 = vmatprep.subr.mxu0 0.0
        %5228 = vmatpush1.msra.mxu0 0.0
        %5229 = vmatprep.subr.mxu0 0.0
        %5230 = vmatpush1.msra.mxu0 0.0
        %5231 = vmatprep.subr.mxu0 0.0
        %5232 = vmatpush1.msra.mxu0 0.0
        %5233 = vmatprep.mubr.f32.mxu0 0.0
        %5234 = vmatmul.mubr.f32.gmra.mrb[0].mxu0 %v5164
        %v5235 = vpop.f32.mrb[0].mxu0
        %v5236 = vadd.f32 0.0, %v5235
        %v5237 = vpop.f32.mrb[0].mxu0
        %5238 = vmatprep.mubr.f32.mxu0 0.0
        %5239 = vmatmul.mubr.f32.gmra.mrb[0].mxu0 %v5167
        %v5240 = vpop.f32.mrb[0].mxu0
        %v5241 = vadd.f32 0.0, %v5240
        %v5242 = vpop.f32.mrb[0].mxu0
        %5243 = vdwg.mxu0
        %v5244 = vld [vmem:[%s5 + $0xd] sm:$0x1]
        %v5245 = vlaneseq
        %v5246 = vshrl.u32 %v5245, 7
        %v5247 = vsub.s32 0, %v5246
        %v5248 = vrot.slane %v5244, %v5247
        %v5249 = vmul.f32 %v5236, %v5248
        %v5250 = vmul.f32 %v5241, %v5248
        %v5251 = vadd.f32 %v5158, %v5249
        %v5252 = vadd.f32 %v5159, %v5250
        %s5253 = scalar_lea.vmem %s3, 80
        %v5254 = vld [vmem:[%s5253] sm:$0xff]
        %v5255 = vld [vmem:[%s5253 + $0x8] sm:$0xff]
        %v5257 = vsel %vm2720, %v5254, 0
        %v5260 = vsel %vm2720, %v5255, 0
        %5262 = vmatprep.subr.mxu0 0.0
        %5263 = vmatpush1.msra.mxu0 %v4783
        %5264 = vmatprep.subr.mxu0 0.0
        %5265 = vmatpush1.msra.mxu0 %v4784
        %5266 = vmatprep.subr.mxu0 0.0
        %5267 = vmatpush1.msra.mxu0 %v4785
        %5268 = vmatprep.subr.mxu0 0.0
        %5269 = vmatpush1.msra.mxu0 %v4786
        %5270 = vmatprep.subr.mxu0 0.0
        %5271 = vmatpush1.msra.mxu0 %v4787
        %5272 = vmatprep.subr.mxu0 0.0
        %5273 = vmatpush1.msra.mxu0 %v4788
        %5274 = vmatprep.subr.mxu0 0.0
        %5275 = vmatpush1.msra.mxu0 %v4789
        %5276 = vmatprep.subr.mxu0 0.0
        %5277 = vmatpush1.msra.mxu0 %v4790
        %5278 = vmatprep.subr.mxu0 0.0
        %5279 = vmatpush1.msra.mxu0 0.0
        %5280 = vmatprep.subr.mxu0 0.0
        %5281 = vmatpush1.msra.mxu0 0.0
        %5282 = vmatprep.subr.mxu0 0.0
        %5283 = vmatpush1.msra.mxu0 0.0
        %5284 = vmatprep.subr.mxu0 0.0
        %5285 = vmatpush1.msra.mxu0 0.0
        %5286 = vmatprep.subr.mxu0 0.0
        %5287 = vmatpush1.msra.mxu0 0.0
        %5288 = vmatprep.subr.mxu0 0.0
        %5289 = vmatpush1.msra.mxu0 0.0
        %5290 = vmatprep.subr.mxu0 0.0
        %5291 = vmatpush1.msra.mxu0 0.0
        %5292 = vmatprep.subr.mxu0 0.0
        %5293 = vmatpush1.msra.mxu0 0.0
        %5294 = vmatprep.subr.mxu0 0.0
        %5295 = vmatpush1.msra.mxu0 0.0
        %5296 = vmatprep.subr.mxu0 0.0
        %5297 = vmatpush1.msra.mxu0 0.0
        %5298 = vmatprep.subr.mxu0 0.0
        %5299 = vmatpush1.msra.mxu0 0.0
        %5300 = vmatprep.subr.mxu0 0.0
        %5301 = vmatpush1.msra.mxu0 0.0
        %5302 = vmatprep.subr.mxu0 0.0
        %5303 = vmatpush1.msra.mxu0 0.0
        %5304 = vmatprep.subr.mxu0 0.0
        %5305 = vmatpush1.msra.mxu0 0.0
        %5306 = vmatprep.subr.mxu0 0.0
        %5307 = vmatpush1.msra.mxu0 0.0
        %5308 = vmatprep.subr.mxu0 0.0
        %5309 = vmatpush1.msra.mxu0 0.0
        %5310 = vmatprep.subr.mxu0 0.0
        %5311 = vmatpush1.msra.mxu0 0.0
        %5312 = vmatprep.subr.mxu0 0.0
        %5313 = vmatpush1.msra.mxu0 0.0
        %5314 = vmatprep.subr.mxu0 0.0
        %5315 = vmatpush1.msra.mxu0 0.0
        %5316 = vmatprep.subr.mxu0 0.0
        %5317 = vmatpush1.msra.mxu0 0.0
        %5318 = vmatprep.subr.mxu0 0.0
        %5319 = vmatpush1.msra.mxu0 0.0
        %5320 = vmatprep.subr.mxu0 0.0
        %5321 = vmatpush1.msra.mxu0 0.0
        %5322 = vmatprep.subr.mxu0 0.0
        %5323 = vmatpush1.msra.mxu0 0.0
        %5324 = vmatprep.subr.mxu0 0.0
        %5325 = vmatpush1.msra.mxu0 0.0
        %5326 = vmatprep.mubr.f32.mxu0 0.0
        %5327 = vmatmul.mubr.f32.gmra.mrb[0].mxu0 %v5257
        %v5328 = vpop.f32.mrb[0].mxu0
        %v5329 = vadd.f32 0.0, %v5328
        %v5330 = vpop.f32.mrb[0].mxu0
        %5331 = vmatprep.mubr.f32.mxu0 0.0
        %5332 = vmatmul.mubr.f32.gmra.mrb[0].mxu0 %v5260
        %v5333 = vpop.f32.mrb[0].mxu0
        %v5334 = vadd.f32 0.0, %v5333
        %v5335 = vpop.f32.mrb[0].mxu0
        %5336 = vdwg.mxu0
        %v5337 = vld [vmem:[%s5 + $0xe] sm:$0x1]
        %v5338 = vlaneseq
        %v5339 = vshrl.u32 %v5338, 7
        %v5340 = vsub.s32 0, %v5339
        %v5341 = vrot.slane %v5337, %v5340
        %v5342 = vmul.f32 %v5329, %v5341
        %v5343 = vmul.f32 %v5334, %v5341
        %v5344 = vadd.f32 %v5251, %v5342
        %v5345 = vadd.f32 %v5252, %v5343
        %s5346 = scalar_lea.vmem %s3, 96
        %v5347 = vld [vmem:[%s5346] sm:$0xff]
        %v5348 = vld [vmem:[%s5346 + $0x8] sm:$0xff]
        %v5350 = vsel %vm2720, %v5347, 0
        %v5353 = vsel %vm2720, %v5348, 0
        %5355 = vmatprep.subr.mxu0 0.0
        %5356 = vmatpush1.msra.mxu0 %v4783
        %5357 = vmatprep.subr.mxu0 0.0
        %5358 = vmatpush1.msra.mxu0 %v4784
        %5359 = vmatprep.subr.mxu0 0.0
        %5360 = vmatpush1.msra.mxu0 %v4785
        %5361 = vmatprep.subr.mxu0 0.0
        %5362 = vmatpush1.msra.mxu0 %v4786
        %5363 = vmatprep.subr.mxu0 0.0
        %5364 = vmatpush1.msra.mxu0 %v4787
        %5365 = vmatprep.subr.mxu0 0.0
        %5366 = vmatpush1.msra.mxu0 %v4788
        %5367 = vmatprep.subr.mxu0 0.0
        %5368 = vmatpush1.msra.mxu0 %v4789
        %5369 = vmatprep.subr.mxu0 0.0
        %5370 = vmatpush1.msra.mxu0 %v4790
        %5371 = vmatprep.subr.mxu0 0.0
        %5372 = vmatpush1.msra.mxu0 0.0
        %5373 = vmatprep.subr.mxu0 0.0
        %5374 = vmatpush1.msra.mxu0 0.0
        %5375 = vmatprep.subr.mxu0 0.0
        %5376 = vmatpush1.msra.mxu0 0.0
        %5377 = vmatprep.subr.mxu0 0.0
        %5378 = vmatpush1.msra.mxu0 0.0
        %5379 = vmatprep.subr.mxu0 0.0
        %5380 = vmatpush1.msra.mxu0 0.0
        %5381 = vmatprep.subr.mxu0 0.0
        %5382 = vmatpush1.msra.mxu0 0.0
        %5383 = vmatprep.subr.mxu0 0.0
        %5384 = vmatpush1.msra.mxu0 0.0
        %5385 = vmatprep.subr.mxu0 0.0
        %5386 = vmatpush1.msra.mxu0 0.0
        %5387 = vmatprep.subr.mxu0 0.0
        %5388 = vmatpush1.msra.mxu0 0.0
        %5389 = vmatprep.subr.mxu0 0.0
        %5390 = vmatpush1.msra.mxu0 0.0
        %5391 = vmatprep.subr.mxu0 0.0
        %5392 = vmatpush1.msra.mxu0 0.0
        %5393 = vmatprep.subr.mxu0 0.0
        %5394 = vmatpush1.msra.mxu0 0.0
        %5395 = vmatprep.subr.mxu0 0.0
        %5396 = vmatpush1.msra.mxu0 0.0
        %5397 = vmatprep.subr.mxu0 0.0
        %5398 = vmatpush1.msra.mxu0 0.0
        %5399 = vmatprep.subr.mxu0 0.0
        %5400 = vmatpush1.msra.mxu0 0.0
        %5401 = vmatprep.subr.mxu0 0.0
        %5402 = vmatpush1.msra.mxu0 0.0
        %5403 = vmatprep.subr.mxu0 0.0
        %5404 = vmatpush1.msra.mxu0 0.0
        %5405 = vmatprep.subr.mxu0 0.0
        %5406 = vmatpush1.msra.mxu0 0.0
        %5407 = vmatprep.subr.mxu0 0.0
        %5408 = vmatpush1.msra.mxu0 0.0
        %5409 = vmatprep.subr.mxu0 0.0
        %5410 = vmatpush1.msra.mxu0 0.0
        %5411 = vmatprep.subr.mxu0 0.0
        %5412 = vmatpush1.msra.mxu0 0.0
        %5413 = vmatprep.subr.mxu0 0.0
        %5414 = vmatpush1.msra.mxu0 0.0
        %5415 = vmatprep.subr.mxu0 0.0
        %5416 = vmatpush1.msra.mxu0 0.0
        %5417 = vmatprep.subr.mxu0 0.0
        %5418 = vmatpush1.msra.mxu0 0.0
        %5419 = vmatprep.mubr.f32.mxu0 0.0
        %5420 = vmatmul.mubr.f32.gmra.mrb[0].mxu0 %v5350
        %v5421 = vpop.f32.mrb[0].mxu0
        %v5422 = vadd.f32 0.0, %v5421
        %v5423 = vpop.f32.mrb[0].mxu0
        %5424 = vmatprep.mubr.f32.mxu0 0.0
        %5425 = vmatmul.mubr.f32.gmra.mrb[0].mxu0 %v5353
        %v5426 = vpop.f32.mrb[0].mxu0
        %v5427 = vadd.f32 0.0, %v5426
        %v5428 = vpop.f32.mrb[0].mxu0
        %5429 = vdwg.mxu0
        %v5430 = vld [vmem:[%s5 + $0xf] sm:$0x1]
        %v5431 = vlaneseq
        %v5432 = vshrl.u32 %v5431, 7
        %v5433 = vsub.s32 0, %v5432
        %v5434 = vrot.slane %v5430, %v5433
        %v5435 = vmul.f32 %v5422, %v5434
        %v5436 = vmul.f32 %v5427, %v5434
        %v5437 = vadd.f32 %v5344, %v5435
        %v5438 = vadd.f32 %v5345, %v5436
        %s5439 = scalar_lea.vmem %s3, 112
        %v5440 = vld [vmem:[%s5439] sm:$0xff]
        %v5441 = vld [vmem:[%s5439 + $0x8] sm:$0xff]
        %v5443 = vsel %vm2720, %v5440, 0
        %v5446 = vsel %vm2720, %v5441, 0
        %5448 = vmatprep.subr.mxu0 0.0
        %5449 = vmatpush1.msra.mxu0 %v4783
        %5450 = vmatprep.subr.mxu0 0.0
        %5451 = vmatpush1.msra.mxu0 %v4784
        %5452 = vmatprep.subr.mxu0 0.0
        %5453 = vmatpush1.msra.mxu0 %v4785
        %5454 = vmatprep.subr.mxu0 0.0
        %5455 = vmatpush1.msra.mxu0 %v4786
        %5456 = vmatprep.subr.mxu0 0.0
        %5457 = vmatpush1.msra.mxu0 %v4787
        %5458 = vmatprep.subr.mxu0 0.0
        %5459 = vmatpush1.msra.mxu0 %v4788
        %5460 = vmatprep.subr.mxu0 0.0
        %5461 = vmatpush1.msra.mxu0 %v4789
        %5462 = vmatprep.subr.mxu0 0.0
        %5463 = vmatpush1.msra.mxu0 %v4790
        %5464 = vmatprep.subr.mxu0 0.0
        %5465 = vmatpush1.msra.mxu0 0.0
        %5466 = vmatprep.subr.mxu0 0.0
        %5467 = vmatpush1.msra.mxu0 0.0
        %5468 = vmatprep.subr.mxu0 0.0
        %5469 = vmatpush1.msra.mxu0 0.0
        %5470 = vmatprep.subr.mxu0 0.0
        %5471 = vmatpush1.msra.mxu0 0.0
        %5472 = vmatprep.subr.mxu0 0.0
        %5473 = vmatpush1.msra.mxu0 0.0
        %5474 = vmatprep.subr.mxu0 0.0
        %5475 = vmatpush1.msra.mxu0 0.0
        %5476 = vmatprep.subr.mxu0 0.0
        %5477 = vmatpush1.msra.mxu0 0.0
        %5478 = vmatprep.subr.mxu0 0.0
        %5479 = vmatpush1.msra.mxu0 0.0
        %5480 = vmatprep.subr.mxu0 0.0
        %5481 = vmatpush1.msra.mxu0 0.0
        %5482 = vmatprep.subr.mxu0 0.0
        %5483 = vmatpush1.msra.mxu0 0.0
        %5484 = vmatprep.subr.mxu0 0.0
        %5485 = vmatpush1.msra.mxu0 0.0
        %5486 = vmatprep.subr.mxu0 0.0
        %5487 = vmatpush1.msra.mxu0 0.0
        %5488 = vmatprep.subr.mxu0 0.0
        %5489 = vmatpush1.msra.mxu0 0.0
        %5490 = vmatprep.subr.mxu0 0.0
        %5491 = vmatpush1.msra.mxu0 0.0
        %5492 = vmatprep.subr.mxu0 0.0
        %5493 = vmatpush1.msra.mxu0 0.0
        %5494 = vmatprep.subr.mxu0 0.0
        %5495 = vmatpush1.msra.mxu0 0.0
        %5496 = vmatprep.subr.mxu0 0.0
        %5497 = vmatpush1.msra.mxu0 0.0
        %5498 = vmatprep.subr.mxu0 0.0
        %5499 = vmatpush1.msra.mxu0 0.0
        %5500 = vmatprep.subr.mxu0 0.0
        %5501 = vmatpush1.msra.mxu0 0.0
        %5502 = vmatprep.subr.mxu0 0.0
        %5503 = vmatpush1.msra.mxu0 0.0
        %5504 = vmatprep.subr.mxu0 0.0
        %5505 = vmatpush1.msra.mxu0 0.0
        %5506 = vmatprep.subr.mxu0 0.0
        %5507 = vmatpush1.msra.mxu0 0.0
        %5508 = vmatprep.subr.mxu0 0.0
        %5509 = vmatpush1.msra.mxu0 0.0
        %5510 = vmatprep.subr.mxu0 0.0
        %5511 = vmatpush1.msra.mxu0 0.0
        %5512 = vmatprep.mubr.f32.mxu0 0.0
        %5513 = vmatmul.mubr.f32.gmra.mrb[0].mxu0 %v5443
        %v5514 = vpop.f32.mrb[0].mxu0
        %v5515 = vadd.f32 0.0, %v5514
        %v5516 = vpop.f32.mrb[0].mxu0
        %5517 = vmatprep.mubr.f32.mxu0 0.0
        %5518 = vmatmul.mubr.f32.gmra.mrb[0].mxu0 %v5446
        %v5519 = vpop.f32.mrb[0].mxu0
        %v5520 = vadd.f32 0.0, %v5519
        %v5521 = vpop.f32.mrb[0].mxu0
        %5522 = vdwg.mxu0
        %v5523 = vld [vmem:[%s5 + $0x10] sm:$0x1]
        %v5524 = vlaneseq
        %v5525 = vshrl.u32 %v5524, 7
        %v5526 = vsub.s32 0, %v5525
        %v5527 = vrot.slane %v5523, %v5526
        %v5528 = vmul.f32 %v5515, %v5527
        %v5529 = vmul.f32 %v5520, %v5527
        %v5530 = vadd.f32 %v5437, %v5528
        %v5531 = vadd.f32 %v5438, %v5529
        %s5532 = scalar_lea.vmem %s3, 128
        %v5533 = vld [vmem:[%s5532] sm:$0xff]
        %v5534 = vld [vmem:[%s5532 + $0x8] sm:$0xff]
        %v5536 = vsel %vm2720, %v5533, 0
        %v5539 = vsel %vm2720, %v5534, 0
        %5541 = vmatprep.subr.mxu0 0.0
        %5542 = vmatpush1.msra.mxu0 %v4783
        %5543 = vmatprep.subr.mxu0 0.0
        %5544 = vmatpush1.msra.mxu0 %v4784
        %5545 = vmatprep.subr.mxu0 0.0
        %5546 = vmatpush1.msra.mxu0 %v4785
        %5547 = vmatprep.subr.mxu0 0.0
        %5548 = vmatpush1.msra.mxu0 %v4786
        %5549 = vmatprep.subr.mxu0 0.0
        %5550 = vmatpush1.msra.mxu0 %v4787
        %5551 = vmatprep.subr.mxu0 0.0
        %5552 = vmatpush1.msra.mxu0 %v4788
        %5553 = vmatprep.subr.mxu0 0.0
        %5554 = vmatpush1.msra.mxu0 %v4789
        %5555 = vmatprep.subr.mxu0 0.0
        %5556 = vmatpush1.msra.mxu0 %v4790
        %5557 = vmatprep.subr.mxu0 0.0
        %5558 = vmatpush1.msra.mxu0 0.0
        %5559 = vmatprep.subr.mxu0 0.0
        %5560 = vmatpush1.msra.mxu0 0.0
        %5561 = vmatprep.subr.mxu0 0.0
        %5562 = vmatpush1.msra.mxu0 0.0
        %5563 = vmatprep.subr.mxu0 0.0
        %5564 = vmatpush1.msra.mxu0 0.0
        %5565 = vmatprep.subr.mxu0 0.0
        %5566 = vmatpush1.msra.mxu0 0.0
        %5567 = vmatprep.subr.mxu0 0.0
        %5568 = vmatpush1.msra.mxu0 0.0
        %5569 = vmatprep.subr.mxu0 0.0
        %5570 = vmatpush1.msra.mxu0 0.0
        %5571 = vmatprep.subr.mxu0 0.0
        %5572 = vmatpush1.msra.mxu0 0.0
        %5573 = vmatprep.subr.mxu0 0.0
        %5574 = vmatpush1.msra.mxu0 0.0
        %5575 = vmatprep.subr.mxu0 0.0
        %5576 = vmatpush1.msra.mxu0 0.0
        %5577 = vmatprep.subr.mxu0 0.0
        %5578 = vmatpush1.msra.mxu0 0.0
        %5579 = vmatprep.subr.mxu0 0.0
        %5580 = vmatpush1.msra.mxu0 0.0
        %5581 = vmatprep.subr.mxu0 0.0
        %5582 = vmatpush1.msra.mxu0 0.0
        %5583 = vmatprep.subr.mxu0 0.0
        %5584 = vmatpush1.msra.mxu0 0.0
        %5585 = vmatprep.subr.mxu0 0.0
        %5586 = vmatpush1.msra.mxu0 0.0
        %5587 = vmatprep.subr.mxu0 0.0
        %5588 = vmatpush1.msra.mxu0 0.0
        %5589 = vmatprep.subr.mxu0 0.0
        %5590 = vmatpush1.msra.mxu0 0.0
        %5591 = vmatprep.subr.mxu0 0.0
        %5592 = vmatpush1.msra.mxu0 0.0
        %5593 = vmatprep.subr.mxu0 0.0
        %5594 = vmatpush1.msra.mxu0 0.0
        %5595 = vmatprep.subr.mxu0 0.0
        %5596 = vmatpush1.msra.mxu0 0.0
        %5597 = vmatprep.subr.mxu0 0.0
        %5598 = vmatpush1.msra.mxu0 0.0
        %5599 = vmatprep.subr.mxu0 0.0
        %5600 = vmatpush1.msra.mxu0 0.0
        %5601 = vmatprep.subr.mxu0 0.0
        %5602 = vmatpush1.msra.mxu0 0.0
        %5603 = vmatprep.subr.mxu0 0.0
        %5604 = vmatpush1.msra.mxu0 0.0
        %5605 = vmatprep.mubr.f32.mxu0 0.0
        %5606 = vmatmul.mubr.f32.gmra.mrb[0].mxu0 %v5536
        %v5607 = vpop.f32.mrb[0].mxu0
        %v5608 = vadd.f32 0.0, %v5607
        %v5609 = vpop.f32.mrb[0].mxu0
        %5610 = vmatprep.mubr.f32.mxu0 0.0
        %5611 = vmatmul.mubr.f32.gmra.mrb[0].mxu0 %v5539
        %v5612 = vpop.f32.mrb[0].mxu0
        %v5613 = vadd.f32 0.0, %v5612
        %v5614 = vpop.f32.mrb[0].mxu0
        %5615 = vdwg.mxu0
        %v5616 = vld [vmem:[%s5 + $0x11] sm:$0x1]
        %v5617 = vlaneseq
        %v5618 = vshrl.u32 %v5617, 7
        %v5619 = vsub.s32 0, %v5618
        %v5620 = vrot.slane %v5616, %v5619
        %v5621 = vmul.f32 %v5608, %v5620
        %v5622 = vmul.f32 %v5613, %v5620
        %v5623 = vadd.f32 %v5530, %v5621
        %v5624 = vadd.f32 %v5531, %v5622
        %v5625 = vld [vmem:[%s7 + $0xa] sm:$0x1]
        %v5626 = vlaneseq
        %v5627 = vshrl.u32 %v5626, 7
        %v5628 = vsub.s32 0, %v5627
        %v5629 = vrot.slane %v5625, %v5628
        %v5630 = vmul.f32 %v5623, %v5629
        %v5631 = vmul.f32 %v5624, %v5629
        %v5632 = vld [vmem:[%s7 + $0xb] sm:$0x1]
        %v5633 = vlaneseq
        %v5634 = vshrl.u32 %v5633, 7
        %v5635 = vsub.s32 0, %v5634
        %v5636 = vrot.slane %v5632, %v5635
        %v5637 = vadd.f32 %v5630, %v5636
        %v5638 = vadd.f32 %v5631, %v5636
        %v5639 = vxor.u32 %v5637, 2147483648
        %v5640 = vxor.u32 %v5638, 2147483648
        %v5641 = vmul.f32 %v5639, 1.442695
        %v5642 = vpow.pop %v5641
        %v5643 = vmul.f32 %v5640, 1.442695
        %v5644 = vpow.pop %v5643
        %v5645 = vadd.f32 %v5642, 1.0
        %v5646 = vadd.f32 %v5644, 1.0
        %v5647 = vrcp.pop %v5645
        %v5648 = vmul.f32 1.0, %v5647
        %v5649 = vrcp.pop %v5646
        %v5650 = vmul.f32 1.0, %v5649
        %v5651 = vmul.f32 %v5637, %v5648
        %v5652 = vmul.f32 %v5638, %v5650
        %v5653 = vadd.f32 %v5651, %v5652
        %v5654 = vrot.slane %v5653, 4
        %v5655 = vadd.f32 %v5653, %v5654
        %v5656 = vrot.slane %v5655, 2
        %v5657 = vadd.f32 %v5655, %v5656
        %v5658 = vrot.slane %v5657, 1
        %v5659 = vadd.f32 %v5657, %v5658
        %v5660 = vmul.f32 %v5659, 0.0625
        %s5661 = scalar_lea.vmem [#allocation6], 512
        %v5662 = vld [vmem:[%s5661] sm:$0xff]
        %v5663 = vld [vmem:[%s5661 + $0x8] sm:$0xff]
        %v5664 = vld [vmem:[%s5661 + $0x10] sm:$0xff]
        %v5665 = vld [vmem:[%s5661 + $0x18] sm:$0xff]
        %v5666 = vld [vmem:[%s5661 + $0x20] sm:$0xff]
        %v5667 = vld [vmem:[%s5661 + $0x28] sm:$0xff]
        %v5668 = vld [vmem:[%s5661 + $0x30] sm:$0xff]
        %v5669 = vld [vmem:[%s5661 + $0x38] sm:$0xff]
        %v5670 = vld [vmem:[%s5661 + $0x40] sm:$0xff]
        %v5671 = vld [vmem:[%s5661 + $0x48] sm:$0xff]
        %v5672 = vld [vmem:[%s5661 + $0x50] sm:$0xff]
        %v5673 = vld [vmem:[%s5661 + $0x58] sm:$0xff]
        %v5674 = vld [vmem:[%s5661 + $0x60] sm:$0xff]
        %v5675 = vld [vmem:[%s5661 + $0x68] sm:$0xff]
        %v5676 = vld [vmem:[%s5661 + $0x70] sm:$0xff]
        %v5677 = vld [vmem:[%s5661 + $0x78] sm:$0xff]
        %v5678 = vld [vmem:[%s7 + $0xc] sm:$0x1]
        %5679 = vmatprep.subr.mxu0 0.0
        %5680 = vmatpush1.msra.mxu0 %v5662
        %5681 = vmatprep.subr.mxu0 0.0
        %5682 = vmatpush1.msra.mxu0 %v5663
        %5683 = vmatprep.subr.mxu0 0.0
        %5684 = vmatpush1.msra.mxu0 %v5664
        %5685 = vmatprep.subr.mxu0 0.0
        %5686 = vmatpush1.msra.mxu0 %v5665
        %5687 = vmatprep.subr.mxu0 0.0
        %5688 = vmatpush1.msra.mxu0 %v5666
        %5689 = vmatprep.subr.mxu0 0.0
        %5690 = vmatpush1.msra.mxu0 %v5667
        %5691 = vmatprep.subr.mxu0 0.0
        %5692 = vmatpush1.msra.mxu0 %v5668
        %5693 = vmatprep.subr.mxu0 0.0
        %5694 = vmatpush1.msra.mxu0 %v5669
        %5695 = vmatprep.subr.mxu0 0.0
        %5696 = vmatpush1.msra.mxu0 %v5670
        %5697 = vmatprep.subr.mxu0 0.0
        %5698 = vmatpush1.msra.mxu0 %v5671
        %5699 = vmatprep.subr.mxu0 0.0
        %5700 = vmatpush1.msra.mxu0 %v5672
        %5701 = vmatprep.subr.mxu0 0.0
        %5702 = vmatpush1.msra.mxu0 %v5673
        %5703 = vmatprep.subr.mxu0 0.0
        %5704 = vmatpush1.msra.mxu0 %v5674
        %5705 = vmatprep.subr.mxu0 0.0
        %5706 = vmatpush1.msra.mxu0 %v5675
        %5707 = vmatprep.subr.mxu0 0.0
        %5708 = vmatpush1.msra.mxu0 %v5676
        %5709 = vmatprep.subr.mxu0 0.0
        %5710 = vmatpush1.msra.mxu0 %v5677
        %5711 = vmatprep.subr.mxu0 0.0
        %5712 = vmatpush1.msra.mxu0 0.0
        %5713 = vmatprep.subr.mxu0 0.0
        %5714 = vmatpush1.msra.mxu0 0.0
        %5715 = vmatprep.subr.mxu0 0.0
        %5716 = vmatpush1.msra.mxu0 0.0
        %5717 = vmatprep.subr.mxu0 0.0
        %5718 = vmatpush1.msra.mxu0 0.0
        %5719 = vmatprep.subr.mxu0 0.0
        %5720 = vmatpush1.msra.mxu0 0.0
        %5721 = vmatprep.subr.mxu0 0.0
        %5722 = vmatpush1.msra.mxu0 0.0
        %5723 = vmatprep.subr.mxu0 0.0
        %5724 = vmatpush1.msra.mxu0 0.0
        %5725 = vmatprep.subr.mxu0 0.0
        %5726 = vmatpush1.msra.mxu0 0.0
        %5727 = vmatprep.subr.mxu0 0.0
        %5728 = vmatpush1.msra.mxu0 0.0
        %5729 = vmatprep.subr.mxu0 0.0
        %5730 = vmatpush1.msra.mxu0 0.0
        %5731 = vmatprep.subr.mxu0 0.0
        %5732 = vmatpush1.msra.mxu0 0.0
        %5733 = vmatprep.subr.mxu0 0.0
        %5734 = vmatpush1.msra.mxu0 0.0
        %5735 = vmatprep.subr.mxu0 0.0
        %5736 = vmatpush1.msra.mxu0 0.0
        %5737 = vmatprep.subr.mxu0 0.0
        %5738 = vmatpush1.msra.mxu0 0.0
        %5739 = vmatprep.subr.mxu0 0.0
        %5740 = vmatpush1.msra.mxu0 0.0
        %5741 = vmatprep.subr.mxu0 0.0
        %5742 = vmatpush1.msra.mxu0 0.0
        %5743 = vmatprep.mubr.f32.mxu0 0.0
        %5744 = vmatmul.mubr.f32.gmra.mrb[0].mxu0 %v5660
        %v5745 = vpop.f32.mrb[0].mxu0
        %v5746 = vadd.f32 %v5678, %v5745
        %v5747 = vpop.f32.mrb[0].mxu0
        %5748 = vdwg.mxu0
        %v5749 = vxor.u32 %v5746, 2147483648
        %v5750 = vmul.f32 %v5749, 1.442695
        %v5751 = vpow.pop %v5750
        %v5752 = vadd.f32 %v5751, 1.0
        %v5753 = vrcp.pop %v5752
        %v5754 = vmul.f32 1.0, %v5753
        %v5755 = vmul.f32 %v5746, %v5754
        %s5756 = scalar_lea.vmem [#allocation6], 640
        %v5757 = vld [vmem:[%s5756] sm:$0xff]
        %v5758 = vld [vmem:[%s5756 + $0x8] sm:$0xff]
        %v5759 = vld [vmem:[%s5756 + $0x10] sm:$0xff]
        %v5760 = vld [vmem:[%s5756 + $0x18] sm:$0xff]
        %v5761 = vld [vmem:[%s5756 + $0x20] sm:$0xff]
        %v5762 = vld [vmem:[%s5756 + $0x28] sm:$0xff]
        %v5763 = vld [vmem:[%s5756 + $0x30] sm:$0xff]
        %v5764 = vld [vmem:[%s5756 + $0x38] sm:$0xff]
        %v5765 = vld [vmem:[%s5756 + $0x40] sm:$0xff]
        %v5766 = vld [vmem:[%s5756 + $0x48] sm:$0xff]
        %v5767 = vld [vmem:[%s5756 + $0x50] sm:$0xff]
        %v5768 = vld [vmem:[%s5756 + $0x58] sm:$0xff]
        %v5769 = vld [vmem:[%s5756 + $0x60] sm:$0xff]
        %v5770 = vld [vmem:[%s5756 + $0x68] sm:$0xff]
        %v5771 = vld [vmem:[%s5756 + $0x70] sm:$0xff]
        %v5772 = vld [vmem:[%s5756 + $0x78] sm:$0xff]
        %v5773 = vld [vmem:[%s7 + $0xd] sm:$0x1]
        %5774 = vmatprep.subr.mxu0 0.0
        %5775 = vmatpush1.msra.mxu0 %v5757
        %5776 = vmatprep.subr.mxu0 0.0
        %5777 = vmatpush1.msra.mxu0 %v5758
        %5778 = vmatprep.subr.mxu0 0.0
        %5779 = vmatpush1.msra.mxu0 %v5759
        %5780 = vmatprep.subr.mxu0 0.0
        %5781 = vmatpush1.msra.mxu0 %v5760
        %5782 = vmatprep.subr.mxu0 0.0
        %5783 = vmatpush1.msra.mxu0 %v5761
        %5784 = vmatprep.subr.mxu0 0.0
        %5785 = vmatpush1.msra.mxu0 %v5762
        %5786 = vmatprep.subr.mxu0 0.0
        %5787 = vmatpush1.msra.mxu0 %v5763
        %5788 = vmatprep.subr.mxu0 0.0
        %5789 = vmatpush1.msra.mxu0 %v5764
        %5790 = vmatprep.subr.mxu0 0.0
        %5791 = vmatpush1.msra.mxu0 %v5765
        %5792 = vmatprep.subr.mxu0 0.0
        %5793 = vmatpush1.msra.mxu0 %v5766
        %5794 = vmatprep.subr.mxu0 0.0
        %5795 = vmatpush1.msra.mxu0 %v5767
        %5796 = vmatprep.subr.mxu0 0.0
        %5797 = vmatpush1.msra.mxu0 %v5768
        %5798 = vmatprep.subr.mxu0 0.0
        %5799 = vmatpush1.msra.mxu0 %v5769
        %5800 = vmatprep.subr.mxu0 0.0
        %5801 = vmatpush1.msra.mxu0 %v5770
        %5802 = vmatprep.subr.mxu0 0.0
        %5803 = vmatpush1.msra.mxu0 %v5771
        %5804 = vmatprep.subr.mxu0 0.0
        %5805 = vmatpush1.msra.mxu0 %v5772
        %5806 = vmatprep.subr.mxu0 0.0
        %5807 = vmatpush1.msra.mxu0 0.0
        %5808 = vmatprep.subr.mxu0 0.0
        %5809 = vmatpush1.msra.mxu0 0.0
        %5810 = vmatprep.subr.mxu0 0.0
        %5811 = vmatpush1.msra.mxu0 0.0
        %5812 = vmatprep.subr.mxu0 0.0
        %5813 = vmatpush1.msra.mxu0 0.0
        %5814 = vmatprep.subr.mxu0 0.0
        %5815 = vmatpush1.msra.mxu0 0.0
        %5816 = vmatprep.subr.mxu0 0.0
        %5817 = vmatpush1.msra.mxu0 0.0
        %5818 = vmatprep.subr.mxu0 0.0
        %5819 = vmatpush1.msra.mxu0 0.0
        %5820 = vmatprep.subr.mxu0 0.0
        %5821 = vmatpush1.msra.mxu0 0.0
        %5822 = vmatprep.subr.mxu0 0.0
        %5823 = vmatpush1.msra.mxu0 0.0
        %5824 = vmatprep.subr.mxu0 0.0
        %5825 = vmatpush1.msra.mxu0 0.0
        %5826 = vmatprep.subr.mxu0 0.0
        %5827 = vmatpush1.msra.mxu0 0.0
        %5828 = vmatprep.subr.mxu0 0.0
        %5829 = vmatpush1.msra.mxu0 0.0
        %5830 = vmatprep.subr.mxu0 0.0
        %5831 = vmatpush1.msra.mxu0 0.0
        %5832 = vmatprep.subr.mxu0 0.0
        %5833 = vmatpush1.msra.mxu0 0.0
        %5834 = vmatprep.subr.mxu0 0.0
        %5835 = vmatpush1.msra.mxu0 0.0
        %5836 = vmatprep.subr.mxu0 0.0
        %5837 = vmatpush1.msra.mxu0 0.0
        %5838 = vmatprep.mubr.f32.mxu0 0.0
        %5839 = vmatmul.mubr.f32.gmra.mrb[0].mxu0 %v5755
        %v5840 = vpop.f32.mrb[0].mxu0
        %v5841 = vadd.f32 %v5773, %v5840
        %v5842 = vpop.f32.mrb[0].mxu0
        %5843 = vdwg.mxu0
        %v5844 = vxor.u32 %v5841, 2147483648
        %v5845 = vmul.f32 %v5844, 1.442695
        %v5846 = vpow.pop %v5845
        %v5847 = vadd.f32 %v5846, 1.0
        %v5848 = vrcp.pop %v5847
        %v5849 = vmul.f32 1.0, %v5848
        %v5850 = vlaneseq
        %v5851 = vshrl.u32 %v5850, 7
        %v5852 = vsub.s32 0, %v5851
        %v5853 = vrot.slane %v5849, %v5852
        %v5854 = vmul.f32 %v5651, %v5853
        %v5855 = vmul.f32 %v5652, %v5853
        %s5856 = scalar_lea.vmem [#allocation6], 768
        %v5857 = vld [vmem:[%s5856] sm:$0xff]
        %v5858 = vld [vmem:[%s5856 + $0x8] sm:$0xff]
        %v5859 = vld [vmem:[%s5856 + $0x10] sm:$0xff]
        %v5860 = vld [vmem:[%s5856 + $0x18] sm:$0xff]
        %v5861 = vld [vmem:[%s5856 + $0x20] sm:$0xff]
        %v5862 = vld [vmem:[%s5856 + $0x28] sm:$0xff]
        %v5863 = vld [vmem:[%s5856 + $0x30] sm:$0xff]
        %v5864 = vld [vmem:[%s5856 + $0x38] sm:$0xff]
        %v5865 = vld [vmem:[%s5856 + $0x40] sm:$0xff]
        %v5866 = vld [vmem:[%s5856 + $0x48] sm:$0xff]
        %v5867 = vld [vmem:[%s5856 + $0x50] sm:$0xff]
        %v5868 = vld [vmem:[%s5856 + $0x58] sm:$0xff]
        %v5869 = vld [vmem:[%s5856 + $0x60] sm:$0xff]
        %v5870 = vld [vmem:[%s5856 + $0x68] sm:$0xff]
        %v5871 = vld [vmem:[%s5856 + $0x70] sm:$0xff]
        %v5872 = vld [vmem:[%s5856 + $0x78] sm:$0xff]
        %5873 = vmatprep.subr.mxu0 0.0
        %5874 = vmatpush1.msra.mxu0 %v5857
        %5875 = vmatprep.subr.mxu0 0.0
        %5876 = vmatpush1.msra.mxu0 %v5858
        %5877 = vmatprep.subr.mxu0 0.0
        %5878 = vmatpush1.msra.mxu0 %v5859
        %5879 = vmatprep.subr.mxu0 0.0
        %5880 = vmatpush1.msra.mxu0 %v5860
        %5881 = vmatprep.subr.mxu0 0.0
        %5882 = vmatpush1.msra.mxu0 %v5861
        %5883 = vmatprep.subr.mxu0 0.0
        %5884 = vmatpush1.msra.mxu0 %v5862
        %5885 = vmatprep.subr.mxu0 0.0
        %5886 = vmatpush1.msra.mxu0 %v5863
        %5887 = vmatprep.subr.mxu0 0.0
        %5888 = vmatpush1.msra.mxu0 %v5864
        %5889 = vmatprep.subr.mxu0 0.0
        %5890 = vmatpush1.msra.mxu0 %v5865
        %5891 = vmatprep.subr.mxu0 0.0
        %5892 = vmatpush1.msra.mxu0 %v5866
        %5893 = vmatprep.subr.mxu0 0.0
        %5894 = vmatpush1.msra.mxu0 %v5867
        %5895 = vmatprep.subr.mxu0 0.0
        %5896 = vmatpush1.msra.mxu0 %v5868
        %5897 = vmatprep.subr.mxu0 0.0
        %5898 = vmatpush1.msra.mxu0 %v5869
        %5899 = vmatprep.subr.mxu0 0.0
        %5900 = vmatpush1.msra.mxu0 %v5870
        %5901 = vmatprep.subr.mxu0 0.0
        %5902 = vmatpush1.msra.mxu0 %v5871
        %5903 = vmatprep.subr.mxu0 0.0
        %5904 = vmatpush1.msra.mxu0 %v5872
        %5905 = vmatprep.subr.mxu0 0.0
        %5906 = vmatpush1.msra.mxu0 0.0
        %5907 = vmatprep.subr.mxu0 0.0
        %5908 = vmatpush1.msra.mxu0 0.0
        %5909 = vmatprep.subr.mxu0 0.0
        %5910 = vmatpush1.msra.mxu0 0.0
        %5911 = vmatprep.subr.mxu0 0.0
        %5912 = vmatpush1.msra.mxu0 0.0
        %5913 = vmatprep.subr.mxu0 0.0
        %5914 = vmatpush1.msra.mxu0 0.0
        %5915 = vmatprep.subr.mxu0 0.0
        %5916 = vmatpush1.msra.mxu0 0.0
        %5917 = vmatprep.subr.mxu0 0.0
        %5918 = vmatpush1.msra.mxu0 0.0
        %5919 = vmatprep.subr.mxu0 0.0
        %5920 = vmatpush1.msra.mxu0 0.0
        %5921 = vmatprep.subr.mxu0 0.0
        %5922 = vmatpush1.msra.mxu0 0.0
        %5923 = vmatprep.subr.mxu0 0.0
        %5924 = vmatpush1.msra.mxu0 0.0
        %5925 = vmatprep.subr.mxu0 0.0
        %5926 = vmatpush1.msra.mxu0 0.0
        %5927 = vmatprep.subr.mxu0 0.0
        %5928 = vmatpush1.msra.mxu0 0.0
        %5929 = vmatprep.subr.mxu0 0.0
        %5930 = vmatpush1.msra.mxu0 0.0
        %5931 = vmatprep.subr.mxu0 0.0
        %5932 = vmatpush1.msra.mxu0 0.0
        %5933 = vmatprep.subr.mxu0 0.0
        %5934 = vmatpush1.msra.mxu0 0.0
        %5935 = vmatprep.subr.mxu0 0.0
        %5936 = vmatpush1.msra.mxu0 0.0
        %5937 = vmatprep.mubr.f32.mxu0 0.0
        %5938 = vmatmul.mubr.f32.gmra.mrb[0].mxu0 %v5854
        %v5939 = vpop.f32.mrb[0].mxu0
        %v5940 = vadd.f32 0.0, %v5939
        %v5941 = vpop.f32.mrb[0].mxu0
        %5942 = vmatprep.mubr.f32.mxu0 0.0
        %5943 = vmatmul.mubr.f32.gmra.mrb[0].mxu0 %v5855
        %v5944 = vpop.f32.mrb[0].mxu0
        %v5945 = vadd.f32 0.0, %v5944
        %v5946 = vpop.f32.mrb[0].mxu0
        %5947 = vdwg.mxu0
        %v5948 = vld [vmem:[%s7 + $0xe] sm:$0x1]
        %v5949 = vlaneseq
        %v5950 = vshrl.u32 %v5949, 7
        %v5951 = vsub.s32 0, %v5950
        %v5952 = vrot.slane %v5948, %v5951
        %v5953 = vmul.f32 %v5940, %v5952
        %v5954 = vmul.f32 %v5945, %v5952
        %v5955 = vld [vmem:[%s7 + $0xf] sm:$0x1]
        %v5956 = vlaneseq
        %v5957 = vshrl.u32 %v5956, 7
        %v5958 = vsub.s32 0, %v5957
        %v5959 = vrot.slane %v5955, %v5958
        %v5960 = vadd.f32 %v5953, %v5959
        %v5961 = vadd.f32 %v5954, %v5959
        %s5962 = scalar_lea.vmem [#allocation6], 896
        %v5963 = vld [vmem:[%s5962] sm:$0xff]
        %v5964 = vld [vmem:[%s5962 + $0x8] sm:$0xff]
        %v5965 = vld [vmem:[%s5962 + $0x10] sm:$0xff]
        %v5966 = vld [vmem:[%s5962 + $0x18] sm:$0xff]
        %v5967 = vld [vmem:[%s5962 + $0x20] sm:$0xff]
        %v5968 = vld [vmem:[%s5962 + $0x28] sm:$0xff]
        %v5969 = vld [vmem:[%s5962 + $0x30] sm:$0xff]
        %v5970 = vld [vmem:[%s5962 + $0x38] sm:$0xff]
        %v5971 = vld [vmem:[%s5962 + $0x40] sm:$0xff]
        %v5972 = vld [vmem:[%s5962 + $0x48] sm:$0xff]
        %v5973 = vld [vmem:[%s5962 + $0x50] sm:$0xff]
        %v5974 = vld [vmem:[%s5962 + $0x58] sm:$0xff]
        %v5975 = vld [vmem:[%s5962 + $0x60] sm:$0xff]
        %v5976 = vld [vmem:[%s5962 + $0x68] sm:$0xff]
        %v5977 = vld [vmem:[%s5962 + $0x70] sm:$0xff]
        %v5978 = vld [vmem:[%s5962 + $0x78] sm:$0xff]
        %5979 = vmatprep.subr.mxu0 0.0
        %5980 = vmatpush1.msra.mxu0 %v5963
        %5981 = vmatprep.subr.mxu0 0.0
        %5982 = vmatpush1.msra.mxu0 %v5964
        %5983 = vmatprep.subr.mxu0 0.0
        %5984 = vmatpush1.msra.mxu0 %v5965
        %5985 = vmatprep.subr.mxu0 0.0
        %5986 = vmatpush1.msra.mxu0 %v5966
        %5987 = vmatprep.subr.mxu0 0.0
        %5988 = vmatpush1.msra.mxu0 %v5967
        %5989 = vmatprep.subr.mxu0 0.0
        %5990 = vmatpush1.msra.mxu0 %v5968
        %5991 = vmatprep.subr.mxu0 0.0
        %5992 = vmatpush1.msra.mxu0 %v5969
        %5993 = vmatprep.subr.mxu0 0.0
        %5994 = vmatpush1.msra.mxu0 %v5970
        %5995 = vmatprep.subr.mxu0 0.0
        %5996 = vmatpush1.msra.mxu0 %v5971
        %5997 = vmatprep.subr.mxu0 0.0
        %5998 = vmatpush1.msra.mxu0 %v5972
        %5999 = vmatprep.subr.mxu0 0.0
        %6000 = vmatpush1.msra.mxu0 %v5973
        %6001 = vmatprep.subr.mxu0 0.0
        %6002 = vmatpush1.msra.mxu0 %v5974
        %6003 = vmatprep.subr.mxu0 0.0
        %6004 = vmatpush1.msra.mxu0 %v5975
        %6005 = vmatprep.subr.mxu0 0.0
        %6006 = vmatpush1.msra.mxu0 %v5976
        %6007 = vmatprep.subr.mxu0 0.0
        %6008 = vmatpush1.msra.mxu0 %v5977
        %6009 = vmatprep.subr.mxu0 0.0
        %6010 = vmatpush1.msra.mxu0 %v5978
        %6011 = vmatprep.subr.mxu0 0.0
        %6012 = vmatpush1.msra.mxu0 0.0
        %6013 = vmatprep.subr.mxu0 0.0
        %6014 = vmatpush1.msra.mxu0 0.0
        %6015 = vmatprep.subr.mxu0 0.0
        %6016 = vmatpush1.msra.mxu0 0.0
        %6017 = vmatprep.subr.mxu0 0.0
        %6018 = vmatpush1.msra.mxu0 0.0
        %6019 = vmatprep.subr.mxu0 0.0
        %6020 = vmatpush1.msra.mxu0 0.0
        %6021 = vmatprep.subr.mxu0 0.0
        %6022 = vmatpush1.msra.mxu0 0.0
        %6023 = vmatprep.subr.mxu0 0.0
        %6024 = vmatpush1.msra.mxu0 0.0
        %6025 = vmatprep.subr.mxu0 0.0
        %6026 = vmatpush1.msra.mxu0 0.0
        %6027 = vmatprep.subr.mxu0 0.0
        %6028 = vmatpush1.msra.mxu0 0.0
        %6029 = vmatprep.subr.mxu0 0.0
        %6030 = vmatpush1.msra.mxu0 0.0
        %6031 = vmatprep.subr.mxu0 0.0
        %6032 = vmatpush1.msra.mxu0 0.0
        %6033 = vmatprep.subr.mxu0 0.0
        %6034 = vmatpush1.msra.mxu0 0.0
        %6035 = vmatprep.subr.mxu0 0.0
        %6036 = vmatpush1.msra.mxu0 0.0
        %6037 = vmatprep.subr.mxu0 0.0
        %6038 = vmatpush1.msra.mxu0 0.0
        %6039 = vmatprep.subr.mxu0 0.0
        %6040 = vmatpush1.msra.mxu0 0.0
        %6041 = vmatprep.subr.mxu0 0.0
        %6042 = vmatpush1.msra.mxu0 0.0
        %6043 = vmatprep.mubr.f32.mxu0 0.0
        %6044 = vmatmul.mubr.f32.gmra.mrb[0].mxu0 %v5960
        %v6045 = vpop.f32.mrb[0].mxu0
        %v6046 = vadd.f32 0.0, %v6045
        %v6047 = vpop.f32.mrb[0].mxu0
        %6048 = vmatprep.mubr.f32.mxu0 0.0
        %6049 = vmatmul.mubr.f32.gmra.mrb[0].mxu0 %v5961
        %v6050 = vpop.f32.mrb[0].mxu0
        %v6051 = vadd.f32 0.0, %v6050
        %v6052 = vpop.f32.mrb[0].mxu0
        %6053 = vdwg.mxu0
        %v6054 = vld [vmem:[%s7 + $0x10] sm:$0x1]
        %v6055 = vlaneseq
        %v6056 = vshrl.u32 %v6055, 7
        %v6057 = vsub.s32 0, %v6056
        %v6058 = vrot.slane %v6054, %v6057
        %v6059 = vmul.f32 %v6046, %v6058
        %v6060 = vmul.f32 %v6051, %v6058
        %v6061 = vld [vmem:[%s7 + $0x11] sm:$0x1]
        %v6062 = vlaneseq
        %v6063 = vshrl.u32 %v6062, 7
        %v6064 = vsub.s32 0, %v6063
        %v6065 = vrot.slane %v6061, %v6064
        %v6066 = vadd.f32 %v6059, %v6065
        %v6067 = vadd.f32 %v6060, %v6065
        %v6068 = vxor.u32 %v6066, 2147483648
        %v6069 = vxor.u32 %v6067, 2147483648
        %v6070 = vmul.f32 %v6068, 1.442695
        %v6071 = vpow.pop %v6070
        %v6072 = vmul.f32 %v6069, 1.442695
        %v6073 = vpow.pop %v6072
        %v6074 = vadd.f32 %v6071, 1.0
        %v6075 = vadd.f32 %v6073, 1.0
        %v6076 = vrcp.pop %v6074
        %v6077 = vmul.f32 1.0, %v6076
        %v6078 = vrcp.pop %v6075
        %v6079 = vmul.f32 1.0, %v6078
        %v6080 = vmul.f32 %v6066, %v6077
        %v6081 = vmul.f32 %v6067, %v6079
        %v6082 = vadd.f32 %v6080, %v6081
        %v6083 = vrot.slane %v6082, 4
        %v6084 = vadd.f32 %v6082, %v6083
        %v6085 = vrot.slane %v6084, 2
        %v6086 = vadd.f32 %v6084, %v6085
        %v6087 = vrot.slane %v6086, 1
        %v6088 = vadd.f32 %v6086, %v6087
        %v6089 = vmul.f32 %v6088, 0.0625
        %s6090 = scalar_lea.vmem [#allocation6], 1024
        %v6091 = vld [vmem:[%s6090] sm:$0xff]
        %v6092 = vld [vmem:[%s6090 + $0x8] sm:$0xff]
        %v6093 = vld [vmem:[%s6090 + $0x10] sm:$0xff]
        %v6094 = vld [vmem:[%s6090 + $0x18] sm:$0xff]
        %v6095 = vld [vmem:[%s6090 + $0x20] sm:$0xff]
        %v6096 = vld [vmem:[%s6090 + $0x28] sm:$0xff]
        %v6097 = vld [vmem:[%s6090 + $0x30] sm:$0xff]
        %v6098 = vld [vmem:[%s6090 + $0x38] sm:$0xff]
        %v6099 = vld [vmem:[%s6090 + $0x40] sm:$0xff]
        %v6100 = vld [vmem:[%s6090 + $0x48] sm:$0xff]
        %v6101 = vld [vmem:[%s6090 + $0x50] sm:$0xff]
        %v6102 = vld [vmem:[%s6090 + $0x58] sm:$0xff]
        %v6103 = vld [vmem:[%s6090 + $0x60] sm:$0xff]
        %v6104 = vld [vmem:[%s6090 + $0x68] sm:$0xff]
        %v6105 = vld [vmem:[%s6090 + $0x70] sm:$0xff]
        %v6106 = vld [vmem:[%s6090 + $0x78] sm:$0xff]
        %v6107 = vld [vmem:[%s7 + $0x12] sm:$0x1]
        %6108 = vmatprep.subr.mxu0 0.0
        %6109 = vmatpush1.msra.mxu0 %v6091
        %6110 = vmatprep.subr.mxu0 0.0
        %6111 = vmatpush1.msra.mxu0 %v6092
        %6112 = vmatprep.subr.mxu0 0.0
        %6113 = vmatpush1.msra.mxu0 %v6093
        %6114 = vmatprep.subr.mxu0 0.0
        %6115 = vmatpush1.msra.mxu0 %v6094
        %6116 = vmatprep.subr.mxu0 0.0
        %6117 = vmatpush1.msra.mxu0 %v6095
        %6118 = vmatprep.subr.mxu0 0.0
        %6119 = vmatpush1.msra.mxu0 %v6096
        %6120 = vmatprep.subr.mxu0 0.0
        %6121 = vmatpush1.msra.mxu0 %v6097
        %6122 = vmatprep.subr.mxu0 0.0
        %6123 = vmatpush1.msra.mxu0 %v6098
        %6124 = vmatprep.subr.mxu0 0.0
        %6125 = vmatpush1.msra.mxu0 %v6099
        %6126 = vmatprep.subr.mxu0 0.0
        %6127 = vmatpush1.msra.mxu0 %v6100
        %6128 = vmatprep.subr.mxu0 0.0
        %6129 = vmatpush1.msra.mxu0 %v6101
        %6130 = vmatprep.subr.mxu0 0.0
        %6131 = vmatpush1.msra.mxu0 %v6102
        %6132 = vmatprep.subr.mxu0 0.0
        %6133 = vmatpush1.msra.mxu0 %v6103
        %6134 = vmatprep.subr.mxu0 0.0
        %6135 = vmatpush1.msra.mxu0 %v6104
        %6136 = vmatprep.subr.mxu0 0.0
        %6137 = vmatpush1.msra.mxu0 %v6105
        %6138 = vmatprep.subr.mxu0 0.0
        %6139 = vmatpush1.msra.mxu0 %v6106
        %6140 = vmatprep.subr.mxu0 0.0
        %6141 = vmatpush1.msra.mxu0 0.0
        %6142 = vmatprep.subr.mxu0 0.0
        %6143 = vmatpush1.msra.mxu0 0.0
        %6144 = vmatprep.subr.mxu0 0.0
        %6145 = vmatpush1.msra.mxu0 0.0
        %6146 = vmatprep.subr.mxu0 0.0
        %6147 = vmatpush1.msra.mxu0 0.0
        %6148 = vmatprep.subr.mxu0 0.0
        %6149 = vmatpush1.msra.mxu0 0.0
        %6150 = vmatprep.subr.mxu0 0.0
        %6151 = vmatpush1.msra.mxu0 0.0
        %6152 = vmatprep.subr.mxu0 0.0
        %6153 = vmatpush1.msra.mxu0 0.0
        %6154 = vmatprep.subr.mxu0 0.0
        %6155 = vmatpush1.msra.mxu0 0.0
        %6156 = vmatprep.subr.mxu0 0.0
        %6157 = vmatpush1.msra.mxu0 0.0
        %6158 = vmatprep.subr.mxu0 0.0
        %6159 = vmatpush1.msra.mxu0 0.0
        %6160 = vmatprep.subr.mxu0 0.0
        %6161 = vmatpush1.msra.mxu0 0.0
        %6162 = vmatprep.subr.mxu0 0.0
        %6163 = vmatpush1.msra.mxu0 0.0
        %6164 = vmatprep.subr.mxu0 0.0
        %6165 = vmatpush1.msra.mxu0 0.0
        %6166 = vmatprep.subr.mxu0 0.0
        %6167 = vmatpush1.msra.mxu0 0.0
        %6168 = vmatprep.subr.mxu0 0.0
        %6169 = vmatpush1.msra.mxu0 0.0
        %6170 = vmatprep.subr.mxu0 0.0
        %6171 = vmatpush1.msra.mxu0 0.0
        %6172 = vmatprep.mubr.f32.mxu0 0.0
        %6173 = vmatmul.mubr.f32.gmra.mrb[0].mxu0 %v6089
        %v6174 = vpop.f32.mrb[0].mxu0
        %v6175 = vadd.f32 %v6107, %v6174
        %v6176 = vpop.f32.mrb[0].mxu0
        %6177 = vdwg.mxu0
        %v6178 = vlaneseq
        %v6179 = vshrl.u32 %v6178, 7
        %v6180 = vsub.s32 0, %v6179
        %v6181 = vrot.slane %v6175, %v6180
        %6182 = vst [vmem:[%s347] sm:$0xff] %v6181
        %p6183 = scmp.lt.s32.totalorder %s21, 1
        %s6184 = scalar_select %p6183, %s21, 1
        %s6185 = smul.addr %s6184, 8
        %s6186 = scalar_lea.vmem %s8, %s6185
        // Predicated region
        $region65: #{efficientnet_forward.1} parent=51 // pred_check
          %p6187 = pneg %p212
        $region66: #{efficientnet_forward.1} parent=51 // pred_check_branch
          %6189 = sbr.rel (%p6187) target = $region68
        $region67: #{efficientnet_forward.1} parent=51 // pred_region
          _
        $region68: #{efficientnet_forward.1} parent=51 // pred_fallthru
          _
      $region52: #{efficientnet_forward.1} parent=5 // pred_fallthru
        _
      %p6190 = scmp.le.s32.totalorder 2, %s16
      // Predicated region
      $region69: #{efficientnet_forward.1} parent=5 // pred_check
        %p6191 = pneg %p6190
      $region70: #{efficientnet_forward.1} parent=5 // pred_check_branch
        %6193 = sbr.rel (%p6191) target = $region72
      $region71: #{efficientnet_forward.1} parent=5 // pred_region
        %s6194 = ssub.s32 %s16, 2
        // Predicated region
        $region73: #{efficientnet_forward.1} parent=71 // pred_check
          %p6195 = pneg %p218
        $region74: #{efficientnet_forward.1} parent=71 // pred_check_branch
          %6197 = sbr.rel (%p6195) target = $region76
        $region75: #{efficientnet_forward.1} parent=71 // pred_region
          %p6198 = scmp.lt.s32.totalorder %s22, 1
          %s6199 = scalar_select %p6198, %s22, 1
          %s6200 = smul.addr %s6199, 8
          %s6201 = scalar_lea.vmem %s8, %s6200
        $region76: #{efficientnet_forward.1} parent=71 // pred_fallthru
          _
      $region72: #{efficientnet_forward.1} parent=5 // pred_fallthru
        _
    $region6: #{efficientnet_forward.1} parent=1 // loop_footer
      %s20 = sadd.s32 1, %s16
    $region7: #{efficientnet_forward.1} parent=1 // loop_footer_branch
      %15 = sbr.rel target = $region3
    $region8: #{efficientnet_forward.1} parent=1 // loop_exit
      _
    %6202 = vsyncpa [#allocation3], 1
    %s6203 = scalar_lea.sflag [#allocation3], 1
    %6204 = vsyncpa %s6203, 1
    %6205 = vsyncpa [#allocation5], 1

</llo_original>
